<compile_context>
chip_gen: v5e
topology: v5e:2x2
jax: 0.10.0
libtpu: 0.0.40
codegen_flags: <defaults>
</compile_context>

<pallas_src>
import jax
import jax.numpy as jnp
from jax.experimental import pallas as pl
from jax.experimental.pallas import tpu as pltpu


def _ru(x, m):
    return (x + m - 1) // m * m


def _pick_tile(dim, prefs, min_blocks=1):
    for t in prefs:
        if dim % t == 0 and dim // t >= min_blocks:
            return t
    for t in prefs:
        if dim % t == 0:
            return t
    return dim


def _detect_v5():
    try:
        return "v5" in jax.devices()[0].device_kind.lower()
    except Exception:
        return False


_IS_V5 = _detect_v5()


# ----------------------------------------------------------------------------
# Hoisted BN + LeakyReLU (lane-dense over padded channels)
# ----------------------------------------------------------------------------

def _bn_act_kernel(x_ref, p_ref, o_ref):
    y = x_ref[...].astype(jnp.float32) * p_ref[0:1, :] + p_ref[1:2, :]
    o_ref[...] = jnp.where(y >= 0, y, 0.1 * y).astype(o_ref.dtype)


def bn_act(x2d, params):
    """x2d: [M, Cp] bf16, params: [2, Cp] f32 (scale; shift).  Returns bf16 [M, Cp]."""
    M, Cp = x2d.shape
    Mp = _ru(M, 8)
    if Mp != M:
        x2d = jnp.pad(x2d, ((0, Mp - M), (0, 0)))
    tm = _pick_tile(Mp, (1024, 512, 256, 128, 64, 32, 16, 8), min_blocks=2)
    out = pl.pallas_call(
        _bn_act_kernel,
        out_shape=jax.ShapeDtypeStruct((Mp, Cp), jnp.bfloat16),
        grid=(Mp // tm,),
        in_specs=[pl.BlockSpec((tm, Cp), lambda i: (i, 0)),
                  pl.BlockSpec((2, Cp), lambda i: (0, 0))],
        out_specs=pl.BlockSpec((tm, Cp), lambda i: (i, 0)),
        compiler_params=pltpu.CompilerParams(dimension_semantics=("parallel",)),
    )(x2d, params)
    return out[:M] if Mp != M else out


# ----------------------------------------------------------------------------
# Tiled matmul (explicit-im2col conv1 with stride>1, and the 1x1 shortcut conv)
#   optional epilogue: leaky_relu(acc * scale + shift)  (folded BN2)
# ----------------------------------------------------------------------------

def _make_mm_kernel(has_bn):
    def kernel(*refs):
        if has_bn:
            a_ref, b_ref, post_ref, o_ref, acc_ref = refs
        else:
            a_ref, b_ref, o_ref, acc_ref = refs
        k = pl.program_id(2)

        @pl.when(k == 0)
        def _():
            acc_ref[...] = jnp.zeros_like(acc_ref)

        acc_ref[...] += jnp.dot(a_ref[...], b_ref[...],
                                preferred_element_type=jnp.float32)

        @pl.when(k == pl.num_programs(2) - 1)
        def _():
            y = acc_ref[...]
            if has_bn:
                y = y * post_ref[0:1, :] + post_ref[1:2, :]
                y = jnp.where(y >= 0, y, 0.1 * y)
            o_ref[...] = y.astype(o_ref.dtype)

    return kernel


def fused_matmul(a, b, *, post=None, out_dtype=jnp.bfloat16):
    """a: [M, K] bf16, b: [K, N] bf16, K and N multiples of 128."""
    M, K = a.shape
    _, N = b.shape
    Mp = _ru(M, 8)
    if Mp != M:
        a = jnp.pad(a, ((0, Mp - M), (0, 0)))

    tm = _pick_tile(Mp, (1024, 512, 256, 128, 64, 32, 16, 8), min_blocks=2)
    if _IS_V5:
        tk = _pick_tile(K, (128, 256))
        tn = N if N <= 256 else _pick_tile(N, (128, 256))
    else:
        tk = _pick_tile(K, (256, 128))
        tn = N if N <= 512 else _pick_tile(N, (256, 128))
    grid = (Mp // tm, N // tn, K // tk)

    has_bn = post is not None
    in_specs = [pl.BlockSpec((tm, tk), lambda i, j, k: (i, k)),
                pl.BlockSpec((tk, tn), lambda i, j, k: (k, j))]
    operands = [a, b]
    if has_bn:
        in_specs.append(pl.BlockSpec((2, tn), lambda i, j, k: (0, j)))
        operands.append(post)

    out = pl.pallas_call(
        _make_mm_kernel(has_bn),
        out_shape=jax.ShapeDtypeStruct((Mp, N), out_dtype),
        grid=grid,
        in_specs=in_specs,
        out_specs=pl.BlockSpec((tm, tn), lambda i, j, k: (i, j)),
        scratch_shapes=[pltpu.VMEM((tm, tn), jnp.float32)],
        compiler_params=pltpu.CompilerParams(
            dimension_semantics=("parallel", "parallel", "arbitrary")),
    )(*operands)
    return out[:M] if Mp != M else out


# ----------------------------------------------------------------------------
# Implicit-im2col 3x3 conv, stride 1 (the common case: conv2 always, conv1 when
# stride==1).  Works on a "wide" flattened layout with per-row pitch Wp = W + 2:
# the input is the spatially padded image flattened to (H+3)*Wp rows, and the
# output row for spatial (r, c) lives at flat index r*Wp + c (the last two
# columns of each row are garbage and discarded by the wrapper).
#   optional epilogue:  "bn"  -> leaky_relu(acc * scale + shift)   (folded BN2)
#                       "res" -> acc + residual (in the same wide layout)
# ----------------------------------------------------------------------------

def _make_conv3x3_kernel(Wp, Lout, epilogue):
    def kernel(*refs):
        if epilogue == "none":
            x_ref, w_ref, o_ref, acc_ref = refs
        else:
            x_ref, w_ref, e_ref, o_ref, acc_ref = refs

        acc_ref[...] = jnp.zeros_like(acc_ref)
        for dh in range(3):
            for dw in range(3):
                off = dh * Wp + dw
                a = x_ref[pl.ds(off, Lout), :]
                acc_ref[...] += jnp.dot(a, w_ref[3 * dh + dw],
                                        preferred_element_type=jnp.float32)

        y = acc_ref[...]
        if epilogue == "bn":
            y = y * e_ref[0:1, :] + e_ref[1:2, :]
            y = jnp.where(y >= 0, y, 0.1 * y)
        elif epilogue == "res":
            y = y + e_ref[...].astype(jnp.float32)
        o_ref[...] = y.astype(o_ref.dtype)

    return kernel


def _pick_conv_tn(coutp, lx, lout, cinp, has_res):
    cands = [coutp]
    for t in ((128,) if _IS_V5 else (256, 128)):
        if t < coutp and coutp % t == 0:
            cands.append(t)
    budget = 20 * 1024 * 1024
    for tn in cands:
        vmem = (2 * lx * cinp * 2 + 2 * 9 * cinp * tn * 2 + 2 * lout * tn * 2
                + (2 * lout * tn * 2 if has_res else 0) + lout * tn * 4)
        if vmem <= budget:
            return tn
    return cands[-1]


def conv3x3_s1(x, w9, *, post=None, residual_wide=None):
    """x: [N,H,W,Cinp] bf16.  w9: [9,Cinp,Coutp] bf16.
    post: [2,Coutp] f32 (BN2 epilogue).  residual_wide: [N, H*(W+2), Coutp] bf16.
    Returns wide output [N, H*(W+2), Coutp] bf16."""
    N, H, W, Cinp = x.shape
    Coutp = w9.shape[-1]
    Wp = W + 2
    Lx = (H + 3) * Wp
    Lout = H * Wp

    xflat = jnp.pad(x, ((0, 0), (1, 2), (1, 1), (0, 0))).reshape(N, Lx, Cinp)

    epi = "bn" if post is not None else ("res" if residual_wide is not None else "none")
    tn = _pick_conv_tn(Coutp, Lx, Lout, Cinp, epi == "res")
    nj = Coutp // tn

    in_specs = [pl.BlockSpec((None, Lx, Cinp), lambda n, j: (n, 0, 0)),
                pl.BlockSpec((9, Cinp, tn), lambda n, j: (0, 0, j))]
    operands = [xflat, w9]
    if epi == "bn":
        in_specs.append(pl.BlockSpec((2, tn), lambda n, j: (0, j)))
        operands.append(post)
    elif epi == "res":
        in_specs.append(pl.BlockSpec((None, Lout, tn), lambda n, j: (n, 0, j)))
        operands.append(residual_wide)

    return pl.pallas_call(
        _make_conv3x3_kernel(Wp, Lout, epi),
        out_shape=jax.ShapeDtypeStruct((N, Lout, Coutp), jnp.bfloat16),
        grid=(N, nj),
        in_specs=in_specs,
        out_specs=pl.BlockSpec((None, Lout, tn), lambda n, j: (n, 0, j)),
        scratch_shapes=[pltpu.VMEM((Lout, tn), jnp.float32)],
        compiler_params=pltpu.CompilerParams(
            dimension_semantics=("parallel", "parallel")),
    )(*operands)


def _wide_to_nhwc(wide, N, Ho, Wo, C):
    return wide.reshape(N, Ho, Wo + 2, C)[:, :, :Wo, :]


def _nhwc_to_wide(x):
    N, H, W, C = x.shape
    return jnp.pad(x, ((0, 0), (0, 0), (0, 2), (0, 0))).reshape(N, H * (W + 2), C)


# ----------------------------------------------------------------------------
# Explicit im2col (XLA glue) -- only used for the stride>1 conv1.
# Column order (kh, kw, cin) matches the weight layout.
# ----------------------------------------------------------------------------

def _im2col3x3(x, stride):
    N, H, W, C = x.shape
    Ho = (H + 2 - 3) // stride + 1
    Wo = (W + 2 - 3) // stride + 1
    xp = jnp.pad(x, ((0, 0), (1, 1), (1, 1), (0, 0)))
    cols = []
    for dh in range(3):
        for dw in range(3):
            cols.append(xp[:, dh:dh + stride * (Ho - 1) + 1:stride,
                           dw:dw + stride * (Wo - 1) + 1:stride, :])
    a = jnp.concatenate(cols, axis=-1).reshape(N * Ho * Wo, 9 * C)
    return a, Ho, Wo


# ----------------------------------------------------------------------------
# BasicBlock forward
# ----------------------------------------------------------------------------

def _fold_bn(gamma, beta, mean, var, eps=1e-5):
    scale = gamma / jnp.sqrt(var + eps)
    shift = beta - mean * scale
    return scale, shift


def basic_block_forward(x, p, stride, equal_in_out, activate_before_residual):
    """One WideResNet BasicBlock; x is NHWC bf16 with channels padded to 128*k."""
    N, H, W, Cinp = x.shape
    Coutp = p["w1"].shape[-1]

    if equal_in_out and stride != 1:
        raise ValueError("equal_in_out with stride != 1 is unsupported "
                         "(mirrors the PyTorch reference's shape mismatch).")

    pre1 = equal_in_out or activate_before_residual
    x_act = None
    if pre1:
        x_act = bn_act(x.reshape(N * H * W, Cinp), p["bn1"]).reshape(N, H, W, Cinp)
    conv1_in = x_act if pre1 else x

    # conv1: 3x3 (stride s) with fused BN2+LeakyReLU epilogue
    if stride == 1:
        Ho, Wo = H, W
        out1_wide = conv3x3_s1(conv1_in, p["w1"], post=p["bn2"])
        out1 = _wide_to_nhwc(out1_wide, N, Ho, Wo, Coutp)
    else:
        a1, Ho, Wo = _im2col3x3(conv1_in, stride)
        out1 = fused_matmul(a1, p["w1"].reshape(9 * Cinp, Coutp), post=p["bn2"])
        out1 = out1.reshape(N, Ho, Wo, Coutp)
    # drop_rate == 0.0 -> dropout is identity (inference semantics).

    # residual branch
    if equal_in_out:
        res = x
    else:
        src = x_act if activate_before_residual else x
        xs = src[:, ::stride, ::stride, :].reshape(N * Ho * Wo, Cinp)
        res = fused_matmul(xs, p["ws"]).reshape(N, Ho, Wo, Coutp)
    res_wide = _nhwc_to_wide(res)

    # conv2: 3x3 stride 1 with fused residual add
    out2_wide = conv3x3_s1(out1, p["w2"], residual_wide=res_wide)
    return _wide_to_nhwc(out2_wide, N, Ho, Wo, Coutp)


# ----------------------------------------------------------------------------
# Parameters: raw (PyTorch layout) init + one-time matmul-ready preparation
# ----------------------------------------------------------------------------

def init_basic_block_params(key, in_planes, out_planes):
    ks = jax.random.split(key, 8)
    p = {
        "bn1_gamma": 1.0 + 0.1 * jax.random.normal(ks[0], (in_planes,), jnp.float32),
        "bn1_beta": 0.1 * jax.random.normal(ks[1], (in_planes,), jnp.float32),
        "bn1_mean": 0.1 * jax.random.normal(ks[2], (in_planes,), jnp.float32),
        "bn1_var": 1.0 + 0.1 * jnp.abs(jax.random.normal(ks[3], (in_planes,), jnp.float32)),
        "conv1_w": jax.random.normal(ks[4], (out_planes, in_planes, 3, 3), jnp.float32)
                   * jnp.sqrt(2.0 / (9 * out_planes)),
        "bn2_gamma": 1.0 + 0.1 * jax.random.normal(ks[5], (out_planes,), jnp.float32),
        "bn2_beta": 0.1 * jax.random.normal(ks[6], (out_planes,), jnp.float32),
        "bn2_mean": jnp.zeros((out_planes,), jnp.float32),
        "bn2_var": jnp.ones((out_planes,), jnp.float32),
        "conv2_w": jax.random.normal(ks[7], (out_planes, out_planes, 3, 3), jnp.float32)
                   * jnp.sqrt(2.0 / (9 * out_planes)),
    }
    if in_planes != out_planes:
        p["short_w"] = jax.random.normal(
            jax.random.fold_in(key, 99), (out_planes, in_planes, 1, 1), jnp.float32
        ) * jnp.sqrt(2.0 / out_planes)
    return p


def _pad1d(v, n):
    return jnp.pad(v, (0, n - v.shape[0]))


def prepare_block_params(raw, in_planes, out_planes):
    """Fold BN, pad channels to multiples of 128, cast weights to bf16."""
    cin_p = _ru(in_planes, 128)
    cout_p = _ru(out_planes, 128)
    s1, b1 = _fold_bn(raw["bn1_gamma"], raw["bn1_beta"], raw["bn1_mean"], raw["bn1_var"])
    s2, b2 = _fold_bn(raw["bn2_gamma"], raw["bn2_beta"], raw["bn2_mean"], raw["bn2_var"])

    w1 = jnp.transpose(raw["conv1_w"], (2, 3, 1, 0))            # (3,3,cin,cout)
    w1 = jnp.pad(w1, ((0, 0), (0, 0), (0, cin_p - in_planes), (0, cout_p - out_planes)))
    w2 = jnp.transpose(raw["conv2_w"], (2, 3, 1, 0))
    w2 = jnp.pad(w2, ((0, 0), (0, 0), (0, cout_p - out_planes), (0, cout_p - out_planes)))

    p = {
        "w1": w1.reshape(9, cin_p, cout_p).astype(jnp.bfloat16),
        "w2": w2.reshape(9, cout_p, cout_p).astype(jnp.bfloat16),
        "bn1": jnp.stack([_pad1d(s1, cin_p), _pad1d(b1, cin_p)]).astype(jnp.float32),
        "bn2": jnp.stack([_pad1d(s2, cout_p), _pad1d(b2, cout_p)]).astype(jnp.float32),
    }
    if in_planes != out_planes:
        ws = raw["short_w"].reshape(out_planes, in_planes).T    # (cin, cout)
        ws = jnp.pad(ws, ((0, cin_p - in_planes), (0, cout_p - out_planes)))
        p["ws"] = ws.astype(jnp.bfloat16)
    return p


# ----------------------------------------------------------------------------
# NetworkBlock
# ----------------------------------------------------------------------------

class NetworkBlockPallas:
    """Pallas implementation of NetworkBlock(nb_layers, in_planes, out_planes,
    BasicBlock, stride, drop_rate, activate_before_residual)."""

    def __init__(self, key, nb_layers, in_planes, out_planes, stride,
                 drop_rate=0.0, activate_before_residual=False):
        # TODO(synk): drop_rate > 0 (dropout RNG) is not implemented.
        self.drop_rate = drop_rate
        self.abr = activate_before_residual
        self.in_planes = in_planes
        self.out_planes = out_planes
        self.cin_p = _ru(in_planes, 128)
        self.layers = []
        for i in range(int(nb_layers)):
            ip = in_planes if i == 0 else out_planes
            st = stride if i == 0 else 1
            raw = init_basic_block_params(jax.random.fold_in(key, i), ip, out_planes)
            self.layers.append((prepare_block_params(raw, ip, out_planes),
                                st, ip == out_planes))

    def __call__(self, x_nchw):
        x = jnp.transpose(x_nchw, (0, 2, 3, 1)).astype(jnp.bfloat16)   # NCHW -> NHWC
        x = jnp.pad(x, ((0, 0), (0, 0), (0, 0), (0, self.cin_p - self.in_planes)))
        for params, st, equal in self.layers:
            x = basic_block_forward(x, params, st, equal, self.abr)
        x = x[..., :self.out_planes]
        return jnp.transpose(x, (0, 3, 1, 2)).astype(jnp.float32)      # NHWC -> NCHW


if __name__ == "__main__":
    key = jax.random.PRNGKey(0)
    k_x, k_p = jax.random.split(key)

    # Small shapes consistent with a WideResNet stage:
    # batch=2, in_planes=4, out_planes=8, spatial 16x16, 2 blocks, stride 2.
    x = jax.random.normal(k_x, (2, 4, 16, 16), jnp.float32)  # NCHW like PyTorch

    block = NetworkBlockPallas(k_p, nb_layers=2, in_planes=4, out_planes=8,
                               stride=2, drop_rate=0.0,
                               activate_before_residual=True)

    fwd = jax.jit(block.__call__)
    out = jax.block_until_ready(fwd(x))
    assert out.shape == (2, 8, 8, 8), out.shape
    assert bool(jnp.all(jnp.isfinite(out)))
    print("KERNEL_OK")
</pallas_src>

<mosaic_0001>
module attributes {stable_mosaic.version = 11 : i64} {
  func.func @_bn_act_kernel(%arg0: i32, %arg1: memref<256x128xbf16, #tpu.memory_space<vmem>>, %arg2: memref<2x128xf32, #tpu.memory_space<vmem>>, %arg3: memref<256x128xbf16, #tpu.memory_space<vmem>>) attributes {dimension_semantics = [#tpu.dimension_semantics<parallel>], iteration_bounds = array<i64: 2>, scalar_prefetch = 0 : i64, scratch_operands = 0 : i64, tpu.core_type = #tpu.core_type<tc>, window_params = [{transform_indices = @transform_0, window_bounds = array<i64: 256, 128>}, {pipeline_mode = #tpu.pipeline_mode<synchronous>, transform_indices = @transform_1, window_bounds = array<i64: 2, 128>}, {transform_indices = @transform_2, window_bounds = array<i64: 256, 128>}]} {
    %c0 = arith.constant 0 : index
    %c0_0 = arith.constant 0 : index
    %0 = vector.load %arg1[%c0, %c0_0] : memref<256x128xbf16, #tpu.memory_space<vmem>>, vector<256x128xbf16>
    %1 = arith.extf %0 : vector<256x128xbf16> to vector<256x128xf32>
    %c0_1 = arith.constant 0 : index
    %c0_2 = arith.constant 0 : index
    %2 = vector.load %arg2[%c0_1, %c0_2] : memref<2x128xf32, #tpu.memory_space<vmem>>, vector<1x128xf32>
    %3 = vector.broadcast %2 : vector<1x128xf32> to vector<256x128xf32>
    %4 = arith.mulf %1, %3 : vector<256x128xf32>
    %c1 = arith.constant 1 : index
    %c0_3 = arith.constant 0 : index
    %5 = vector.load %arg2[%c1, %c0_3] : memref<2x128xf32, #tpu.memory_space<vmem>>, vector<1x128xf32>
    %6 = vector.broadcast %5 : vector<1x128xf32> to vector<256x128xf32>
    %7 = arith.addf %4, %6 : vector<256x128xf32>
    %cst = arith.constant 0.000000e+00 : f32
    %8 = vector.broadcast %cst : f32 to vector<256x128xf32>
    %9 = arith.cmpf oge, %7, %8 : vector<256x128xf32>
    %cst_4 = arith.constant 1.000000e-01 : f32
    %10 = vector.broadcast %cst_4 : f32 to vector<256x128xf32>
    %11 = arith.mulf %10, %7 : vector<256x128xf32>
    %12 = arith.select %9, %7, %11 : vector<256x128xi1>, vector<256x128xf32>
    %13 = arith.truncf %12 : vector<256x128xf32> to vector<256x128xbf16>
    %c0_5 = arith.constant 0 : index
    %c0_6 = arith.constant 0 : index
    %14 = vector.load %arg3[%c0_5, %c0_6] : memref<256x128xbf16, #tpu.memory_space<vmem>>, vector<256x128xbf16>
    tpu.vector_store %arg3[%c0_5, %c0_6], %13 {strides = array<i32>} : memref<256x128xbf16, #tpu.memory_space<vmem>>, vector<256x128xbf16>,
    return
  }
  func.func @transform_0(%arg0: i32) -> (i32, i32) {
    %c0_i32 = arith.constant 0 : i32
    %c0_i32_0 = arith.constant 0 : i32
    return %arg0, %c0_i32 : i32, i32
  }
  func.func @transform_1(%arg0: i32) -> (i32, i32) {
    %c0_i32 = arith.constant 0 : i32
    %c0_i32_0 = arith.constant 0 : i32
    %c0_i32_1 = arith.constant 0 : i32
    return %c0_i32, %c0_i32_0 : i32, i32
  }
  func.func @transform_2(%arg0: i32) -> (i32, i32) {
    %c0_i32 = arith.constant 0 : i32
    %c0_i32_0 = arith.constant 0 : i32
    return %arg0, %c0_i32 : i32, i32
  }
}

module attributes {stable_mosaic.version = 11 : i64} {
  func.func @kernel(%arg0: i32, %arg1: i32, %arg2: i32, %arg3: memref<64x128xbf16, #tpu.memory_space<vmem>>, %arg4: memref<128x128xbf16, #tpu.memory_space<vmem>>, %arg5: memref<64x128xbf16, #tpu.memory_space<vmem>>, %arg6: memref<64x128xf32, #tpu.memory_space<vmem>>) attributes {dimension_semantics = [#tpu.dimension_semantics<parallel>, #tpu.dimension_semantics<parallel>, #tpu.dimension_semantics<arbitrary>], iteration_bounds = array<i64: 2, 1, 1>, scalar_prefetch = 0 : i64, scratch_operands = 1 : i64, tpu.core_type = #tpu.core_type<tc>, window_params = [{transform_indices = @transform_0, window_bounds = array<i64: 64, 128>}, {transform_indices = @transform_1, window_bounds = array<i64: 128, 128>}, {transform_indices = @transform_2, window_bounds = array<i64: 64, 128>}]} {
    %c0_i32 = arith.constant 0 : i32
    %0 = arith.cmpi eq, %arg2, %c0_i32 : i32
    %1 = arith.extui %0 : i1 to i32
    %c0_i32_0 = arith.constant 0 : i32
    %2 = arith.cmpi ne, %1, %c0_i32_0 : i32
    scf.if %2 {
      %cst_10 = arith.constant 0.000000e+00 : f32
      %12 = vector.broadcast %cst_10 : f32 to vector<64x128xf32>
      %c0_11 = arith.constant 0 : index
      %c0_12 = arith.constant 0 : index
      %13 = vector.load %arg6[%c0_11, %c0_12] : memref<64x128xf32, #tpu.memory_space<vmem>>, vector<64x128xf32>
      tpu.vector_store %arg6[%c0_11, %c0_12], %12 {strides = array<i32>} : memref<64x128xf32, #tpu.memory_space<vmem>>, vector<64x128xf32>,
    } else {
    }
    %c0 = arith.constant 0 : index
    %c0_1 = arith.constant 0 : index
    %3 = vector.load %arg6[%c0, %c0_1] : memref<64x128xf32, #tpu.memory_space<vmem>>, vector<64x128xf32>
    %c0_2 = arith.constant 0 : index
    %c0_3 = arith.constant 0 : index
    %4 = vector.load %arg3[%c0_2, %c0_3] : memref<64x128xbf16, #tpu.memory_space<vmem>>, vector<64x128xbf16>
    %c0_4 = arith.constant 0 : index
    %c0_5 = arith.constant 0 : index
    %5 = vector.load %arg4[%c0_4, %c0_5] : memref<128x128xbf16, #tpu.memory_space<vmem>>, vector<128x128xbf16>
    %cst = arith.constant dense<0.000000e+00> : vector<64x128xf32>
    %6 = tpu.matmul %4, %5, %cst {dimension_numbers = #tpu.dot_dimension_numbers<[1], [0], [0], [1], [0, 0, 1, 1], [], []>} : vector<64x128xbf16>, vector<128x128xbf16>, vector<64x128xf32> -> vector<64x128xf32>
    %7 = arith.addf %3, %6 : vector<64x128xf32>
    %c0_6 = arith.constant 0 : index
    %c0_7 = arith.constant 0 : index
    %8 = vector.load %arg6[%c0_6, %c0_7] : memref<64x128xf32, #tpu.memory_space<vmem>>, vector<64x128xf32>
    tpu.vector_store %arg6[%c0_6, %c0_7], %7 {strides = array<i32>} : memref<64x128xf32, #tpu.memory_space<vmem>>, vector<64x128xf32>,
    %c0_i32_8 = arith.constant 0 : i32
    %9 = arith.cmpi eq, %arg2, %c0_i32_8 : i32
    %10 = arith.extui %9 : i1 to i32
    %c0_i32_9 = arith.constant 0 : i32
    %11 = arith.cmpi ne, %10, %c0_i32_9 : i32
    scf.if %11 {
      %c0_10 = arith.constant 0 : index
      %c0_11 = arith.constant 0 : index
      %12 = vector.load %arg6[%c0_10, %c0_11] : memref<64x128xf32, #tpu.memory_space<vmem>>, vector<64x128xf32>
      %13 = arith.truncf %12 : vector<64x128xf32> to vector<64x128xbf16>
      %c0_12 = arith.constant 0 : index
      %c0_13 = arith.constant 0 : index
      %14 = vector.load %arg5[%c0_12, %c0_13] : memref<64x128xbf16, #tpu.memory_space<vmem>>, vector<64x128xbf16>
      tpu.vector_store %arg5[%c0_12, %c0_13], %13 {strides = array<i32>} : memref<64x128xbf16, #tpu.memory_space<vmem>>, vector<64x128xbf16>,
    } else {
    }
    return
  }
  func.func @transform_0(%arg0: i32, %arg1: i32, %arg2: i32) -> (i32, i32) {
    %c0_i32 = arith.constant 0 : i32
    return %arg0, %arg2 : i32, i32
  }
  func.func @transform_1(%arg0: i32, %arg1: i32, %arg2: i32) -> (i32, i32) {
    %c0_i32 = arith.constant 0 : i32
    return %arg2, %arg1 : i32, i32
  }
  func.func @transform_2(%arg0: i32, %arg1: i32, %arg2: i32) -> (i32, i32) {
    %c0_i32 = arith.constant 0 : i32
    return %arg0, %arg1 : i32, i32
  }
}

module attributes {stable_mosaic.version = 11 : i64} {
  func.func @kernel(%arg0: i32, %arg1: i32, %arg2: i32, %arg3: memref<64x128xbf16, #tpu.memory_space<vmem>>, %arg4: memref<128x128xbf16, #tpu.memory_space<vmem>>, %arg5: memref<2x128xf32, #tpu.memory_space<vmem>>, %arg6: memref<64x128xbf16, #tpu.memory_space<vmem>>, %arg7: memref<64x128xf32, #tpu.memory_space<vmem>>) attributes {dimension_semantics = [#tpu.dimension_semantics<parallel>, #tpu.dimension_semantics<parallel>, #tpu.dimension_semantics<arbitrary>], iteration_bounds = array<i64: 2, 1, 9>, scalar_prefetch = 0 : i64, scratch_operands = 1 : i64, tpu.core_type = #tpu.core_type<tc>, window_params = [{transform_indices = @transform_0, window_bounds = array<i64: 64, 128>}, {transform_indices = @transform_1, window_bounds = array<i64: 128, 128>}, {transform_indices = @transform_2, window_bounds = array<i64: 2, 128>}, {transform_indices = @transform_3, window_bounds = array<i64: 64, 128>}]} {
    %c0_i32 = arith.constant 0 : i32
    %0 = arith.cmpi eq, %arg2, %c0_i32 : i32
    %1 = arith.extui %0 : i1 to i32
    %c0_i32_0 = arith.constant 0 : i32
    %2 = arith.cmpi ne, %1, %c0_i32_0 : i32
    scf.if %2 {
      %cst_9 = arith.constant 0.000000e+00 : f32
      %12 = vector.broadcast %cst_9 : f32 to vector<64x128xf32>
      %c0_10 = arith.constant 0 : index
      %c0_11 = arith.constant 0 : index
      %13 = vector.load %arg7[%c0_10, %c0_11] : memref<64x128xf32, #tpu.memory_space<vmem>>, vector<64x128xf32>
      tpu.vector_store %arg7[%c0_10, %c0_11], %12 {strides = array<i32>} : memref<64x128xf32, #tpu.memory_space<vmem>>, vector<64x128xf32>,
    } else {
    }
    %c0 = arith.constant 0 : index
    %c0_1 = arith.constant 0 : index
    %3 = vector.load %arg7[%c0, %c0_1] : memref<64x128xf32, #tpu.memory_space<vmem>>, vector<64x128xf32>
    %c0_2 = arith.constant 0 : index
    %c0_3 = arith.constant 0 : index
    %4 = vector.load %arg3[%c0_2, %c0_3] : memref<64x128xbf16, #tpu.memory_space<vmem>>, vector<64x128xbf16>
    %c0_4 = arith.constant 0 : index
    %c0_5 = arith.constant 0 : index
    %5 = vector.load %arg4[%c0_4, %c0_5] : memref<128x128xbf16, #tpu.memory_space<vmem>>, vector<128x128xbf16>
    %cst = arith.constant dense<0.000000e+00> : vector<64x128xf32>
    %6 = tpu.matmul %4, %5, %cst {dimension_numbers = #tpu.dot_dimension_numbers<[1], [0], [0], [1], [0, 0, 1, 1], [], []>} : vector<64x128xbf16>, vector<128x128xbf16>, vector<64x128xf32> -> vector<64x128xf32>
    %7 = arith.addf %3, %6 : vector<64x128xf32>
    %c0_6 = arith.constant 0 : index
    %c0_7 = arith.constant 0 : index
    %8 = vector.load %arg7[%c0_6, %c0_7] : memref<64x128xf32, #tpu.memory_space<vmem>>, vector<64x128xf32>
    tpu.vector_store %arg7[%c0_6, %c0_7], %7 {strides = array<i32>} : memref<64x128xf32, #tpu.memory_space<vmem>>, vector<64x128xf32>,
    %c8_i32 = arith.constant 8 : i32
    %9 = arith.cmpi eq, %arg2, %c8_i32 : i32
    %10 = arith.extui %9 : i1 to i32
    %c0_i32_8 = arith.constant 0 : i32
    %11 = arith.cmpi ne, %10, %c0_i32_8 : i32
    scf.if %11 {
      %c0_9 = arith.constant 0 : index
      %c0_10 = arith.constant 0 : index
      %12 = vector.load %arg7[%c0_9, %c0_10] : memref<64x128xf32, #tpu.memory_space<vmem>>, vector<64x128xf32>
      %c0_11 = arith.constant 0 : index
      %c0_12 = arith.constant 0 : index
      %13 = vector.load %arg5[%c0_11, %c0_12] : memref<2x128xf32, #tpu.memory_space<vmem>>, vector<1x128xf32>
      %14 = vector.broadcast %13 : vector<1x128xf32> to vector<64x128xf32>
      %15 = arith.mulf %12, %14 : vector<64x128xf32>
      %c1 = arith.constant 1 : index
      %c0_13 = arith.constant 0 : index
      %16 = vector.load %arg5[%c1, %c0_13] : memref<2x128xf32, #tpu.memory_space<vmem>>, vector<1x128xf32>
      %17 = vector.broadcast %16 : vector<1x128xf32> to vector<64x128xf32>
      %18 = arith.addf %15, %17 : vector<64x128xf32>
      %cst_14 = arith.constant 0.000000e+00 : f32
      %19 = vector.broadcast %cst_14 : f32 to vector<64x128xf32>
      %20 = arith.cmpf oge, %18, %19 : vector<64x128xf32>
      %cst_15 = arith.constant 1.000000e-01 : f32
      %21 = vector.broadcast %cst_15 : f32 to vector<64x128xf32>
      %22 = arith.mulf %21, %18 : vector<64x128xf32>
      %23 = arith.select %20, %18, %22 : vector<64x128xi1>, vector<64x128xf32>
      %24 = arith.truncf %23 : vector<64x128xf32> to vector<64x128xbf16>
      %c0_16 = arith.constant 0 : index
      %c0_17 = arith.constant 0 : index
      %25 = vector.load %arg6[%c0_16, %c0_17] : memref<64x128xbf16, #tpu.memory_space<vmem>>, vector<64x128xbf16>
      tpu.vector_store %arg6[%c0_16, %c0_17], %24 {strides = array<i32>} : memref<64x128xbf16, #tpu.memory_space<vmem>>, vector<64x128xbf16>,
    } else {
    }
    return
  }
  func.func @transform_0(%arg0: i32, %arg1: i32, %arg2: i32) -> (i32, i32) {
    %c0_i32 = arith.constant 0 : i32
    return %arg0, %arg2 : i32, i32
  }
  func.func @transform_1(%arg0: i32, %arg1: i32, %arg2: i32) -> (i32, i32) {
    %c0_i32 = arith.constant 0 : i32
    return %arg2, %arg1 : i32, i32
  }
  func.func @transform_2(%arg0: i32, %arg1: i32, %arg2: i32) -> (i32, i32) {
    %c0_i32 = arith.constant 0 : i32
    %c0_i32_0 = arith.constant 0 : i32
    return %c0_i32, %arg1 : i32, i32
  }
  func.func @transform_3(%arg0: i32, %arg1: i32, %arg2: i32) -> (i32, i32) {
    %c0_i32 = arith.constant 0 : i32
    return %arg0, %arg1 : i32, i32
  }
}

module attributes {stable_mosaic.version = 11 : i64} {
  func.func @kernel(%arg0: i32, %arg1: i32, %arg2: memref<1x110x128xbf16, #tpu.memory_space<vmem>>, %arg3: memref<9x128x128xbf16, #tpu.memory_space<vmem>>, %arg4: memref<1x80x128xbf16, #tpu.memory_space<vmem>>, %arg5: memref<1x80x128xbf16, #tpu.memory_space<vmem>>, %arg6: memref<80x128xf32, #tpu.memory_space<vmem>>) attributes {dimension_semantics = [#tpu.dimension_semantics<parallel>, #tpu.dimension_semantics<parallel>], iteration_bounds = array<i64: 2, 1>, scalar_prefetch = 0 : i64, scratch_operands = 1 : i64, tpu.core_type = #tpu.core_type<tc>, window_params = [{transform_indices = @transform_0, window_bounds = array<i64: 1, 110, 128>}, {transform_indices = @transform_1, window_bounds = array<i64: 9, 128, 128>}, {transform_indices = @transform_2, window_bounds = array<i64: 1, 80, 128>}, {transform_indices = @transform_3, window_bounds = array<i64: 1, 80, 128>}]} {
    %cst = arith.constant 0.000000e+00 : f32
    %0 = vector.broadcast %cst : f32 to vector<80x128xf32>
    %c0 = arith.constant 0 : index
    %c0_0 = arith.constant 0 : index
    %1 = vector.load %arg6[%c0, %c0_0] : memref<80x128xf32, #tpu.memory_space<vmem>>, vector<80x128xf32>
    tpu.vector_store %arg6[%c0, %c0_0], %0 {strides = array<i32>} : memref<80x128xf32, #tpu.memory_space<vmem>>, vector<80x128xf32>,
    %c0_1 = arith.constant 0 : index
    %c0_2 = arith.constant 0 : index
    %c0_3 = arith.constant 0 : index
    %2 = vector.load %arg2[%c0_1, %c0_2, %c0_3] : memref<1x110x128xbf16, #tpu.memory_space<vmem>>, vector<1x80x128xbf16>
    %3 = vector.shape_cast %2 : vector<1x80x128xbf16> to vector<80x128xbf16>
    %c0_4 = arith.constant 0 : index
    %c0_5 = arith.constant 0 : index
    %4 = vector.load %arg6[%c0_4, %c0_5] : memref<80x128xf32, #tpu.memory_space<vmem>>, vector<80x128xf32>
    %c0_6 = arith.constant 0 : index
    %c0_7 = arith.constant 0 : index
    %c0_8 = arith.constant 0 : index
    %5 = vector.load %arg3[%c0_6, %c0_7, %c0_8] : memref<9x128x128xbf16, #tpu.memory_space<vmem>>, vector<1x128x128xbf16>
    %6 = vector.shape_cast %5 : vector<1x128x128xbf16> to vector<128x128xbf16>
    %cst_9 = arith.constant dense<0.000000e+00> : vector<80x128xf32>
    %7 = tpu.matmul %3, %6, %cst_9 {dimension_numbers = #tpu.dot_dimension_numbers<[1], [0], [0], [1], [0, 0, 1, 1], [], []>} : vector<80x128xbf16>, vector<128x128xbf16>, vector<80x128xf32> -> vector<80x128xf32>
    %8 = arith.addf %4, %7 : vector<80x128xf32>
    %c0_10 = arith.constant 0 : index
    %c0_11 = arith.constant 0 : index
    %9 = vector.load %arg6[%c0_10, %c0_11] : memref<80x128xf32, #tpu.memory_space<vmem>>, vector<80x128xf32>
    tpu.vector_store %arg6[%c0_10, %c0_11], %8 {strides = array<i32>} : memref<80x128xf32, #tpu.memory_space<vmem>>, vector<80x128xf32>,
    %c0_12 = arith.constant 0 : index
    %c1 = arith.constant 1 : index
    %c0_13 = arith.constant 0 : index
    %10 = vector.load %arg2[%c0_12, %c1, %c0_13] : memref<1x110x128xbf16, #tpu.memory_space<vmem>>, vector<1x80x128xbf16>
    %11 = vector.shape_cast %10 : vector<1x80x128xbf16> to vector<80x128xbf16>
    %c0_14 = arith.constant 0 : index
    %c0_15 = arith.constant 0 : index
    %12 = vector.load %arg6[%c0_14, %c0_15] : memref<80x128xf32, #tpu.memory_space<vmem>>, vector<80x128xf32>
    %c1_16 = arith.constant 1 : index
    %c0_17 = arith.constant 0 : index
    %c0_18 = arith.constant 0 : index
    %13 = vector.load %arg3[%c1_16, %c0_17, %c0_18] : memref<9x128x128xbf16, #tpu.memory_space<vmem>>, vector<1x128x128xbf16>
    %14 = vector.shape_cast %13 : vector<1x128x128xbf16> to vector<128x128xbf16>
    %cst_19 = arith.constant dense<0.000000e+00> : vector<80x128xf32>
    %15 = tpu.matmul %11, %14, %cst_19 {dimension_numbers = #tpu.dot_dimension_numbers<[1], [0], [0], [1], [0, 0, 1, 1], [], []>} : vector<80x128xbf16>, vector<128x128xbf16>, vector<80x128xf32> -> vector<80x128xf32>
    %16 = arith.addf %12, %15 : vector<80x128xf32>
    %c0_20 = arith.constant 0 : index
    %c0_21 = arith.constant 0 : index
    %17 = vector.load %arg6[%c0_20, %c0_21] : memref<80x128xf32, #tpu.memory_space<vmem>>, vector<80x128xf32>
    tpu.vector_store %arg6[%c0_20, %c0_21], %16 {strides = array<i32>} : memref<80x128xf32, #tpu.memory_space<vmem>>, vector<80x128xf32>,
    %c0_22 = arith.constant 0 : index
    %c2 = arith.constant 2 : index
    %c0_23 = arith.constant 0 : index
    %18 = vector.load %arg2[%c0_22, %c2, %c0_23] : memref<1x110x128xbf16, #tpu.memory_space<vmem>>, vector<1x80x128xbf16>
    %19 = vector.shape_cast %18 : vector<1x80x128xbf16> to vector<80x128xbf16>
    %c0_24 = arith.constant 0 : index
    %c0_25 = arith.constant 0 : index
    %20 = vector.load %arg6[%c0_24, %c0_25] : memref<80x128xf32, #tpu.memory_space<vmem>>, vector<80x128xf32>
    %c2_26 = arith.constant 2 : index
    %c0_27 = arith.constant 0 : index
    %c0_28 = arith.constant 0 : index
    %21 = vector.load %arg3[%c2_26, %c0_27, %c0_28] : memref<9x128x128xbf16, #tpu.memory_space<vmem>>, vector<1x128x128xbf16>
    %22 = vector.shape_cast %21 : vector<1x128x128xbf16> to vector<128x128xbf16>
    %cst_29 = arith.constant dense<0.000000e+00> : vector<80x128xf32>
    %23 = tpu.matmul %19, %22, %cst_29 {dimension_numbers = #tpu.dot_dimension_numbers<[1], [0], [0], [1], [0, 0, 1, 1], [], []>} : vector<80x128xbf16>, vector<128x128xbf16>, vector<80x128xf32> -> vector<80x128xf32>
    %24 = arith.addf %20, %23 : vector<80x128xf32>
    %c0_30 = arith.constant 0 : index
    %c0_31 = arith.constant 0 : index
    %25 = vector.load %arg6[%c0_30, %c0_31] : memref<80x128xf32, #tpu.memory_space<vmem>>, vector<80x128xf32>
    tpu.vector_store %arg6[%c0_30, %c0_31], %24 {strides = array<i32>} : memref<80x128xf32, #tpu.memory_space<vmem>>, vector<80x128xf32>,
    %c0_32 = arith.constant 0 : index
    %c10 = arith.constant 10 : index
    %c0_33 = arith.constant 0 : index
    %26 = vector.load %arg2[%c0_32, %c10, %c0_33] : memref<1x110x128xbf16, #tpu.memory_space<vmem>>, vector<1x80x128xbf16>
    %27 = vector.shape_cast %26 : vector<1x80x128xbf16> to vector<80x128xbf16>
    %c0_34 = arith.constant 0 : index
    %c0_35 = arith.constant 0 : index
    %28 = vector.load %arg6[%c0_34, %c0_35] : memref<80x128xf32, #tpu.memory_space<vmem>>, vector<80x128xf32>
    %c3 = arith.constant 3 : index
    %c0_36 = arith.constant 0 : index
    %c0_37 = arith.constant 0 : index
    %29 = vector.load %arg3[%c3, %c0_36, %c0_37] : memref<9x128x128xbf16, #tpu.memory_space<vmem>>, vector<1x128x128xbf16>
    %30 = vector.shape_cast %29 : vector<1x128x128xbf16> to vector<128x128xbf16>
    %cst_38 = arith.constant dense<0.000000e+00> : vector<80x128xf32>
    %31 = tpu.matmul %27, %30, %cst_38 {dimension_numbers = #tpu.dot_dimension_numbers<[1], [0], [0], [1], [0, 0, 1, 1], [], []>} : vector<80x128xbf16>, vector<128x128xbf16>, vector<80x128xf32> -> vector<80x128xf32>
    %32 = arith.addf %28, %31 : vector<80x128xf32>
    %c0_39 = arith.constant 0 : index
    %c0_40 = arith.constant 0 : index
    %33 = vector.load %arg6[%c0_39, %c0_40] : memref<80x128xf32, #tpu.memory_space<vmem>>, vector<80x128xf32>
    tpu.vector_store %arg6[%c0_39, %c0_40], %32 {strides = array<i32>} : memref<80x128xf32, #tpu.memory_space<vmem>>, vector<80x128xf32>,
    %c0_41 = arith.constant 0 : index
    %c11 = arith.constant 11 : index
    %c0_42 = arith.constant 0 : index
    %34 = vector.load %arg2[%c0_41, %c11, %c0_42] : memref<1x110x128xbf16, #tpu.memory_space<vmem>>, vector<1x80x128xbf16>
    %35 = vector.shape_cast %34 : vector<1x80x128xbf16> to vector<80x128xbf16>
    %c0_43 = arith.constant 0 : index
    %c0_44 = arith.constant 0 : index
    %36 = vector.load %arg6[%c0_43, %c0_44] : memref<80x128xf32, #tpu.memory_space<vmem>>, vector<80x128xf32>
    %c4 = arith.constant 4 : index
    %c0_45 = arith.constant 0 : index
    %c0_46 = arith.constant 0 : index
    %37 = vector.load %arg3[%c4, %c0_45, %c0_46] : memref<9x128x128xbf16, #tpu.memory_space<vmem>>, vector<1x128x128xbf16>
    %38 = vector.shape_cast %37 : vector<1x128x128xbf16> to vector<128x128xbf16>
    %cst_47 = arith.constant dense<0.000000e+00> : vector<80x128xf32>
    %39 = tpu.matmul %35, %38, %cst_47 {dimension_numbers = #tpu.dot_dimension_numbers<[1], [0], [0], [1], [0, 0, 1, 1], [], []>} : vector<80x128xbf16>, vector<128x128xbf16>, vector<80x128xf32> -> vector<80x128xf32>
    %40 = arith.addf %36, %39 : vector<80x128xf32>
    %c0_48 = arith.constant 0 : index
    %c0_49 = arith.constant 0 : index
    %41 = vector.load %arg6[%c0_48, %c0_49] : memref<80x128xf32, #tpu.memory_space<vmem>>, vector<80x128xf32>
    tpu.vector_store %arg6[%c0_48, %c0_49], %40 {strides = array<i32>} : memref<80x128xf32, #tpu.memory_space<vmem>>, vector<80x128xf32>,
    %c0_50 = arith.constant 0 : index
    %c12 = arith.constant 12 : index
    %c0_51 = arith.constant 0 : index
    %42 = vector.load %arg2[%c0_50, %c12, %c0_51] : memref<1x110x128xbf16, #tpu.memory_space<vmem>>, vector<1x80x128xbf16>
    %43 = vector.shape_cast %42 : vector<1x80x128xbf16> to vector<80x128xbf16>
    %c0_52 = arith.constant 0 : index
    %c0_53 = arith.constant 0 : index
    %44 = vector.load %arg6[%c0_52, %c0_53] : memref<80x128xf32, #tpu.memory_space<vmem>>, vector<80x128xf32>
    %c5 = arith.constant 5 : index
    %c0_54 = arith.constant 0 : index
    %c0_55 = arith.constant 0 : index
    %45 = vector.load %arg3[%c5, %c0_54, %c0_55] : memref<9x128x128xbf16, #tpu.memory_space<vmem>>, vector<1x128x128xbf16>
    %46 = vector.shape_cast %45 : vector<1x128x128xbf16> to vector<128x128xbf16>
    %cst_56 = arith.constant dense<0.000000e+00> : vector<80x128xf32>
    %47 = tpu.matmul %43, %46, %cst_56 {dimension_numbers = #tpu.dot_dimension_numbers<[1], [0], [0], [1], [0, 0, 1, 1], [], []>} : vector<80x128xbf16>, vector<128x128xbf16>, vector<80x128xf32> -> vector<80x128xf32>
    %48 = arith.addf %44, %47 : vector<80x128xf32>
    %c0_57 = arith.constant 0 : index
    %c0_58 = arith.constant 0 : index
    %49 = vector.load %arg6[%c0_57, %c0_58] : memref<80x128xf32, #tpu.memory_space<vmem>>, vector<80x128xf32>
    tpu.vector_store %arg6[%c0_57, %c0_58], %48 {strides = array<i32>} : memref<80x128xf32, #tpu.memory_space<vmem>>, vector<80x128xf32>,
    %c0_59 = arith.constant 0 : index
    %c20 = arith.constant 20 : index
    %c0_60 = arith.constant 0 : index
    %50 = vector.load %arg2[%c0_59, %c20, %c0_60] : memref<1x110x128xbf16, #tpu.memory_space<vmem>>, vector<1x80x128xbf16>
    %51 = vector.shape_cast %50 : vector<1x80x128xbf16> to vector<80x128xbf16>
    %c0_61 = arith.constant 0 : index
    %c0_62 = arith.constant 0 : index
    %52 = vector.load %arg6[%c0_61, %c0_62] : memref<80x128xf32, #tpu.memory_space<vmem>>, vector<80x128xf32>
    %c6 = arith.constant 6 : index
    %c0_63 = arith.constant 0 : index
    %c0_64 = arith.constant 0 : index
    %53 = vector.load %arg3[%c6, %c0_63, %c0_64] : memref<9x128x128xbf16, #tpu.memory_space<vmem>>, vector<1x128x128xbf16>
    %54 = vector.shape_cast %53 : vector<1x128x128xbf16> to vector<128x128xbf16>
    %cst_65 = arith.constant dense<0.000000e+00> : vector<80x128xf32>
    %55 = tpu.matmul %51, %54, %cst_65 {dimension_numbers = #tpu.dot_dimension_numbers<[1], [0], [0], [1], [0, 0, 1, 1], [], []>} : vector<80x128xbf16>, vector<128x128xbf16>, vector<80x128xf32> -> vector<80x128xf32>
    %56 = arith.addf %52, %55 : vector<80x128xf32>
    %c0_66 = arith.constant 0 : index
    %c0_67 = arith.constant 0 : index
    %57 = vector.load %arg6[%c0_66, %c0_67] : memref<80x128xf32, #tpu.memory_space<vmem>>, vector<80x128xf32>
    tpu.vector_store %arg6[%c0_66, %c0_67], %56 {strides = array<i32>} : memref<80x128xf32, #tpu.memory_space<vmem>>, vector<80x128xf32>,
    %c0_68 = arith.constant 0 : index
    %c21 = arith.constant 21 : index
    %c0_69 = arith.constant 0 : index
    %58 = vector.load %arg2[%c0_68, %c21, %c0_69] : memref<1x110x128xbf16, #tpu.memory_space<vmem>>, vector<1x80x128xbf16>
    %59 = vector.shape_cast %58 : vector<1x80x128xbf16> to vector<80x128xbf16>
    %c0_70 = arith.constant 0 : index
    %c0_71 = arith.constant 0 : index
    %60 = vector.load %arg6[%c0_70, %c0_71] : memref<80x128xf32, #tpu.memory_space<vmem>>, vector<80x128xf32>
    %c7 = arith.constant 7 : index
    %c0_72 = arith.constant 0 : index
    %c0_73 = arith.constant 0 : index
    %61 = vector.load %arg3[%c7, %c0_72, %c0_73] : memref<9x128x128xbf16, #tpu.memory_space<vmem>>, vector<1x128x128xbf16>
    %62 = vector.shape_cast %61 : vector<1x128x128xbf16> to vector<128x128xbf16>
    %cst_74 = arith.constant dense<0.000000e+00> : vector<80x128xf32>
    %63 = tpu.matmul %59, %62, %cst_74 {dimension_numbers = #tpu.dot_dimension_numbers<[1], [0], [0], [1], [0, 0, 1, 1], [], []>} : vector<80x128xbf16>, vector<128x128xbf16>, vector<80x128xf32> -> vector<80x128xf32>
    %64 = arith.addf %60, %63 : vector<80x128xf32>
    %c0_75 = arith.constant 0 : index
    %c0_76 = arith.constant 0 : index
    %65 = vector.load %arg6[%c0_75, %c0_76] : memref<80x128xf32, #tpu.memory_space<vmem>>, vector<80x128xf32>
    tpu.vector_store %arg6[%c0_75, %c0_76], %64 {strides = array<i32>} : memref<80x128xf32, #tpu.memory_space<vmem>>, vector<80x128xf32>,
    %c0_77 = arith.constant 0 : index
    %c22 = arith.constant 22 : index
    %c0_78 = arith.constant 0 : index
    %66 = vector.load %arg2[%c0_77, %c22, %c0_78] : memref<1x110x128xbf16, #tpu.memory_space<vmem>>, vector<1x80x128xbf16>
    %67 = vector.shape_cast %66 : vector<1x80x128xbf16> to vector<80x128xbf16>
    %c0_79 = arith.constant 0 : index
    %c0_80 = arith.constant 0 : index
    %68 = vector.load %arg6[%c0_79, %c0_80] : memref<80x128xf32, #tpu.memory_space<vmem>>, vector<80x128xf32>
    %c8 = arith.constant 8 : index
    %c0_81 = arith.constant 0 : index
    %c0_82 = arith.constant 0 : index
    %69 = vector.load %arg3[%c8, %c0_81, %c0_82] : memref<9x128x128xbf16, #tpu.memory_space<vmem>>, vector<1x128x128xbf16>
    %70 = vector.shape_cast %69 : vector<1x128x128xbf16> to vector<128x128xbf16>
    %cst_83 = arith.constant dense<0.000000e+00> : vector<80x128xf32>
    %71 = tpu.matmul %67, %70, %cst_83 {dimension_numbers = #tpu.dot_dimension_numbers<[1], [0], [0], [1], [0, 0, 1, 1], [], []>} : vector<80x128xbf16>, vector<128x128xbf16>, vector<80x128xf32> -> vector<80x128xf32>
    %72 = arith.addf %68, %71 : vector<80x128xf32>
    %c0_84 = arith.constant 0 : index
    %c0_85 = arith.constant 0 : index
    %73 = vector.load %arg6[%c0_84, %c0_85] : memref<80x128xf32, #tpu.memory_space<vmem>>, vector<80x128xf32>
    tpu.vector_store %arg6[%c0_84, %c0_85], %72 {strides = array<i32>} : memref<80x128xf32, #tpu.memory_space<vmem>>, vector<80x128xf32>,
    %c0_86 = arith.constant 0 : index
    %c0_87 = arith.constant 0 : index
    %74 = vector.load %arg6[%c0_86, %c0_87] : memref<80x128xf32, #tpu.memory_space<vmem>>, vector<80x128xf32>
    %c0_88 = arith.constant 0 : index
    %c0_89 = arith.constant 0 : index
    %c0_90 = arith.constant 0 : index
    %75 = vector.load %arg4[%c0_88, %c0_89, %c0_90] : memref<1x80x128xbf16, #tpu.memory_space<vmem>>, vector<1x80x128xbf16>
    %76 = vector.shape_cast %75 : vector<1x80x128xbf16> to vector<80x128xbf16>
    %77 = arith.extf %76 : vector<80x128xbf16> to vector<80x128xf32>
    %78 = arith.addf %74, %77 : vector<80x128xf32>
    %79 = arith.truncf %78 : vector<80x128xf32> to vector<80x128xbf16>
    %c0_91 = arith.constant 0 : index
    %c0_92 = arith.constant 0 : index
    %c0_93 = arith.constant 0 : index
    %80 = vector.load %arg5[%c0_91, %c0_92, %c0_93] : memref<1x80x128xbf16, #tpu.memory_space<vmem>>, vector<1x80x128xbf16>
    %81 = vector.shape_cast %80 : vector<1x80x128xbf16> to vector<80x128xbf16>
    %82 = vector.shape_cast %79 : vector<80x128xbf16> to vector<1x80x128xbf16>
    tpu.vector_store %arg5[%c0_91, %c0_92, %c0_93], %82 {strides = array<i32>} : memref<1x80x128xbf16, #tpu.memory_space<vmem>>, vector<1x80x128xbf16>,
    return
  }
  func.func @transform_0(%arg0: i32, %arg1: i32) -> (i32, i32, i32) {
    %c0_i32 = arith.constant 0 : i32
    %c0_i32_0 = arith.constant 0 : i32
    %c0_i32_1 = arith.constant 0 : i32
    return %arg0, %c0_i32, %c0_i32_0 : i32, i32, i32
  }
  func.func @transform_1(%arg0: i32, %arg1: i32) -> (i32, i32, i32) {
    %c0_i32 = arith.constant 0 : i32
    %c0_i32_0 = arith.constant 0 : i32
    %c0_i32_1 = arith.constant 0 : i32
    return %c0_i32, %c0_i32_0, %arg1 : i32, i32, i32
  }
  func.func @transform_2(%arg0: i32, %arg1: i32) -> (i32, i32, i32) {
    %c0_i32 = arith.constant 0 : i32
    %c0_i32_0 = arith.constant 0 : i32
    return %arg0, %c0_i32, %arg1 : i32, i32, i32
  }
  func.func @transform_3(%arg0: i32, %arg1: i32) -> (i32, i32, i32) {
    %c0_i32 = arith.constant 0 : i32
    %c0_i32_0 = arith.constant 0 : i32
    return %arg0, %c0_i32, %arg1 : i32, i32, i32
  }
}

module attributes {stable_mosaic.version = 11 : i64} {
  func.func @_bn_act_kernel(%arg0: i32, %arg1: memref<64x128xbf16, #tpu.memory_space<vmem>>, %arg2: memref<2x128xf32, #tpu.memory_space<vmem>>, %arg3: memref<64x128xbf16, #tpu.memory_space<vmem>>) attributes {dimension_semantics = [#tpu.dimension_semantics<parallel>], iteration_bounds = array<i64: 2>, scalar_prefetch = 0 : i64, scratch_operands = 0 : i64, tpu.core_type = #tpu.core_type<tc>, window_params = [{transform_indices = @transform_0, window_bounds = array<i64: 64, 128>}, {pipeline_mode = #tpu.pipeline_mode<synchronous>, transform_indices = @transform_1, window_bounds = array<i64: 2, 128>}, {transform_indices = @transform_2, window_bounds = array<i64: 64, 128>}]} {
    %c0 = arith.constant 0 : index
    %c0_0 = arith.constant 0 : index
    %0 = vector.load %arg1[%c0, %c0_0] : memref<64x128xbf16, #tpu.memory_space<vmem>>, vector<64x128xbf16>
    %1 = arith.extf %0 : vector<64x128xbf16> to vector<64x128xf32>
    %c0_1 = arith.constant 0 : index
    %c0_2 = arith.constant 0 : index
    %2 = vector.load %arg2[%c0_1, %c0_2] : memref<2x128xf32, #tpu.memory_space<vmem>>, vector<1x128xf32>
    %3 = vector.broadcast %2 : vector<1x128xf32> to vector<64x128xf32>
    %4 = arith.mulf %1, %3 : vector<64x128xf32>
    %c1 = arith.constant 1 : index
    %c0_3 = arith.constant 0 : index
    %5 = vector.load %arg2[%c1, %c0_3] : memref<2x128xf32, #tpu.memory_space<vmem>>, vector<1x128xf32>
    %6 = vector.broadcast %5 : vector<1x128xf32> to vector<64x128xf32>
    %7 = arith.addf %4, %6 : vector<64x128xf32>
    %cst = arith.constant 0.000000e+00 : f32
    %8 = vector.broadcast %cst : f32 to vector<64x128xf32>
    %9 = arith.cmpf oge, %7, %8 : vector<64x128xf32>
    %cst_4 = arith.constant 1.000000e-01 : f32
    %10 = vector.broadcast %cst_4 : f32 to vector<64x128xf32>
    %11 = arith.mulf %10, %7 : vector<64x128xf32>
    %12 = arith.select %9, %7, %11 : vector<64x128xi1>, vector<64x128xf32>
    %13 = arith.truncf %12 : vector<64x128xf32> to vector<64x128xbf16>
    %c0_5 = arith.constant 0 : index
    %c0_6 = arith.constant 0 : index
    %14 = vector.load %arg3[%c0_5, %c0_6] : memref<64x128xbf16, #tpu.memory_space<vmem>>, vector<64x128xbf16>
    tpu.vector_store %arg3[%c0_5, %c0_6], %13 {strides = array<i32>} : memref<64x128xbf16, #tpu.memory_space<vmem>>, vector<64x128xbf16>,
    return
  }
  func.func @transform_0(%arg0: i32) -> (i32, i32) {
    %c0_i32 = arith.constant 0 : i32
    %c0_i32_0 = arith.constant 0 : i32
    return %arg0, %c0_i32 : i32, i32
  }
  func.func @transform_1(%arg0: i32) -> (i32, i32) {
    %c0_i32 = arith.constant 0 : i32
    %c0_i32_0 = arith.constant 0 : i32
    %c0_i32_1 = arith.constant 0 : i32
    return %c0_i32, %c0_i32_0 : i32, i32
  }
  func.func @transform_2(%arg0: i32) -> (i32, i32) {
    %c0_i32 = arith.constant 0 : i32
    %c0_i32_0 = arith.constant 0 : i32
    return %arg0, %c0_i32 : i32, i32
  }
}

module attributes {stable_mosaic.version = 11 : i64} {
  func.func @kernel(%arg0: i32, %arg1: i32, %arg2: memref<1x110x128xbf16, #tpu.memory_space<vmem>>, %arg3: memref<9x128x128xbf16, #tpu.memory_space<vmem>>, %arg4: memref<2x128xf32, #tpu.memory_space<vmem>>, %arg5: memref<1x80x128xbf16, #tpu.memory_space<vmem>>, %arg6: memref<80x128xf32, #tpu.memory_space<vmem>>) attributes {dimension_semantics = [#tpu.dimension_semantics<parallel>, #tpu.dimension_semantics<parallel>], iteration_bounds = array<i64: 2, 1>, scalar_prefetch = 0 : i64, scratch_operands = 1 : i64, tpu.core_type = #tpu.core_type<tc>, window_params = [{transform_indices = @transform_0, window_bounds = array<i64: 1, 110, 128>}, {transform_indices = @transform_1, window_bounds = array<i64: 9, 128, 128>}, {transform_indices = @transform_2, window_bounds = array<i64: 2, 128>}, {transform_indices = @transform_3, window_bounds = array<i64: 1, 80, 128>}]} {
    %cst = arith.constant 0.000000e+00 : f32
    %0 = vector.broadcast %cst : f32 to vector<80x128xf32>
    %c0 = arith.constant 0 : index
    %c0_0 = arith.constant 0 : index
    %1 = vector.load %arg6[%c0, %c0_0] : memref<80x128xf32, #tpu.memory_space<vmem>>, vector<80x128xf32>
    tpu.vector_store %arg6[%c0, %c0_0], %0 {strides = array<i32>} : memref<80x128xf32, #tpu.memory_space<vmem>>, vector<80x128xf32>,
    %c0_1 = arith.constant 0 : index
    %c0_2 = arith.constant 0 : index
    %c0_3 = arith.constant 0 : index
    %2 = vector.load %arg2[%c0_1, %c0_2, %c0_3] : memref<1x110x128xbf16, #tpu.memory_space<vmem>>, vector<1x80x128xbf16>
    %3 = vector.shape_cast %2 : vector<1x80x128xbf16> to vector<80x128xbf16>
    %c0_4 = arith.constant 0 : index
    %c0_5 = arith.constant 0 : index
    %4 = vector.load %arg6[%c0_4, %c0_5] : memref<80x128xf32, #tpu.memory_space<vmem>>, vector<80x128xf32>
    %c0_6 = arith.constant 0 : index
    %c0_7 = arith.constant 0 : index
    %c0_8 = arith.constant 0 : index
    %5 = vector.load %arg3[%c0_6, %c0_7, %c0_8] : memref<9x128x128xbf16, #tpu.memory_space<vmem>>, vector<1x128x128xbf16>
    %6 = vector.shape_cast %5 : vector<1x128x128xbf16> to vector<128x128xbf16>
    %cst_9 = arith.constant dense<0.000000e+00> : vector<80x128xf32>
    %7 = tpu.matmul %3, %6, %cst_9 {dimension_numbers = #tpu.dot_dimension_numbers<[1], [0], [0], [1], [0, 0, 1, 1], [], []>} : vector<80x128xbf16>, vector<128x128xbf16>, vector<80x128xf32> -> vector<80x128xf32>
    %8 = arith.addf %4, %7 : vector<80x128xf32>
    %c0_10 = arith.constant 0 : index
    %c0_11 = arith.constant 0 : index
    %9 = vector.load %arg6[%c0_10, %c0_11] : memref<80x128xf32, #tpu.memory_space<vmem>>, vector<80x128xf32>
    tpu.vector_store %arg6[%c0_10, %c0_11], %8 {strides = array<i32>} : memref<80x128xf32, #tpu.memory_space<vmem>>, vector<80x128xf32>,
    %c0_12 = arith.constant 0 : index
    %c1 = arith.constant 1 : index
    %c0_13 = arith.constant 0 : index
    %10 = vector.load %arg2[%c0_12, %c1, %c0_13] : memref<1x110x128xbf16, #tpu.memory_space<vmem>>, vector<1x80x128xbf16>
    %11 = vector.shape_cast %10 : vector<1x80x128xbf16> to vector<80x128xbf16>
    %c0_14 = arith.constant 0 : index
    %c0_15 = arith.constant 0 : index
    %12 = vector.load %arg6[%c0_14, %c0_15] : memref<80x128xf32, #tpu.memory_space<vmem>>, vector<80x128xf32>
    %c1_16 = arith.constant 1 : index
    %c0_17 = arith.constant 0 : index
    %c0_18 = arith.constant 0 : index
    %13 = vector.load %arg3[%c1_16, %c0_17, %c0_18] : memref<9x128x128xbf16, #tpu.memory_space<vmem>>, vector<1x128x128xbf16>
    %14 = vector.shape_cast %13 : vector<1x128x128xbf16> to vector<128x128xbf16>
    %cst_19 = arith.constant dense<0.000000e+00> : vector<80x128xf32>
    %15 = tpu.matmul %11, %14, %cst_19 {dimension_numbers = #tpu.dot_dimension_numbers<[1], [0], [0], [1], [0, 0, 1, 1], [], []>} : vector<80x128xbf16>, vector<128x128xbf16>, vector<80x128xf32> -> vector<80x128xf32>
    %16 = arith.addf %12, %15 : vector<80x128xf32>
    %c0_20 = arith.constant 0 : index
    %c0_21 = arith.constant 0 : index
    %17 = vector.load %arg6[%c0_20, %c0_21] : memref<80x128xf32, #tpu.memory_space<vmem>>, vector<80x128xf32>
    tpu.vector_store %arg6[%c0_20, %c0_21], %16 {strides = array<i32>} : memref<80x128xf32, #tpu.memory_space<vmem>>, vector<80x128xf32>,
    %c0_22 = arith.constant 0 : index
    %c2 = arith.constant 2 : index
    %c0_23 = arith.constant 0 : index
    %18 = vector.load %arg2[%c0_22, %c2, %c0_23] : memref<1x110x128xbf16, #tpu.memory_space<vmem>>, vector<1x80x128xbf16>
    %19 = vector.shape_cast %18 : vector<1x80x128xbf16> to vector<80x128xbf16>
    %c0_24 = arith.constant 0 : index
    %c0_25 = arith.constant 0 : index
    %20 = vector.load %arg6[%c0_24, %c0_25] : memref<80x128xf32, #tpu.memory_space<vmem>>, vector<80x128xf32>
    %c2_26 = arith.constant 2 : index
    %c0_27 = arith.constant 0 : index
    %c0_28 = arith.constant 0 : index
    %21 = vector.load %arg3[%c2_26, %c0_27, %c0_28] : memref<9x128x128xbf16, #tpu.memory_space<vmem>>, vector<1x128x128xbf16>
    %22 = vector.shape_cast %21 : vector<1x128x128xbf16> to vector<128x128xbf16>
    %cst_29 = arith.constant dense<0.000000e+00> : vector<80x128xf32>
    %23 = tpu.matmul %19, %22, %cst_29 {dimension_numbers = #tpu.dot_dimension_numbers<[1], [0], [0], [1], [0, 0, 1, 1], [], []>} : vector<80x128xbf16>, vector<128x128xbf16>, vector<80x128xf32> -> vector<80x128xf32>
    %24 = arith.addf %20, %23 : vector<80x128xf32>
    %c0_30 = arith.constant 0 : index
    %c0_31 = arith.constant 0 : index
    %25 = vector.load %arg6[%c0_30, %c0_31] : memref<80x128xf32, #tpu.memory_space<vmem>>, vector<80x128xf32>
    tpu.vector_store %arg6[%c0_30, %c0_31], %24 {strides = array<i32>} : memref<80x128xf32, #tpu.memory_space<vmem>>, vector<80x128xf32>,
    %c0_32 = arith.constant 0 : index
    %c10 = arith.constant 10 : index
    %c0_33 = arith.constant 0 : index
    %26 = vector.load %arg2[%c0_32, %c10, %c0_33] : memref<1x110x128xbf16, #tpu.memory_space<vmem>>, vector<1x80x128xbf16>
    %27 = vector.shape_cast %26 : vector<1x80x128xbf16> to vector<80x128xbf16>
    %c0_34 = arith.constant 0 : index
    %c0_35 = arith.constant 0 : index
    %28 = vector.load %arg6[%c0_34, %c0_35] : memref<80x128xf32, #tpu.memory_space<vmem>>, vector<80x128xf32>
    %c3 = arith.constant 3 : index
    %c0_36 = arith.constant 0 : index
    %c0_37 = arith.constant 0 : index
    %29 = vector.load %arg3[%c3, %c0_36, %c0_37] : memref<9x128x128xbf16, #tpu.memory_space<vmem>>, vector<1x128x128xbf16>
    %30 = vector.shape_cast %29 : vector<1x128x128xbf16> to vector<128x128xbf16>
    %cst_38 = arith.constant dense<0.000000e+00> : vector<80x128xf32>
    %31 = tpu.matmul %27, %30, %cst_38 {dimension_numbers = #tpu.dot_dimension_numbers<[1], [0], [0], [1], [0, 0, 1, 1], [], []>} : vector<80x128xbf16>, vector<128x128xbf16>, vector<80x128xf32> -> vector<80x128xf32>
    %32 = arith.addf %28, %31 : vector<80x128xf32>
    %c0_39 = arith.constant 0 : index
    %c0_40 = arith.constant 0 : index
    %33 = vector.load %arg6[%c0_39, %c0_40] : memref<80x128xf32, #tpu.memory_space<vmem>>, vector<80x128xf32>
    tpu.vector_store %arg6[%c0_39, %c0_40], %32 {strides = array<i32>} : memref<80x128xf32, #tpu.memory_space<vmem>>, vector<80x128xf32>,
    %c0_41 = arith.constant 0 : index
    %c11 = arith.constant 11 : index
    %c0_42 = arith.constant 0 : index
    %34 = vector.load %arg2[%c0_41, %c11, %c0_42] : memref<1x110x128xbf16, #tpu.memory_space<vmem>>, vector<1x80x128xbf16>
    %35 = vector.shape_cast %34 : vector<1x80x128xbf16> to vector<80x128xbf16>
    %c0_43 = arith.constant 0 : index
    %c0_44 = arith.constant 0 : index
    %36 = vector.load %arg6[%c0_43, %c0_44] : memref<80x128xf32, #tpu.memory_space<vmem>>, vector<80x128xf32>
    %c4 = arith.constant 4 : index
    %c0_45 = arith.constant 0 : index
    %c0_46 = arith.constant 0 : index
    %37 = vector.load %arg3[%c4, %c0_45, %c0_46] : memref<9x128x128xbf16, #tpu.memory_space<vmem>>, vector<1x128x128xbf16>
    %38 = vector.shape_cast %37 : vector<1x128x128xbf16> to vector<128x128xbf16>
    %cst_47 = arith.constant dense<0.000000e+00> : vector<80x128xf32>
    %39 = tpu.matmul %35, %38, %cst_47 {dimension_numbers = #tpu.dot_dimension_numbers<[1], [0], [0], [1], [0, 0, 1, 1], [], []>} : vector<80x128xbf16>, vector<128x128xbf16>, vector<80x128xf32> -> vector<80x128xf32>
    %40 = arith.addf %36, %39 : vector<80x128xf32>
    %c0_48 = arith.constant 0 : index
    %c0_49 = arith.constant 0 : index
    %41 = vector.load %arg6[%c0_48, %c0_49] : memref<80x128xf32, #tpu.memory_space<vmem>>, vector<80x128xf32>
    tpu.vector_store %arg6[%c0_48, %c0_49], %40 {strides = array<i32>} : memref<80x128xf32, #tpu.memory_space<vmem>>, vector<80x128xf32>,
    %c0_50 = arith.constant 0 : index
    %c12 = arith.constant 12 : index
    %c0_51 = arith.constant 0 : index
    %42 = vector.load %arg2[%c0_50, %c12, %c0_51] : memref<1x110x128xbf16, #tpu.memory_space<vmem>>, vector<1x80x128xbf16>
    %43 = vector.shape_cast %42 : vector<1x80x128xbf16> to vector<80x128xbf16>
    %c0_52 = arith.constant 0 : index
    %c0_53 = arith.constant 0 : index
    %44 = vector.load %arg6[%c0_52, %c0_53] : memref<80x128xf32, #tpu.memory_space<vmem>>, vector<80x128xf32>
    %c5 = arith.constant 5 : index
    %c0_54 = arith.constant 0 : index
    %c0_55 = arith.constant 0 : index
    %45 = vector.load %arg3[%c5, %c0_54, %c0_55] : memref<9x128x128xbf16, #tpu.memory_space<vmem>>, vector<1x128x128xbf16>
    %46 = vector.shape_cast %45 : vector<1x128x128xbf16> to vector<128x128xbf16>
    %cst_56 = arith.constant dense<0.000000e+00> : vector<80x128xf32>
    %47 = tpu.matmul %43, %46, %cst_56 {dimension_numbers = #tpu.dot_dimension_numbers<[1], [0], [0], [1], [0, 0, 1, 1], [], []>} : vector<80x128xbf16>, vector<128x128xbf16>, vector<80x128xf32> -> vector<80x128xf32>
    %48 = arith.addf %44, %47 : vector<80x128xf32>
    %c0_57 = arith.constant 0 : index
    %c0_58 = arith.constant 0 : index
    %49 = vector.load %arg6[%c0_57, %c0_58] : memref<80x128xf32, #tpu.memory_space<vmem>>, vector<80x128xf32>
    tpu.vector_store %arg6[%c0_57, %c0_58], %48 {strides = array<i32>} : memref<80x128xf32, #tpu.memory_space<vmem>>, vector<80x128xf32>,
    %c0_59 = arith.constant 0 : index
    %c20 = arith.constant 20 : index
    %c0_60 = arith.constant 0 : index
    %50 = vector.load %arg2[%c0_59, %c20, %c0_60] : memref<1x110x128xbf16, #tpu.memory_space<vmem>>, vector<1x80x128xbf16>
    %51 = vector.shape_cast %50 : vector<1x80x128xbf16> to vector<80x128xbf16>
    %c0_61 = arith.constant 0 : index
    %c0_62 = arith.constant 0 : index
    %52 = vector.load %arg6[%c0_61, %c0_62] : memref<80x128xf32, #tpu.memory_space<vmem>>, vector<80x128xf32>
    %c6 = arith.constant 6 : index
    %c0_63 = arith.constant 0 : index
    %c0_64 = arith.constant 0 : index
    %53 = vector.load %arg3[%c6, %c0_63, %c0_64] : memref<9x128x128xbf16, #tpu.memory_space<vmem>>, vector<1x128x128xbf16>
    %54 = vector.shape_cast %53 : vector<1x128x128xbf16> to vector<128x128xbf16>
    %cst_65 = arith.constant dense<0.000000e+00> : vector<80x128xf32>
    %55 = tpu.matmul %51, %54, %cst_65 {dimension_numbers = #tpu.dot_dimension_numbers<[1], [0], [0], [1], [0, 0, 1, 1], [], []>} : vector<80x128xbf16>, vector<128x128xbf16>, vector<80x128xf32> -> vector<80x128xf32>
    %56 = arith.addf %52, %55 : vector<80x128xf32>
    %c0_66 = arith.constant 0 : index
    %c0_67 = arith.constant 0 : index
    %57 = vector.load %arg6[%c0_66, %c0_67] : memref<80x128xf32, #tpu.memory_space<vmem>>, vector<80x128xf32>
    tpu.vector_store %arg6[%c0_66, %c0_67], %56 {strides = array<i32>} : memref<80x128xf32, #tpu.memory_space<vmem>>, vector<80x128xf32>,
    %c0_68 = arith.constant 0 : index
    %c21 = arith.constant 21 : index
    %c0_69 = arith.constant 0 : index
    %58 = vector.load %arg2[%c0_68, %c21, %c0_69] : memref<1x110x128xbf16, #tpu.memory_space<vmem>>, vector<1x80x128xbf16>
    %59 = vector.shape_cast %58 : vector<1x80x128xbf16> to vector<80x128xbf16>
    %c0_70 = arith.constant 0 : index
    %c0_71 = arith.constant 0 : index
    %60 = vector.load %arg6[%c0_70, %c0_71] : memref<80x128xf32, #tpu.memory_space<vmem>>, vector<80x128xf32>
    %c7 = arith.constant 7 : index
    %c0_72 = arith.constant 0 : index
    %c0_73 = arith.constant 0 : index
    %61 = vector.load %arg3[%c7, %c0_72, %c0_73] : memref<9x128x128xbf16, #tpu.memory_space<vmem>>, vector<1x128x128xbf16>
    %62 = vector.shape_cast %61 : vector<1x128x128xbf16> to vector<128x128xbf16>
    %cst_74 = arith.constant dense<0.000000e+00> : vector<80x128xf32>
    %63 = tpu.matmul %59, %62, %cst_74 {dimension_numbers = #tpu.dot_dimension_numbers<[1], [0], [0], [1], [0, 0, 1, 1], [], []>} : vector<80x128xbf16>, vector<128x128xbf16>, vector<80x128xf32> -> vector<80x128xf32>
    %64 = arith.addf %60, %63 : vector<80x128xf32>
    %c0_75 = arith.constant 0 : index
    %c0_76 = arith.constant 0 : index
    %65 = vector.load %arg6[%c0_75, %c0_76] : memref<80x128xf32, #tpu.memory_space<vmem>>, vector<80x128xf32>
    tpu.vector_store %arg6[%c0_75, %c0_76], %64 {strides = array<i32>} : memref<80x128xf32, #tpu.memory_space<vmem>>, vector<80x128xf32>,
    %c0_77 = arith.constant 0 : index
    %c22 = arith.constant 22 : index
    %c0_78 = arith.constant 0 : index
    %66 = vector.load %arg2[%c0_77, %c22, %c0_78] : memref<1x110x128xbf16, #tpu.memory_space<vmem>>, vector<1x80x128xbf16>
    %67 = vector.shape_cast %66 : vector<1x80x128xbf16> to vector<80x128xbf16>
    %c0_79 = arith.constant 0 : index
    %c0_80 = arith.constant 0 : index
    %68 = vector.load %arg6[%c0_79, %c0_80] : memref<80x128xf32, #tpu.memory_space<vmem>>, vector<80x128xf32>
    %c8 = arith.constant 8 : index
    %c0_81 = arith.constant 0 : index
    %c0_82 = arith.constant 0 : index
    %69 = vector.load %arg3[%c8, %c0_81, %c0_82] : memref<9x128x128xbf16, #tpu.memory_space<vmem>>, vector<1x128x128xbf16>
    %70 = vector.shape_cast %69 : vector<1x128x128xbf16> to vector<128x128xbf16>
    %cst_83 = arith.constant dense<0.000000e+00> : vector<80x128xf32>
    %71 = tpu.matmul %67, %70, %cst_83 {dimension_numbers = #tpu.dot_dimension_numbers<[1], [0], [0], [1], [0, 0, 1, 1], [], []>} : vector<80x128xbf16>, vector<128x128xbf16>, vector<80x128xf32> -> vector<80x128xf32>
    %72 = arith.addf %68, %71 : vector<80x128xf32>
    %c0_84 = arith.constant 0 : index
    %c0_85 = arith.constant 0 : index
    %73 = vector.load %arg6[%c0_84, %c0_85] : memref<80x128xf32, #tpu.memory_space<vmem>>, vector<80x128xf32>
    tpu.vector_store %arg6[%c0_84, %c0_85], %72 {strides = array<i32>} : memref<80x128xf32, #tpu.memory_space<vmem>>, vector<80x128xf32>,
    %c0_86 = arith.constant 0 : index
    %c0_87 = arith.constant 0 : index
    %74 = vector.load %arg6[%c0_86, %c0_87] : memref<80x128xf32, #tpu.memory_space<vmem>>, vector<80x128xf32>
    %c0_88 = arith.constant 0 : index
    %c0_89 = arith.constant 0 : index
    %75 = vector.load %arg4[%c0_88, %c0_89] : memref<2x128xf32, #tpu.memory_space<vmem>>, vector<1x128xf32>
    %76 = vector.broadcast %75 : vector<1x128xf32> to vector<80x128xf32>
    %77 = arith.mulf %74, %76 : vector<80x128xf32>
    %c1_90 = arith.constant 1 : index
    %c0_91 = arith.constant 0 : index
    %78 = vector.load %arg4[%c1_90, %c0_91] : memref<2x128xf32, #tpu.memory_space<vmem>>, vector<1x128xf32>
    %79 = vector.broadcast %78 : vector<1x128xf32> to vector<80x128xf32>
    %80 = arith.addf %77, %79 : vector<80x128xf32>
    %cst_92 = arith.constant 0.000000e+00 : f32
    %81 = vector.broadcast %cst_92 : f32 to vector<80x128xf32>
    %82 = arith.cmpf oge, %80, %81 : vector<80x128xf32>
    %cst_93 = arith.constant 1.000000e-01 : f32
    %83 = vector.broadcast %cst_93 : f32 to vector<80x128xf32>
    %84 = arith.mulf %83, %80 : vector<80x128xf32>
    %85 = arith.select %82, %80, %84 : vector<80x128xi1>, vector<80x128xf32>
    %86 = arith.truncf %85 : vector<80x128xf32> to vector<80x128xbf16>
    %c0_94 = arith.constant 0 : index
    %c0_95 = arith.constant 0 : index
    %c0_96 = arith.constant 0 : index
    %87 = vector.load %arg5[%c0_94, %c0_95, %c0_96] : memref<1x80x128xbf16, #tpu.memory_space<vmem>>, vector<1x80x128xbf16>
    %88 = vector.shape_cast %87 : vector<1x80x128xbf16> to vector<80x128xbf16>
    %89 = vector.shape_cast %86 : vector<80x128xbf16> to vector<1x80x128xbf16>
    tpu.vector_store %arg5[%c0_94, %c0_95, %c0_96], %89 {strides = array<i32>} : memref<1x80x128xbf16, #tpu.memory_space<vmem>>, vector<1x80x128xbf16>,
    return
  }
  func.func @transform_0(%arg0: i32, %arg1: i32) -> (i32, i32, i32) {
    %c0_i32 = arith.constant 0 : i32
    %c0_i32_0 = arith.constant 0 : i32
    %c0_i32_1 = arith.constant 0 : i32
    return %arg0, %c0_i32, %c0_i32_0 : i32, i32, i32
  }
  func.func @transform_1(%arg0: i32, %arg1: i32) -> (i32, i32, i32) {
    %c0_i32 = arith.constant 0 : i32
    %c0_i32_0 = arith.constant 0 : i32
    %c0_i32_1 = arith.constant 0 : i32
    return %c0_i32, %c0_i32_0, %arg1 : i32, i32, i32
  }
  func.func @transform_2(%arg0: i32, %arg1: i32) -> (i32, i32) {
    %c0_i32 = arith.constant 0 : i32
    %c0_i32_0 = arith.constant 0 : i32
    return %c0_i32, %arg1 : i32, i32
  }
  func.func @transform_3(%arg0: i32, %arg1: i32) -> (i32, i32, i32) {
    %c0_i32 = arith.constant 0 : i32
    %c0_i32_0 = arith.constant 0 : i32
    return %arg0, %c0_i32, %arg1 : i32, i32, i32
  }
}

</mosaic_0001>

<llo_original>
// kernel: a_call__.7
$region0: #{a_call__.7}
  #allocation0 [shape = 'u32[]', space=smem, size = 0x4, offset = 0x4, fixed_abs, tag = 'smem constant byte address 0x4 - core index']
  #allocation1 [shape = 'u32[72,128]{1,0:T(1,128)}', space=vmem, size = 0x9000, scoped, tag = 'internal scratch']
  %s0 = inlined_call_operand.vmem [shape: bf16[512,128], index: 0, kind: input, shape index: {}]
  %s1 = inlined_call_operand.vmem [shape: f32[2,128], index: 1, kind: input, shape index: {}]
  %s2 = inlined_call_operand.vmem [shape: bf16[512,128], index: 2, kind: output, shape index: {}]
  %s3 = sld [smem:[#allocation0]]
  $region41: #{a_call__.7} parent=0
    _
  %s5 = ssub.s32 1, %s3
  %s6 = scalar_select 0, %s5, %s3
  loop: start=0, step=1, limit=4
  $region2: #{a_call__.7} parent=0 // loop_pre_header
    _
  $region3: #{a_call__.7} parent=0 // loop_header
    %s8 = sphi 0, %s12
    %p9 = scmp.ge.s32.totalorder %s8, 4
    %s18 = sphi 0, %s20
    %s21 = sphi 0, %s18
    %s22 = sphi 0, %s21
    %s38 = sphi 0, %s22
    %s42 = sphi 0, %s42
    %s44 = sphi 0, %s42
    %s45 = sphi 0, %s44
    %s59 = sphi 0, %s45
    %s65 = sphi 0, %s67
    %s68 = sphi 0, %s65
    %s69 = sphi 0, %s68
    %s85 = sphi 0, %s69
  $region4: #{a_call__.7} parent=0 // loop_header_branch
    %11 = sbr.rel (%p9) target = $region8
  $region5: #{a_call__.7} parent=0 // loop_body
    %s13 = ssub.s32 %s8, 1
    %s14 = ssub.s32 %s8, 2
    %s15 = sadd.s32 %s8, 1
    %s16 = ssub.s32 %s8, %s15
    %p17 = scmp.eq.s32.totalorder %s16, 0
    %s19 = sadd.s32 %s18, 1
    %s20 = scalar_select %p17, %s18, %s19
    %p23 = pneg %p17
    %p24 = scmp.eq.s32.totalorder %s8, 1
    %p25 = por %p23, %p24
    %p26 = scmp.ne.s32.totalorder %s18, %s21
    %p27 = scmp.eq.s32.totalorder %s8, 0
    %p28 = por %p26, %p27
    %p29 = scmp.ne.s32.totalorder %s18, %s21
    %p30 = scmp.eq.s32.totalorder %s13, 1
    %p31 = por %p29, %p30
    %p32 = scmp.ne.s32.totalorder %s21, %s22
    %p33 = scmp.eq.s32.totalorder %s13, 0
    %p34 = por %p32, %p33
    %p35 = scmp.ne.s32.totalorder %s21, %s22
    %p36 = scmp.eq.s32.totalorder %s14, 1
    %p37 = por %p35, %p36
    %p39 = scmp.ne.s32.totalorder %s22, %s38
    %p40 = scmp.eq.s32.totalorder %s14, 0
    %p41 = por %p39, %p40
    %s43 = sadd.s32 %s42, 1
    %p46 = scmp.eq.s32.totalorder %s8, 1
    %p47 = scmp.ne.s32.totalorder %s42, %s44
    %p48 = scmp.eq.s32.totalorder %s8, 0
    %p49 = por %p47, %p48
    %p50 = scmp.ne.s32.totalorder %s42, %s44
    %p51 = scmp.eq.s32.totalorder %s13, 1
    %p52 = por %p50, %p51
    %p53 = scmp.ne.s32.totalorder %s44, %s45
    %p54 = scmp.eq.s32.totalorder %s13, 0
    %p55 = por %p53, %p54
    %p56 = scmp.ne.s32.totalorder %s44, %s45
    %p57 = scmp.eq.s32.totalorder %s14, 1
    %p58 = por %p56, %p57
    %p60 = scmp.ne.s32.totalorder %s45, %s59
    %p61 = scmp.eq.s32.totalorder %s14, 0
    %p62 = por %p60, %p61
    %s63 = ssub.s32 %s8, %s15
    %p64 = scmp.eq.s32.totalorder %s63, 0
    %s66 = sadd.s32 %s65, 1
    %s67 = scalar_select %p64, %s65, %s66
    %p70 = pneg %p64
    %p71 = scmp.eq.s32.totalorder %s8, 1
    %p72 = por %p70, %p71
    %p73 = scmp.ne.s32.totalorder %s65, %s68
    %p74 = scmp.eq.s32.totalorder %s8, 0
    %p75 = por %p73, %p74
    %p76 = scmp.ne.s32.totalorder %s65, %s68
    %p77 = scmp.eq.s32.totalorder %s13, 1
    %p78 = por %p76, %p77
    %p79 = scmp.ne.s32.totalorder %s68, %s69
    %p80 = scmp.eq.s32.totalorder %s13, 0
    %p81 = por %p79, %p80
    %p82 = scmp.ne.s32.totalorder %s68, %s69
    %p83 = scmp.eq.s32.totalorder %s14, 1
    %p84 = por %p82, %p83
    %p86 = scmp.ne.s32.totalorder %s69, %s85
    %p87 = scmp.eq.s32.totalorder %s14, 0
    %p88 = por %p86, %p87
    %p89 = scmp.le.s32.totalorder 1, %s8
    %p90 = scmp.lt.s32.totalorder %s8, 3
    %p91 = pnand %p89, %p90
    %p92 = pneg %p91
    // Predicated region
    $region9: #{a_call__.7} parent=5 // pred_check
      _
    $region10: #{a_call__.7} parent=5 // pred_check_branch
      %94 = sbr.rel (%p91) target = $region12
    $region11: #{a_call__.7} parent=5 // pred_region
      %s95 = ssub.s32 %s8, 1
      // Predicated region
      $region13: #{a_call__.7} parent=11 // pred_check
        %p96 = pneg %p55
      $region14: #{a_call__.7} parent=11 // pred_check_branch
        %98 = sbr.rel (%p96) target = $region16
      $region15: #{a_call__.7} parent=11 // pred_region
        _
      $region16: #{a_call__.7} parent=11 // pred_fallthru
        _
    $region12: #{a_call__.7} parent=5 // pred_fallthru
      _
    %p99 = scmp.lt.s32.totalorder %s8, 2
    // Predicated region
    $region17: #{a_call__.7} parent=5 // pred_check
      %p100 = pneg %p99
    $region18: #{a_call__.7} parent=5 // pred_check_branch
      %102 = sbr.rel (%p100) target = $region20
    $region19: #{a_call__.7} parent=5 // pred_region
      // Predicated region
      $region21: #{a_call__.7} parent=19 // pred_check
        %p103 = pneg %p28
      $region22: #{a_call__.7} parent=19 // pred_check_branch
        %105 = sbr.rel (%p103) target = $region24
      $region23: #{a_call__.7} parent=19 // pred_region
        %s106 = smul.u32 32, %s8
        %p107 = scmp.lt.s32.totalorder %s106, 63
        %s108 = scalar_select %p107, %s106, 63
        %s109 = smul.addr %s108, 4
        %s110 = scalar_lea.vmem %s0, %s109
        %s111 = smul.u32 32, %s8
      $region24: #{a_call__.7} parent=19 // pred_fallthru
        _
    $region20: #{a_call__.7} parent=5 // pred_fallthru
      _
    %p112 = scmp.le.s32.totalorder 1, %s8
    %p113 = scmp.lt.s32.totalorder %s8, 3
    %p114 = pnand %p112, %p113
    %p115 = pneg %p114
    // Predicated region
    $region25: #{a_call__.7} parent=5 // pred_check
      _
    $region26: #{a_call__.7} parent=5 // pred_check_branch
      %117 = sbr.rel (%p114) target = $region28
    $region27: #{a_call__.7} parent=5 // pred_region
      %s118 = ssub.s32 %s8, 1
      %s119 = smul.u32 32, %s13
      %p120 = scmp.lt.s32.totalorder %s119, 63
      %s121 = scalar_select %p120, %s119, 63
      %s122 = smul.addr %s121, 4
      %s123 = scalar_lea.vmem %s0, %s122
      %p124 = pneg %p34
      %p125 = pneg %p31
      %p126 = pneg %p55
      %p127 = pneg %p52
      %p128 = pneg %p81
      %p129 = pneg %p78
      %s130 = smul.u32 32, %s13
      %p131 = scmp.lt.s32.totalorder %s130, 63
      %s132 = scalar_select %p131, %s130, 63
      %s133 = smul.addr %s132, 4
      %s134 = scalar_lea.vmem %s2, %s133
      %s135 = smul.u32 32, %s13
      %p136 = scmp.lt.s32.totalorder %s135, 63
      %s137 = scalar_select %p136, %s135, 63
      %s138 = smul.addr %s137, 4
      %s139 = scalar_lea.vmem %s0, %s138
      %s140 = smul.u32 32, %s13
      %s141 = smul.u32 32, %s13
      %p142 = scmp.lt.s32.totalorder %s141, 63
      %s143 = scalar_select %p142, %s141, 63
      %s144 = smul.addr %s143, 4
      %s145 = scalar_lea.vmem %s2, %s144
      %s146 = smul.u32 32, %s13
      %v147 = vld [vmem:[%s139] sm:$0xf]
      %v148 = vld [vmem:[%s139 + $0x4] sm:$0xf]
      %v149 = vld [vmem:[%s139 + $0x8] sm:$0xf]
      %v150 = vld [vmem:[%s139 + $0xc] sm:$0xf]
      %v151 = vld [vmem:[%s139 + $0x10] sm:$0xf]
      %v152 = vld [vmem:[%s139 + $0x14] sm:$0xf]
      %v153 = vld [vmem:[%s139 + $0x18] sm:$0xf]
      %v154 = vld [vmem:[%s139 + $0x1c] sm:$0xf]
      %v155 = vld [vmem:[%s139 + $0x20] sm:$0xf]
      %v156 = vld [vmem:[%s139 + $0x24] sm:$0xf]
      %v157 = vld [vmem:[%s139 + $0x28] sm:$0xf]
      %v158 = vld [vmem:[%s139 + $0x2c] sm:$0xf]
      %v159 = vld [vmem:[%s139 + $0x30] sm:$0xf]
      %v160 = vld [vmem:[%s139 + $0x34] sm:$0xf]
      %v161 = vld [vmem:[%s139 + $0x38] sm:$0xf]
      %v162 = vld [vmem:[%s139 + $0x3c] sm:$0xf]
      %v163 = vld [vmem:[%s139 + $0x40] sm:$0xf]
      %v164 = vld [vmem:[%s139 + $0x44] sm:$0xf]
      %v165 = vld [vmem:[%s139 + $0x48] sm:$0xf]
      %v166 = vld [vmem:[%s139 + $0x4c] sm:$0xf]
      %v167 = vld [vmem:[%s139 + $0x50] sm:$0xf]
      %v168 = vld [vmem:[%s139 + $0x54] sm:$0xf]
      %v169 = vld [vmem:[%s139 + $0x58] sm:$0xf]
      %v170 = vld [vmem:[%s139 + $0x5c] sm:$0xf]
      %v171 = vld [vmem:[%s139 + $0x60] sm:$0xf]
      %v172 = vld [vmem:[%s139 + $0x64] sm:$0xf]
      %v173 = vld [vmem:[%s139 + $0x68] sm:$0xf]
      %v174 = vld [vmem:[%s139 + $0x6c] sm:$0xf]
      %v175 = vld [vmem:[%s139 + $0x70] sm:$0xf]
      %v176 = vld [vmem:[%s139 + $0x74] sm:$0xf]
      %v177 = vld [vmem:[%s139 + $0x78] sm:$0xf]
      %v178 = vld [vmem:[%s139 + $0x7c] sm:$0xf]
      %v179 = vunpack.c.l.bf16 %v147
      %v180 = vunpack.c.l.bf16 %v148
      %v181 = vunpack.c.l.bf16 %v149
      %v182 = vunpack.c.l.bf16 %v150
      %v183 = vunpack.c.l.bf16 %v151
      %v184 = vunpack.c.l.bf16 %v152
      %v185 = vunpack.c.l.bf16 %v153
      %v186 = vunpack.c.l.bf16 %v154
      %v187 = vunpack.c.l.bf16 %v155
      %v188 = vunpack.c.l.bf16 %v156
      %v189 = vunpack.c.l.bf16 %v157
      %v190 = vunpack.c.l.bf16 %v158
      %v191 = vunpack.c.l.bf16 %v159
      %v192 = vunpack.c.l.bf16 %v160
      %v193 = vunpack.c.l.bf16 %v161
      %v194 = vunpack.c.l.bf16 %v162
      %v195 = vunpack.c.l.bf16 %v163
      %v196 = vunpack.c.l.bf16 %v164
      %v197 = vunpack.c.l.bf16 %v165
      %v198 = vunpack.c.l.bf16 %v166
      %v199 = vunpack.c.l.bf16 %v167
      %v200 = vunpack.c.l.bf16 %v168
      %v201 = vunpack.c.l.bf16 %v169
      %v202 = vunpack.c.l.bf16 %v170
      %v203 = vunpack.c.l.bf16 %v171
      %v204 = vunpack.c.l.bf16 %v172
      %v205 = vunpack.c.l.bf16 %v173
      %v206 = vunpack.c.l.bf16 %v174
      %v207 = vunpack.c.l.bf16 %v175
      %v208 = vunpack.c.l.bf16 %v176
      %v209 = vunpack.c.l.bf16 %v177
      %v210 = vunpack.c.l.bf16 %v178
      %v211 = vld [vmem:[%s1] sm:$0x1]
      %v212 = vperm.slane %v211, 0
      %v213 = vmul.f32 %v179, %v212
      %v214 = vmul.f32 %v180, %v212
      %v215 = vmul.f32 %v181, %v212
      %v216 = vmul.f32 %v182, %v212
      %v217 = vmul.f32 %v183, %v212
      %v218 = vmul.f32 %v184, %v212
      %v219 = vmul.f32 %v185, %v212
      %v220 = vmul.f32 %v186, %v212
      %v221 = vmul.f32 %v187, %v212
      %v222 = vmul.f32 %v188, %v212
      %v223 = vmul.f32 %v189, %v212
      %v224 = vmul.f32 %v190, %v212
      %v225 = vmul.f32 %v191, %v212
      %v226 = vmul.f32 %v192, %v212
      %v227 = vmul.f32 %v193, %v212
      %v228 = vmul.f32 %v194, %v212
      %v229 = vmul.f32 %v195, %v212
      %v230 = vmul.f32 %v196, %v212
      %v231 = vmul.f32 %v197, %v212
      %v232 = vmul.f32 %v198, %v212
      %v233 = vmul.f32 %v199, %v212
      %v234 = vmul.f32 %v200, %v212
      %v235 = vmul.f32 %v201, %v212
      %v236 = vmul.f32 %v202, %v212
      %v237 = vmul.f32 %v203, %v212
      %v238 = vmul.f32 %v204, %v212
      %v239 = vmul.f32 %v205, %v212
      %v240 = vmul.f32 %v206, %v212
      %v241 = vmul.f32 %v207, %v212
      %v242 = vmul.f32 %v208, %v212
      %v243 = vmul.f32 %v209, %v212
      %v244 = vmul.f32 %v210, %v212
      %v245 = vld [vmem:[%s1 + $0x1] sm:$0x1]
      %v246 = vperm.slane %v245, 0
      %v247 = vadd.f32 %v213, %v246
      %v248 = vadd.f32 %v214, %v246
      %v249 = vadd.f32 %v215, %v246
      %v250 = vadd.f32 %v216, %v246
      %v251 = vadd.f32 %v217, %v246
      %v252 = vadd.f32 %v218, %v246
      %v253 = vadd.f32 %v219, %v246
      %v254 = vadd.f32 %v220, %v246
      %v255 = vadd.f32 %v221, %v246
      %v256 = vadd.f32 %v222, %v246
      %v257 = vadd.f32 %v223, %v246
      %v258 = vadd.f32 %v224, %v246
      %v259 = vadd.f32 %v225, %v246
      %v260 = vadd.f32 %v226, %v246
      %v261 = vadd.f32 %v227, %v246
      %v262 = vadd.f32 %v228, %v246
      %v263 = vadd.f32 %v229, %v246
      %v264 = vadd.f32 %v230, %v246
      %v265 = vadd.f32 %v231, %v246
      %v266 = vadd.f32 %v232, %v246
      %v267 = vadd.f32 %v233, %v246
      %v268 = vadd.f32 %v234, %v246
      %v269 = vadd.f32 %v235, %v246
      %v270 = vadd.f32 %v236, %v246
      %v271 = vadd.f32 %v237, %v246
      %v272 = vadd.f32 %v238, %v246
      %v273 = vadd.f32 %v239, %v246
      %v274 = vadd.f32 %v240, %v246
      %v275 = vadd.f32 %v241, %v246
      %v276 = vadd.f32 %v242, %v246
      %v277 = vadd.f32 %v243, %v246
      %v278 = vadd.f32 %v244, %v246
      %vm279 = vcmp.ge.f32.partialorder %v247, 0.0
      %vm280 = vcmp.ge.f32.partialorder %v248, 0.0
      %vm281 = vcmp.ge.f32.partialorder %v249, 0.0
      %vm282 = vcmp.ge.f32.partialorder %v250, 0.0
      %vm283 = vcmp.ge.f32.partialorder %v251, 0.0
      %vm284 = vcmp.ge.f32.partialorder %v252, 0.0
      %vm285 = vcmp.ge.f32.partialorder %v253, 0.0
      %vm286 = vcmp.ge.f32.partialorder %v254, 0.0
      %vm287 = vcmp.ge.f32.partialorder %v255, 0.0
      %vm288 = vcmp.ge.f32.partialorder %v256, 0.0
      %vm289 = vcmp.ge.f32.partialorder %v257, 0.0
      %vm290 = vcmp.ge.f32.partialorder %v258, 0.0
      %vm291 = vcmp.ge.f32.partialorder %v259, 0.0
      %vm292 = vcmp.ge.f32.partialorder %v260, 0.0
      %vm293 = vcmp.ge.f32.partialorder %v261, 0.0
      %vm294 = vcmp.ge.f32.partialorder %v262, 0.0
      %vm295 = vcmp.ge.f32.partialorder %v263, 0.0
      %vm296 = vcmp.ge.f32.partialorder %v264, 0.0
      %vm297 = vcmp.ge.f32.partialorder %v265, 0.0
      %vm298 = vcmp.ge.f32.partialorder %v266, 0.0
      %vm299 = vcmp.ge.f32.partialorder %v267, 0.0
      %vm300 = vcmp.ge.f32.partialorder %v268, 0.0
      %vm301 = vcmp.ge.f32.partialorder %v269, 0.0
      %vm302 = vcmp.ge.f32.partialorder %v270, 0.0
      %vm303 = vcmp.ge.f32.partialorder %v271, 0.0
      %vm304 = vcmp.ge.f32.partialorder %v272, 0.0
      %vm305 = vcmp.ge.f32.partialorder %v273, 0.0
      %vm306 = vcmp.ge.f32.partialorder %v274, 0.0
      %vm307 = vcmp.ge.f32.partialorder %v275, 0.0
      %vm308 = vcmp.ge.f32.partialorder %v276, 0.0
      %vm309 = vcmp.ge.f32.partialorder %v277, 0.0
      %vm310 = vcmp.ge.f32.partialorder %v278, 0.0
      %v311 = vmul.f32 %v247, 0.1
      %v312 = vmul.f32 %v248, 0.1
      %v313 = vmul.f32 %v249, 0.1
      %v314 = vmul.f32 %v250, 0.1
      %v315 = vmul.f32 %v251, 0.1
      %v316 = vmul.f32 %v252, 0.1
      %v317 = vmul.f32 %v253, 0.1
      %v318 = vmul.f32 %v254, 0.1
      %v319 = vmul.f32 %v255, 0.1
      %v320 = vmul.f32 %v256, 0.1
      %v321 = vmul.f32 %v257, 0.1
      %v322 = vmul.f32 %v258, 0.1
      %v323 = vmul.f32 %v259, 0.1
      %v324 = vmul.f32 %v260, 0.1
      %v325 = vmul.f32 %v261, 0.1
      %v326 = vmul.f32 %v262, 0.1
      %v327 = vmul.f32 %v263, 0.1
      %v328 = vmul.f32 %v264, 0.1
      %v329 = vmul.f32 %v265, 0.1
      %v330 = vmul.f32 %v266, 0.1
      %v331 = vmul.f32 %v267, 0.1
      %v332 = vmul.f32 %v268, 0.1
      %v333 = vmul.f32 %v269, 0.1
      %v334 = vmul.f32 %v270, 0.1
      %v335 = vmul.f32 %v271, 0.1
      %v336 = vmul.f32 %v272, 0.1
      %v337 = vmul.f32 %v273, 0.1
      %v338 = vmul.f32 %v274, 0.1
      %v339 = vmul.f32 %v275, 0.1
      %v340 = vmul.f32 %v276, 0.1
      %v341 = vmul.f32 %v277, 0.1
      %v342 = vmul.f32 %v278, 0.1
      %v343 = vsel %vm279, %v247, %v311
      %v344 = vsel %vm280, %v248, %v312
      %v345 = vsel %vm281, %v249, %v313
      %v346 = vsel %vm282, %v250, %v314
      %v347 = vsel %vm283, %v251, %v315
      %v348 = vsel %vm284, %v252, %v316
      %v349 = vsel %vm285, %v253, %v317
      %v350 = vsel %vm286, %v254, %v318
      %v351 = vsel %vm287, %v255, %v319
      %v352 = vsel %vm288, %v256, %v320
      %v353 = vsel %vm289, %v257, %v321
      %v354 = vsel %vm290, %v258, %v322
      %v355 = vsel %vm291, %v259, %v323
      %v356 = vsel %vm292, %v260, %v324
      %v357 = vsel %vm293, %v261, %v325
      %v358 = vsel %vm294, %v262, %v326
      %v359 = vsel %vm295, %v263, %v327
      %v360 = vsel %vm296, %v264, %v328
      %v361 = vsel %vm297, %v265, %v329
      %v362 = vsel %vm298, %v266, %v330
      %v363 = vsel %vm299, %v267, %v331
      %v364 = vsel %vm300, %v268, %v332
      %v365 = vsel %vm301, %v269, %v333
      %v366 = vsel %vm302, %v270, %v334
      %v367 = vsel %vm303, %v271, %v335
      %v368 = vsel %vm304, %v272, %v336
      %v369 = vsel %vm305, %v273, %v337
      %v370 = vsel %vm306, %v274, %v338
      %v371 = vsel %vm307, %v275, %v339
      %v372 = vsel %vm308, %v276, %v340
      %v373 = vsel %vm309, %v277, %v341
      %v374 = vsel %vm310, %v278, %v342
      %v375 = vpack.c.bf16 %v343, %v343
      %v376 = vpack.c.bf16 %v344, %v344
      %v377 = vpack.c.bf16 %v345, %v345
      %v378 = vpack.c.bf16 %v346, %v346
      %v379 = vpack.c.bf16 %v347, %v347
      %v380 = vpack.c.bf16 %v348, %v348
      %v381 = vpack.c.bf16 %v349, %v349
      %v382 = vpack.c.bf16 %v350, %v350
      %v383 = vpack.c.bf16 %v351, %v351
      %v384 = vpack.c.bf16 %v352, %v352
      %v385 = vpack.c.bf16 %v353, %v353
      %v386 = vpack.c.bf16 %v354, %v354
      %v387 = vpack.c.bf16 %v355, %v355
      %v388 = vpack.c.bf16 %v356, %v356
      %v389 = vpack.c.bf16 %v357, %v357
      %v390 = vpack.c.bf16 %v358, %v358
      %v391 = vpack.c.bf16 %v359, %v359
      %v392 = vpack.c.bf16 %v360, %v360
      %v393 = vpack.c.bf16 %v361, %v361
      %v394 = vpack.c.bf16 %v362, %v362
      %v395 = vpack.c.bf16 %v363, %v363
      %v396 = vpack.c.bf16 %v364, %v364
      %v397 = vpack.c.bf16 %v365, %v365
      %v398 = vpack.c.bf16 %v366, %v366
      %v399 = vpack.c.bf16 %v367, %v367
      %v400 = vpack.c.bf16 %v368, %v368
      %v401 = vpack.c.bf16 %v369, %v369
      %v402 = vpack.c.bf16 %v370, %v370
      %v403 = vpack.c.bf16 %v371, %v371
      %v404 = vpack.c.bf16 %v372, %v372
      %v405 = vpack.c.bf16 %v373, %v373
      %v406 = vpack.c.bf16 %v374, %v374
      %407 = vst [vmem:[%s145] sm:$0xf] %v375
      %408 = vst [vmem:[%s145 + $0x4] sm:$0xf] %v376
      %409 = vst [vmem:[%s145 + $0x8] sm:$0xf] %v377
      %410 = vst [vmem:[%s145 + $0xc] sm:$0xf] %v378
      %411 = vst [vmem:[%s145 + $0x10] sm:$0xf] %v379
      %412 = vst [vmem:[%s145 + $0x14] sm:$0xf] %v380
      %413 = vst [vmem:[%s145 + $0x18] sm:$0xf] %v381
      %414 = vst [vmem:[%s145 + $0x1c] sm:$0xf] %v382
      %415 = vst [vmem:[%s145 + $0x20] sm:$0xf] %v383
      %416 = vst [vmem:[%s145 + $0x24] sm:$0xf] %v384
      %417 = vst [vmem:[%s145 + $0x28] sm:$0xf] %v385
      %418 = vst [vmem:[%s145 + $0x2c] sm:$0xf] %v386
      %419 = vst [vmem:[%s145 + $0x30] sm:$0xf] %v387
      %420 = vst [vmem:[%s145 + $0x34] sm:$0xf] %v388
      %421 = vst [vmem:[%s145 + $0x38] sm:$0xf] %v389
      %422 = vst [vmem:[%s145 + $0x3c] sm:$0xf] %v390
      %423 = vst [vmem:[%s145 + $0x40] sm:$0xf] %v391
      %424 = vst [vmem:[%s145 + $0x44] sm:$0xf] %v392
      %425 = vst [vmem:[%s145 + $0x48] sm:$0xf] %v393
      %426 = vst [vmem:[%s145 + $0x4c] sm:$0xf] %v394
      %427 = vst [vmem:[%s145 + $0x50] sm:$0xf] %v395
      %428 = vst [vmem:[%s145 + $0x54] sm:$0xf] %v396
      %429 = vst [vmem:[%s145 + $0x58] sm:$0xf] %v397
      %430 = vst [vmem:[%s145 + $0x5c] sm:$0xf] %v398
      %431 = vst [vmem:[%s145 + $0x60] sm:$0xf] %v399
      %432 = vst [vmem:[%s145 + $0x64] sm:$0xf] %v400
      %433 = vst [vmem:[%s145 + $0x68] sm:$0xf] %v401
      %434 = vst [vmem:[%s145 + $0x6c] sm:$0xf] %v402
      %435 = vst [vmem:[%s145 + $0x70] sm:$0xf] %v403
      %436 = vst [vmem:[%s145 + $0x74] sm:$0xf] %v404
      %437 = vst [vmem:[%s145 + $0x78] sm:$0xf] %v405
      %438 = vst [vmem:[%s145 + $0x7c] sm:$0xf] %v406
      %s439 = smul.u32 32, %s13
      %p440 = scmp.lt.s32.totalorder %s439, 63
      %s441 = scalar_select %p440, %s439, 63
      %s442 = smul.addr %s441, 4
      %s443 = scalar_lea.vmem %s2, %s442
      // Predicated region
      $region29: #{a_call__.7} parent=27 // pred_check
        %p444 = pneg %p78
      $region30: #{a_call__.7} parent=27 // pred_check_branch
        %446 = sbr.rel (%p444) target = $region32
      $region31: #{a_call__.7} parent=27 // pred_region
        %s447 = smul.u32 32, %s13
      $region32: #{a_call__.7} parent=27 // pred_fallthru
        _
    $region28: #{a_call__.7} parent=5 // pred_fallthru
      _
    %p448 = scmp.le.s32.totalorder 2, %s8
    // Predicated region
    $region33: #{a_call__.7} parent=5 // pred_check
      %p449 = pneg %p448
    $region34: #{a_call__.7} parent=5 // pred_check_branch
      %451 = sbr.rel (%p449) target = $region36
    $region35: #{a_call__.7} parent=5 // pred_region
      %s452 = ssub.s32 %s8, 2
      // Predicated region
      $region37: #{a_call__.7} parent=35 // pred_check
        %p453 = pneg %p84
      $region38: #{a_call__.7} parent=35 // pred_check_branch
        %455 = sbr.rel (%p453) target = $region40
      $region39: #{a_call__.7} parent=35 // pred_region
        %s456 = smul.u32 32, %s14
        %p457 = scmp.lt.s32.totalorder %s456, 63
        %s458 = scalar_select %p457, %s456, 63
        %s459 = smul.addr %s458, 4
        %s460 = scalar_lea.vmem %s2, %s459
      $region40: #{a_call__.7} parent=35 // pred_fallthru
        _
    $region36: #{a_call__.7} parent=5 // pred_fallthru
      _
  $region6: #{a_call__.7} parent=0 // loop_footer
    %s12 = sadd.s32 1, %s8
  $region7: #{a_call__.7} parent=0 // loop_footer_branch
    %7 = sbr.rel target = $region3
  $region8: #{a_call__.7} parent=0 // loop_exit
    _

// kernel: a_call__.9
$region0: #{a_call__.9}
  #allocation0 [shape = 'u32[]', space=smem, size = 0x4, offset = 0x4, fixed_abs, tag = 'smem constant byte address 0x4 - core index']
  #allocation1 [shape = 'u32[72,128]{1,0:T(1,128)}', space=vmem, size = 0x9000, scoped, tag = 'internal scratch']
  #allocation2 [shape = 'f32[64,128]{1,0:T(8,128)}', space=vmem, size = 0x8000, scoped, tag = 'scratch operand']
  %s0 = inlined_call_operand.vmem [shape: bf16[128,128], index: 0, kind: input, shape index: {}]
  %s1 = inlined_call_operand.vmem [shape: bf16[128,128], index: 1, kind: input, shape index: {}]
  %s2 = inlined_call_operand.vmem [shape: bf16[128,128], index: 2, kind: output, shape index: {}]
  %s3 = sld [smem:[#allocation0]]
  $region49: #{a_call__.9} parent=0
    _
  %s5 = ssub.s32 1, %s3
  %s6 = scalar_select 0, %s5, %s3
  loop: start=0, step=1, limit=4
  $region2: #{a_call__.9} parent=0 // loop_pre_header
    _
  $region3: #{a_call__.9} parent=0 // loop_header
    %s8 = sphi 0, %s12
    %p9 = scmp.ge.s32.totalorder %s8, 4
    %s15 = sphi 0, %s34
    %s16 = sphi 0, %s30
    %s17 = sphi 0, %s26
    %s18 = sphi 0, %s15
    %s19 = sphi 0, %s16
    %s20 = sphi 0, %s17
    %s21 = sphi 0, %s18
    %s22 = sphi 0, %s19
    %s23 = sphi 0, %s20
    %s39 = sphi 0, %s41
    %s42 = sphi 0, %s39
    %s43 = sphi 0, %s42
    %s59 = sphi 0, %s43
    %s67 = sphi 0, %s69
    %s70 = sphi 0, %s67
    %s71 = sphi 0, %s70
    %s87 = sphi 0, %s71
    %s95 = sphi 0, %s97
    %s98 = sphi 0, %s95
    %s99 = sphi 0, %s98
    %s115 = sphi 0, %s99
  $region4: #{a_call__.9} parent=0 // loop_header_branch
    %11 = sbr.rel (%p9) target = $region8
  $region5: #{a_call__.9} parent=0 // loop_body
    %s13 = ssub.s32 %s8, 1
    %s14 = ssub.s32 %s8, 2
    %s24 = sadd.s32 1, %s17
    %p25 = scmp.ge.s32.totalorder %s24, 1
    %s26 = scalar_select %p25, 0, %s24
    %s27 = sadd.s32 1, %s16
    %s28 = scalar_select %p25, %s27, %s16
    %p29 = scmp.ge.s32.totalorder %s28, 1
    %s30 = scalar_select %p29, 0, %s28
    %s31 = sadd.s32 1, %s15
    %s32 = scalar_select %p29, %s31, %s15
    %p33 = scmp.ge.s32.totalorder %s32, 2
    %s34 = scalar_select %p33, 0, %s32
    %s35 = ssub.s32 %s15, %s34
    %s36 = ssub.s32 %s17, %s26
    %s37 = sor.u32 %s35, %s36
    %p38 = scmp.eq.s32.totalorder %s37, 0
    %s40 = sadd.s32 %s39, 1
    %s41 = scalar_select %p38, %s39, %s40
    %p44 = pneg %p38
    %p45 = scmp.eq.s32.totalorder %s8, 1
    %p46 = por %p44, %p45
    %p47 = scmp.ne.s32.totalorder %s39, %s42
    %p48 = scmp.eq.s32.totalorder %s8, 0
    %p49 = por %p47, %p48
    %p50 = scmp.ne.s32.totalorder %s39, %s42
    %p51 = scmp.eq.s32.totalorder %s13, 1
    %p52 = por %p50, %p51
    %p53 = scmp.ne.s32.totalorder %s42, %s43
    %p54 = scmp.eq.s32.totalorder %s13, 0
    %p55 = por %p53, %p54
    %p56 = scmp.ne.s32.totalorder %s42, %s43
    %p57 = scmp.eq.s32.totalorder %s14, 1
    %p58 = por %p56, %p57
    %p60 = scmp.ne.s32.totalorder %s43, %s59
    %p61 = scmp.eq.s32.totalorder %s14, 0
    %p62 = por %p60, %p61
    %s63 = ssub.s32 %s17, %s26
    %s64 = ssub.s32 %s16, %s30
    %s65 = sor.u32 %s63, %s64
    %p66 = scmp.eq.s32.totalorder %s65, 0
    %s68 = sadd.s32 %s67, 1
    %s69 = scalar_select %p66, %s67, %s68
    %p72 = pneg %p66
    %p73 = scmp.eq.s32.totalorder %s8, 1
    %p74 = por %p72, %p73
    %p75 = scmp.ne.s32.totalorder %s67, %s70
    %p76 = scmp.eq.s32.totalorder %s8, 0
    %p77 = por %p75, %p76
    %p78 = scmp.ne.s32.totalorder %s67, %s70
    %p79 = scmp.eq.s32.totalorder %s13, 1
    %p80 = por %p78, %p79
    %p81 = scmp.ne.s32.totalorder %s70, %s71
    %p82 = scmp.eq.s32.totalorder %s13, 0
    %p83 = por %p81, %p82
    %p84 = scmp.ne.s32.totalorder %s70, %s71
    %p85 = scmp.eq.s32.totalorder %s14, 1
    %p86 = por %p84, %p85
    %p88 = scmp.ne.s32.totalorder %s71, %s87
    %p89 = scmp.eq.s32.totalorder %s14, 0
    %p90 = por %p88, %p89
    %s91 = ssub.s32 %s15, %s34
    %s92 = ssub.s32 %s16, %s30
    %s93 = sor.u32 %s91, %s92
    %p94 = scmp.eq.s32.totalorder %s93, 0
    %s96 = sadd.s32 %s95, 1
    %s97 = scalar_select %p94, %s95, %s96
    %p100 = pneg %p94
    %p101 = scmp.eq.s32.totalorder %s8, 1
    %p102 = por %p100, %p101
    %p103 = scmp.ne.s32.totalorder %s95, %s98
    %p104 = scmp.eq.s32.totalorder %s8, 0
    %p105 = por %p103, %p104
    %p106 = scmp.ne.s32.totalorder %s95, %s98
    %p107 = scmp.eq.s32.totalorder %s13, 1
    %p108 = por %p106, %p107
    %p109 = scmp.ne.s32.totalorder %s98, %s99
    %p110 = scmp.eq.s32.totalorder %s13, 0
    %p111 = por %p109, %p110
    %p112 = scmp.ne.s32.totalorder %s98, %s99
    %p113 = scmp.eq.s32.totalorder %s14, 1
    %p114 = por %p112, %p113
    %p116 = scmp.ne.s32.totalorder %s99, %s115
    %p117 = scmp.eq.s32.totalorder %s14, 0
    %p118 = por %p116, %p117
    %p119 = scmp.le.s32.totalorder 1, %s8
    %p120 = scmp.lt.s32.totalorder %s8, 3
    %p121 = pnand %p119, %p120
    %p122 = pneg %p121
    // Predicated region
    $region9: #{a_call__.9} parent=5 // pred_check
      _
    $region10: #{a_call__.9} parent=5 // pred_check_branch
      %124 = sbr.rel (%p121) target = $region12
    $region11: #{a_call__.9} parent=5 // pred_region
      %s125 = ssub.s32 %s8, 1
      // Predicated region
      $region13: #{a_call__.9} parent=11 // pred_check
        %p126 = pneg %p83
      $region14: #{a_call__.9} parent=11 // pred_check_branch
        %128 = sbr.rel (%p126) target = $region16
      $region15: #{a_call__.9} parent=11 // pred_region
        %s129 = smul.u32 16, %s20
        %p130 = scmp.lt.s32.totalorder %s129, 15
        %s131 = scalar_select %p130, %s129, 15
        %p132 = scmp.lt.s32.totalorder %s19, 0
        %s133 = scalar_select %p132, %s19, 0
        %s134 = sadd.s32 %s133, %s131
        %s135 = smul.addr %s134, 4
        %s136 = scalar_lea.vmem %s1, %s135
        %s137 = smul.u32 16, %s20
      $region16: #{a_call__.9} parent=11 // pred_fallthru
        _
    $region12: #{a_call__.9} parent=5 // pred_fallthru
      _
    %p138 = scmp.lt.s32.totalorder %s8, 2
    // Predicated region
    $region17: #{a_call__.9} parent=5 // pred_check
      %p139 = pneg %p138
    $region18: #{a_call__.9} parent=5 // pred_check_branch
      %141 = sbr.rel (%p139) target = $region20
    $region19: #{a_call__.9} parent=5 // pred_region
      // Predicated region
      $region21: #{a_call__.9} parent=19 // pred_check
        %p142 = pneg %p49
      $region22: #{a_call__.9} parent=19 // pred_check_branch
        %144 = sbr.rel (%p142) target = $region24
      $region23: #{a_call__.9} parent=19 // pred_region
        %s145 = smul.u32 8, %s15
        %p146 = scmp.lt.s32.totalorder %s145, 15
        %s147 = scalar_select %p146, %s145, 15
        %p148 = scmp.lt.s32.totalorder %s17, 0
        %s149 = scalar_select %p148, %s17, 0
        %s150 = sadd.s32 %s149, %s147
        %s151 = smul.addr %s150, 4
        %s152 = scalar_lea.vmem %s0, %s151
        %s153 = smul.u32 8, %s15
      $region24: #{a_call__.9} parent=19 // pred_fallthru
        _
    $region20: #{a_call__.9} parent=5 // pred_fallthru
      _
    %p154 = scmp.le.s32.totalorder 1, %s8
    %p155 = scmp.lt.s32.totalorder %s8, 3
    %p156 = pnand %p154, %p155
    %p157 = pneg %p156
    // Predicated region
    $region25: #{a_call__.9} parent=5 // pred_check
      _
    $region26: #{a_call__.9} parent=5 // pred_check_branch
      %159 = sbr.rel (%p156) target = $region28
    $region27: #{a_call__.9} parent=5 // pred_region
      %s160 = ssub.s32 %s8, 1
      %s161 = smul.u32 8, %s18
      %p162 = scmp.lt.s32.totalorder %s161, 15
      %s163 = scalar_select %p162, %s161, 15
      %p164 = scmp.lt.s32.totalorder %s20, 0
      %s165 = scalar_select %p164, %s20, 0
      %s166 = sadd.s32 %s165, %s163
      %s167 = smul.addr %s166, 4
      %s168 = scalar_lea.vmem %s0, %s167
      %p169 = pneg %p55
      %p170 = pneg %p52
      %s171 = smul.u32 16, %s20
      %p172 = scmp.lt.s32.totalorder %s171, 15
      %s173 = scalar_select %p172, %s171, 15
      %p174 = scmp.lt.s32.totalorder %s19, 0
      %s175 = scalar_select %p174, %s19, 0
      %s176 = sadd.s32 %s175, %s173
      %s177 = smul.addr %s176, 4
      %s178 = scalar_lea.vmem %s1, %s177
      %p179 = pneg %p83
      %p180 = pneg %p80
      %p181 = pneg %p111
      %p182 = pneg %p108
      %s183 = smul.u32 8, %s18
      %p184 = scmp.lt.s32.totalorder %s183, 15
      %s185 = scalar_select %p184, %s183, 15
      %p186 = scmp.lt.s32.totalorder %s19, 0
      %s187 = scalar_select %p186, %s19, 0
      %s188 = sadd.s32 %s187, %s185
      %s189 = smul.addr %s188, 4
      %s190 = scalar_lea.vmem %s2, %s189
      %s191 = smul.u32 8, %s18
      %p192 = scmp.lt.s32.totalorder %s191, 15
      %s193 = scalar_select %p192, %s191, 15
      %p194 = scmp.lt.s32.totalorder %s20, 0
      %s195 = scalar_select %p194, %s20, 0
      %s196 = sadd.s32 %s195, %s193
      %s197 = smul.addr %s196, 4
      %s198 = scalar_lea.vmem %s0, %s197
      %s199 = smul.u32 8, %s18
      %s200 = smul.u32 16, %s20
      %p201 = scmp.lt.s32.totalorder %s200, 15
      %s202 = scalar_select %p201, %s200, 15
      %p203 = scmp.lt.s32.totalorder %s19, 0
      %s204 = scalar_select %p203, %s19, 0
      %s205 = sadd.s32 %s204, %s202
      %s206 = smul.addr %s205, 4
      %s207 = scalar_lea.vmem %s1, %s206
      %s208 = smul.u32 16, %s20
      %s209 = smul.u32 8, %s18
      %p210 = scmp.lt.s32.totalorder %s209, 15
      %s211 = scalar_select %p210, %s209, 15
      %p212 = scmp.lt.s32.totalorder %s19, 0
      %s213 = scalar_select %p212, %s19, 0
      %s214 = sadd.s32 %s213, %s211
      %s215 = smul.addr %s214, 4
      %s216 = scalar_lea.vmem %s2, %s215
      %s217 = smul.u32 8, %s18
      %p218 = scmp.eq.s32.totalorder %s20, 0
      // Predicated region
      $region29: #{a_call__.9} parent=27 // pred_check
        %p219 = pneg %p218
      $region30: #{a_call__.9} parent=27 // pred_check_branch
        %221 = sbr.rel (%p219) target = $region32
      $region31: #{a_call__.9} parent=27 // pred_region
        %222 = vst [vmem:[#allocation2] sm:$0xff] 0.0
        %223 = vst [vmem:[#allocation2 + $0x8] sm:$0xff] 0.0
        %224 = vst [vmem:[#allocation2 + $0x10] sm:$0xff] 0.0
        %225 = vst [vmem:[#allocation2 + $0x18] sm:$0xff] 0.0
        %226 = vst [vmem:[#allocation2 + $0x20] sm:$0xff] 0.0
        %227 = vst [vmem:[#allocation2 + $0x28] sm:$0xff] 0.0
        %228 = vst [vmem:[#allocation2 + $0x30] sm:$0xff] 0.0
        %229 = vst [vmem:[#allocation2 + $0x38] sm:$0xff] 0.0
      $region32: #{a_call__.9} parent=27 // pred_fallthru
        _
      %v230 = vld [vmem:[#allocation2] sm:$0xff]
      %v231 = vld [vmem:[#allocation2 + $0x8] sm:$0xff]
      %v232 = vld [vmem:[#allocation2 + $0x10] sm:$0xff]
      %v233 = vld [vmem:[#allocation2 + $0x18] sm:$0xff]
      %v234 = vld [vmem:[#allocation2 + $0x20] sm:$0xff]
      %v235 = vld [vmem:[#allocation2 + $0x28] sm:$0xff]
      %v236 = vld [vmem:[#allocation2 + $0x30] sm:$0xff]
      %v237 = vld [vmem:[#allocation2 + $0x38] sm:$0xff]
      %v238 = vld [vmem:[%s198] sm:$0xf]
      %v239 = vld [vmem:[%s198 + $0x4] sm:$0xf]
      %v240 = vld [vmem:[%s198 + $0x8] sm:$0xf]
      %v241 = vld [vmem:[%s198 + $0xc] sm:$0xf]
      %v242 = vld [vmem:[%s198 + $0x10] sm:$0xf]
      %v243 = vld [vmem:[%s198 + $0x14] sm:$0xf]
      %v244 = vld [vmem:[%s198 + $0x18] sm:$0xf]
      %v245 = vld [vmem:[%s198 + $0x1c] sm:$0xf]
      %v246 = vld [vmem:[%s207] sm:$0xf]
      %v247 = vld [vmem:[%s207 + $0x4] sm:$0xf]
      %v248 = vld [vmem:[%s207 + $0x8] sm:$0xf]
      %v249 = vld [vmem:[%s207 + $0xc] sm:$0xf]
      %v250 = vld [vmem:[%s207 + $0x10] sm:$0xf]
      %v251 = vld [vmem:[%s207 + $0x14] sm:$0xf]
      %v252 = vld [vmem:[%s207 + $0x18] sm:$0xf]
      %v253 = vld [vmem:[%s207 + $0x1c] sm:$0xf]
      %v254 = vld [vmem:[%s207 + $0x20] sm:$0xf]
      %v255 = vld [vmem:[%s207 + $0x24] sm:$0xf]
      %v256 = vld [vmem:[%s207 + $0x28] sm:$0xf]
      %v257 = vld [vmem:[%s207 + $0x2c] sm:$0xf]
      %v258 = vld [vmem:[%s207 + $0x30] sm:$0xf]
      %v259 = vld [vmem:[%s207 + $0x34] sm:$0xf]
      %v260 = vld [vmem:[%s207 + $0x38] sm:$0xf]
      %v261 = vld [vmem:[%s207 + $0x3c] sm:$0xf]
      %v270 = vunpack.c.l.b16 %v238
      %v271 = vunpack.c.l.b16 %v239
      %v272 = vunpack.c.l.b16 %v240
      %v273 = vunpack.c.l.b16 %v241
      %v274 = vunpack.c.l.b16 %v242
      %v275 = vunpack.c.l.b16 %v243
      %v276 = vunpack.c.l.b16 %v244
      %v277 = vunpack.c.l.b16 %v245
      %v278 = vpack.c.b16 %v271, %v270
      %v279 = vpack.c.b16 %v273, %v272
      %v280 = vpack.c.b16 %v275, %v274
      %v281 = vpack.c.b16 %v277, %v276
      %v302 = vunpack.c.l.b16 %v246
      %v303 = vunpack.c.l.b16 %v247
      %v304 = vunpack.c.l.b16 %v248
      %v305 = vunpack.c.l.b16 %v249
      %v306 = vunpack.c.l.b16 %v250
      %v307 = vunpack.c.l.b16 %v251
      %v308 = vunpack.c.l.b16 %v252
      %v309 = vunpack.c.l.b16 %v253
      %v310 = vunpack.c.l.b16 %v254
      %v311 = vunpack.c.l.b16 %v255
      %v312 = vunpack.c.l.b16 %v256
      %v313 = vunpack.c.l.b16 %v257
      %v314 = vunpack.c.l.b16 %v258
      %v315 = vunpack.c.l.b16 %v259
      %v316 = vunpack.c.l.b16 %v260
      %v317 = vunpack.c.l.b16 %v261
      %v318 = vpack.c.b16 %v303, %v302
      %v319 = vpack.c.b16 %v305, %v304
      %v320 = vpack.c.b16 %v307, %v306
      %v321 = vpack.c.b16 %v309, %v308
      %v322 = vpack.c.b16 %v311, %v310
      %v323 = vpack.c.b16 %v313, %v312
      %v324 = vpack.c.b16 %v315, %v314
      %v325 = vpack.c.b16 %v317, %v316
      %334 = vmatpush.bf16.msra.mxu0 %v325
      %335 = vmatpush.bf16.msra.mxu0 %v324
      %336 = vmatpush.bf16.msra.mxu0 %v323
      %337 = vmatpush.bf16.msra.mxu0 %v322
      %338 = vmatpush.bf16.msra.mxu0 %v321
      %339 = vmatpush.bf16.msra.mxu0 %v320
      %340 = vmatpush.bf16.msra.mxu0 %v319
      %341 = vmatpush.bf16.msra.mxu0 %v318
      %342 = vmatmul.bf16.gmra.mxu0 %v278
      %v343 = vpop.f32.mrf.mxu0
      %v344 = vadd.f32 0.0, %v343
      %v345 = vpop.f32.mrf.mxu0
      %v346 = vadd.f32 0.0, %v345
      %347 = vmatmul.bf16.gmra.mxu0 %v279
      %v348 = vpop.f32.mrf.mxu0
      %v349 = vadd.f32 0.0, %v348
      %v350 = vpop.f32.mrf.mxu0
      %v351 = vadd.f32 0.0, %v350
      %352 = vmatmul.bf16.gmra.mxu0 %v280
      %v353 = vpop.f32.mrf.mxu0
      %v354 = vadd.f32 0.0, %v353
      %v355 = vpop.f32.mrf.mxu0
      %v356 = vadd.f32 0.0, %v355
      %357 = vmatmul.bf16.gmra.mxu0 %v281
      %v358 = vpop.f32.mrf.mxu0
      %v359 = vadd.f32 0.0, %v358
      %v360 = vpop.f32.mrf.mxu0
      %v361 = vadd.f32 0.0, %v360
      %362 = vdwg.mxu0
      %v363 = vadd.f32 %v230, %v344
      %v364 = vadd.f32 %v231, %v346
      %v365 = vadd.f32 %v232, %v349
      %v366 = vadd.f32 %v233, %v351
      %v367 = vadd.f32 %v234, %v354
      %v368 = vadd.f32 %v235, %v356
      %v369 = vadd.f32 %v236, %v359
      %v370 = vadd.f32 %v237, %v361
      %371 = vst [vmem:[#allocation2] sm:$0xff] %v363
      %372 = vst [vmem:[#allocation2 + $0x8] sm:$0xff] %v364
      %373 = vst [vmem:[#allocation2 + $0x10] sm:$0xff] %v365
      %374 = vst [vmem:[#allocation2 + $0x18] sm:$0xff] %v366
      %375 = vst [vmem:[#allocation2 + $0x20] sm:$0xff] %v367
      %376 = vst [vmem:[#allocation2 + $0x28] sm:$0xff] %v368
      %377 = vst [vmem:[#allocation2 + $0x30] sm:$0xff] %v369
      %378 = vst [vmem:[#allocation2 + $0x38] sm:$0xff] %v370
      // Predicated region
      $region33: #{a_call__.9} parent=27 // pred_check
        %p379 = pneg %p218
      $region34: #{a_call__.9} parent=27 // pred_check_branch
        %381 = sbr.rel (%p379) target = $region36
      $region35: #{a_call__.9} parent=27 // pred_region
        %v382 = vld [vmem:[#allocation2] sm:$0xff]
        %v383 = vld [vmem:[#allocation2 + $0x8] sm:$0xff]
        %v384 = vld [vmem:[#allocation2 + $0x10] sm:$0xff]
        %v385 = vld [vmem:[#allocation2 + $0x18] sm:$0xff]
        %v386 = vld [vmem:[#allocation2 + $0x20] sm:$0xff]
        %v387 = vld [vmem:[#allocation2 + $0x28] sm:$0xff]
        %v388 = vld [vmem:[#allocation2 + $0x30] sm:$0xff]
        %v389 = vld [vmem:[#allocation2 + $0x38] sm:$0xff]
        %v390 = vpack.c.bf16 %v382, %v382
        %v391 = vpack.c.bf16 %v383, %v383
        %v392 = vpack.c.bf16 %v384, %v384
        %v393 = vpack.c.bf16 %v385, %v385
        %v394 = vpack.c.bf16 %v386, %v386
        %v395 = vpack.c.bf16 %v387, %v387
        %v396 = vpack.c.bf16 %v388, %v388
        %v397 = vpack.c.bf16 %v389, %v389
        %398 = vst [vmem:[%s216] sm:$0xf] %v390
        %399 = vst [vmem:[%s216 + $0x4] sm:$0xf] %v391
        %400 = vst [vmem:[%s216 + $0x8] sm:$0xf] %v392
        %401 = vst [vmem:[%s216 + $0xc] sm:$0xf] %v393
        %402 = vst [vmem:[%s216 + $0x10] sm:$0xf] %v394
        %403 = vst [vmem:[%s216 + $0x14] sm:$0xf] %v395
        %404 = vst [vmem:[%s216 + $0x18] sm:$0xf] %v396
        %405 = vst [vmem:[%s216 + $0x1c] sm:$0xf] %v397
      $region36: #{a_call__.9} parent=27 // pred_fallthru
        _
      %s406 = smul.u32 8, %s18
      %p407 = scmp.lt.s32.totalorder %s406, 15
      %s408 = scalar_select %p407, %s406, 15
      %p409 = scmp.lt.s32.totalorder %s19, 0
      %s410 = scalar_select %p409, %s19, 0
      %s411 = sadd.s32 %s410, %s408
      %s412 = smul.addr %s411, 4
      %s413 = scalar_lea.vmem %s2, %s412
      // Predicated region
      $region37: #{a_call__.9} parent=27 // pred_check
        %p414 = pneg %p108
      $region38: #{a_call__.9} parent=27 // pred_check_branch
        %416 = sbr.rel (%p414) target = $region40
      $region39: #{a_call__.9} parent=27 // pred_region
        %s417 = smul.u32 8, %s18
      $region40: #{a_call__.9} parent=27 // pred_fallthru
        _
    $region28: #{a_call__.9} parent=5 // pred_fallthru
      _
    %p418 = scmp.le.s32.totalorder 2, %s8
    // Predicated region
    $region41: #{a_call__.9} parent=5 // pred_check
      %p419 = pneg %p418
    $region42: #{a_call__.9} parent=5 // pred_check_branch
      %421 = sbr.rel (%p419) target = $region44
    $region43: #{a_call__.9} parent=5 // pred_region
      %s422 = ssub.s32 %s8, 2
      // Predicated region
      $region45: #{a_call__.9} parent=43 // pred_check
        %p423 = pneg %p114
      $region46: #{a_call__.9} parent=43 // pred_check_branch
        %425 = sbr.rel (%p423) target = $region48
      $region47: #{a_call__.9} parent=43 // pred_region
        %s426 = smul.u32 8, %s21
        %p427 = scmp.lt.s32.totalorder %s426, 15
        %s428 = scalar_select %p427, %s426, 15
        %p429 = scmp.lt.s32.totalorder %s22, 0
        %s430 = scalar_select %p429, %s22, 0
        %s431 = sadd.s32 %s430, %s428
        %s432 = smul.addr %s431, 4
        %s433 = scalar_lea.vmem %s2, %s432
      $region48: #{a_call__.9} parent=43 // pred_fallthru
        _
    $region44: #{a_call__.9} parent=5 // pred_fallthru
      _
  $region6: #{a_call__.9} parent=0 // loop_footer
    %s12 = sadd.s32 1, %s8
  $region7: #{a_call__.9} parent=0 // loop_footer_branch
    %7 = sbr.rel target = $region3
  $region8: #{a_call__.9} parent=0 // loop_exit
    _

// kernel: a_call__.8
$region0: #{a_call__.8}
  #allocation0 [shape = 'u32[]', space=smem, size = 0x4, offset = 0x4, fixed_abs, tag = 'smem constant byte address 0x4 - core index']
  #allocation1 [shape = 'u32[72,128]{1,0:T(1,128)}', space=vmem, size = 0x9000, scoped, tag = 'internal scratch']
  #allocation2 [shape = 'f32[64,128]{1,0:T(8,128)}', space=vmem, size = 0x8000, scoped, tag = 'scratch operand']
  %s0 = inlined_call_operand.vmem [shape: bf16[128,1152], index: 0, kind: input, shape index: {}]
  %s1 = inlined_call_operand.vmem [shape: bf16[1152,128], index: 1, kind: input, shape index: {}]
  %s2 = inlined_call_operand.vmem [shape: f32[2,128], index: 2, kind: input, shape index: {}]
  %s3 = inlined_call_operand.vmem [shape: bf16[128,128], index: 3, kind: output, shape index: {}]
  %s4 = sld [smem:[#allocation0]]
  $region94: #{a_call__.8} parent=0
    _
  %s6 = ssub.s32 1, %s4
  %s7 = scalar_select 0, %s6, %s4
  $region1: #{a_call__.8} parent=0
    #allocation3 [shape = 'u8[32768]{0}', space=vmem, size = 0x8000, scoped, tag = 'input window, operand 0']
    loop: start=0, step=1, limit=20
    $region2: #{a_call__.8} parent=1 // loop_pre_header
      _
    $region3: #{a_call__.8} parent=1 // loop_header
      %s9 = sphi 0, %s13
      %p10 = scmp.ge.s32.totalorder %s9, 20
      %s16 = sphi 0, %s35
      %s17 = sphi 0, %s31
      %s18 = sphi 0, %s27
      %s19 = sphi 0, %s16
      %s20 = sphi 0, %s17
      %s21 = sphi 0, %s18
      %s22 = sphi 0, %s19
      %s23 = sphi 0, %s20
      %s24 = sphi 0, %s21
      %s40 = sphi 0, %s42
      %s43 = sphi 0, %s40
      %s44 = sphi 0, %s43
      %s60 = sphi 0, %s44
      %s68 = sphi 0, %s70
      %s71 = sphi 0, %s68
      %s72 = sphi 0, %s71
      %s88 = sphi 0, %s72
      %s94 = sphi 0, %s96
      %s97 = sphi 0, %s94
      %s98 = sphi 0, %s97
      %s114 = sphi 0, %s98
      %s122 = sphi 0, %s124
      %s125 = sphi 0, %s122
      %s126 = sphi 0, %s125
      %s142 = sphi 0, %s126
    $region4: #{a_call__.8} parent=1 // loop_header_branch
      %12 = sbr.rel (%p10) target = $region8
    $region5: #{a_call__.8} parent=1 // loop_body
      %s14 = ssub.s32 %s9, 1
      %s15 = ssub.s32 %s9, 2
      %s25 = sadd.s32 1, %s18
      %p26 = scmp.ge.s32.totalorder %s25, 9
      %s27 = scalar_select %p26, 0, %s25
      %s28 = sadd.s32 1, %s17
      %s29 = scalar_select %p26, %s28, %s17
      %p30 = scmp.ge.s32.totalorder %s29, 1
      %s31 = scalar_select %p30, 0, %s29
      %s32 = sadd.s32 1, %s16
      %s33 = scalar_select %p30, %s32, %s16
      %p34 = scmp.ge.s32.totalorder %s33, 2
      %s35 = scalar_select %p34, 0, %s33
      %s36 = ssub.s32 %s16, %s35
      %s37 = ssub.s32 %s18, %s27
      %s38 = sor.u32 %s36, %s37
      %p39 = scmp.eq.s32.totalorder %s38, 0
      %s41 = sadd.s32 %s40, 1
      %s42 = scalar_select %p39, %s40, %s41
      %p45 = pneg %p39
      %p46 = scmp.eq.s32.totalorder %s9, 17
      %p47 = por %p45, %p46
      %p48 = scmp.ne.s32.totalorder %s40, %s43
      %p49 = scmp.eq.s32.totalorder %s9, 0
      %p50 = por %p48, %p49
      %p51 = scmp.ne.s32.totalorder %s40, %s43
      %p52 = scmp.eq.s32.totalorder %s14, 17
      %p53 = por %p51, %p52
      %p54 = scmp.ne.s32.totalorder %s43, %s44
      %p55 = scmp.eq.s32.totalorder %s14, 0
      %p56 = por %p54, %p55
      %p57 = scmp.ne.s32.totalorder %s43, %s44
      %p58 = scmp.eq.s32.totalorder %s15, 17
      %p59 = por %p57, %p58
      %p61 = scmp.ne.s32.totalorder %s44, %s60
      %p62 = scmp.eq.s32.totalorder %s15, 0
      %p63 = por %p61, %p62
      %s64 = ssub.s32 %s18, %s27
      %s65 = ssub.s32 %s17, %s31
      %s66 = sor.u32 %s64, %s65
      %p67 = scmp.eq.s32.totalorder %s66, 0
      %s69 = sadd.s32 %s68, 1
      %s70 = scalar_select %p67, %s68, %s69
      %p73 = pneg %p67
      %p74 = scmp.eq.s32.totalorder %s9, 17
      %p75 = por %p73, %p74
      %p76 = scmp.ne.s32.totalorder %s68, %s71
      %p77 = scmp.eq.s32.totalorder %s9, 0
      %p78 = por %p76, %p77
      %p79 = scmp.ne.s32.totalorder %s68, %s71
      %p80 = scmp.eq.s32.totalorder %s14, 17
      %p81 = por %p79, %p80
      %p82 = scmp.ne.s32.totalorder %s71, %s72
      %p83 = scmp.eq.s32.totalorder %s14, 0
      %p84 = por %p82, %p83
      %p85 = scmp.ne.s32.totalorder %s71, %s72
      %p86 = scmp.eq.s32.totalorder %s15, 17
      %p87 = por %p85, %p86
      %p89 = scmp.ne.s32.totalorder %s72, %s88
      %p90 = scmp.eq.s32.totalorder %s15, 0
      %p91 = por %p89, %p90
      %s92 = ssub.s32 %s17, %s31
      %p93 = scmp.eq.s32.totalorder %s92, 0
      %s95 = sadd.s32 %s94, 1
      %s96 = scalar_select %p93, %s94, %s95
      %p99 = pneg %p93
      %p100 = scmp.eq.s32.totalorder %s9, 17
      %p101 = por %p99, %p100
      %p102 = scmp.ne.s32.totalorder %s94, %s97
      %p103 = scmp.eq.s32.totalorder %s9, 0
      %p104 = por %p102, %p103
      %p105 = scmp.ne.s32.totalorder %s94, %s97
      %p106 = scmp.eq.s32.totalorder %s14, 17
      %p107 = por %p105, %p106
      %p108 = scmp.ne.s32.totalorder %s97, %s98
      %p109 = scmp.eq.s32.totalorder %s14, 0
      %p110 = por %p108, %p109
      %p111 = scmp.ne.s32.totalorder %s97, %s98
      %p112 = scmp.eq.s32.totalorder %s15, 17
      %p113 = por %p111, %p112
      %p115 = scmp.ne.s32.totalorder %s98, %s114
      %p116 = scmp.eq.s32.totalorder %s15, 0
      %p117 = por %p115, %p116
      %s118 = ssub.s32 %s16, %s35
      %s119 = ssub.s32 %s17, %s31
      %s120 = sor.u32 %s118, %s119
      %p121 = scmp.eq.s32.totalorder %s120, 0
      %s123 = sadd.s32 %s122, 1
      %s124 = scalar_select %p121, %s122, %s123
      %p127 = pneg %p121
      %p128 = scmp.eq.s32.totalorder %s9, 17
      %p129 = por %p127, %p128
      %p130 = scmp.ne.s32.totalorder %s122, %s125
      %p131 = scmp.eq.s32.totalorder %s9, 0
      %p132 = por %p130, %p131
      %p133 = scmp.ne.s32.totalorder %s122, %s125
      %p134 = scmp.eq.s32.totalorder %s14, 17
      %p135 = por %p133, %p134
      %p136 = scmp.ne.s32.totalorder %s125, %s126
      %p137 = scmp.eq.s32.totalorder %s14, 0
      %p138 = por %p136, %p137
      %p139 = scmp.ne.s32.totalorder %s125, %s126
      %p140 = scmp.eq.s32.totalorder %s15, 17
      %p141 = por %p139, %p140
      %p143 = scmp.ne.s32.totalorder %s126, %s142
      %p144 = scmp.eq.s32.totalorder %s15, 0
      %p145 = por %p143, %p144
      %p146 = scmp.le.s32.totalorder 1, %s9
      %p147 = scmp.lt.s32.totalorder %s9, 19
      %p148 = pnand %p146, %p147
      %p149 = pneg %p148
      // Predicated region
      $region9: #{a_call__.8} parent=5 // pred_check
        _
      $region10: #{a_call__.8} parent=5 // pred_check_branch
        %151 = sbr.rel (%p148) target = $region12
      $region11: #{a_call__.8} parent=5 // pred_region
        %s152 = ssub.s32 %s9, 1
        // Predicated region
        $region13: #{a_call__.8} parent=11 // pred_check
          %p153 = pneg %p110
        $region14: #{a_call__.8} parent=11 // pred_check_branch
          %155 = sbr.rel (%p153) target = $region16
        $region15: #{a_call__.8} parent=11 // pred_region
          %p156 = scmp.lt.s32.totalorder %s20, 0
          %s157 = scalar_select %p156, %s20, 0
          %s158 = smul.addr %s157, 2
          %s159 = scalar_lea.vmem %s2, %s158
        $region16: #{a_call__.8} parent=11 // pred_fallthru
          _
      $region12: #{a_call__.8} parent=5 // pred_fallthru
        _
      %p160 = scmp.lt.s32.totalorder %s9, 18
      // Predicated region
      $region17: #{a_call__.8} parent=5 // pred_check
        %p161 = pneg %p160
      $region18: #{a_call__.8} parent=5 // pred_check_branch
        %163 = sbr.rel (%p161) target = $region20
      $region19: #{a_call__.8} parent=5 // pred_region
        // Predicated region
        $region21: #{a_call__.8} parent=19 // pred_check
          %p164 = pneg %p50
        $region22: #{a_call__.8} parent=19 // pred_check_branch
          %166 = sbr.rel (%p164) target = $region24
        $region23: #{a_call__.8} parent=19 // pred_region
          %s167 = sand.u32 %s40, 1
          %s168 = sand.u32 %s40, 1
          %s169 = smul.addr %s168, 32
          %s170 = scalar_lea.vmem [#allocation3], %s169
          %s171 = smul.u32 8, %s16
          %s172 = smul.addr %s171, 9
          %s173 = sadd.s32 %s18, %s172
          %s174 = smul.addr %s173, 4
          %s175 = scalar_lea.vmem %s0, %s174
          // Predicated region
          $region25: #{a_call__.8} parent=23 // pred_check
            _
          $region26: #{a_call__.8} parent=23 // pred_check_branch
            %177 = sbr.rel (0) target = $region28
          $region27: #{a_call__.8} parent=23 // pred_region
            // Predicated region
            $region29: #{a_call__.8} parent=27 // pred_check
              _
            $region30: #{a_call__.8} parent=27 // pred_check_branch
              %179 = sbr.rel target = $region32
            $region31: #{a_call__.8} parent=27 // pred_region
              // Predicated region
              $region44: #{a_call__.8} parent=31 // pred_check
                _
              $region45: #{a_call__.8} parent=31 // pred_check_branch
                %209 = sbr.rel (0) target = $region47
              $region46: #{a_call__.8} parent=31 // pred_region
                loop: start=0, step=1, limit=1
                $region48: #{a_call__.8} parent=46 // loop_pre_header
                  _
                $region49: #{a_call__.8} parent=46 // loop_header
                  %s211 = sphi 0, %s215
                  %p212 = scmp.ge.s32.totalorder %s211, 1
                  %s216 = sphi %s175, %s175
                  %s217 = sphi %s170, %s170
                $region50: #{a_call__.8} parent=46 // loop_header_branch
                  %214 = sbr.rel (%p212) target = $region54
                $region51: #{a_call__.8} parent=46 // loop_body
                  _
                $region52: #{a_call__.8} parent=46 // loop_footer
                  %s215 = sadd.s32 1, %s211
                $region53: #{a_call__.8} parent=46 // loop_footer_branch
                  %210 = sbr.rel target = $region49
                $region54: #{a_call__.8} parent=46 // loop_exit
                  _
                %s219 = ssub.s32 16, 1
                loop: start=0, step=1, limit=1
                $region55: #{a_call__.8} parent=46 // loop_pre_header
                  _
                $region56: #{a_call__.8} parent=46 // loop_header
                  %s221 = sphi 0, %s225
                  %p222 = scmp.ge.s32.totalorder %s221, 1
                  %s226 = sphi %s175, %s175
                  %s227 = sphi %s170, %s170
                $region57: #{a_call__.8} parent=46 // loop_header_branch
                  %224 = sbr.rel (%p222) target = $region61
                $region58: #{a_call__.8} parent=46 // loop_body
                  %v228 = vld [vmem:[%s226] sm:%s219]
                  %229 = vst [vmem:[%s227] sm:%s219] %v228
                  %v230 = vld [vmem:[%s226 + $0x24] sm:%s219]
                  %231 = vst [vmem:[%s227 + $0x4] sm:%s219] %v230
                  %v232 = vld [vmem:[%s226 + $0x48] sm:%s219]
                  %233 = vst [vmem:[%s227 + $0x8] sm:%s219] %v232
                  %v234 = vld [vmem:[%s226 + $0x6c] sm:%s219]
                  %235 = vst [vmem:[%s227 + $0xc] sm:%s219] %v234
                  %v236 = vld [vmem:[%s226 + $0x90] sm:%s219]
                  %237 = vst [vmem:[%s227 + $0x10] sm:%s219] %v236
                  %v238 = vld [vmem:[%s226 + $0xb4] sm:%s219]
                  %239 = vst [vmem:[%s227 + $0x14] sm:%s219] %v238
                  %v240 = vld [vmem:[%s226 + $0xd8] sm:%s219]
                  %241 = vst [vmem:[%s227 + $0x18] sm:%s219] %v240
                  %v242 = vld [vmem:[%s226 + $0xfc] sm:%s219]
                  %243 = vst [vmem:[%s227 + $0x1c] sm:%s219] %v242
                $region59: #{a_call__.8} parent=46 // loop_footer
                  %s225 = sadd.s32 1, %s221
                $region60: #{a_call__.8} parent=46 // loop_footer_branch
                  %220 = sbr.rel target = $region56
                $region61: #{a_call__.8} parent=46 // loop_exit
                  _
              $region47: #{a_call__.8} parent=31 // pred_fallthru
                _
            $region32: #{a_call__.8} parent=27 // pred_fallthru
              _
            // Predicated region
            $region33: #{a_call__.8} parent=27 // pred_check
              _
            $region34: #{a_call__.8} parent=27 // pred_check_branch
              %181 = sbr.rel (0) target = $region36
            $region35: #{a_call__.8} parent=27 // pred_region
              %s183 = ssub.s32 16, 1
              loop: start=0, step=1, limit=1
              $region37: #{a_call__.8} parent=35 // loop_pre_header
                _
              $region38: #{a_call__.8} parent=35 // loop_header
                %s185 = sphi 0, %s189
                %p186 = scmp.ge.s32.totalorder %s185, 1
                %s190 = sphi %s175, %s175
                %s191 = sphi %s170, %s170
              $region39: #{a_call__.8} parent=35 // loop_header_branch
                %188 = sbr.rel (%p186) target = $region43
              $region40: #{a_call__.8} parent=35 // loop_body
                %v192 = vld [vmem:[%s190] sm:%s183]
                %193 = vst [vmem:[%s191] sm:%s183] %v192
                %v194 = vld [vmem:[%s190 + $0x24] sm:%s183]
                %195 = vst [vmem:[%s191 + $0x4] sm:%s183] %v194
                %v196 = vld [vmem:[%s190 + $0x48] sm:%s183]
                %197 = vst [vmem:[%s191 + $0x8] sm:%s183] %v196
                %v198 = vld [vmem:[%s190 + $0x6c] sm:%s183]
                %199 = vst [vmem:[%s191 + $0xc] sm:%s183] %v198
                %v200 = vld [vmem:[%s190 + $0x90] sm:%s183]
                %201 = vst [vmem:[%s191 + $0x10] sm:%s183] %v200
                %v202 = vld [vmem:[%s190 + $0xb4] sm:%s183]
                %203 = vst [vmem:[%s191 + $0x14] sm:%s183] %v202
                %v204 = vld [vmem:[%s190 + $0xd8] sm:%s183]
                %205 = vst [vmem:[%s191 + $0x18] sm:%s183] %v204
                %v206 = vld [vmem:[%s190 + $0xfc] sm:%s183]
                %207 = vst [vmem:[%s191 + $0x1c] sm:%s183] %v206
              $region41: #{a_call__.8} parent=35 // loop_footer
                %s189 = sadd.s32 1, %s185
              $region42: #{a_call__.8} parent=35 // loop_footer_branch
                %184 = sbr.rel target = $region38
              $region43: #{a_call__.8} parent=35 // loop_exit
                _
            $region36: #{a_call__.8} parent=27 // pred_fallthru
              _
          $region28: #{a_call__.8} parent=23 // pred_fallthru
            _
          %244 = vnop
        $region24: #{a_call__.8} parent=19 // pred_fallthru
          _
        // Predicated region
        $region62: #{a_call__.8} parent=19 // pred_check
          %p245 = pneg %p78
        $region63: #{a_call__.8} parent=19 // pred_check_branch
          %247 = sbr.rel (%p245) target = $region65
        $region64: #{a_call__.8} parent=19 // pred_region
          %s248 = smul.u32 16, %s18
          %p249 = scmp.lt.s32.totalorder %s248, 143
          %s250 = scalar_select %p249, %s248, 143
          %p251 = scmp.lt.s32.totalorder %s17, 0
          %s252 = scalar_select %p251, %s17, 0
          %s253 = sadd.s32 %s252, %s250
          %s254 = smul.addr %s253, 4
          %s255 = scalar_lea.vmem %s1, %s254
          %s256 = smul.u32 16, %s18
        $region65: #{a_call__.8} parent=19 // pred_fallthru
          _
      $region20: #{a_call__.8} parent=5 // pred_fallthru
        _
      %p257 = scmp.le.s32.totalorder 1, %s9
      %p258 = scmp.lt.s32.totalorder %s9, 19
      %p259 = pnand %p257, %p258
      %p260 = pneg %p259
      // Predicated region
      $region66: #{a_call__.8} parent=5 // pred_check
        _
      $region67: #{a_call__.8} parent=5 // pred_check_branch
        %262 = sbr.rel (%p259) target = $region69
      $region68: #{a_call__.8} parent=5 // pred_region
        %s263 = ssub.s32 %s9, 1
        %s264 = sand.u32 %s43, 1
        %s265 = sand.u32 %s43, 1
        %s266 = smul.addr %s265, 32
        %s267 = scalar_lea.vmem [#allocation3], %s266
        // Predicated region
        $region70: #{a_call__.8} parent=68 // pred_check
          %p268 = pneg %p56
        $region71: #{a_call__.8} parent=68 // pred_check_branch
          %270 = sbr.rel (%p268) target = $region73
        $region72: #{a_call__.8} parent=68 // pred_region
          _
        $region73: #{a_call__.8} parent=68 // pred_fallthru
          _
        %s271 = sand.u32 %s43, 1
        %s272 = sand.u32 %s43, 1
        %s273 = smul.addr %s272, 32
        %s274 = scalar_lea.vmem [#allocation3], %s273
        %p275 = pneg %p56
        %p276 = pneg %p53
        %s277 = smul.u32 16, %s21
        %p278 = scmp.lt.s32.totalorder %s277, 143
        %s279 = scalar_select %p278, %s277, 143
        %p280 = scmp.lt.s32.totalorder %s20, 0
        %s281 = scalar_select %p280, %s20, 0
        %s282 = sadd.s32 %s281, %s279
        %s283 = smul.addr %s282, 4
        %s284 = scalar_lea.vmem %s1, %s283
        %p285 = pneg %p84
        %p286 = pneg %p81
        %p287 = scmp.lt.s32.totalorder %s20, 0
        %s288 = scalar_select %p287, %s20, 0
        %s289 = smul.addr %s288, 2
        %s290 = scalar_lea.vmem %s2, %s289
        %p291 = pneg %p110
        %p292 = pneg %p107
        %p293 = pneg %p138
        %p294 = pneg %p135
        %s295 = smul.u32 8, %s19
        %p296 = scmp.lt.s32.totalorder %s295, 15
        %s297 = scalar_select %p296, %s295, 15
        %p298 = scmp.lt.s32.totalorder %s20, 0
        %s299 = scalar_select %p298, %s20, 0
        %s300 = sadd.s32 %s299, %s297
        %s301 = smul.addr %s300, 4
        %s302 = scalar_lea.vmem %s3, %s301
        %s303 = smul.u32 8, %s19
        %s304 = smul.u32 16, %s21
        %p305 = scmp.lt.s32.totalorder %s304, 143
        %s306 = scalar_select %p305, %s304, 143
        %p307 = scmp.lt.s32.totalorder %s20, 0
        %s308 = scalar_select %p307, %s20, 0
        %s309 = sadd.s32 %s308, %s306
        %s310 = smul.addr %s309, 4
        %s311 = scalar_lea.vmem %s1, %s310
        %s312 = smul.u32 16, %s21
        %p313 = scmp.lt.s32.totalorder %s20, 0
        %s314 = scalar_select %p313, %s20, 0
        %s315 = smul.addr %s314, 2
        %s316 = scalar_lea.vmem %s2, %s315
        %s317 = smul.u32 8, %s19
        %p318 = scmp.lt.s32.totalorder %s317, 15
        %s319 = scalar_select %p318, %s317, 15
        %p320 = scmp.lt.s32.totalorder %s20, 0
        %s321 = scalar_select %p320, %s20, 0
        %s322 = sadd.s32 %s321, %s319
        %s323 = smul.addr %s322, 4
        %s324 = scalar_lea.vmem %s3, %s323
        %s325 = smul.u32 8, %s19
        %p326 = scmp.eq.s32.totalorder %s21, 0
        // Predicated region
        $region74: #{a_call__.8} parent=68 // pred_check
          %p327 = pneg %p326
        $region75: #{a_call__.8} parent=68 // pred_check_branch
          %329 = sbr.rel (%p327) target = $region77
        $region76: #{a_call__.8} parent=68 // pred_region
          %330 = vst [vmem:[#allocation2] sm:$0xff] 0.0
          %331 = vst [vmem:[#allocation2 + $0x8] sm:$0xff] 0.0
          %332 = vst [vmem:[#allocation2 + $0x10] sm:$0xff] 0.0
          %333 = vst [vmem:[#allocation2 + $0x18] sm:$0xff] 0.0
          %334 = vst [vmem:[#allocation2 + $0x20] sm:$0xff] 0.0
          %335 = vst [vmem:[#allocation2 + $0x28] sm:$0xff] 0.0
          %336 = vst [vmem:[#allocation2 + $0x30] sm:$0xff] 0.0
          %337 = vst [vmem:[#allocation2 + $0x38] sm:$0xff] 0.0
        $region77: #{a_call__.8} parent=68 // pred_fallthru
          _
        %v338 = vld [vmem:[#allocation2] sm:$0xff]
        %v339 = vld [vmem:[#allocation2 + $0x8] sm:$0xff]
        %v340 = vld [vmem:[#allocation2 + $0x10] sm:$0xff]
        %v341 = vld [vmem:[#allocation2 + $0x18] sm:$0xff]
        %v342 = vld [vmem:[#allocation2 + $0x20] sm:$0xff]
        %v343 = vld [vmem:[#allocation2 + $0x28] sm:$0xff]
        %v344 = vld [vmem:[#allocation2 + $0x30] sm:$0xff]
        %v345 = vld [vmem:[#allocation2 + $0x38] sm:$0xff]
        %v346 = vld [vmem:[%s267] sm:$0xf]
        %v347 = vld [vmem:[%s267 + $0x4] sm:$0xf]
        %v348 = vld [vmem:[%s267 + $0x8] sm:$0xf]
        %v349 = vld [vmem:[%s267 + $0xc] sm:$0xf]
        %v350 = vld [vmem:[%s267 + $0x10] sm:$0xf]
        %v351 = vld [vmem:[%s267 + $0x14] sm:$0xf]
        %v352 = vld [vmem:[%s267 + $0x18] sm:$0xf]
        %v353 = vld [vmem:[%s267 + $0x1c] sm:$0xf]
        %v354 = vld [vmem:[%s311] sm:$0xf]
        %v355 = vld [vmem:[%s311 + $0x4] sm:$0xf]
        %v356 = vld [vmem:[%s311 + $0x8] sm:$0xf]
        %v357 = vld [vmem:[%s311 + $0xc] sm:$0xf]
        %v358 = vld [vmem:[%s311 + $0x10] sm:$0xf]
        %v359 = vld [vmem:[%s311 + $0x14] sm:$0xf]
        %v360 = vld [vmem:[%s311 + $0x18] sm:$0xf]
        %v361 = vld [vmem:[%s311 + $0x1c] sm:$0xf]
        %v362 = vld [vmem:[%s311 + $0x20] sm:$0xf]
        %v363 = vld [vmem:[%s311 + $0x24] sm:$0xf]
        %v364 = vld [vmem:[%s311 + $0x28] sm:$0xf]
        %v365 = vld [vmem:[%s311 + $0x2c] sm:$0xf]
        %v366 = vld [vmem:[%s311 + $0x30] sm:$0xf]
        %v367 = vld [vmem:[%s311 + $0x34] sm:$0xf]
        %v368 = vld [vmem:[%s311 + $0x38] sm:$0xf]
        %v369 = vld [vmem:[%s311 + $0x3c] sm:$0xf]
        %v378 = vunpack.c.l.b16 %v346
        %v379 = vunpack.c.l.b16 %v347
        %v380 = vunpack.c.l.b16 %v348
        %v381 = vunpack.c.l.b16 %v349
        %v382 = vunpack.c.l.b16 %v350
        %v383 = vunpack.c.l.b16 %v351
        %v384 = vunpack.c.l.b16 %v352
        %v385 = vunpack.c.l.b16 %v353
        %v386 = vpack.c.b16 %v379, %v378
        %v387 = vpack.c.b16 %v381, %v380
        %v388 = vpack.c.b16 %v383, %v382
        %v389 = vpack.c.b16 %v385, %v384
        %v410 = vunpack.c.l.b16 %v354
        %v411 = vunpack.c.l.b16 %v355
        %v412 = vunpack.c.l.b16 %v356
        %v413 = vunpack.c.l.b16 %v357
        %v414 = vunpack.c.l.b16 %v358
        %v415 = vunpack.c.l.b16 %v359
        %v416 = vunpack.c.l.b16 %v360
        %v417 = vunpack.c.l.b16 %v361
        %v418 = vunpack.c.l.b16 %v362
        %v419 = vunpack.c.l.b16 %v363
        %v420 = vunpack.c.l.b16 %v364
        %v421 = vunpack.c.l.b16 %v365
        %v422 = vunpack.c.l.b16 %v366
        %v423 = vunpack.c.l.b16 %v367
        %v424 = vunpack.c.l.b16 %v368
        %v425 = vunpack.c.l.b16 %v369
        %v426 = vpack.c.b16 %v411, %v410
        %v427 = vpack.c.b16 %v413, %v412
        %v428 = vpack.c.b16 %v415, %v414
        %v429 = vpack.c.b16 %v417, %v416
        %v430 = vpack.c.b16 %v419, %v418
        %v431 = vpack.c.b16 %v421, %v420
        %v432 = vpack.c.b16 %v423, %v422
        %v433 = vpack.c.b16 %v425, %v424
        %442 = vmatpush.bf16.msra.mxu0 %v433
        %443 = vmatpush.bf16.msra.mxu0 %v432
        %444 = vmatpush.bf16.msra.mxu0 %v431
        %445 = vmatpush.bf16.msra.mxu0 %v430
        %446 = vmatpush.bf16.msra.mxu0 %v429
        %447 = vmatpush.bf16.msra.mxu0 %v428
        %448 = vmatpush.bf16.msra.mxu0 %v427
        %449 = vmatpush.bf16.msra.mxu0 %v426
        %450 = vmatmul.bf16.gmra.mxu0 %v386
        %v451 = vpop.f32.mrf.mxu0
        %v452 = vadd.f32 0.0, %v451
        %v453 = vpop.f32.mrf.mxu0
        %v454 = vadd.f32 0.0, %v453
        %455 = vmatmul.bf16.gmra.mxu0 %v387
        %v456 = vpop.f32.mrf.mxu0
        %v457 = vadd.f32 0.0, %v456
        %v458 = vpop.f32.mrf.mxu0
        %v459 = vadd.f32 0.0, %v458
        %460 = vmatmul.bf16.gmra.mxu0 %v388
        %v461 = vpop.f32.mrf.mxu0
        %v462 = vadd.f32 0.0, %v461
        %v463 = vpop.f32.mrf.mxu0
        %v464 = vadd.f32 0.0, %v463
        %465 = vmatmul.bf16.gmra.mxu0 %v389
        %v466 = vpop.f32.mrf.mxu0
        %v467 = vadd.f32 0.0, %v466
        %v468 = vpop.f32.mrf.mxu0
        %v469 = vadd.f32 0.0, %v468
        %470 = vdwg.mxu0
        %v471 = vadd.f32 %v338, %v452
        %v472 = vadd.f32 %v339, %v454
        %v473 = vadd.f32 %v340, %v457
        %v474 = vadd.f32 %v341, %v459
        %v475 = vadd.f32 %v342, %v462
        %v476 = vadd.f32 %v343, %v464
        %v477 = vadd.f32 %v344, %v467
        %v478 = vadd.f32 %v345, %v469
        %479 = vst [vmem:[#allocation2] sm:$0xff] %v471
        %480 = vst [vmem:[#allocation2 + $0x8] sm:$0xff] %v472
        %481 = vst [vmem:[#allocation2 + $0x10] sm:$0xff] %v473
        %482 = vst [vmem:[#allocation2 + $0x18] sm:$0xff] %v474
        %483 = vst [vmem:[#allocation2 + $0x20] sm:$0xff] %v475
        %484 = vst [vmem:[#allocation2 + $0x28] sm:$0xff] %v476
        %485 = vst [vmem:[#allocation2 + $0x30] sm:$0xff] %v477
        %486 = vst [vmem:[#allocation2 + $0x38] sm:$0xff] %v478
        %p487 = scmp.eq.s32.totalorder %s21, 8
        // Predicated region
        $region78: #{a_call__.8} parent=68 // pred_check
          %p488 = pneg %p487
        $region79: #{a_call__.8} parent=68 // pred_check_branch
          %490 = sbr.rel (%p488) target = $region81
        $region80: #{a_call__.8} parent=68 // pred_region
          %v491 = vld [vmem:[#allocation2] sm:$0xff]
          %v492 = vld [vmem:[#allocation2 + $0x8] sm:$0xff]
          %v493 = vld [vmem:[#allocation2 + $0x10] sm:$0xff]
          %v494 = vld [vmem:[#allocation2 + $0x18] sm:$0xff]
          %v495 = vld [vmem:[#allocation2 + $0x20] sm:$0xff]
          %v496 = vld [vmem:[#allocation2 + $0x28] sm:$0xff]
          %v497 = vld [vmem:[#allocation2 + $0x30] sm:$0xff]
          %v498 = vld [vmem:[#allocation2 + $0x38] sm:$0xff]
          %v499 = vld [vmem:[%s316] sm:$0x1]
          %v500 = vperm.slane %v499, 0
          %v501 = vmul.f32 %v491, %v500
          %v502 = vmul.f32 %v492, %v500
          %v503 = vmul.f32 %v493, %v500
          %v504 = vmul.f32 %v494, %v500
          %v505 = vmul.f32 %v495, %v500
          %v506 = vmul.f32 %v496, %v500
          %v507 = vmul.f32 %v497, %v500
          %v508 = vmul.f32 %v498, %v500
          %v509 = vld [vmem:[%s316 + $0x1] sm:$0x1]
          %v510 = vperm.slane %v509, 0
          %v511 = vadd.f32 %v501, %v510
          %v512 = vadd.f32 %v502, %v510
          %v513 = vadd.f32 %v503, %v510
          %v514 = vadd.f32 %v504, %v510
          %v515 = vadd.f32 %v505, %v510
          %v516 = vadd.f32 %v506, %v510
          %v517 = vadd.f32 %v507, %v510
          %v518 = vadd.f32 %v508, %v510
          %vm519 = vcmp.ge.f32.partialorder %v511, 0.0
          %vm520 = vcmp.ge.f32.partialorder %v512, 0.0
          %vm521 = vcmp.ge.f32.partialorder %v513, 0.0
          %vm522 = vcmp.ge.f32.partialorder %v514, 0.0
          %vm523 = vcmp.ge.f32.partialorder %v515, 0.0
          %vm524 = vcmp.ge.f32.partialorder %v516, 0.0
          %vm525 = vcmp.ge.f32.partialorder %v517, 0.0
          %vm526 = vcmp.ge.f32.partialorder %v518, 0.0
          %v527 = vmul.f32 %v511, 0.1
          %v528 = vmul.f32 %v512, 0.1
          %v529 = vmul.f32 %v513, 0.1
          %v530 = vmul.f32 %v514, 0.1
          %v531 = vmul.f32 %v515, 0.1
          %v532 = vmul.f32 %v516, 0.1
          %v533 = vmul.f32 %v517, 0.1
          %v534 = vmul.f32 %v518, 0.1
          %v535 = vsel %vm519, %v511, %v527
          %v536 = vsel %vm520, %v512, %v528
          %v537 = vsel %vm521, %v513, %v529
          %v538 = vsel %vm522, %v514, %v530
          %v539 = vsel %vm523, %v515, %v531
          %v540 = vsel %vm524, %v516, %v532
          %v541 = vsel %vm525, %v517, %v533
          %v542 = vsel %vm526, %v518, %v534
          %v543 = vpack.c.bf16 %v535, %v535
          %v544 = vpack.c.bf16 %v536, %v536
          %v545 = vpack.c.bf16 %v537, %v537
          %v546 = vpack.c.bf16 %v538, %v538
          %v547 = vpack.c.bf16 %v539, %v539
          %v548 = vpack.c.bf16 %v540, %v540
          %v549 = vpack.c.bf16 %v541, %v541
          %v550 = vpack.c.bf16 %v542, %v542
          %551 = vst [vmem:[%s324] sm:$0xf] %v543
          %552 = vst [vmem:[%s324 + $0x4] sm:$0xf] %v544
          %553 = vst [vmem:[%s324 + $0x8] sm:$0xf] %v545
          %554 = vst [vmem:[%s324 + $0xc] sm:$0xf] %v546
          %555 = vst [vmem:[%s324 + $0x10] sm:$0xf] %v547
          %556 = vst [vmem:[%s324 + $0x14] sm:$0xf] %v548
          %557 = vst [vmem:[%s324 + $0x18] sm:$0xf] %v549
          %558 = vst [vmem:[%s324 + $0x1c] sm:$0xf] %v550
        $region81: #{a_call__.8} parent=68 // pred_fallthru
          _
        %s559 = smul.u32 8, %s19
        %p560 = scmp.lt.s32.totalorder %s559, 15
        %s561 = scalar_select %p560, %s559, 15
        %p562 = scmp.lt.s32.totalorder %s20, 0
        %s563 = scalar_select %p562, %s20, 0
        %s564 = sadd.s32 %s563, %s561
        %s565 = smul.addr %s564, 4
        %s566 = scalar_lea.vmem %s3, %s565
        // Predicated region
        $region82: #{a_call__.8} parent=68 // pred_check
          %p567 = pneg %p135
        $region83: #{a_call__.8} parent=68 // pred_check_branch
          %569 = sbr.rel (%p567) target = $region85
        $region84: #{a_call__.8} parent=68 // pred_region
          %s570 = smul.u32 8, %s19
        $region85: #{a_call__.8} parent=68 // pred_fallthru
          _
      $region69: #{a_call__.8} parent=5 // pred_fallthru
        _
      %p571 = scmp.le.s32.totalorder 2, %s9
      // Predicated region
      $region86: #{a_call__.8} parent=5 // pred_check
        %p572 = pneg %p571
      $region87: #{a_call__.8} parent=5 // pred_check_branch
        %574 = sbr.rel (%p572) target = $region89
      $region88: #{a_call__.8} parent=5 // pred_region
        %s575 = ssub.s32 %s9, 2
        // Predicated region
        $region90: #{a_call__.8} parent=88 // pred_check
          %p576 = pneg %p141
        $region91: #{a_call__.8} parent=88 // pred_check_branch
          %578 = sbr.rel (%p576) target = $region93
        $region92: #{a_call__.8} parent=88 // pred_region
          %s579 = smul.u32 8, %s22
          %p580 = scmp.lt.s32.totalorder %s579, 15
          %s581 = scalar_select %p580, %s579, 15
          %p582 = scmp.lt.s32.totalorder %s23, 0
          %s583 = scalar_select %p582, %s23, 0
          %s584 = sadd.s32 %s583, %s581
          %s585 = smul.addr %s584, 4
          %s586 = scalar_lea.vmem %s3, %s585
        $region93: #{a_call__.8} parent=88 // pred_fallthru
          _
      $region89: #{a_call__.8} parent=5 // pred_fallthru
        _
    $region6: #{a_call__.8} parent=1 // loop_footer
      %s13 = sadd.s32 1, %s9
    $region7: #{a_call__.8} parent=1 // loop_footer_branch
      %8 = sbr.rel target = $region3
    $region8: #{a_call__.8} parent=1 // loop_exit
      _

// kernel: a_call__.11
$region0: #{a_call__.11}
  #allocation0 [shape = 'u32[]', space=smem, size = 0x4, offset = 0x4, fixed_abs, tag = 'smem constant byte address 0x4 - core index']
  #allocation1 [shape = 'u32[72,128]{1,0:T(1,128)}', space=vmem, size = 0x9000, scoped, tag = 'internal scratch']
  %s0 = inlined_call_operand.vmem [shape: bf16[128,128], index: 0, kind: input, shape index: {}]
  %s1 = inlined_call_operand.vmem [shape: f32[2,128], index: 1, kind: input, shape index: {}]
  %s2 = inlined_call_operand.vmem [shape: bf16[128,128], index: 2, kind: output, shape index: {}]
  %s3 = sld [smem:[#allocation0]]
  $region41: #{a_call__.11} parent=0
    _
  %s5 = ssub.s32 1, %s3
  %s6 = scalar_select 0, %s5, %s3
  loop: start=0, step=1, limit=4
  $region2: #{a_call__.11} parent=0 // loop_pre_header
    _
  $region3: #{a_call__.11} parent=0 // loop_header
    %s8 = sphi 0, %s12
    %p9 = scmp.ge.s32.totalorder %s8, 4
    %s18 = sphi 0, %s20
    %s21 = sphi 0, %s18
    %s22 = sphi 0, %s21
    %s38 = sphi 0, %s22
    %s42 = sphi 0, %s42
    %s44 = sphi 0, %s42
    %s45 = sphi 0, %s44
    %s59 = sphi 0, %s45
    %s65 = sphi 0, %s67
    %s68 = sphi 0, %s65
    %s69 = sphi 0, %s68
    %s85 = sphi 0, %s69
  $region4: #{a_call__.11} parent=0 // loop_header_branch
    %11 = sbr.rel (%p9) target = $region8
  $region5: #{a_call__.11} parent=0 // loop_body
    %s13 = ssub.s32 %s8, 1
    %s14 = ssub.s32 %s8, 2
    %s15 = sadd.s32 %s8, 1
    %s16 = ssub.s32 %s8, %s15
    %p17 = scmp.eq.s32.totalorder %s16, 0
    %s19 = sadd.s32 %s18, 1
    %s20 = scalar_select %p17, %s18, %s19
    %p23 = pneg %p17
    %p24 = scmp.eq.s32.totalorder %s8, 1
    %p25 = por %p23, %p24
    %p26 = scmp.ne.s32.totalorder %s18, %s21
    %p27 = scmp.eq.s32.totalorder %s8, 0
    %p28 = por %p26, %p27
    %p29 = scmp.ne.s32.totalorder %s18, %s21
    %p30 = scmp.eq.s32.totalorder %s13, 1
    %p31 = por %p29, %p30
    %p32 = scmp.ne.s32.totalorder %s21, %s22
    %p33 = scmp.eq.s32.totalorder %s13, 0
    %p34 = por %p32, %p33
    %p35 = scmp.ne.s32.totalorder %s21, %s22
    %p36 = scmp.eq.s32.totalorder %s14, 1
    %p37 = por %p35, %p36
    %p39 = scmp.ne.s32.totalorder %s22, %s38
    %p40 = scmp.eq.s32.totalorder %s14, 0
    %p41 = por %p39, %p40
    %s43 = sadd.s32 %s42, 1
    %p46 = scmp.eq.s32.totalorder %s8, 1
    %p47 = scmp.ne.s32.totalorder %s42, %s44
    %p48 = scmp.eq.s32.totalorder %s8, 0
    %p49 = por %p47, %p48
    %p50 = scmp.ne.s32.totalorder %s42, %s44
    %p51 = scmp.eq.s32.totalorder %s13, 1
    %p52 = por %p50, %p51
    %p53 = scmp.ne.s32.totalorder %s44, %s45
    %p54 = scmp.eq.s32.totalorder %s13, 0
    %p55 = por %p53, %p54
    %p56 = scmp.ne.s32.totalorder %s44, %s45
    %p57 = scmp.eq.s32.totalorder %s14, 1
    %p58 = por %p56, %p57
    %p60 = scmp.ne.s32.totalorder %s45, %s59
    %p61 = scmp.eq.s32.totalorder %s14, 0
    %p62 = por %p60, %p61
    %s63 = ssub.s32 %s8, %s15
    %p64 = scmp.eq.s32.totalorder %s63, 0
    %s66 = sadd.s32 %s65, 1
    %s67 = scalar_select %p64, %s65, %s66
    %p70 = pneg %p64
    %p71 = scmp.eq.s32.totalorder %s8, 1
    %p72 = por %p70, %p71
    %p73 = scmp.ne.s32.totalorder %s65, %s68
    %p74 = scmp.eq.s32.totalorder %s8, 0
    %p75 = por %p73, %p74
    %p76 = scmp.ne.s32.totalorder %s65, %s68
    %p77 = scmp.eq.s32.totalorder %s13, 1
    %p78 = por %p76, %p77
    %p79 = scmp.ne.s32.totalorder %s68, %s69
    %p80 = scmp.eq.s32.totalorder %s13, 0
    %p81 = por %p79, %p80
    %p82 = scmp.ne.s32.totalorder %s68, %s69
    %p83 = scmp.eq.s32.totalorder %s14, 1
    %p84 = por %p82, %p83
    %p86 = scmp.ne.s32.totalorder %s69, %s85
    %p87 = scmp.eq.s32.totalorder %s14, 0
    %p88 = por %p86, %p87
    %p89 = scmp.le.s32.totalorder 1, %s8
    %p90 = scmp.lt.s32.totalorder %s8, 3
    %p91 = pnand %p89, %p90
    %p92 = pneg %p91
    // Predicated region
    $region9: #{a_call__.11} parent=5 // pred_check
      _
    $region10: #{a_call__.11} parent=5 // pred_check_branch
      %94 = sbr.rel (%p91) target = $region12
    $region11: #{a_call__.11} parent=5 // pred_region
      %s95 = ssub.s32 %s8, 1
      // Predicated region
      $region13: #{a_call__.11} parent=11 // pred_check
        %p96 = pneg %p55
      $region14: #{a_call__.11} parent=11 // pred_check_branch
        %98 = sbr.rel (%p96) target = $region16
      $region15: #{a_call__.11} parent=11 // pred_region
        _
      $region16: #{a_call__.11} parent=11 // pred_fallthru
        _
    $region12: #{a_call__.11} parent=5 // pred_fallthru
      _
    %p99 = scmp.lt.s32.totalorder %s8, 2
    // Predicated region
    $region17: #{a_call__.11} parent=5 // pred_check
      %p100 = pneg %p99
    $region18: #{a_call__.11} parent=5 // pred_check_branch
      %102 = sbr.rel (%p100) target = $region20
    $region19: #{a_call__.11} parent=5 // pred_region
      // Predicated region
      $region21: #{a_call__.11} parent=19 // pred_check
        %p103 = pneg %p28
      $region22: #{a_call__.11} parent=19 // pred_check_branch
        %105 = sbr.rel (%p103) target = $region24
      $region23: #{a_call__.11} parent=19 // pred_region
        %s106 = smul.u32 8, %s8
        %p107 = scmp.lt.s32.totalorder %s106, 15
        %s108 = scalar_select %p107, %s106, 15
        %s109 = smul.addr %s108, 4
        %s110 = scalar_lea.vmem %s0, %s109
        %s111 = smul.u32 8, %s8
      $region24: #{a_call__.11} parent=19 // pred_fallthru
        _
    $region20: #{a_call__.11} parent=5 // pred_fallthru
      _
    %p112 = scmp.le.s32.totalorder 1, %s8
    %p113 = scmp.lt.s32.totalorder %s8, 3
    %p114 = pnand %p112, %p113
    %p115 = pneg %p114
    // Predicated region
    $region25: #{a_call__.11} parent=5 // pred_check
      _
    $region26: #{a_call__.11} parent=5 // pred_check_branch
      %117 = sbr.rel (%p114) target = $region28
    $region27: #{a_call__.11} parent=5 // pred_region
      %s118 = ssub.s32 %s8, 1
      %s119 = smul.u32 8, %s13
      %p120 = scmp.lt.s32.totalorder %s119, 15
      %s121 = scalar_select %p120, %s119, 15
      %s122 = smul.addr %s121, 4
      %s123 = scalar_lea.vmem %s0, %s122
      %p124 = pneg %p34
      %p125 = pneg %p31
      %p126 = pneg %p55
      %p127 = pneg %p52
      %p128 = pneg %p81
      %p129 = pneg %p78
      %s130 = smul.u32 8, %s13
      %p131 = scmp.lt.s32.totalorder %s130, 15
      %s132 = scalar_select %p131, %s130, 15
      %s133 = smul.addr %s132, 4
      %s134 = scalar_lea.vmem %s2, %s133
      %s135 = smul.u32 8, %s13
      %p136 = scmp.lt.s32.totalorder %s135, 15
      %s137 = scalar_select %p136, %s135, 15
      %s138 = smul.addr %s137, 4
      %s139 = scalar_lea.vmem %s0, %s138
      %s140 = smul.u32 8, %s13
      %s141 = smul.u32 8, %s13
      %p142 = scmp.lt.s32.totalorder %s141, 15
      %s143 = scalar_select %p142, %s141, 15
      %s144 = smul.addr %s143, 4
      %s145 = scalar_lea.vmem %s2, %s144
      %s146 = smul.u32 8, %s13
      %v147 = vld [vmem:[%s139] sm:$0xf]
      %v148 = vld [vmem:[%s139 + $0x4] sm:$0xf]
      %v149 = vld [vmem:[%s139 + $0x8] sm:$0xf]
      %v150 = vld [vmem:[%s139 + $0xc] sm:$0xf]
      %v151 = vld [vmem:[%s139 + $0x10] sm:$0xf]
      %v152 = vld [vmem:[%s139 + $0x14] sm:$0xf]
      %v153 = vld [vmem:[%s139 + $0x18] sm:$0xf]
      %v154 = vld [vmem:[%s139 + $0x1c] sm:$0xf]
      %v155 = vunpack.c.l.bf16 %v147
      %v156 = vunpack.c.l.bf16 %v148
      %v157 = vunpack.c.l.bf16 %v149
      %v158 = vunpack.c.l.bf16 %v150
      %v159 = vunpack.c.l.bf16 %v151
      %v160 = vunpack.c.l.bf16 %v152
      %v161 = vunpack.c.l.bf16 %v153
      %v162 = vunpack.c.l.bf16 %v154
      %v163 = vld [vmem:[%s1] sm:$0x1]
      %v164 = vperm.slane %v163, 0
      %v165 = vmul.f32 %v155, %v164
      %v166 = vmul.f32 %v156, %v164
      %v167 = vmul.f32 %v157, %v164
      %v168 = vmul.f32 %v158, %v164
      %v169 = vmul.f32 %v159, %v164
      %v170 = vmul.f32 %v160, %v164
      %v171 = vmul.f32 %v161, %v164
      %v172 = vmul.f32 %v162, %v164
      %v173 = vld [vmem:[%s1 + $0x1] sm:$0x1]
      %v174 = vperm.slane %v173, 0
      %v175 = vadd.f32 %v165, %v174
      %v176 = vadd.f32 %v166, %v174
      %v177 = vadd.f32 %v167, %v174
      %v178 = vadd.f32 %v168, %v174
      %v179 = vadd.f32 %v169, %v174
      %v180 = vadd.f32 %v170, %v174
      %v181 = vadd.f32 %v171, %v174
      %v182 = vadd.f32 %v172, %v174
      %vm183 = vcmp.ge.f32.partialorder %v175, 0.0
      %vm184 = vcmp.ge.f32.partialorder %v176, 0.0
      %vm185 = vcmp.ge.f32.partialorder %v177, 0.0
      %vm186 = vcmp.ge.f32.partialorder %v178, 0.0
      %vm187 = vcmp.ge.f32.partialorder %v179, 0.0
      %vm188 = vcmp.ge.f32.partialorder %v180, 0.0
      %vm189 = vcmp.ge.f32.partialorder %v181, 0.0
      %vm190 = vcmp.ge.f32.partialorder %v182, 0.0
      %v191 = vmul.f32 %v175, 0.1
      %v192 = vmul.f32 %v176, 0.1
      %v193 = vmul.f32 %v177, 0.1
      %v194 = vmul.f32 %v178, 0.1
      %v195 = vmul.f32 %v179, 0.1
      %v196 = vmul.f32 %v180, 0.1
      %v197 = vmul.f32 %v181, 0.1
      %v198 = vmul.f32 %v182, 0.1
      %v199 = vsel %vm183, %v175, %v191
      %v200 = vsel %vm184, %v176, %v192
      %v201 = vsel %vm185, %v177, %v193
      %v202 = vsel %vm186, %v178, %v194
      %v203 = vsel %vm187, %v179, %v195
      %v204 = vsel %vm188, %v180, %v196
      %v205 = vsel %vm189, %v181, %v197
      %v206 = vsel %vm190, %v182, %v198
      %v207 = vpack.c.bf16 %v199, %v199
      %v208 = vpack.c.bf16 %v200, %v200
      %v209 = vpack.c.bf16 %v201, %v201
      %v210 = vpack.c.bf16 %v202, %v202
      %v211 = vpack.c.bf16 %v203, %v203
      %v212 = vpack.c.bf16 %v204, %v204
      %v213 = vpack.c.bf16 %v205, %v205
      %v214 = vpack.c.bf16 %v206, %v206
      %215 = vst [vmem:[%s145] sm:$0xf] %v207
      %216 = vst [vmem:[%s145 + $0x4] sm:$0xf] %v208
      %217 = vst [vmem:[%s145 + $0x8] sm:$0xf] %v209
      %218 = vst [vmem:[%s145 + $0xc] sm:$0xf] %v210
      %219 = vst [vmem:[%s145 + $0x10] sm:$0xf] %v211
      %220 = vst [vmem:[%s145 + $0x14] sm:$0xf] %v212
      %221 = vst [vmem:[%s145 + $0x18] sm:$0xf] %v213
      %222 = vst [vmem:[%s145 + $0x1c] sm:$0xf] %v214
      %s223 = smul.u32 8, %s13
      %p224 = scmp.lt.s32.totalorder %s223, 15
      %s225 = scalar_select %p224, %s223, 15
      %s226 = smul.addr %s225, 4
      %s227 = scalar_lea.vmem %s2, %s226
      // Predicated region
      $region29: #{a_call__.11} parent=27 // pred_check
        %p228 = pneg %p78
      $region30: #{a_call__.11} parent=27 // pred_check_branch
        %230 = sbr.rel (%p228) target = $region32
      $region31: #{a_call__.11} parent=27 // pred_region
        %s231 = smul.u32 8, %s13
      $region32: #{a_call__.11} parent=27 // pred_fallthru
        _
    $region28: #{a_call__.11} parent=5 // pred_fallthru
      _
    %p232 = scmp.le.s32.totalorder 2, %s8
    // Predicated region
    $region33: #{a_call__.11} parent=5 // pred_check
      %p233 = pneg %p232
    $region34: #{a_call__.11} parent=5 // pred_check_branch
      %235 = sbr.rel (%p233) target = $region36
    $region35: #{a_call__.11} parent=5 // pred_region
      %s236 = ssub.s32 %s8, 2
      // Predicated region
      $region37: #{a_call__.11} parent=35 // pred_check
        %p237 = pneg %p84
      $region38: #{a_call__.11} parent=35 // pred_check_branch
        %239 = sbr.rel (%p237) target = $region40
      $region39: #{a_call__.11} parent=35 // pred_region
        %s240 = smul.u32 8, %s14
        %p241 = scmp.lt.s32.totalorder %s240, 15
        %s242 = scalar_select %p241, %s240, 15
        %s243 = smul.addr %s242, 4
        %s244 = scalar_lea.vmem %s2, %s243
      $region40: #{a_call__.11} parent=35 // pred_fallthru
        _
    $region36: #{a_call__.11} parent=5 // pred_fallthru
      _
  $region6: #{a_call__.11} parent=0 // loop_footer
    %s12 = sadd.s32 1, %s8
  $region7: #{a_call__.11} parent=0 // loop_footer_branch
    %7 = sbr.rel target = $region3
  $region8: #{a_call__.11} parent=0 // loop_exit
    _

// kernel: a_call__.10
$region0: #{a_call__.10}
  #allocation0 [shape = 'u32[]', space=smem, size = 0x4, offset = 0x4, fixed_abs, tag = 'smem constant byte address 0x4 - core index']
  #allocation1 [shape = 'u32[72,128]{1,0:T(1,128)}', space=vmem, size = 0x9000, scoped, tag = 'internal scratch']
  #allocation2 [shape = 'f32[80,128]{1,0:T(8,128)}', space=vmem, size = 0xa000, scoped, tag = 'scratch operand']
  %s0 = inlined_call_operand.vmem [shape: bf16[2,110,128], index: 0, kind: input, shape index: {}]
  %s1 = inlined_call_operand.vmem [shape: bf16[9,128,128], index: 1, kind: input, shape index: {}]
  %s2 = inlined_call_operand.vmem [shape: bf16[2,80,128], index: 2, kind: input, shape index: {}]
  %s3 = inlined_call_operand.vmem [shape: bf16[2,80,128], index: 3, kind: output, shape index: {}]
  %s4 = sld [smem:[#allocation0]]
  $region45: #{a_call__.10} parent=0
    _
  %s6 = ssub.s32 1, %s4
  %s7 = scalar_select 0, %s6, %s4
  loop: start=0, step=1, limit=4
  $region2: #{a_call__.10} parent=0 // loop_pre_header
    _
  $region3: #{a_call__.10} parent=0 // loop_header
    %s9 = sphi 0, %s13
    %p10 = scmp.ge.s32.totalorder %s9, 4
    %s16 = sphi 0, %s28
    %s17 = sphi 0, %s24
    %s18 = sphi 0, %s16
    %s19 = sphi 0, %s17
    %s20 = sphi 0, %s18
    %s21 = sphi 0, %s19
    %s31 = sphi 0, %s33
    %s34 = sphi 0, %s31
    %s35 = sphi 0, %s34
    %s51 = sphi 0, %s35
    %s57 = sphi 0, %s59
    %s60 = sphi 0, %s57
    %s61 = sphi 0, %s60
    %s77 = sphi 0, %s61
    %s85 = sphi 0, %s87
    %s88 = sphi 0, %s85
    %s89 = sphi 0, %s88
    %s105 = sphi 0, %s89
    %s113 = sphi 0, %s115
    %s116 = sphi 0, %s113
    %s117 = sphi 0, %s116
    %s133 = sphi 0, %s117
  $region4: #{a_call__.10} parent=0 // loop_header_branch
    %12 = sbr.rel (%p10) target = $region8
  $region5: #{a_call__.10} parent=0 // loop_body
    %s14 = ssub.s32 %s9, 1
    %s15 = ssub.s32 %s9, 2
    %s22 = sadd.s32 1, %s17
    %p23 = scmp.ge.s32.totalorder %s22, 1
    %s24 = scalar_select %p23, 0, %s22
    %s25 = sadd.s32 1, %s16
    %s26 = scalar_select %p23, %s25, %s16
    %p27 = scmp.ge.s32.totalorder %s26, 2
    %s28 = scalar_select %p27, 0, %s26
    %s29 = ssub.s32 %s16, %s28
    %p30 = scmp.eq.s32.totalorder %s29, 0
    %s32 = sadd.s32 %s31, 1
    %s33 = scalar_select %p30, %s31, %s32
    %p36 = pneg %p30
    %p37 = scmp.eq.s32.totalorder %s9, 1
    %p38 = por %p36, %p37
    %p39 = scmp.ne.s32.totalorder %s31, %s34
    %p40 = scmp.eq.s32.totalorder %s9, 0
    %p41 = por %p39, %p40
    %p42 = scmp.ne.s32.totalorder %s31, %s34
    %p43 = scmp.eq.s32.totalorder %s14, 1
    %p44 = por %p42, %p43
    %p45 = scmp.ne.s32.totalorder %s34, %s35
    %p46 = scmp.eq.s32.totalorder %s14, 0
    %p47 = por %p45, %p46
    %p48 = scmp.ne.s32.totalorder %s34, %s35
    %p49 = scmp.eq.s32.totalorder %s15, 1
    %p50 = por %p48, %p49
    %p52 = scmp.ne.s32.totalorder %s35, %s51
    %p53 = scmp.eq.s32.totalorder %s15, 0
    %p54 = por %p52, %p53
    %s55 = ssub.s32 %s17, %s24
    %p56 = scmp.eq.s32.totalorder %s55, 0
    %s58 = sadd.s32 %s57, 1
    %s59 = scalar_select %p56, %s57, %s58
    %p62 = pneg %p56
    %p63 = scmp.eq.s32.totalorder %s9, 1
    %p64 = por %p62, %p63
    %p65 = scmp.ne.s32.totalorder %s57, %s60
    %p66 = scmp.eq.s32.totalorder %s9, 0
    %p67 = por %p65, %p66
    %p68 = scmp.ne.s32.totalorder %s57, %s60
    %p69 = scmp.eq.s32.totalorder %s14, 1
    %p70 = por %p68, %p69
    %p71 = scmp.ne.s32.totalorder %s60, %s61
    %p72 = scmp.eq.s32.totalorder %s14, 0
    %p73 = por %p71, %p72
    %p74 = scmp.ne.s32.totalorder %s60, %s61
    %p75 = scmp.eq.s32.totalorder %s15, 1
    %p76 = por %p74, %p75
    %p78 = scmp.ne.s32.totalorder %s61, %s77
    %p79 = scmp.eq.s32.totalorder %s15, 0
    %p80 = por %p78, %p79
    %s81 = ssub.s32 %s16, %s28
    %s82 = ssub.s32 %s17, %s24
    %s83 = sor.u32 %s81, %s82
    %p84 = scmp.eq.s32.totalorder %s83, 0
    %s86 = sadd.s32 %s85, 1
    %s87 = scalar_select %p84, %s85, %s86
    %p90 = pneg %p84
    %p91 = scmp.eq.s32.totalorder %s9, 1
    %p92 = por %p90, %p91
    %p93 = scmp.ne.s32.totalorder %s85, %s88
    %p94 = scmp.eq.s32.totalorder %s9, 0
    %p95 = por %p93, %p94
    %p96 = scmp.ne.s32.totalorder %s85, %s88
    %p97 = scmp.eq.s32.totalorder %s14, 1
    %p98 = por %p96, %p97
    %p99 = scmp.ne.s32.totalorder %s88, %s89
    %p100 = scmp.eq.s32.totalorder %s14, 0
    %p101 = por %p99, %p100
    %p102 = scmp.ne.s32.totalorder %s88, %s89
    %p103 = scmp.eq.s32.totalorder %s15, 1
    %p104 = por %p102, %p103
    %p106 = scmp.ne.s32.totalorder %s89, %s105
    %p107 = scmp.eq.s32.totalorder %s15, 0
    %p108 = por %p106, %p107
    %s109 = ssub.s32 %s16, %s28
    %s110 = ssub.s32 %s17, %s24
    %s111 = sor.u32 %s109, %s110
    %p112 = scmp.eq.s32.totalorder %s111, 0
    %s114 = sadd.s32 %s113, 1
    %s115 = scalar_select %p112, %s113, %s114
    %p118 = pneg %p112
    %p119 = scmp.eq.s32.totalorder %s9, 1
    %p120 = por %p118, %p119
    %p121 = scmp.ne.s32.totalorder %s113, %s116
    %p122 = scmp.eq.s32.totalorder %s9, 0
    %p123 = por %p121, %p122
    %p124 = scmp.ne.s32.totalorder %s113, %s116
    %p125 = scmp.eq.s32.totalorder %s14, 1
    %p126 = por %p124, %p125
    %p127 = scmp.ne.s32.totalorder %s116, %s117
    %p128 = scmp.eq.s32.totalorder %s14, 0
    %p129 = por %p127, %p128
    %p130 = scmp.ne.s32.totalorder %s116, %s117
    %p131 = scmp.eq.s32.totalorder %s15, 1
    %p132 = por %p130, %p131
    %p134 = scmp.ne.s32.totalorder %s117, %s133
    %p135 = scmp.eq.s32.totalorder %s15, 0
    %p136 = por %p134, %p135
    %p137 = scmp.le.s32.totalorder 1, %s9
    %p138 = scmp.lt.s32.totalorder %s9, 3
    %p139 = pnand %p137, %p138
    %p140 = pneg %p139
    // Predicated region
    $region9: #{a_call__.10} parent=5 // pred_check
      _
    $region10: #{a_call__.10} parent=5 // pred_check_branch
      %142 = sbr.rel (%p139) target = $region12
    $region11: #{a_call__.10} parent=5 // pred_region
      %s143 = ssub.s32 %s9, 1
      // Predicated region
      $region13: #{a_call__.10} parent=11 // pred_check
        %p144 = pneg %p73
      $region14: #{a_call__.10} parent=11 // pred_check_branch
        %146 = sbr.rel (%p144) target = $region16
      $region15: #{a_call__.10} parent=11 // pred_region
        %p147 = scmp.lt.s32.totalorder %s19, 0
        %s148 = scalar_select %p147, %s19, 0
        %s149 = smul.addr %s148, 4
        %s150 = scalar_lea.vmem %s1, %s149
      $region16: #{a_call__.10} parent=11 // pred_fallthru
        _
    $region12: #{a_call__.10} parent=5 // pred_fallthru
      _
    %p151 = scmp.lt.s32.totalorder %s9, 2
    // Predicated region
    $region17: #{a_call__.10} parent=5 // pred_check
      %p152 = pneg %p151
    $region18: #{a_call__.10} parent=5 // pred_check_branch
      %154 = sbr.rel (%p152) target = $region20
    $region19: #{a_call__.10} parent=5 // pred_region
      // Predicated region
      $region21: #{a_call__.10} parent=19 // pred_check
        %p155 = pneg %p41
      $region22: #{a_call__.10} parent=19 // pred_check_branch
        %157 = sbr.rel (%p155) target = $region24
      $region23: #{a_call__.10} parent=19 // pred_region
        %p158 = scmp.lt.s32.totalorder %s16, 1
        %s159 = scalar_select %p158, %s16, 1
        %s160 = smul.addr %s159, 14
        %s161 = smul.addr %s160, 4
        %s162 = scalar_lea.vmem %s0, %s161
      $region24: #{a_call__.10} parent=19 // pred_fallthru
        _
      // Predicated region
      $region25: #{a_call__.10} parent=19 // pred_check
        %p163 = pneg %p95
      $region26: #{a_call__.10} parent=19 // pred_check_branch
        %165 = sbr.rel (%p163) target = $region28
      $region27: #{a_call__.10} parent=19 // pred_region
        %p166 = scmp.lt.s32.totalorder %s16, 1
        %s167 = scalar_select %p166, %s16, 1
        %p168 = scmp.lt.s32.totalorder %s17, 0
        %s169 = scalar_select %p168, %s17, 0
        %s170 = smul.addr %s167, 10
        %s171 = sadd.s32 %s169, %s170
        %s172 = smul.addr %s171, 4
        %s173 = scalar_lea.vmem %s2, %s172
      $region28: #{a_call__.10} parent=19 // pred_fallthru
        _
    $region20: #{a_call__.10} parent=5 // pred_fallthru
      _
    %p174 = scmp.le.s32.totalorder 1, %s9
    %p175 = scmp.lt.s32.totalorder %s9, 3
    %p176 = pnand %p174, %p175
    %p177 = pneg %p176
    // Predicated region
    $region29: #{a_call__.10} parent=5 // pred_check
      _
    $region30: #{a_call__.10} parent=5 // pred_check_branch
      %179 = sbr.rel (%p176) target = $region32
    $region31: #{a_call__.10} parent=5 // pred_region
      %s180 = ssub.s32 %s9, 1
      %p181 = scmp.lt.s32.totalorder %s18, 1
      %s182 = scalar_select %p181, %s18, 1
      %s183 = smul.addr %s182, 14
      %s184 = smul.addr %s183, 4
      %s185 = scalar_lea.vmem %s0, %s184
      %p186 = pneg %p47
      %p187 = pneg %p44
      %p188 = scmp.lt.s32.totalorder %s19, 0
      %s189 = scalar_select %p188, %s19, 0
      %s190 = smul.addr %s189, 4
      %s191 = scalar_lea.vmem %s1, %s190
      %p192 = pneg %p73
      %p193 = pneg %p70
      %p194 = scmp.lt.s32.totalorder %s18, 1
      %s195 = scalar_select %p194, %s18, 1
      %p196 = scmp.lt.s32.totalorder %s19, 0
      %s197 = scalar_select %p196, %s19, 0
      %s198 = smul.addr %s195, 10
      %s199 = sadd.s32 %s197, %s198
      %s200 = smul.addr %s199, 4
      %s201 = scalar_lea.vmem %s2, %s200
      %p202 = pneg %p101
      %p203 = pneg %p98
      %p204 = pneg %p129
      %p205 = pneg %p126
      %p206 = scmp.lt.s32.totalorder %s18, 1
      %s207 = scalar_select %p206, %s18, 1
      %p208 = scmp.lt.s32.totalorder %s19, 0
      %s209 = scalar_select %p208, %s19, 0
      %s210 = smul.addr %s207, 10
      %s211 = sadd.s32 %s209, %s210
      %s212 = smul.addr %s211, 4
      %s213 = scalar_lea.vmem %s3, %s212
      %p214 = scmp.lt.s32.totalorder %s18, 1
      %s215 = scalar_select %p214, %s18, 1
      %s216 = smul.addr %s215, 14
      %s217 = smul.addr %s216, 4
      %s218 = scalar_lea.vmem %s0, %s217
      %p219 = scmp.lt.s32.totalorder %s19, 0
      %s220 = scalar_select %p219, %s19, 0
      %s221 = smul.addr %s220, 4
      %s222 = scalar_lea.vmem %s1, %s221
      %p223 = scmp.lt.s32.totalorder %s18, 1
      %s224 = scalar_select %p223, %s18, 1
      %p225 = scmp.lt.s32.totalorder %s19, 0
      %s226 = scalar_select %p225, %s19, 0
      %s227 = smul.addr %s224, 10
      %s228 = sadd.s32 %s226, %s227
      %s229 = smul.addr %s228, 4
      %s230 = scalar_lea.vmem %s2, %s229
      %p231 = scmp.lt.s32.totalorder %s18, 1
      %s232 = scalar_select %p231, %s18, 1
      %p233 = scmp.lt.s32.totalorder %s19, 0
      %s234 = scalar_select %p233, %s19, 0
      %s235 = smul.addr %s232, 10
      %s236 = sadd.s32 %s234, %s235
      %s237 = smul.addr %s236, 4
      %s238 = scalar_lea.vmem %s3, %s237
      %239 = vst [vmem:[#allocation2] sm:$0xff] 0.0
      %240 = vst [vmem:[#allocation2 + $0x8] sm:$0xff] 0.0
      %241 = vst [vmem:[#allocation2 + $0x10] sm:$0xff] 0.0
      %242 = vst [vmem:[#allocation2 + $0x18] sm:$0xff] 0.0
      %243 = vst [vmem:[#allocation2 + $0x20] sm:$0xff] 0.0
      %244 = vst [vmem:[#allocation2 + $0x28] sm:$0xff] 0.0
      %245 = vst [vmem:[#allocation2 + $0x30] sm:$0xff] 0.0
      %246 = vst [vmem:[#allocation2 + $0x38] sm:$0xff] 0.0
      %247 = vst [vmem:[#allocation2 + $0x40] sm:$0xff] 0.0
      %248 = vst [vmem:[#allocation2 + $0x48] sm:$0xff] 0.0
      %v249 = vld [vmem:[%s218] sm:$0xf]
      %v250 = vld [vmem:[%s218 + $0x4] sm:$0xf]
      %v251 = vld [vmem:[%s218 + $0x8] sm:$0xf]
      %v252 = vld [vmem:[%s218 + $0xc] sm:$0xf]
      %v253 = vld [vmem:[%s218 + $0x10] sm:$0xf]
      %v254 = vld [vmem:[%s218 + $0x14] sm:$0xf]
      %v255 = vld [vmem:[%s218 + $0x18] sm:$0xf]
      %v256 = vld [vmem:[%s218 + $0x1c] sm:$0xf]
      %v257 = vld [vmem:[%s218 + $0x20] sm:$0xf]
      %v258 = vld [vmem:[%s218 + $0x24] sm:$0xf]
      %v259 = vld [vmem:[#allocation2] sm:$0xff]
      %v260 = vld [vmem:[#allocation2 + $0x8] sm:$0xff]
      %v261 = vld [vmem:[#allocation2 + $0x10] sm:$0xff]
      %v262 = vld [vmem:[#allocation2 + $0x18] sm:$0xff]
      %v263 = vld [vmem:[#allocation2 + $0x20] sm:$0xff]
      %v264 = vld [vmem:[#allocation2 + $0x28] sm:$0xff]
      %v265 = vld [vmem:[#allocation2 + $0x30] sm:$0xff]
      %v266 = vld [vmem:[#allocation2 + $0x38] sm:$0xff]
      %v267 = vld [vmem:[#allocation2 + $0x40] sm:$0xff]
      %v268 = vld [vmem:[#allocation2 + $0x48] sm:$0xff]
      %v269 = vld [vmem:[%s222] sm:$0xf]
      %v270 = vld [vmem:[%s222 + $0x4] sm:$0xf]
      %v271 = vld [vmem:[%s222 + $0x8] sm:$0xf]
      %v272 = vld [vmem:[%s222 + $0xc] sm:$0xf]
      %v273 = vld [vmem:[%s222 + $0x10] sm:$0xf]
      %v274 = vld [vmem:[%s222 + $0x14] sm:$0xf]
      %v275 = vld [vmem:[%s222 + $0x18] sm:$0xf]
      %v276 = vld [vmem:[%s222 + $0x1c] sm:$0xf]
      %v277 = vld [vmem:[%s222 + $0x20] sm:$0xf]
      %v278 = vld [vmem:[%s222 + $0x24] sm:$0xf]
      %v279 = vld [vmem:[%s222 + $0x28] sm:$0xf]
      %v280 = vld [vmem:[%s222 + $0x2c] sm:$0xf]
      %v281 = vld [vmem:[%s222 + $0x30] sm:$0xf]
      %v282 = vld [vmem:[%s222 + $0x34] sm:$0xf]
      %v283 = vld [vmem:[%s222 + $0x38] sm:$0xf]
      %v284 = vld [vmem:[%s222 + $0x3c] sm:$0xf]
      %v295 = vunpack.c.l.b16 %v249
      %v296 = vunpack.c.l.b16 %v250
      %v297 = vunpack.c.l.b16 %v251
      %v298 = vunpack.c.l.b16 %v252
      %v299 = vunpack.c.l.b16 %v253
      %v300 = vunpack.c.l.b16 %v254
      %v301 = vunpack.c.l.b16 %v255
      %v302 = vunpack.c.l.b16 %v256
      %v303 = vunpack.c.l.b16 %v257
      %v304 = vunpack.c.l.b16 %v258
      %v305 = vpack.c.b16 %v296, %v295
      %v306 = vpack.c.b16 %v298, %v297
      %v307 = vpack.c.b16 %v300, %v299
      %v308 = vpack.c.b16 %v302, %v301
      %v309 = vpack.c.b16 %v304, %v303
      %v331 = vunpack.c.l.b16 %v269
      %v332 = vunpack.c.l.b16 %v270
      %v333 = vunpack.c.l.b16 %v271
      %v334 = vunpack.c.l.b16 %v272
      %v335 = vunpack.c.l.b16 %v273
      %v336 = vunpack.c.l.b16 %v274
      %v337 = vunpack.c.l.b16 %v275
      %v338 = vunpack.c.l.b16 %v276
      %v339 = vunpack.c.l.b16 %v277
      %v340 = vunpack.c.l.b16 %v278
      %v341 = vunpack.c.l.b16 %v279
      %v342 = vunpack.c.l.b16 %v280
      %v343 = vunpack.c.l.b16 %v281
      %v344 = vunpack.c.l.b16 %v282
      %v345 = vunpack.c.l.b16 %v283
      %v346 = vunpack.c.l.b16 %v284
      %v347 = vpack.c.b16 %v332, %v331
      %v348 = vpack.c.b16 %v334, %v333
      %v349 = vpack.c.b16 %v336, %v335
      %v350 = vpack.c.b16 %v338, %v337
      %v351 = vpack.c.b16 %v340, %v339
      %v352 = vpack.c.b16 %v342, %v341
      %v353 = vpack.c.b16 %v344, %v343
      %v354 = vpack.c.b16 %v346, %v345
      %363 = vmatpush.bf16.msra.mxu0 %v354
      %364 = vmatpush.bf16.msra.mxu0 %v353
      %365 = vmatpush.bf16.msra.mxu0 %v352
      %366 = vmatpush.bf16.msra.mxu0 %v351
      %367 = vmatpush.bf16.msra.mxu0 %v350
      %368 = vmatpush.bf16.msra.mxu0 %v349
      %369 = vmatpush.bf16.msra.mxu0 %v348
      %370 = vmatpush.bf16.msra.mxu0 %v347
      %371 = vmatmul.bf16.gmra.mxu0 %v305
      %v372 = vpop.f32.mrf.mxu0
      %v373 = vadd.f32 0.0, %v372
      %v374 = vpop.f32.mrf.mxu0
      %v375 = vadd.f32 0.0, %v374
      %376 = vmatmul.bf16.gmra.mxu0 %v306
      %v377 = vpop.f32.mrf.mxu0
      %v378 = vadd.f32 0.0, %v377
      %v379 = vpop.f32.mrf.mxu0
      %v380 = vadd.f32 0.0, %v379
      %381 = vmatmul.bf16.gmra.mxu0 %v307
      %v382 = vpop.f32.mrf.mxu0
      %v383 = vadd.f32 0.0, %v382
      %v384 = vpop.f32.mrf.mxu0
      %v385 = vadd.f32 0.0, %v384
      %386 = vmatmul.bf16.gmra.mxu0 %v308
      %v387 = vpop.f32.mrf.mxu0
      %v388 = vadd.f32 0.0, %v387
      %v389 = vpop.f32.mrf.mxu0
      %v390 = vadd.f32 0.0, %v389
      %391 = vmatmul.bf16.gmra.mxu0 %v309
      %v392 = vpop.f32.mrf.mxu0
      %v393 = vadd.f32 0.0, %v392
      %v394 = vpop.f32.mrf.mxu0
      %v395 = vadd.f32 0.0, %v394
      %396 = vdwg.mxu0
      %v397 = vadd.f32 %v259, %v373
      %v398 = vadd.f32 %v260, %v375
      %v399 = vadd.f32 %v261, %v378
      %v400 = vadd.f32 %v262, %v380
      %v401 = vadd.f32 %v263, %v383
      %v402 = vadd.f32 %v264, %v385
      %v403 = vadd.f32 %v265, %v388
      %v404 = vadd.f32 %v266, %v390
      %v405 = vadd.f32 %v267, %v393
      %v406 = vadd.f32 %v268, %v395
      %407 = vst [vmem:[#allocation2] sm:$0xff] %v397
      %408 = vst [vmem:[#allocation2 + $0x8] sm:$0xff] %v398
      %409 = vst [vmem:[#allocation2 + $0x10] sm:$0xff] %v399
      %410 = vst [vmem:[#allocation2 + $0x18] sm:$0xff] %v400
      %411 = vst [vmem:[#allocation2 + $0x20] sm:$0xff] %v401
      %412 = vst [vmem:[#allocation2 + $0x28] sm:$0xff] %v402
      %413 = vst [vmem:[#allocation2 + $0x30] sm:$0xff] %v403
      %414 = vst [vmem:[#allocation2 + $0x38] sm:$0xff] %v404
      %415 = vst [vmem:[#allocation2 + $0x40] sm:$0xff] %v405
      %416 = vst [vmem:[#allocation2 + $0x48] sm:$0xff] %v406
      %v417 = vld [vmem:[%s218] sm:$0xf]
      %v418 = vld [vmem:[%s218 + $0x4] sm:$0xf]
      %v419 = vld [vmem:[%s218 + $0x8] sm:$0xf]
      %v420 = vld [vmem:[%s218 + $0xc] sm:$0xf]
      %v421 = vld [vmem:[%s218 + $0x10] sm:$0xf]
      %v422 = vld [vmem:[%s218 + $0x14] sm:$0xf]
      %v423 = vld [vmem:[%s218 + $0x18] sm:$0xf]
      %v424 = vld [vmem:[%s218 + $0x1c] sm:$0xf]
      %v425 = vld [vmem:[%s218 + $0x20] sm:$0xf]
      %v426 = vld [vmem:[%s218 + $0x24] sm:$0xf]
      %v427 = vld [vmem:[%s218 + $0x28] sm:$0x1]
      %v428 = vld [vmem:[#allocation2] sm:$0xff]
      %v429 = vld [vmem:[#allocation2 + $0x8] sm:$0xff]
      %v430 = vld [vmem:[#allocation2 + $0x10] sm:$0xff]
      %v431 = vld [vmem:[#allocation2 + $0x18] sm:$0xff]
      %v432 = vld [vmem:[#allocation2 + $0x20] sm:$0xff]
      %v433 = vld [vmem:[#allocation2 + $0x28] sm:$0xff]
      %v434 = vld [vmem:[#allocation2 + $0x30] sm:$0xff]
      %v435 = vld [vmem:[#allocation2 + $0x38] sm:$0xff]
      %v436 = vld [vmem:[#allocation2 + $0x40] sm:$0xff]
      %v437 = vld [vmem:[#allocation2 + $0x48] sm:$0xff]
      %s438 = scalar_lea.vmem %s222, 64
      %v439 = vld [vmem:[%s438] sm:$0xf]
      %v440 = vld [vmem:[%s438 + $0x4] sm:$0xf]
      %v441 = vld [vmem:[%s438 + $0x8] sm:$0xf]
      %v442 = vld [vmem:[%s438 + $0xc] sm:$0xf]
      %v443 = vld [vmem:[%s438 + $0x10] sm:$0xf]
      %v444 = vld [vmem:[%s438 + $0x14] sm:$0xf]
      %v445 = vld [vmem:[%s438 + $0x18] sm:$0xf]
      %v446 = vld [vmem:[%s438 + $0x1c] sm:$0xf]
      %v447 = vld [vmem:[%s438 + $0x20] sm:$0xf]
      %v448 = vld [vmem:[%s438 + $0x24] sm:$0xf]
      %v449 = vld [vmem:[%s438 + $0x28] sm:$0xf]
      %v450 = vld [vmem:[%s438 + $0x2c] sm:$0xf]
      %v451 = vld [vmem:[%s438 + $0x30] sm:$0xf]
      %v452 = vld [vmem:[%s438 + $0x34] sm:$0xf]
      %v453 = vld [vmem:[%s438 + $0x38] sm:$0xf]
      %v454 = vld [vmem:[%s438 + $0x3c] sm:$0xf]
      %v466 = vunpack.c.l.b16 %v417
      %v467 = vunpack.c.l.b16 %v418
      %v468 = vunpack.c.l.b16 %v419
      %v469 = vunpack.c.l.b16 %v420
      %v470 = vunpack.c.l.b16 %v421
      %v471 = vunpack.c.l.b16 %v422
      %v472 = vunpack.c.l.b16 %v423
      %v473 = vunpack.c.l.b16 %v424
      %v474 = vunpack.c.l.b16 %v425
      %v475 = vunpack.c.l.b16 %v426
      %v476 = vunpack.c.l.b16 %v427
      %v477 = vpack.c.b16 %v467, %v466
      %v478 = vpack.c.b16 %v469, %v468
      %v479 = vpack.c.b16 %v471, %v470
      %v480 = vpack.c.b16 %v473, %v472
      %v481 = vpack.c.b16 %v475, %v474
      %v482 = vpack.c.b16 %v476, %v476
      %vm483 = vsmask.f32 7424
      %v485 = vshrl.u32 %v477, 16
      %v487 = vshll.u32 %v477, 16
      %v489 = vrot.slane %v487, 1
      %v490 = vor.u32 %v485, %v489
      %v492 = vshll.u32 %v478, 16
      %v494 = vrot.slane %v492, 1
      %v495 = vsel %vm483, %v490, %v494
      %v496 = vshrl.u32 %v478, 16
      %v498 = vor.u32 %v496, %v494
      %v500 = vshll.u32 %v479, 16
      %v502 = vrot.slane %v500, 1
      %v503 = vsel %vm483, %v498, %v502
      %v504 = vshrl.u32 %v479, 16
      %v506 = vor.u32 %v504, %v502
      %v508 = vshll.u32 %v480, 16
      %v510 = vrot.slane %v508, 1
      %v511 = vsel %vm483, %v506, %v510
      %v512 = vshrl.u32 %v480, 16
      %v514 = vor.u32 %v512, %v510
      %v516 = vshll.u32 %v481, 16
      %v518 = vrot.slane %v516, 1
      %v519 = vsel %vm483, %v514, %v518
      %v520 = vshrl.u32 %v481, 16
      %v522 = vor.u32 %v520, %v518
      %v524 = vshll.u32 %v482, 16
      %v526 = vrot.slane %v524, 1
      %v527 = vsel %vm483, %v522, %v526
      %v549 = vunpack.c.l.b16 %v439
      %v550 = vunpack.c.l.b16 %v440
      %v551 = vunpack.c.l.b16 %v441
      %v552 = vunpack.c.l.b16 %v442
      %v553 = vunpack.c.l.b16 %v443
      %v554 = vunpack.c.l.b16 %v444
      %v555 = vunpack.c.l.b16 %v445
      %v556 = vunpack.c.l.b16 %v446
      %v557 = vunpack.c.l.b16 %v447
      %v558 = vunpack.c.l.b16 %v448
      %v559 = vunpack.c.l.b16 %v449
      %v560 = vunpack.c.l.b16 %v450
      %v561 = vunpack.c.l.b16 %v451
      %v562 = vunpack.c.l.b16 %v452
      %v563 = vunpack.c.l.b16 %v453
      %v564 = vunpack.c.l.b16 %v454
      %v565 = vpack.c.b16 %v550, %v549
      %v566 = vpack.c.b16 %v552, %v551
      %v567 = vpack.c.b16 %v554, %v553
      %v568 = vpack.c.b16 %v556, %v555
      %v569 = vpack.c.b16 %v558, %v557
      %v570 = vpack.c.b16 %v560, %v559
      %v571 = vpack.c.b16 %v562, %v561
      %v572 = vpack.c.b16 %v564, %v563
      %581 = vmatpush.bf16.msra.mxu0 %v572
      %582 = vmatpush.bf16.msra.mxu0 %v571
      %583 = vmatpush.bf16.msra.mxu0 %v570
      %584 = vmatpush.bf16.msra.mxu0 %v569
      %585 = vmatpush.bf16.msra.mxu0 %v568
      %586 = vmatpush.bf16.msra.mxu0 %v567
      %587 = vmatpush.bf16.msra.mxu0 %v566
      %588 = vmatpush.bf16.msra.mxu0 %v565
      %589 = vmatmul.bf16.gmra.mxu0 %v495
      %v590 = vpop.f32.mrf.mxu0
      %v591 = vadd.f32 0.0, %v590
      %v592 = vpop.f32.mrf.mxu0
      %v593 = vadd.f32 0.0, %v592
      %594 = vmatmul.bf16.gmra.mxu0 %v503
      %v595 = vpop.f32.mrf.mxu0
      %v596 = vadd.f32 0.0, %v595
      %v597 = vpop.f32.mrf.mxu0
      %v598 = vadd.f32 0.0, %v597
      %599 = vmatmul.bf16.gmra.mxu0 %v511
      %v600 = vpop.f32.mrf.mxu0
      %v601 = vadd.f32 0.0, %v600
      %v602 = vpop.f32.mrf.mxu0
      %v603 = vadd.f32 0.0, %v602
      %604 = vmatmul.bf16.gmra.mxu0 %v519
      %v605 = vpop.f32.mrf.mxu0
      %v606 = vadd.f32 0.0, %v605
      %v607 = vpop.f32.mrf.mxu0
      %v608 = vadd.f32 0.0, %v607
      %609 = vmatmul.bf16.gmra.mxu0 %v527
      %v610 = vpop.f32.mrf.mxu0
      %v611 = vadd.f32 0.0, %v610
      %v612 = vpop.f32.mrf.mxu0
      %v613 = vadd.f32 0.0, %v612
      %614 = vdwg.mxu0
      %v615 = vadd.f32 %v428, %v591
      %v616 = vadd.f32 %v429, %v593
      %v617 = vadd.f32 %v430, %v596
      %v618 = vadd.f32 %v431, %v598
      %v619 = vadd.f32 %v432, %v601
      %v620 = vadd.f32 %v433, %v603
      %v621 = vadd.f32 %v434, %v606
      %v622 = vadd.f32 %v435, %v608
      %v623 = vadd.f32 %v436, %v611
      %v624 = vadd.f32 %v437, %v613
      %625 = vst [vmem:[#allocation2] sm:$0xff] %v615
      %626 = vst [vmem:[#allocation2 + $0x8] sm:$0xff] %v616
      %627 = vst [vmem:[#allocation2 + $0x10] sm:$0xff] %v617
      %628 = vst [vmem:[#allocation2 + $0x18] sm:$0xff] %v618
      %629 = vst [vmem:[#allocation2 + $0x20] sm:$0xff] %v619
      %630 = vst [vmem:[#allocation2 + $0x28] sm:$0xff] %v620
      %631 = vst [vmem:[#allocation2 + $0x30] sm:$0xff] %v621
      %632 = vst [vmem:[#allocation2 + $0x38] sm:$0xff] %v622
      %633 = vst [vmem:[#allocation2 + $0x40] sm:$0xff] %v623
      %634 = vst [vmem:[#allocation2 + $0x48] sm:$0xff] %v624
      %v635 = vld [vmem:[%s218] sm:$0xe]
      %v636 = vld [vmem:[%s218 + $0x4] sm:$0xf]
      %v637 = vld [vmem:[%s218 + $0x8] sm:$0xf]
      %v638 = vld [vmem:[%s218 + $0xc] sm:$0xf]
      %v639 = vld [vmem:[%s218 + $0x10] sm:$0xf]
      %v640 = vld [vmem:[%s218 + $0x14] sm:$0xf]
      %v641 = vld [vmem:[%s218 + $0x18] sm:$0xf]
      %v642 = vld [vmem:[%s218 + $0x1c] sm:$0xf]
      %v643 = vld [vmem:[%s218 + $0x20] sm:$0xf]
      %v644 = vld [vmem:[%s218 + $0x24] sm:$0xf]
      %v645 = vld [vmem:[%s218 + $0x28] sm:$0x1]
      %v646 = vld [vmem:[#allocation2] sm:$0xff]
      %v647 = vld [vmem:[#allocation2 + $0x8] sm:$0xff]
      %v648 = vld [vmem:[#allocation2 + $0x10] sm:$0xff]
      %v649 = vld [vmem:[#allocation2 + $0x18] sm:$0xff]
      %v650 = vld [vmem:[#allocation2 + $0x20] sm:$0xff]
      %v651 = vld [vmem:[#allocation2 + $0x28] sm:$0xff]
      %v652 = vld [vmem:[#allocation2 + $0x30] sm:$0xff]
      %v653 = vld [vmem:[#allocation2 + $0x38] sm:$0xff]
      %v654 = vld [vmem:[#allocation2 + $0x40] sm:$0xff]
      %v655 = vld [vmem:[#allocation2 + $0x48] sm:$0xff]
      %s656 = scalar_lea.vmem %s222, 128
      %v657 = vld [vmem:[%s656] sm:$0xf]
      %v658 = vld [vmem:[%s656 + $0x4] sm:$0xf]
      %v659 = vld [vmem:[%s656 + $0x8] sm:$0xf]
      %v660 = vld [vmem:[%s656 + $0xc] sm:$0xf]
      %v661 = vld [vmem:[%s656 + $0x10] sm:$0xf]
      %v662 = vld [vmem:[%s656 + $0x14] sm:$0xf]
      %v663 = vld [vmem:[%s656 + $0x18] sm:$0xf]
      %v664 = vld [vmem:[%s656 + $0x1c] sm:$0xf]
      %v665 = vld [vmem:[%s656 + $0x20] sm:$0xf]
      %v666 = vld [vmem:[%s656 + $0x24] sm:$0xf]
      %v667 = vld [vmem:[%s656 + $0x28] sm:$0xf]
      %v668 = vld [vmem:[%s656 + $0x2c] sm:$0xf]
      %v669 = vld [vmem:[%s656 + $0x30] sm:$0xf]
      %v670 = vld [vmem:[%s656 + $0x34] sm:$0xf]
      %v671 = vld [vmem:[%s656 + $0x38] sm:$0xf]
      %v672 = vld [vmem:[%s656 + $0x3c] sm:$0xf]
      %v684 = vunpack.c.l.b16 %v635
      %v685 = vunpack.c.l.b16 %v636
      %v686 = vunpack.c.l.b16 %v637
      %v687 = vunpack.c.l.b16 %v638
      %v688 = vunpack.c.l.b16 %v639
      %v689 = vunpack.c.l.b16 %v640
      %v690 = vunpack.c.l.b16 %v641
      %v691 = vunpack.c.l.b16 %v642
      %v692 = vunpack.c.l.b16 %v643
      %v693 = vunpack.c.l.b16 %v644
      %v694 = vunpack.c.l.b16 %v645
      %v695 = vpack.c.b16 %v685, %v684
      %v696 = vpack.c.b16 %v687, %v686
      %v697 = vpack.c.b16 %v689, %v688
      %v698 = vpack.c.b16 %v691, %v690
      %v699 = vpack.c.b16 %v693, %v692
      %v700 = vpack.c.b16 %v694, %v694
      %vm701 = vcmask 1046528
      %v702 = vrot.slane %v695, 1
      %v703 = vrot.slane %v696, 1
      %v704 = vsel %vm701, %v702, %v703
      %v705 = vrot.slane %v697, 1
      %v706 = vsel %vm701, %v703, %v705
      %v707 = vrot.slane %v698, 1
      %v708 = vsel %vm701, %v705, %v707
      %v709 = vrot.slane %v699, 1
      %v710 = vsel %vm701, %v707, %v709
      %v711 = vrot.slane %v700, 1
      %v712 = vsel %vm701, %v709, %v711
      %v734 = vunpack.c.l.b16 %v657
      %v735 = vunpack.c.l.b16 %v658
      %v736 = vunpack.c.l.b16 %v659
      %v737 = vunpack.c.l.b16 %v660
      %v738 = vunpack.c.l.b16 %v661
      %v739 = vunpack.c.l.b16 %v662
      %v740 = vunpack.c.l.b16 %v663
      %v741 = vunpack.c.l.b16 %v664
      %v742 = vunpack.c.l.b16 %v665
      %v743 = vunpack.c.l.b16 %v666
      %v744 = vunpack.c.l.b16 %v667
      %v745 = vunpack.c.l.b16 %v668
      %v746 = vunpack.c.l.b16 %v669
      %v747 = vunpack.c.l.b16 %v670
      %v748 = vunpack.c.l.b16 %v671
      %v749 = vunpack.c.l.b16 %v672
      %v750 = vpack.c.b16 %v735, %v734
      %v751 = vpack.c.b16 %v737, %v736
      %v752 = vpack.c.b16 %v739, %v738
      %v753 = vpack.c.b16 %v741, %v740
      %v754 = vpack.c.b16 %v743, %v742
      %v755 = vpack.c.b16 %v745, %v744
      %v756 = vpack.c.b16 %v747, %v746
      %v757 = vpack.c.b16 %v749, %v748
      %766 = vmatpush.bf16.msra.mxu0 %v757
      %767 = vmatpush.bf16.msra.mxu0 %v756
      %768 = vmatpush.bf16.msra.mxu0 %v755
      %769 = vmatpush.bf16.msra.mxu0 %v754
      %770 = vmatpush.bf16.msra.mxu0 %v753
      %771 = vmatpush.bf16.msra.mxu0 %v752
      %772 = vmatpush.bf16.msra.mxu0 %v751
      %773 = vmatpush.bf16.msra.mxu0 %v750
      %774 = vmatmul.bf16.gmra.mxu0 %v704
      %v775 = vpop.f32.mrf.mxu0
      %v776 = vadd.f32 0.0, %v775
      %v777 = vpop.f32.mrf.mxu0
      %v778 = vadd.f32 0.0, %v777
      %779 = vmatmul.bf16.gmra.mxu0 %v706
      %v780 = vpop.f32.mrf.mxu0
      %v781 = vadd.f32 0.0, %v780
      %v782 = vpop.f32.mrf.mxu0
      %v783 = vadd.f32 0.0, %v782
      %784 = vmatmul.bf16.gmra.mxu0 %v708
      %v785 = vpop.f32.mrf.mxu0
      %v786 = vadd.f32 0.0, %v785
      %v787 = vpop.f32.mrf.mxu0
      %v788 = vadd.f32 0.0, %v787
      %789 = vmatmul.bf16.gmra.mxu0 %v710
      %v790 = vpop.f32.mrf.mxu0
      %v791 = vadd.f32 0.0, %v790
      %v792 = vpop.f32.mrf.mxu0
      %v793 = vadd.f32 0.0, %v792
      %794 = vmatmul.bf16.gmra.mxu0 %v712
      %v795 = vpop.f32.mrf.mxu0
      %v796 = vadd.f32 0.0, %v795
      %v797 = vpop.f32.mrf.mxu0
      %v798 = vadd.f32 0.0, %v797
      %799 = vdwg.mxu0
      %v800 = vadd.f32 %v646, %v776
      %v801 = vadd.f32 %v647, %v778
      %v802 = vadd.f32 %v648, %v781
      %v803 = vadd.f32 %v649, %v783
      %v804 = vadd.f32 %v650, %v786
      %v805 = vadd.f32 %v651, %v788
      %v806 = vadd.f32 %v652, %v791
      %v807 = vadd.f32 %v653, %v793
      %v808 = vadd.f32 %v654, %v796
      %v809 = vadd.f32 %v655, %v798
      %810 = vst [vmem:[#allocation2] sm:$0xff] %v800
      %811 = vst [vmem:[#allocation2 + $0x8] sm:$0xff] %v801
      %812 = vst [vmem:[#allocation2 + $0x10] sm:$0xff] %v802
      %813 = vst [vmem:[#allocation2 + $0x18] sm:$0xff] %v803
      %814 = vst [vmem:[#allocation2 + $0x20] sm:$0xff] %v804
      %815 = vst [vmem:[#allocation2 + $0x28] sm:$0xff] %v805
      %816 = vst [vmem:[#allocation2 + $0x30] sm:$0xff] %v806
      %817 = vst [vmem:[#allocation2 + $0x38] sm:$0xff] %v807
      %818 = vst [vmem:[#allocation2 + $0x40] sm:$0xff] %v808
      %819 = vst [vmem:[#allocation2 + $0x48] sm:$0xff] %v809
      %v820 = vld [vmem:[%s218 + $0x4] sm:$0xe]
      %v821 = vld [vmem:[%s218 + $0x8] sm:$0xf]
      %v822 = vld [vmem:[%s218 + $0xc] sm:$0xf]
      %v823 = vld [vmem:[%s218 + $0x10] sm:$0xf]
      %v824 = vld [vmem:[%s218 + $0x14] sm:$0xf]
      %v825 = vld [vmem:[%s218 + $0x18] sm:$0xf]
      %v826 = vld [vmem:[%s218 + $0x1c] sm:$0xf]
      %v827 = vld [vmem:[%s218 + $0x20] sm:$0xf]
      %v828 = vld [vmem:[%s218 + $0x24] sm:$0xf]
      %v829 = vld [vmem:[%s218 + $0x28] sm:$0xf]
      %v830 = vld [vmem:[%s218 + $0x2c] sm:$0x1]
      %v831 = vld [vmem:[#allocation2] sm:$0xff]
      %v832 = vld [vmem:[#allocation2 + $0x8] sm:$0xff]
      %v833 = vld [vmem:[#allocation2 + $0x10] sm:$0xff]
      %v834 = vld [vmem:[#allocation2 + $0x18] sm:$0xff]
      %v835 = vld [vmem:[#allocation2 + $0x20] sm:$0xff]
      %v836 = vld [vmem:[#allocation2 + $0x28] sm:$0xff]
      %v837 = vld [vmem:[#allocation2 + $0x30] sm:$0xff]
      %v838 = vld [vmem:[#allocation2 + $0x38] sm:$0xff]
      %v839 = vld [vmem:[#allocation2 + $0x40] sm:$0xff]
      %v840 = vld [vmem:[#allocation2 + $0x48] sm:$0xff]
      %s841 = scalar_lea.vmem %s222, 192
      %v842 = vld [vmem:[%s841] sm:$0xf]
      %v843 = vld [vmem:[%s841 + $0x4] sm:$0xf]
      %v844 = vld [vmem:[%s841 + $0x8] sm:$0xf]
      %v845 = vld [vmem:[%s841 + $0xc] sm:$0xf]
      %v846 = vld [vmem:[%s841 + $0x10] sm:$0xf]
      %v847 = vld [vmem:[%s841 + $0x14] sm:$0xf]
      %v848 = vld [vmem:[%s841 + $0x18] sm:$0xf]
      %v849 = vld [vmem:[%s841 + $0x1c] sm:$0xf]
      %v850 = vld [vmem:[%s841 + $0x20] sm:$0xf]
      %v851 = vld [vmem:[%s841 + $0x24] sm:$0xf]
      %v852 = vld [vmem:[%s841 + $0x28] sm:$0xf]
      %v853 = vld [vmem:[%s841 + $0x2c] sm:$0xf]
      %v854 = vld [vmem:[%s841 + $0x30] sm:$0xf]
      %v855 = vld [vmem:[%s841 + $0x34] sm:$0xf]
      %v856 = vld [vmem:[%s841 + $0x38] sm:$0xf]
      %v857 = vld [vmem:[%s841 + $0x3c] sm:$0xf]
      %v869 = vunpack.c.l.b16 %v820
      %v870 = vunpack.c.l.b16 %v821
      %v871 = vunpack.c.l.b16 %v822
      %v872 = vunpack.c.l.b16 %v823
      %v873 = vunpack.c.l.b16 %v824
      %v874 = vunpack.c.l.b16 %v825
      %v875 = vunpack.c.l.b16 %v826
      %v876 = vunpack.c.l.b16 %v827
      %v877 = vunpack.c.l.b16 %v828
      %v878 = vunpack.c.l.b16 %v829
      %v879 = vunpack.c.l.b16 %v830
      %v880 = vpack.c.b16 %v870, %v869
      %v881 = vpack.c.b16 %v872, %v871
      %v882 = vpack.c.b16 %v874, %v873
      %v883 = vpack.c.b16 %v876, %v875
      %v884 = vpack.c.b16 %v878, %v877
      %v885 = vpack.c.b16 %v879, %v879
      %v886 = vrot.slane %v880, 1
      %v887 = vrot.slane %v881, 1
      %v888 = vsel %vm701, %v886, %v887
      %v889 = vrot.slane %v882, 1
      %v890 = vsel %vm701, %v887, %v889
      %v891 = vrot.slane %v883, 1
      %v892 = vsel %vm701, %v889, %v891
      %v893 = vrot.slane %v884, 1
      %v894 = vsel %vm701, %v891, %v893
      %v895 = vrot.slane %v885, 1
      %v896 = vsel %vm701, %v893, %v895
      %v918 = vunpack.c.l.b16 %v842
      %v919 = vunpack.c.l.b16 %v843
      %v920 = vunpack.c.l.b16 %v844
      %v921 = vunpack.c.l.b16 %v845
      %v922 = vunpack.c.l.b16 %v846
      %v923 = vunpack.c.l.b16 %v847
      %v924 = vunpack.c.l.b16 %v848
      %v925 = vunpack.c.l.b16 %v849
      %v926 = vunpack.c.l.b16 %v850
      %v927 = vunpack.c.l.b16 %v851
      %v928 = vunpack.c.l.b16 %v852
      %v929 = vunpack.c.l.b16 %v853
      %v930 = vunpack.c.l.b16 %v854
      %v931 = vunpack.c.l.b16 %v855
      %v932 = vunpack.c.l.b16 %v856
      %v933 = vunpack.c.l.b16 %v857
      %v934 = vpack.c.b16 %v919, %v918
      %v935 = vpack.c.b16 %v921, %v920
      %v936 = vpack.c.b16 %v923, %v922
      %v937 = vpack.c.b16 %v925, %v924
      %v938 = vpack.c.b16 %v927, %v926
      %v939 = vpack.c.b16 %v929, %v928
      %v940 = vpack.c.b16 %v931, %v930
      %v941 = vpack.c.b16 %v933, %v932
      %950 = vmatpush.bf16.msra.mxu0 %v941
      %951 = vmatpush.bf16.msra.mxu0 %v940
      %952 = vmatpush.bf16.msra.mxu0 %v939
      %953 = vmatpush.bf16.msra.mxu0 %v938
      %954 = vmatpush.bf16.msra.mxu0 %v937
      %955 = vmatpush.bf16.msra.mxu0 %v936
      %956 = vmatpush.bf16.msra.mxu0 %v935
      %957 = vmatpush.bf16.msra.mxu0 %v934
      %958 = vmatmul.bf16.gmra.mxu0 %v888
      %v959 = vpop.f32.mrf.mxu0
      %v960 = vadd.f32 0.0, %v959
      %v961 = vpop.f32.mrf.mxu0
      %v962 = vadd.f32 0.0, %v961
      %963 = vmatmul.bf16.gmra.mxu0 %v890
      %v964 = vpop.f32.mrf.mxu0
      %v965 = vadd.f32 0.0, %v964
      %v966 = vpop.f32.mrf.mxu0
      %v967 = vadd.f32 0.0, %v966
      %968 = vmatmul.bf16.gmra.mxu0 %v892
      %v969 = vpop.f32.mrf.mxu0
      %v970 = vadd.f32 0.0, %v969
      %v971 = vpop.f32.mrf.mxu0
      %v972 = vadd.f32 0.0, %v971
      %973 = vmatmul.bf16.gmra.mxu0 %v894
      %v974 = vpop.f32.mrf.mxu0
      %v975 = vadd.f32 0.0, %v974
      %v976 = vpop.f32.mrf.mxu0
      %v977 = vadd.f32 0.0, %v976
      %978 = vmatmul.bf16.gmra.mxu0 %v896
      %v979 = vpop.f32.mrf.mxu0
      %v980 = vadd.f32 0.0, %v979
      %v981 = vpop.f32.mrf.mxu0
      %v982 = vadd.f32 0.0, %v981
      %983 = vdwg.mxu0
      %v984 = vadd.f32 %v831, %v960
      %v985 = vadd.f32 %v832, %v962
      %v986 = vadd.f32 %v833, %v965
      %v987 = vadd.f32 %v834, %v967
      %v988 = vadd.f32 %v835, %v970
      %v989 = vadd.f32 %v836, %v972
      %v990 = vadd.f32 %v837, %v975
      %v991 = vadd.f32 %v838, %v977
      %v992 = vadd.f32 %v839, %v980
      %v993 = vadd.f32 %v840, %v982
      %994 = vst [vmem:[#allocation2] sm:$0xff] %v984
      %995 = vst [vmem:[#allocation2 + $0x8] sm:$0xff] %v985
      %996 = vst [vmem:[#allocation2 + $0x10] sm:$0xff] %v986
      %997 = vst [vmem:[#allocation2 + $0x18] sm:$0xff] %v987
      %998 = vst [vmem:[#allocation2 + $0x20] sm:$0xff] %v988
      %999 = vst [vmem:[#allocation2 + $0x28] sm:$0xff] %v989
      %1000 = vst [vmem:[#allocation2 + $0x30] sm:$0xff] %v990
      %1001 = vst [vmem:[#allocation2 + $0x38] sm:$0xff] %v991
      %1002 = vst [vmem:[#allocation2 + $0x40] sm:$0xff] %v992
      %1003 = vst [vmem:[#allocation2 + $0x48] sm:$0xff] %v993
      %v1004 = vld [vmem:[%s218 + $0x4] sm:$0xe]
      %v1005 = vld [vmem:[%s218 + $0x8] sm:$0xf]
      %v1006 = vld [vmem:[%s218 + $0xc] sm:$0xf]
      %v1007 = vld [vmem:[%s218 + $0x10] sm:$0xf]
      %v1008 = vld [vmem:[%s218 + $0x14] sm:$0xf]
      %v1009 = vld [vmem:[%s218 + $0x18] sm:$0xf]
      %v1010 = vld [vmem:[%s218 + $0x1c] sm:$0xf]
      %v1011 = vld [vmem:[%s218 + $0x20] sm:$0xf]
      %v1012 = vld [vmem:[%s218 + $0x24] sm:$0xf]
      %v1013 = vld [vmem:[%s218 + $0x28] sm:$0xf]
      %v1014 = vld [vmem:[%s218 + $0x2c] sm:$0x3]
      %v1015 = vld [vmem:[#allocation2] sm:$0xff]
      %v1016 = vld [vmem:[#allocation2 + $0x8] sm:$0xff]
      %v1017 = vld [vmem:[#allocation2 + $0x10] sm:$0xff]
      %v1018 = vld [vmem:[#allocation2 + $0x18] sm:$0xff]
      %v1019 = vld [vmem:[#allocation2 + $0x20] sm:$0xff]
      %v1020 = vld [vmem:[#allocation2 + $0x28] sm:$0xff]
      %v1021 = vld [vmem:[#allocation2 + $0x30] sm:$0xff]
      %v1022 = vld [vmem:[#allocation2 + $0x38] sm:$0xff]
      %v1023 = vld [vmem:[#allocation2 + $0x40] sm:$0xff]
      %v1024 = vld [vmem:[#allocation2 + $0x48] sm:$0xff]
      %s1025 = scalar_lea.vmem %s222, 256
      %v1026 = vld [vmem:[%s1025] sm:$0xf]
      %v1027 = vld [vmem:[%s1025 + $0x4] sm:$0xf]
      %v1028 = vld [vmem:[%s1025 + $0x8] sm:$0xf]
      %v1029 = vld [vmem:[%s1025 + $0xc] sm:$0xf]
      %v1030 = vld [vmem:[%s1025 + $0x10] sm:$0xf]
      %v1031 = vld [vmem:[%s1025 + $0x14] sm:$0xf]
      %v1032 = vld [vmem:[%s1025 + $0x18] sm:$0xf]
      %v1033 = vld [vmem:[%s1025 + $0x1c] sm:$0xf]
      %v1034 = vld [vmem:[%s1025 + $0x20] sm:$0xf]
      %v1035 = vld [vmem:[%s1025 + $0x24] sm:$0xf]
      %v1036 = vld [vmem:[%s1025 + $0x28] sm:$0xf]
      %v1037 = vld [vmem:[%s1025 + $0x2c] sm:$0xf]
      %v1038 = vld [vmem:[%s1025 + $0x30] sm:$0xf]
      %v1039 = vld [vmem:[%s1025 + $0x34] sm:$0xf]
      %v1040 = vld [vmem:[%s1025 + $0x38] sm:$0xf]
      %v1041 = vld [vmem:[%s1025 + $0x3c] sm:$0xf]
      %v1053 = vunpack.c.l.b16 %v1004
      %v1054 = vunpack.c.l.b16 %v1005
      %v1055 = vunpack.c.l.b16 %v1006
      %v1056 = vunpack.c.l.b16 %v1007
      %v1057 = vunpack.c.l.b16 %v1008
      %v1058 = vunpack.c.l.b16 %v1009
      %v1059 = vunpack.c.l.b16 %v1010
      %v1060 = vunpack.c.l.b16 %v1011
      %v1061 = vunpack.c.l.b16 %v1012
      %v1062 = vunpack.c.l.b16 %v1013
      %v1063 = vunpack.c.l.b16 %v1014
      %v1064 = vpack.c.b16 %v1054, %v1053
      %v1065 = vpack.c.b16 %v1056, %v1055
      %v1066 = vpack.c.b16 %v1058, %v1057
      %v1067 = vpack.c.b16 %v1060, %v1059
      %v1068 = vpack.c.b16 %v1062, %v1061
      %v1069 = vpack.c.b16 %v1063, %v1063
      %vm1070 = vsmask.f32 6400
      %v1072 = vshrl.u32 %v1064, 16
      %v1074 = vrot.slane %v1072, 1
      %v1075 = vshll.u32 %v1064, 16
      %v1077 = vrot.slane %v1075, 2
      %v1078 = vor.u32 %v1074, %v1077
      %v1080 = vshrl.u32 %v1065, 16
      %v1082 = vrot.slane %v1080, 1
      %v1083 = vshll.u32 %v1065, 16
      %v1085 = vrot.slane %v1083, 2
      %v1086 = vor.u32 %v1082, %v1085
      %v1087 = vsel %vm1070, %v1078, %v1086
      %v1089 = vshrl.u32 %v1066, 16
      %v1091 = vrot.slane %v1089, 1
      %v1092 = vshll.u32 %v1066, 16
      %v1094 = vrot.slane %v1092, 2
      %v1095 = vor.u32 %v1091, %v1094
      %v1096 = vsel %vm1070, %v1086, %v1095
      %v1098 = vshrl.u32 %v1067, 16
      %v1100 = vrot.slane %v1098, 1
      %v1101 = vshll.u32 %v1067, 16
      %v1103 = vrot.slane %v1101, 2
      %v1104 = vor.u32 %v1100, %v1103
      %v1105 = vsel %vm1070, %v1095, %v1104
      %v1107 = vshrl.u32 %v1068, 16
      %v1109 = vrot.slane %v1107, 1
      %v1110 = vshll.u32 %v1068, 16
      %v1112 = vrot.slane %v1110, 2
      %v1113 = vor.u32 %v1109, %v1112
      %v1114 = vsel %vm1070, %v1104, %v1113
      %v1116 = vshrl.u32 %v1069, 16
      %v1118 = vrot.slane %v1116, 1
      %v1119 = vshll.u32 %v1069, 16
      %v1121 = vrot.slane %v1119, 2
      %v1122 = vor.u32 %v1118, %v1121
      %v1123 = vsel %vm1070, %v1113, %v1122
      %v1145 = vunpack.c.l.b16 %v1026
      %v1146 = vunpack.c.l.b16 %v1027
      %v1147 = vunpack.c.l.b16 %v1028
      %v1148 = vunpack.c.l.b16 %v1029
      %v1149 = vunpack.c.l.b16 %v1030
      %v1150 = vunpack.c.l.b16 %v1031
      %v1151 = vunpack.c.l.b16 %v1032
      %v1152 = vunpack.c.l.b16 %v1033
      %v1153 = vunpack.c.l.b16 %v1034
      %v1154 = vunpack.c.l.b16 %v1035
      %v1155 = vunpack.c.l.b16 %v1036
      %v1156 = vunpack.c.l.b16 %v1037
      %v1157 = vunpack.c.l.b16 %v1038
      %v1158 = vunpack.c.l.b16 %v1039
      %v1159 = vunpack.c.l.b16 %v1040
      %v1160 = vunpack.c.l.b16 %v1041
      %v1161 = vpack.c.b16 %v1146, %v1145
      %v1162 = vpack.c.b16 %v1148, %v1147
      %v1163 = vpack.c.b16 %v1150, %v1149
      %v1164 = vpack.c.b16 %v1152, %v1151
      %v1165 = vpack.c.b16 %v1154, %v1153
      %v1166 = vpack.c.b16 %v1156, %v1155
      %v1167 = vpack.c.b16 %v1158, %v1157
      %v1168 = vpack.c.b16 %v1160, %v1159
      %1177 = vmatpush.bf16.msra.mxu0 %v1168
      %1178 = vmatpush.bf16.msra.mxu0 %v1167
      %1179 = vmatpush.bf16.msra.mxu0 %v1166
      %1180 = vmatpush.bf16.msra.mxu0 %v1165
      %1181 = vmatpush.bf16.msra.mxu0 %v1164
      %1182 = vmatpush.bf16.msra.mxu0 %v1163
      %1183 = vmatpush.bf16.msra.mxu0 %v1162
      %1184 = vmatpush.bf16.msra.mxu0 %v1161
      %1185 = vmatmul.bf16.gmra.mxu0 %v1087
      %v1186 = vpop.f32.mrf.mxu0
      %v1187 = vadd.f32 0.0, %v1186
      %v1188 = vpop.f32.mrf.mxu0
      %v1189 = vadd.f32 0.0, %v1188
      %1190 = vmatmul.bf16.gmra.mxu0 %v1096
      %v1191 = vpop.f32.mrf.mxu0
      %v1192 = vadd.f32 0.0, %v1191
      %v1193 = vpop.f32.mrf.mxu0
      %v1194 = vadd.f32 0.0, %v1193
      %1195 = vmatmul.bf16.gmra.mxu0 %v1105
      %v1196 = vpop.f32.mrf.mxu0
      %v1197 = vadd.f32 0.0, %v1196
      %v1198 = vpop.f32.mrf.mxu0
      %v1199 = vadd.f32 0.0, %v1198
      %1200 = vmatmul.bf16.gmra.mxu0 %v1114
      %v1201 = vpop.f32.mrf.mxu0
      %v1202 = vadd.f32 0.0, %v1201
      %v1203 = vpop.f32.mrf.mxu0
      %v1204 = vadd.f32 0.0, %v1203
      %1205 = vmatmul.bf16.gmra.mxu0 %v1123
      %v1206 = vpop.f32.mrf.mxu0
      %v1207 = vadd.f32 0.0, %v1206
      %v1208 = vpop.f32.mrf.mxu0
      %v1209 = vadd.f32 0.0, %v1208
      %1210 = vdwg.mxu0
      %v1211 = vadd.f32 %v1015, %v1187
      %v1212 = vadd.f32 %v1016, %v1189
      %v1213 = vadd.f32 %v1017, %v1192
      %v1214 = vadd.f32 %v1018, %v1194
      %v1215 = vadd.f32 %v1019, %v1197
      %v1216 = vadd.f32 %v1020, %v1199
      %v1217 = vadd.f32 %v1021, %v1202
      %v1218 = vadd.f32 %v1022, %v1204
      %v1219 = vadd.f32 %v1023, %v1207
      %v1220 = vadd.f32 %v1024, %v1209
      %1221 = vst [vmem:[#allocation2] sm:$0xff] %v1211
      %1222 = vst [vmem:[#allocation2 + $0x8] sm:$0xff] %v1212
      %1223 = vst [vmem:[#allocation2 + $0x10] sm:$0xff] %v1213
      %1224 = vst [vmem:[#allocation2 + $0x18] sm:$0xff] %v1214
      %1225 = vst [vmem:[#allocation2 + $0x20] sm:$0xff] %v1215
      %1226 = vst [vmem:[#allocation2 + $0x28] sm:$0xff] %v1216
      %1227 = vst [vmem:[#allocation2 + $0x30] sm:$0xff] %v1217
      %1228 = vst [vmem:[#allocation2 + $0x38] sm:$0xff] %v1218
      %1229 = vst [vmem:[#allocation2 + $0x40] sm:$0xff] %v1219
      %1230 = vst [vmem:[#allocation2 + $0x48] sm:$0xff] %v1220
      %v1231 = vld [vmem:[%s218 + $0x4] sm:$0xc]
      %v1232 = vld [vmem:[%s218 + $0x8] sm:$0xf]
      %v1233 = vld [vmem:[%s218 + $0xc] sm:$0xf]
      %v1234 = vld [vmem:[%s218 + $0x10] sm:$0xf]
      %v1235 = vld [vmem:[%s218 + $0x14] sm:$0xf]
      %v1236 = vld [vmem:[%s218 + $0x18] sm:$0xf]
      %v1237 = vld [vmem:[%s218 + $0x1c] sm:$0xf]
      %v1238 = vld [vmem:[%s218 + $0x20] sm:$0xf]
      %v1239 = vld [vmem:[%s218 + $0x24] sm:$0xf]
      %v1240 = vld [vmem:[%s218 + $0x28] sm:$0xf]
      %v1241 = vld [vmem:[%s218 + $0x2c] sm:$0x3]
      %v1242 = vld [vmem:[#allocation2] sm:$0xff]
      %v1243 = vld [vmem:[#allocation2 + $0x8] sm:$0xff]
      %v1244 = vld [vmem:[#allocation2 + $0x10] sm:$0xff]
      %v1245 = vld [vmem:[#allocation2 + $0x18] sm:$0xff]
      %v1246 = vld [vmem:[#allocation2 + $0x20] sm:$0xff]
      %v1247 = vld [vmem:[#allocation2 + $0x28] sm:$0xff]
      %v1248 = vld [vmem:[#allocation2 + $0x30] sm:$0xff]
      %v1249 = vld [vmem:[#allocation2 + $0x38] sm:$0xff]
      %v1250 = vld [vmem:[#allocation2 + $0x40] sm:$0xff]
      %v1251 = vld [vmem:[#allocation2 + $0x48] sm:$0xff]
      %s1252 = scalar_lea.vmem %s222, 320
      %v1253 = vld [vmem:[%s1252] sm:$0xf]
      %v1254 = vld [vmem:[%s1252 + $0x4] sm:$0xf]
      %v1255 = vld [vmem:[%s1252 + $0x8] sm:$0xf]
      %v1256 = vld [vmem:[%s1252 + $0xc] sm:$0xf]
      %v1257 = vld [vmem:[%s1252 + $0x10] sm:$0xf]
      %v1258 = vld [vmem:[%s1252 + $0x14] sm:$0xf]
      %v1259 = vld [vmem:[%s1252 + $0x18] sm:$0xf]
      %v1260 = vld [vmem:[%s1252 + $0x1c] sm:$0xf]
      %v1261 = vld [vmem:[%s1252 + $0x20] sm:$0xf]
      %v1262 = vld [vmem:[%s1252 + $0x24] sm:$0xf]
      %v1263 = vld [vmem:[%s1252 + $0x28] sm:$0xf]
      %v1264 = vld [vmem:[%s1252 + $0x2c] sm:$0xf]
      %v1265 = vld [vmem:[%s1252 + $0x30] sm:$0xf]
      %v1266 = vld [vmem:[%s1252 + $0x34] sm:$0xf]
      %v1267 = vld [vmem:[%s1252 + $0x38] sm:$0xf]
      %v1268 = vld [vmem:[%s1252 + $0x3c] sm:$0xf]
      %v1280 = vunpack.c.l.b16 %v1231
      %v1281 = vunpack.c.l.b16 %v1232
      %v1282 = vunpack.c.l.b16 %v1233
      %v1283 = vunpack.c.l.b16 %v1234
      %v1284 = vunpack.c.l.b16 %v1235
      %v1285 = vunpack.c.l.b16 %v1236
      %v1286 = vunpack.c.l.b16 %v1237
      %v1287 = vunpack.c.l.b16 %v1238
      %v1288 = vunpack.c.l.b16 %v1239
      %v1289 = vunpack.c.l.b16 %v1240
      %v1290 = vunpack.c.l.b16 %v1241
      %v1291 = vpack.c.b16 %v1281, %v1280
      %v1292 = vpack.c.b16 %v1283, %v1282
      %v1293 = vpack.c.b16 %v1285, %v1284
      %v1294 = vpack.c.b16 %v1287, %v1286
      %v1295 = vpack.c.b16 %v1289, %v1288
      %v1296 = vpack.c.b16 %v1290, %v1290
      %vm1297 = vcmask 1045504
      %v1298 = vrot.slane %v1291, 2
      %v1299 = vrot.slane %v1292, 2
      %v1300 = vsel %vm1297, %v1298, %v1299
      %v1301 = vrot.slane %v1293, 2
      %v1302 = vsel %vm1297, %v1299, %v1301
      %v1303 = vrot.slane %v1294, 2
      %v1304 = vsel %vm1297, %v1301, %v1303
      %v1305 = vrot.slane %v1295, 2
      %v1306 = vsel %vm1297, %v1303, %v1305
      %v1307 = vrot.slane %v1296, 2
      %v1308 = vsel %vm1297, %v1305, %v1307
      %v1330 = vunpack.c.l.b16 %v1253
      %v1331 = vunpack.c.l.b16 %v1254
      %v1332 = vunpack.c.l.b16 %v1255
      %v1333 = vunpack.c.l.b16 %v1256
      %v1334 = vunpack.c.l.b16 %v1257
      %v1335 = vunpack.c.l.b16 %v1258
      %v1336 = vunpack.c.l.b16 %v1259
      %v1337 = vunpack.c.l.b16 %v1260
      %v1338 = vunpack.c.l.b16 %v1261
      %v1339 = vunpack.c.l.b16 %v1262
      %v1340 = vunpack.c.l.b16 %v1263
      %v1341 = vunpack.c.l.b16 %v1264
      %v1342 = vunpack.c.l.b16 %v1265
      %v1343 = vunpack.c.l.b16 %v1266
      %v1344 = vunpack.c.l.b16 %v1267
      %v1345 = vunpack.c.l.b16 %v1268
      %v1346 = vpack.c.b16 %v1331, %v1330
      %v1347 = vpack.c.b16 %v1333, %v1332
      %v1348 = vpack.c.b16 %v1335, %v1334
      %v1349 = vpack.c.b16 %v1337, %v1336
      %v1350 = vpack.c.b16 %v1339, %v1338
      %v1351 = vpack.c.b16 %v1341, %v1340
      %v1352 = vpack.c.b16 %v1343, %v1342
      %v1353 = vpack.c.b16 %v1345, %v1344
      %1362 = vmatpush.bf16.msra.mxu0 %v1353
      %1363 = vmatpush.bf16.msra.mxu0 %v1352
      %1364 = vmatpush.bf16.msra.mxu0 %v1351
      %1365 = vmatpush.bf16.msra.mxu0 %v1350
      %1366 = vmatpush.bf16.msra.mxu0 %v1349
      %1367 = vmatpush.bf16.msra.mxu0 %v1348
      %1368 = vmatpush.bf16.msra.mxu0 %v1347
      %1369 = vmatpush.bf16.msra.mxu0 %v1346
      %1370 = vmatmul.bf16.gmra.mxu0 %v1300
      %v1371 = vpop.f32.mrf.mxu0
      %v1372 = vadd.f32 0.0, %v1371
      %v1373 = vpop.f32.mrf.mxu0
      %v1374 = vadd.f32 0.0, %v1373
      %1375 = vmatmul.bf16.gmra.mxu0 %v1302
      %v1376 = vpop.f32.mrf.mxu0
      %v1377 = vadd.f32 0.0, %v1376
      %v1378 = vpop.f32.mrf.mxu0
      %v1379 = vadd.f32 0.0, %v1378
      %1380 = vmatmul.bf16.gmra.mxu0 %v1304
      %v1381 = vpop.f32.mrf.mxu0
      %v1382 = vadd.f32 0.0, %v1381
      %v1383 = vpop.f32.mrf.mxu0
      %v1384 = vadd.f32 0.0, %v1383
      %1385 = vmatmul.bf16.gmra.mxu0 %v1306
      %v1386 = vpop.f32.mrf.mxu0
      %v1387 = vadd.f32 0.0, %v1386
      %v1388 = vpop.f32.mrf.mxu0
      %v1389 = vadd.f32 0.0, %v1388
      %1390 = vmatmul.bf16.gmra.mxu0 %v1308
      %v1391 = vpop.f32.mrf.mxu0
      %v1392 = vadd.f32 0.0, %v1391
      %v1393 = vpop.f32.mrf.mxu0
      %v1394 = vadd.f32 0.0, %v1393
      %1395 = vdwg.mxu0
      %v1396 = vadd.f32 %v1242, %v1372
      %v1397 = vadd.f32 %v1243, %v1374
      %v1398 = vadd.f32 %v1244, %v1377
      %v1399 = vadd.f32 %v1245, %v1379
      %v1400 = vadd.f32 %v1246, %v1382
      %v1401 = vadd.f32 %v1247, %v1384
      %v1402 = vadd.f32 %v1248, %v1387
      %v1403 = vadd.f32 %v1249, %v1389
      %v1404 = vadd.f32 %v1250, %v1392
      %v1405 = vadd.f32 %v1251, %v1394
      %1406 = vst [vmem:[#allocation2] sm:$0xff] %v1396
      %1407 = vst [vmem:[#allocation2 + $0x8] sm:$0xff] %v1397
      %1408 = vst [vmem:[#allocation2 + $0x10] sm:$0xff] %v1398
      %1409 = vst [vmem:[#allocation2 + $0x18] sm:$0xff] %v1399
      %1410 = vst [vmem:[#allocation2 + $0x20] sm:$0xff] %v1400
      %1411 = vst [vmem:[#allocation2 + $0x28] sm:$0xff] %v1401
      %1412 = vst [vmem:[#allocation2 + $0x30] sm:$0xff] %v1402
      %1413 = vst [vmem:[#allocation2 + $0x38] sm:$0xff] %v1403
      %1414 = vst [vmem:[#allocation2 + $0x40] sm:$0xff] %v1404
      %1415 = vst [vmem:[#allocation2 + $0x48] sm:$0xff] %v1405
      %v1416 = vld [vmem:[%s218 + $0x8] sm:$0xc]
      %v1417 = vld [vmem:[%s218 + $0xc] sm:$0xf]
      %v1418 = vld [vmem:[%s218 + $0x10] sm:$0xf]
      %v1419 = vld [vmem:[%s218 + $0x14] sm:$0xf]
      %v1420 = vld [vmem:[%s218 + $0x18] sm:$0xf]
      %v1421 = vld [vmem:[%s218 + $0x1c] sm:$0xf]
      %v1422 = vld [vmem:[%s218 + $0x20] sm:$0xf]
      %v1423 = vld [vmem:[%s218 + $0x24] sm:$0xf]
      %v1424 = vld [vmem:[%s218 + $0x28] sm:$0xf]
      %v1425 = vld [vmem:[%s218 + $0x2c] sm:$0xf]
      %v1426 = vld [vmem:[%s218 + $0x30] sm:$0x3]
      %v1427 = vld [vmem:[#allocation2] sm:$0xff]
      %v1428 = vld [vmem:[#allocation2 + $0x8] sm:$0xff]
      %v1429 = vld [vmem:[#allocation2 + $0x10] sm:$0xff]
      %v1430 = vld [vmem:[#allocation2 + $0x18] sm:$0xff]
      %v1431 = vld [vmem:[#allocation2 + $0x20] sm:$0xff]
      %v1432 = vld [vmem:[#allocation2 + $0x28] sm:$0xff]
      %v1433 = vld [vmem:[#allocation2 + $0x30] sm:$0xff]
      %v1434 = vld [vmem:[#allocation2 + $0x38] sm:$0xff]
      %v1435 = vld [vmem:[#allocation2 + $0x40] sm:$0xff]
      %v1436 = vld [vmem:[#allocation2 + $0x48] sm:$0xff]
      %s1437 = scalar_lea.vmem %s222, 384
      %v1438 = vld [vmem:[%s1437] sm:$0xf]
      %v1439 = vld [vmem:[%s1437 + $0x4] sm:$0xf]
      %v1440 = vld [vmem:[%s1437 + $0x8] sm:$0xf]
      %v1441 = vld [vmem:[%s1437 + $0xc] sm:$0xf]
      %v1442 = vld [vmem:[%s1437 + $0x10] sm:$0xf]
      %v1443 = vld [vmem:[%s1437 + $0x14] sm:$0xf]
      %v1444 = vld [vmem:[%s1437 + $0x18] sm:$0xf]
      %v1445 = vld [vmem:[%s1437 + $0x1c] sm:$0xf]
      %v1446 = vld [vmem:[%s1437 + $0x20] sm:$0xf]
      %v1447 = vld [vmem:[%s1437 + $0x24] sm:$0xf]
      %v1448 = vld [vmem:[%s1437 + $0x28] sm:$0xf]
      %v1449 = vld [vmem:[%s1437 + $0x2c] sm:$0xf]
      %v1450 = vld [vmem:[%s1437 + $0x30] sm:$0xf]
      %v1451 = vld [vmem:[%s1437 + $0x34] sm:$0xf]
      %v1452 = vld [vmem:[%s1437 + $0x38] sm:$0xf]
      %v1453 = vld [vmem:[%s1437 + $0x3c] sm:$0xf]
      %v1465 = vunpack.c.l.b16 %v1416
      %v1466 = vunpack.c.l.b16 %v1417
      %v1467 = vunpack.c.l.b16 %v1418
      %v1468 = vunpack.c.l.b16 %v1419
      %v1469 = vunpack.c.l.b16 %v1420
      %v1470 = vunpack.c.l.b16 %v1421
      %v1471 = vunpack.c.l.b16 %v1422
      %v1472 = vunpack.c.l.b16 %v1423
      %v1473 = vunpack.c.l.b16 %v1424
      %v1474 = vunpack.c.l.b16 %v1425
      %v1475 = vunpack.c.l.b16 %v1426
      %v1476 = vpack.c.b16 %v1466, %v1465
      %v1477 = vpack.c.b16 %v1468, %v1467
      %v1478 = vpack.c.b16 %v1470, %v1469
      %v1479 = vpack.c.b16 %v1472, %v1471
      %v1480 = vpack.c.b16 %v1474, %v1473
      %v1481 = vpack.c.b16 %v1475, %v1475
      %v1482 = vrot.slane %v1476, 2
      %v1483 = vrot.slane %v1477, 2
      %v1484 = vsel %vm1297, %v1482, %v1483
      %v1485 = vrot.slane %v1478, 2
      %v1486 = vsel %vm1297, %v1483, %v1485
      %v1487 = vrot.slane %v1479, 2
      %v1488 = vsel %vm1297, %v1485, %v1487
      %v1489 = vrot.slane %v1480, 2
      %v1490 = vsel %vm1297, %v1487, %v1489
      %v1491 = vrot.slane %v1481, 2
      %v1492 = vsel %vm1297, %v1489, %v1491
      %v1514 = vunpack.c.l.b16 %v1438
      %v1515 = vunpack.c.l.b16 %v1439
      %v1516 = vunpack.c.l.b16 %v1440
      %v1517 = vunpack.c.l.b16 %v1441
      %v1518 = vunpack.c.l.b16 %v1442
      %v1519 = vunpack.c.l.b16 %v1443
      %v1520 = vunpack.c.l.b16 %v1444
      %v1521 = vunpack.c.l.b16 %v1445
      %v1522 = vunpack.c.l.b16 %v1446
      %v1523 = vunpack.c.l.b16 %v1447
      %v1524 = vunpack.c.l.b16 %v1448
      %v1525 = vunpack.c.l.b16 %v1449
      %v1526 = vunpack.c.l.b16 %v1450
      %v1527 = vunpack.c.l.b16 %v1451
      %v1528 = vunpack.c.l.b16 %v1452
      %v1529 = vunpack.c.l.b16 %v1453
      %v1530 = vpack.c.b16 %v1515, %v1514
      %v1531 = vpack.c.b16 %v1517, %v1516
      %v1532 = vpack.c.b16 %v1519, %v1518
      %v1533 = vpack.c.b16 %v1521, %v1520
      %v1534 = vpack.c.b16 %v1523, %v1522
      %v1535 = vpack.c.b16 %v1525, %v1524
      %v1536 = vpack.c.b16 %v1527, %v1526
      %v1537 = vpack.c.b16 %v1529, %v1528
      %1546 = vmatpush.bf16.msra.mxu0 %v1537
      %1547 = vmatpush.bf16.msra.mxu0 %v1536
      %1548 = vmatpush.bf16.msra.mxu0 %v1535
      %1549 = vmatpush.bf16.msra.mxu0 %v1534
      %1550 = vmatpush.bf16.msra.mxu0 %v1533
      %1551 = vmatpush.bf16.msra.mxu0 %v1532
      %1552 = vmatpush.bf16.msra.mxu0 %v1531
      %1553 = vmatpush.bf16.msra.mxu0 %v1530
      %1554 = vmatmul.bf16.gmra.mxu0 %v1484
      %v1555 = vpop.f32.mrf.mxu0
      %v1556 = vadd.f32 0.0, %v1555
      %v1557 = vpop.f32.mrf.mxu0
      %v1558 = vadd.f32 0.0, %v1557
      %1559 = vmatmul.bf16.gmra.mxu0 %v1486
      %v1560 = vpop.f32.mrf.mxu0
      %v1561 = vadd.f32 0.0, %v1560
      %v1562 = vpop.f32.mrf.mxu0
      %v1563 = vadd.f32 0.0, %v1562
      %1564 = vmatmul.bf16.gmra.mxu0 %v1488
      %v1565 = vpop.f32.mrf.mxu0
      %v1566 = vadd.f32 0.0, %v1565
      %v1567 = vpop.f32.mrf.mxu0
      %v1568 = vadd.f32 0.0, %v1567
      %1569 = vmatmul.bf16.gmra.mxu0 %v1490
      %v1570 = vpop.f32.mrf.mxu0
      %v1571 = vadd.f32 0.0, %v1570
      %v1572 = vpop.f32.mrf.mxu0
      %v1573 = vadd.f32 0.0, %v1572
      %1574 = vmatmul.bf16.gmra.mxu0 %v1492
      %v1575 = vpop.f32.mrf.mxu0
      %v1576 = vadd.f32 0.0, %v1575
      %v1577 = vpop.f32.mrf.mxu0
      %v1578 = vadd.f32 0.0, %v1577
      %1579 = vdwg.mxu0
      %v1580 = vadd.f32 %v1427, %v1556
      %v1581 = vadd.f32 %v1428, %v1558
      %v1582 = vadd.f32 %v1429, %v1561
      %v1583 = vadd.f32 %v1430, %v1563
      %v1584 = vadd.f32 %v1431, %v1566
      %v1585 = vadd.f32 %v1432, %v1568
      %v1586 = vadd.f32 %v1433, %v1571
      %v1587 = vadd.f32 %v1434, %v1573
      %v1588 = vadd.f32 %v1435, %v1576
      %v1589 = vadd.f32 %v1436, %v1578
      %1590 = vst [vmem:[#allocation2] sm:$0xff] %v1580
      %1591 = vst [vmem:[#allocation2 + $0x8] sm:$0xff] %v1581
      %1592 = vst [vmem:[#allocation2 + $0x10] sm:$0xff] %v1582
      %1593 = vst [vmem:[#allocation2 + $0x18] sm:$0xff] %v1583
      %1594 = vst [vmem:[#allocation2 + $0x20] sm:$0xff] %v1584
      %1595 = vst [vmem:[#allocation2 + $0x28] sm:$0xff] %v1585
      %1596 = vst [vmem:[#allocation2 + $0x30] sm:$0xff] %v1586
      %1597 = vst [vmem:[#allocation2 + $0x38] sm:$0xff] %v1587
      %1598 = vst [vmem:[#allocation2 + $0x40] sm:$0xff] %v1588
      %1599 = vst [vmem:[#allocation2 + $0x48] sm:$0xff] %v1589
      %v1600 = vld [vmem:[%s218 + $0x8] sm:$0xc]
      %v1601 = vld [vmem:[%s218 + $0xc] sm:$0xf]
      %v1602 = vld [vmem:[%s218 + $0x10] sm:$0xf]
      %v1603 = vld [vmem:[%s218 + $0x14] sm:$0xf]
      %v1604 = vld [vmem:[%s218 + $0x18] sm:$0xf]
      %v1605 = vld [vmem:[%s218 + $0x1c] sm:$0xf]
      %v1606 = vld [vmem:[%s218 + $0x20] sm:$0xf]
      %v1607 = vld [vmem:[%s218 + $0x24] sm:$0xf]
      %v1608 = vld [vmem:[%s218 + $0x28] sm:$0xf]
      %v1609 = vld [vmem:[%s218 + $0x2c] sm:$0xf]
      %v1610 = vld [vmem:[%s218 + $0x30] sm:$0x7]
      %v1611 = vld [vmem:[#allocation2] sm:$0xff]
      %v1612 = vld [vmem:[#allocation2 + $0x8] sm:$0xff]
      %v1613 = vld [vmem:[#allocation2 + $0x10] sm:$0xff]
      %v1614 = vld [vmem:[#allocation2 + $0x18] sm:$0xff]
      %v1615 = vld [vmem:[#allocation2 + $0x20] sm:$0xff]
      %v1616 = vld [vmem:[#allocation2 + $0x28] sm:$0xff]
      %v1617 = vld [vmem:[#allocation2 + $0x30] sm:$0xff]
      %v1618 = vld [vmem:[#allocation2 + $0x38] sm:$0xff]
      %v1619 = vld [vmem:[#allocation2 + $0x40] sm:$0xff]
      %v1620 = vld [vmem:[#allocation2 + $0x48] sm:$0xff]
      %s1621 = scalar_lea.vmem %s222, 448
      %v1622 = vld [vmem:[%s1621] sm:$0xf]
      %v1623 = vld [vmem:[%s1621 + $0x4] sm:$0xf]
      %v1624 = vld [vmem:[%s1621 + $0x8] sm:$0xf]
      %v1625 = vld [vmem:[%s1621 + $0xc] sm:$0xf]
      %v1626 = vld [vmem:[%s1621 + $0x10] sm:$0xf]
      %v1627 = vld [vmem:[%s1621 + $0x14] sm:$0xf]
      %v1628 = vld [vmem:[%s1621 + $0x18] sm:$0xf]
      %v1629 = vld [vmem:[%s1621 + $0x1c] sm:$0xf]
      %v1630 = vld [vmem:[%s1621 + $0x20] sm:$0xf]
      %v1631 = vld [vmem:[%s1621 + $0x24] sm:$0xf]
      %v1632 = vld [vmem:[%s1621 + $0x28] sm:$0xf]
      %v1633 = vld [vmem:[%s1621 + $0x2c] sm:$0xf]
      %v1634 = vld [vmem:[%s1621 + $0x30] sm:$0xf]
      %v1635 = vld [vmem:[%s1621 + $0x34] sm:$0xf]
      %v1636 = vld [vmem:[%s1621 + $0x38] sm:$0xf]
      %v1637 = vld [vmem:[%s1621 + $0x3c] sm:$0xf]
      %v1649 = vunpack.c.l.b16 %v1600
      %v1650 = vunpack.c.l.b16 %v1601
      %v1651 = vunpack.c.l.b16 %v1602
      %v1652 = vunpack.c.l.b16 %v1603
      %v1653 = vunpack.c.l.b16 %v1604
      %v1654 = vunpack.c.l.b16 %v1605
      %v1655 = vunpack.c.l.b16 %v1606
      %v1656 = vunpack.c.l.b16 %v1607
      %v1657 = vunpack.c.l.b16 %v1608
      %v1658 = vunpack.c.l.b16 %v1609
      %v1659 = vunpack.c.l.b16 %v1610
      %v1660 = vpack.c.b16 %v1650, %v1649
      %v1661 = vpack.c.b16 %v1652, %v1651
      %v1662 = vpack.c.b16 %v1654, %v1653
      %v1663 = vpack.c.b16 %v1656, %v1655
      %v1664 = vpack.c.b16 %v1658, %v1657
      %v1665 = vpack.c.b16 %v1659, %v1659
      %vm1666 = vsmask.f32 5376
      %v1668 = vshrl.u32 %v1660, 16
      %v1670 = vrot.slane %v1668, 2
      %v1671 = vshll.u32 %v1660, 16
      %v1673 = vrot.slane %v1671, 3
      %v1674 = vor.u32 %v1670, %v1673
      %v1676 = vshrl.u32 %v1661, 16
      %v1678 = vrot.slane %v1676, 2
      %v1679 = vshll.u32 %v1661, 16
      %v1681 = vrot.slane %v1679, 3
      %v1682 = vor.u32 %v1678, %v1681
      %v1683 = vsel %vm1666, %v1674, %v1682
      %v1685 = vshrl.u32 %v1662, 16
      %v1687 = vrot.slane %v1685, 2
      %v1688 = vshll.u32 %v1662, 16
      %v1690 = vrot.slane %v1688, 3
      %v1691 = vor.u32 %v1687, %v1690
      %v1692 = vsel %vm1666, %v1682, %v1691
      %v1694 = vshrl.u32 %v1663, 16
      %v1696 = vrot.slane %v1694, 2
      %v1697 = vshll.u32 %v1663, 16
      %v1699 = vrot.slane %v1697, 3
      %v1700 = vor.u32 %v1696, %v1699
      %v1701 = vsel %vm1666, %v1691, %v1700
      %v1703 = vshrl.u32 %v1664, 16
      %v1705 = vrot.slane %v1703, 2
      %v1706 = vshll.u32 %v1664, 16
      %v1708 = vrot.slane %v1706, 3
      %v1709 = vor.u32 %v1705, %v1708
      %v1710 = vsel %vm1666, %v1700, %v1709
      %v1712 = vshrl.u32 %v1665, 16
      %v1714 = vrot.slane %v1712, 2
      %v1715 = vshll.u32 %v1665, 16
      %v1717 = vrot.slane %v1715, 3
      %v1718 = vor.u32 %v1714, %v1717
      %v1719 = vsel %vm1666, %v1709, %v1718
      %v1741 = vunpack.c.l.b16 %v1622
      %v1742 = vunpack.c.l.b16 %v1623
      %v1743 = vunpack.c.l.b16 %v1624
      %v1744 = vunpack.c.l.b16 %v1625
      %v1745 = vunpack.c.l.b16 %v1626
      %v1746 = vunpack.c.l.b16 %v1627
      %v1747 = vunpack.c.l.b16 %v1628
      %v1748 = vunpack.c.l.b16 %v1629
      %v1749 = vunpack.c.l.b16 %v1630
      %v1750 = vunpack.c.l.b16 %v1631
      %v1751 = vunpack.c.l.b16 %v1632
      %v1752 = vunpack.c.l.b16 %v1633
      %v1753 = vunpack.c.l.b16 %v1634
      %v1754 = vunpack.c.l.b16 %v1635
      %v1755 = vunpack.c.l.b16 %v1636
      %v1756 = vunpack.c.l.b16 %v1637
      %v1757 = vpack.c.b16 %v1742, %v1741
      %v1758 = vpack.c.b16 %v1744, %v1743
      %v1759 = vpack.c.b16 %v1746, %v1745
      %v1760 = vpack.c.b16 %v1748, %v1747
      %v1761 = vpack.c.b16 %v1750, %v1749
      %v1762 = vpack.c.b16 %v1752, %v1751
      %v1763 = vpack.c.b16 %v1754, %v1753
      %v1764 = vpack.c.b16 %v1756, %v1755
      %1773 = vmatpush.bf16.msra.mxu0 %v1764
      %1774 = vmatpush.bf16.msra.mxu0 %v1763
      %1775 = vmatpush.bf16.msra.mxu0 %v1762
      %1776 = vmatpush.bf16.msra.mxu0 %v1761
      %1777 = vmatpush.bf16.msra.mxu0 %v1760
      %1778 = vmatpush.bf16.msra.mxu0 %v1759
      %1779 = vmatpush.bf16.msra.mxu0 %v1758
      %1780 = vmatpush.bf16.msra.mxu0 %v1757
      %1781 = vmatmul.bf16.gmra.mxu0 %v1683
      %v1782 = vpop.f32.mrf.mxu0
      %v1783 = vadd.f32 0.0, %v1782
      %v1784 = vpop.f32.mrf.mxu0
      %v1785 = vadd.f32 0.0, %v1784
      %1786 = vmatmul.bf16.gmra.mxu0 %v1692
      %v1787 = vpop.f32.mrf.mxu0
      %v1788 = vadd.f32 0.0, %v1787
      %v1789 = vpop.f32.mrf.mxu0
      %v1790 = vadd.f32 0.0, %v1789
      %1791 = vmatmul.bf16.gmra.mxu0 %v1701
      %v1792 = vpop.f32.mrf.mxu0
      %v1793 = vadd.f32 0.0, %v1792
      %v1794 = vpop.f32.mrf.mxu0
      %v1795 = vadd.f32 0.0, %v1794
      %1796 = vmatmul.bf16.gmra.mxu0 %v1710
      %v1797 = vpop.f32.mrf.mxu0
      %v1798 = vadd.f32 0.0, %v1797
      %v1799 = vpop.f32.mrf.mxu0
      %v1800 = vadd.f32 0.0, %v1799
      %1801 = vmatmul.bf16.gmra.mxu0 %v1719
      %v1802 = vpop.f32.mrf.mxu0
      %v1803 = vadd.f32 0.0, %v1802
      %v1804 = vpop.f32.mrf.mxu0
      %v1805 = vadd.f32 0.0, %v1804
      %1806 = vdwg.mxu0
      %v1807 = vadd.f32 %v1611, %v1783
      %v1808 = vadd.f32 %v1612, %v1785
      %v1809 = vadd.f32 %v1613, %v1788
      %v1810 = vadd.f32 %v1614, %v1790
      %v1811 = vadd.f32 %v1615, %v1793
      %v1812 = vadd.f32 %v1616, %v1795
      %v1813 = vadd.f32 %v1617, %v1798
      %v1814 = vadd.f32 %v1618, %v1800
      %v1815 = vadd.f32 %v1619, %v1803
      %v1816 = vadd.f32 %v1620, %v1805
      %1817 = vst [vmem:[#allocation2] sm:$0xff] %v1807
      %1818 = vst [vmem:[#allocation2 + $0x8] sm:$0xff] %v1808
      %1819 = vst [vmem:[#allocation2 + $0x10] sm:$0xff] %v1809
      %1820 = vst [vmem:[#allocation2 + $0x18] sm:$0xff] %v1810
      %1821 = vst [vmem:[#allocation2 + $0x20] sm:$0xff] %v1811
      %1822 = vst [vmem:[#allocation2 + $0x28] sm:$0xff] %v1812
      %1823 = vst [vmem:[#allocation2 + $0x30] sm:$0xff] %v1813
      %1824 = vst [vmem:[#allocation2 + $0x38] sm:$0xff] %v1814
      %1825 = vst [vmem:[#allocation2 + $0x40] sm:$0xff] %v1815
      %1826 = vst [vmem:[#allocation2 + $0x48] sm:$0xff] %v1816
      %v1827 = vld [vmem:[%s218 + $0x8] sm:$0x8]
      %v1828 = vld [vmem:[%s218 + $0xc] sm:$0xf]
      %v1829 = vld [vmem:[%s218 + $0x10] sm:$0xf]
      %v1830 = vld [vmem:[%s218 + $0x14] sm:$0xf]
      %v1831 = vld [vmem:[%s218 + $0x18] sm:$0xf]
      %v1832 = vld [vmem:[%s218 + $0x1c] sm:$0xf]
      %v1833 = vld [vmem:[%s218 + $0x20] sm:$0xf]
      %v1834 = vld [vmem:[%s218 + $0x24] sm:$0xf]
      %v1835 = vld [vmem:[%s218 + $0x28] sm:$0xf]
      %v1836 = vld [vmem:[%s218 + $0x2c] sm:$0xf]
      %v1837 = vld [vmem:[%s218 + $0x30] sm:$0x7]
      %v1838 = vld [vmem:[#allocation2] sm:$0xff]
      %v1839 = vld [vmem:[#allocation2 + $0x8] sm:$0xff]
      %v1840 = vld [vmem:[#allocation2 + $0x10] sm:$0xff]
      %v1841 = vld [vmem:[#allocation2 + $0x18] sm:$0xff]
      %v1842 = vld [vmem:[#allocation2 + $0x20] sm:$0xff]
      %v1843 = vld [vmem:[#allocation2 + $0x28] sm:$0xff]
      %v1844 = vld [vmem:[#allocation2 + $0x30] sm:$0xff]
      %v1845 = vld [vmem:[#allocation2 + $0x38] sm:$0xff]
      %v1846 = vld [vmem:[#allocation2 + $0x40] sm:$0xff]
      %v1847 = vld [vmem:[#allocation2 + $0x48] sm:$0xff]
      %s1848 = scalar_lea.vmem %s222, 512
      %v1849 = vld [vmem:[%s1848] sm:$0xf]
      %v1850 = vld [vmem:[%s1848 + $0x4] sm:$0xf]
      %v1851 = vld [vmem:[%s1848 + $0x8] sm:$0xf]
      %v1852 = vld [vmem:[%s1848 + $0xc] sm:$0xf]
      %v1853 = vld [vmem:[%s1848 + $0x10] sm:$0xf]
      %v1854 = vld [vmem:[%s1848 + $0x14] sm:$0xf]
      %v1855 = vld [vmem:[%s1848 + $0x18] sm:$0xf]
      %v1856 = vld [vmem:[%s1848 + $0x1c] sm:$0xf]
      %v1857 = vld [vmem:[%s1848 + $0x20] sm:$0xf]
      %v1858 = vld [vmem:[%s1848 + $0x24] sm:$0xf]
      %v1859 = vld [vmem:[%s1848 + $0x28] sm:$0xf]
      %v1860 = vld [vmem:[%s1848 + $0x2c] sm:$0xf]
      %v1861 = vld [vmem:[%s1848 + $0x30] sm:$0xf]
      %v1862 = vld [vmem:[%s1848 + $0x34] sm:$0xf]
      %v1863 = vld [vmem:[%s1848 + $0x38] sm:$0xf]
      %v1864 = vld [vmem:[%s1848 + $0x3c] sm:$0xf]
      %v1876 = vunpack.c.l.b16 %v1827
      %v1877 = vunpack.c.l.b16 %v1828
      %v1878 = vunpack.c.l.b16 %v1829
      %v1879 = vunpack.c.l.b16 %v1830
      %v1880 = vunpack.c.l.b16 %v1831
      %v1881 = vunpack.c.l.b16 %v1832
      %v1882 = vunpack.c.l.b16 %v1833
      %v1883 = vunpack.c.l.b16 %v1834
      %v1884 = vunpack.c.l.b16 %v1835
      %v1885 = vunpack.c.l.b16 %v1836
      %v1886 = vunpack.c.l.b16 %v1837
      %v1887 = vpack.c.b16 %v1877, %v1876
      %v1888 = vpack.c.b16 %v1879, %v1878
      %v1889 = vpack.c.b16 %v1881, %v1880
      %v1890 = vpack.c.b16 %v1883, %v1882
      %v1891 = vpack.c.b16 %v1885, %v1884
      %v1892 = vpack.c.b16 %v1886, %v1886
      %vm1893 = vcmask 1044480
      %v1894 = vrot.slane %v1887, 3
      %v1895 = vrot.slane %v1888, 3
      %v1896 = vsel %vm1893, %v1894, %v1895
      %v1897 = vrot.slane %v1889, 3
      %v1898 = vsel %vm1893, %v1895, %v1897
      %v1899 = vrot.slane %v1890, 3
      %v1900 = vsel %vm1893, %v1897, %v1899
      %v1901 = vrot.slane %v1891, 3
      %v1902 = vsel %vm1893, %v1899, %v1901
      %v1903 = vrot.slane %v1892, 3
      %v1904 = vsel %vm1893, %v1901, %v1903
      %v1926 = vunpack.c.l.b16 %v1849
      %v1927 = vunpack.c.l.b16 %v1850
      %v1928 = vunpack.c.l.b16 %v1851
      %v1929 = vunpack.c.l.b16 %v1852
      %v1930 = vunpack.c.l.b16 %v1853
      %v1931 = vunpack.c.l.b16 %v1854
      %v1932 = vunpack.c.l.b16 %v1855
      %v1933 = vunpack.c.l.b16 %v1856
      %v1934 = vunpack.c.l.b16 %v1857
      %v1935 = vunpack.c.l.b16 %v1858
      %v1936 = vunpack.c.l.b16 %v1859
      %v1937 = vunpack.c.l.b16 %v1860
      %v1938 = vunpack.c.l.b16 %v1861
      %v1939 = vunpack.c.l.b16 %v1862
      %v1940 = vunpack.c.l.b16 %v1863
      %v1941 = vunpack.c.l.b16 %v1864
      %v1942 = vpack.c.b16 %v1927, %v1926
      %v1943 = vpack.c.b16 %v1929, %v1928
      %v1944 = vpack.c.b16 %v1931, %v1930
      %v1945 = vpack.c.b16 %v1933, %v1932
      %v1946 = vpack.c.b16 %v1935, %v1934
      %v1947 = vpack.c.b16 %v1937, %v1936
      %v1948 = vpack.c.b16 %v1939, %v1938
      %v1949 = vpack.c.b16 %v1941, %v1940
      %1958 = vmatpush.bf16.msra.mxu0 %v1949
      %1959 = vmatpush.bf16.msra.mxu0 %v1948
      %1960 = vmatpush.bf16.msra.mxu0 %v1947
      %1961 = vmatpush.bf16.msra.mxu0 %v1946
      %1962 = vmatpush.bf16.msra.mxu0 %v1945
      %1963 = vmatpush.bf16.msra.mxu0 %v1944
      %1964 = vmatpush.bf16.msra.mxu0 %v1943
      %1965 = vmatpush.bf16.msra.mxu0 %v1942
      %1966 = vmatmul.bf16.gmra.mxu0 %v1896
      %v1967 = vpop.f32.mrf.mxu0
      %v1968 = vadd.f32 0.0, %v1967
      %v1969 = vpop.f32.mrf.mxu0
      %v1970 = vadd.f32 0.0, %v1969
      %1971 = vmatmul.bf16.gmra.mxu0 %v1898
      %v1972 = vpop.f32.mrf.mxu0
      %v1973 = vadd.f32 0.0, %v1972
      %v1974 = vpop.f32.mrf.mxu0
      %v1975 = vadd.f32 0.0, %v1974
      %1976 = vmatmul.bf16.gmra.mxu0 %v1900
      %v1977 = vpop.f32.mrf.mxu0
      %v1978 = vadd.f32 0.0, %v1977
      %v1979 = vpop.f32.mrf.mxu0
      %v1980 = vadd.f32 0.0, %v1979
      %1981 = vmatmul.bf16.gmra.mxu0 %v1902
      %v1982 = vpop.f32.mrf.mxu0
      %v1983 = vadd.f32 0.0, %v1982
      %v1984 = vpop.f32.mrf.mxu0
      %v1985 = vadd.f32 0.0, %v1984
      %1986 = vmatmul.bf16.gmra.mxu0 %v1904
      %v1987 = vpop.f32.mrf.mxu0
      %v1988 = vadd.f32 0.0, %v1987
      %v1989 = vpop.f32.mrf.mxu0
      %v1990 = vadd.f32 0.0, %v1989
      %1991 = vdwg.mxu0
      %v1992 = vadd.f32 %v1838, %v1968
      %v1993 = vadd.f32 %v1839, %v1970
      %v1994 = vadd.f32 %v1840, %v1973
      %v1995 = vadd.f32 %v1841, %v1975
      %v1996 = vadd.f32 %v1842, %v1978
      %v1997 = vadd.f32 %v1843, %v1980
      %v1998 = vadd.f32 %v1844, %v1983
      %v1999 = vadd.f32 %v1845, %v1985
      %v2000 = vadd.f32 %v1846, %v1988
      %v2001 = vadd.f32 %v1847, %v1990
      %2002 = vst [vmem:[#allocation2] sm:$0xff] %v1992
      %2003 = vst [vmem:[#allocation2 + $0x8] sm:$0xff] %v1993
      %2004 = vst [vmem:[#allocation2 + $0x10] sm:$0xff] %v1994
      %2005 = vst [vmem:[#allocation2 + $0x18] sm:$0xff] %v1995
      %2006 = vst [vmem:[#allocation2 + $0x20] sm:$0xff] %v1996
      %2007 = vst [vmem:[#allocation2 + $0x28] sm:$0xff] %v1997
      %2008 = vst [vmem:[#allocation2 + $0x30] sm:$0xff] %v1998
      %2009 = vst [vmem:[#allocation2 + $0x38] sm:$0xff] %v1999
      %2010 = vst [vmem:[#allocation2 + $0x40] sm:$0xff] %v2000
      %2011 = vst [vmem:[#allocation2 + $0x48] sm:$0xff] %v2001
      %v2012 = vld [vmem:[#allocation2] sm:$0xff]
      %v2013 = vld [vmem:[#allocation2 + $0x8] sm:$0xff]
      %v2014 = vld [vmem:[#allocation2 + $0x10] sm:$0xff]
      %v2015 = vld [vmem:[#allocation2 + $0x18] sm:$0xff]
      %v2016 = vld [vmem:[#allocation2 + $0x20] sm:$0xff]
      %v2017 = vld [vmem:[#allocation2 + $0x28] sm:$0xff]
      %v2018 = vld [vmem:[#allocation2 + $0x30] sm:$0xff]
      %v2019 = vld [vmem:[#allocation2 + $0x38] sm:$0xff]
      %v2020 = vld [vmem:[#allocation2 + $0x40] sm:$0xff]
      %v2021 = vld [vmem:[#allocation2 + $0x48] sm:$0xff]
      %v2022 = vld [vmem:[%s230] sm:$0xf]
      %v2023 = vld [vmem:[%s230 + $0x4] sm:$0xf]
      %v2024 = vld [vmem:[%s230 + $0x8] sm:$0xf]
      %v2025 = vld [vmem:[%s230 + $0xc] sm:$0xf]
      %v2026 = vld [vmem:[%s230 + $0x10] sm:$0xf]
      %v2027 = vld [vmem:[%s230 + $0x14] sm:$0xf]
      %v2028 = vld [vmem:[%s230 + $0x18] sm:$0xf]
      %v2029 = vld [vmem:[%s230 + $0x1c] sm:$0xf]
      %v2030 = vld [vmem:[%s230 + $0x20] sm:$0xf]
      %v2031 = vld [vmem:[%s230 + $0x24] sm:$0xf]
      %v2032 = vunpack.c.l.bf16 %v2022
      %v2033 = vunpack.c.l.bf16 %v2023
      %v2034 = vunpack.c.l.bf16 %v2024
      %v2035 = vunpack.c.l.bf16 %v2025
      %v2036 = vunpack.c.l.bf16 %v2026
      %v2037 = vunpack.c.l.bf16 %v2027
      %v2038 = vunpack.c.l.bf16 %v2028
      %v2039 = vunpack.c.l.bf16 %v2029
      %v2040 = vunpack.c.l.bf16 %v2030
      %v2041 = vunpack.c.l.bf16 %v2031
      %v2042 = vadd.f32 %v2012, %v2032
      %v2043 = vadd.f32 %v2013, %v2033
      %v2044 = vadd.f32 %v2014, %v2034
      %v2045 = vadd.f32 %v2015, %v2035
      %v2046 = vadd.f32 %v2016, %v2036
      %v2047 = vadd.f32 %v2017, %v2037
      %v2048 = vadd.f32 %v2018, %v2038
      %v2049 = vadd.f32 %v2019, %v2039
      %v2050 = vadd.f32 %v2020, %v2040
      %v2051 = vadd.f32 %v2021, %v2041
      %v2052 = vpack.c.bf16 %v2042, %v2042
      %v2053 = vpack.c.bf16 %v2043, %v2043
      %v2054 = vpack.c.bf16 %v2044, %v2044
      %v2055 = vpack.c.bf16 %v2045, %v2045
      %v2056 = vpack.c.bf16 %v2046, %v2046
      %v2057 = vpack.c.bf16 %v2047, %v2047
      %v2058 = vpack.c.bf16 %v2048, %v2048
      %v2059 = vpack.c.bf16 %v2049, %v2049
      %v2060 = vpack.c.bf16 %v2050, %v2050
      %v2061 = vpack.c.bf16 %v2051, %v2051
      %2062 = vst [vmem:[%s238] sm:$0xf] %v2052
      %2063 = vst [vmem:[%s238 + $0x4] sm:$0xf] %v2053
      %2064 = vst [vmem:[%s238 + $0x8] sm:$0xf] %v2054
      %2065 = vst [vmem:[%s238 + $0xc] sm:$0xf] %v2055
      %2066 = vst [vmem:[%s238 + $0x10] sm:$0xf] %v2056
      %2067 = vst [vmem:[%s238 + $0x14] sm:$0xf] %v2057
      %2068 = vst [vmem:[%s238 + $0x18] sm:$0xf] %v2058
      %2069 = vst [vmem:[%s238 + $0x1c] sm:$0xf] %v2059
      %2070 = vst [vmem:[%s238 + $0x20] sm:$0xf] %v2060
      %2071 = vst [vmem:[%s238 + $0x24] sm:$0xf] %v2061
      %p2072 = scmp.lt.s32.totalorder %s18, 1
      %s2073 = scalar_select %p2072, %s18, 1
      %p2074 = scmp.lt.s32.totalorder %s19, 0
      %s2075 = scalar_select %p2074, %s19, 0
      %s2076 = smul.addr %s2073, 10
      %s2077 = sadd.s32 %s2075, %s2076
      %s2078 = smul.addr %s2077, 4
      %s2079 = scalar_lea.vmem %s3, %s2078
      // Predicated region
      $region33: #{a_call__.10} parent=31 // pred_check
        %p2080 = pneg %p126
      $region34: #{a_call__.10} parent=31 // pred_check_branch
        %2082 = sbr.rel (%p2080) target = $region36
      $region35: #{a_call__.10} parent=31 // pred_region
        _
      $region36: #{a_call__.10} parent=31 // pred_fallthru
        _
    $region32: #{a_call__.10} parent=5 // pred_fallthru
      _
    %p2083 = scmp.le.s32.totalorder 2, %s9
    // Predicated region
    $region37: #{a_call__.10} parent=5 // pred_check
      %p2084 = pneg %p2083
    $region38: #{a_call__.10} parent=5 // pred_check_branch
      %2086 = sbr.rel (%p2084) target = $region40
    $region39: #{a_call__.10} parent=5 // pred_region
      %s2087 = ssub.s32 %s9, 2
      // Predicated region
      $region41: #{a_call__.10} parent=39 // pred_check
        %p2088 = pneg %p132
      $region42: #{a_call__.10} parent=39 // pred_check_branch
        %2090 = sbr.rel (%p2088) target = $region44
      $region43: #{a_call__.10} parent=39 // pred_region
        %p2091 = scmp.lt.s32.totalorder %s20, 1
        %s2092 = scalar_select %p2091, %s20, 1
        %p2093 = scmp.lt.s32.totalorder %s21, 0
        %s2094 = scalar_select %p2093, %s21, 0
        %s2095 = smul.addr %s2092, 10
        %s2096 = sadd.s32 %s2094, %s2095
        %s2097 = smul.addr %s2096, 4
        %s2098 = scalar_lea.vmem %s3, %s2097
      $region44: #{a_call__.10} parent=39 // pred_fallthru
        _
    $region40: #{a_call__.10} parent=5 // pred_fallthru
      _
  $region6: #{a_call__.10} parent=0 // loop_footer
    %s13 = sadd.s32 1, %s9
  $region7: #{a_call__.10} parent=0 // loop_footer_branch
    %8 = sbr.rel target = $region3
  $region8: #{a_call__.10} parent=0 // loop_exit
    _

// kernel: a_call__.12
$region0: #{a_call__.12}
  #allocation0 [shape = 'u32[]', space=smem, size = 0x4, offset = 0x4, fixed_abs, tag = 'smem constant byte address 0x4 - core index']
  #allocation1 [shape = 'u32[72,128]{1,0:T(1,128)}', space=vmem, size = 0x9000, scoped, tag = 'internal scratch']
  #allocation2 [shape = 'f32[80,128]{1,0:T(8,128)}', space=vmem, size = 0xa000, scoped, tag = 'scratch operand']
  %s0 = inlined_call_operand.vmem [shape: bf16[2,110,128], index: 0, kind: input, shape index: {}]
  %s1 = inlined_call_operand.vmem [shape: bf16[9,128,128], index: 1, kind: input, shape index: {}]
  %s2 = inlined_call_operand.vmem [shape: f32[2,128], index: 2, kind: input, shape index: {}]
  %s3 = inlined_call_operand.vmem [shape: bf16[2,80,128], index: 3, kind: output, shape index: {}]
  %s4 = sld [smem:[#allocation0]]
  $region45: #{a_call__.12} parent=0
    _
  %s6 = ssub.s32 1, %s4
  %s7 = scalar_select 0, %s6, %s4
  loop: start=0, step=1, limit=4
  $region2: #{a_call__.12} parent=0 // loop_pre_header
    _
  $region3: #{a_call__.12} parent=0 // loop_header
    %s9 = sphi 0, %s13
    %p10 = scmp.ge.s32.totalorder %s9, 4
    %s16 = sphi 0, %s28
    %s17 = sphi 0, %s24
    %s18 = sphi 0, %s16
    %s19 = sphi 0, %s17
    %s20 = sphi 0, %s18
    %s21 = sphi 0, %s19
    %s31 = sphi 0, %s33
    %s34 = sphi 0, %s31
    %s35 = sphi 0, %s34
    %s51 = sphi 0, %s35
    %s57 = sphi 0, %s59
    %s60 = sphi 0, %s57
    %s61 = sphi 0, %s60
    %s77 = sphi 0, %s61
    %s83 = sphi 0, %s85
    %s86 = sphi 0, %s83
    %s87 = sphi 0, %s86
    %s103 = sphi 0, %s87
    %s111 = sphi 0, %s113
    %s114 = sphi 0, %s111
    %s115 = sphi 0, %s114
    %s131 = sphi 0, %s115
  $region4: #{a_call__.12} parent=0 // loop_header_branch
    %12 = sbr.rel (%p10) target = $region8
  $region5: #{a_call__.12} parent=0 // loop_body
    %s14 = ssub.s32 %s9, 1
    %s15 = ssub.s32 %s9, 2
    %s22 = sadd.s32 1, %s17
    %p23 = scmp.ge.s32.totalorder %s22, 1
    %s24 = scalar_select %p23, 0, %s22
    %s25 = sadd.s32 1, %s16
    %s26 = scalar_select %p23, %s25, %s16
    %p27 = scmp.ge.s32.totalorder %s26, 2
    %s28 = scalar_select %p27, 0, %s26
    %s29 = ssub.s32 %s16, %s28
    %p30 = scmp.eq.s32.totalorder %s29, 0
    %s32 = sadd.s32 %s31, 1
    %s33 = scalar_select %p30, %s31, %s32
    %p36 = pneg %p30
    %p37 = scmp.eq.s32.totalorder %s9, 1
    %p38 = por %p36, %p37
    %p39 = scmp.ne.s32.totalorder %s31, %s34
    %p40 = scmp.eq.s32.totalorder %s9, 0
    %p41 = por %p39, %p40
    %p42 = scmp.ne.s32.totalorder %s31, %s34
    %p43 = scmp.eq.s32.totalorder %s14, 1
    %p44 = por %p42, %p43
    %p45 = scmp.ne.s32.totalorder %s34, %s35
    %p46 = scmp.eq.s32.totalorder %s14, 0
    %p47 = por %p45, %p46
    %p48 = scmp.ne.s32.totalorder %s34, %s35
    %p49 = scmp.eq.s32.totalorder %s15, 1
    %p50 = por %p48, %p49
    %p52 = scmp.ne.s32.totalorder %s35, %s51
    %p53 = scmp.eq.s32.totalorder %s15, 0
    %p54 = por %p52, %p53
    %s55 = ssub.s32 %s17, %s24
    %p56 = scmp.eq.s32.totalorder %s55, 0
    %s58 = sadd.s32 %s57, 1
    %s59 = scalar_select %p56, %s57, %s58
    %p62 = pneg %p56
    %p63 = scmp.eq.s32.totalorder %s9, 1
    %p64 = por %p62, %p63
    %p65 = scmp.ne.s32.totalorder %s57, %s60
    %p66 = scmp.eq.s32.totalorder %s9, 0
    %p67 = por %p65, %p66
    %p68 = scmp.ne.s32.totalorder %s57, %s60
    %p69 = scmp.eq.s32.totalorder %s14, 1
    %p70 = por %p68, %p69
    %p71 = scmp.ne.s32.totalorder %s60, %s61
    %p72 = scmp.eq.s32.totalorder %s14, 0
    %p73 = por %p71, %p72
    %p74 = scmp.ne.s32.totalorder %s60, %s61
    %p75 = scmp.eq.s32.totalorder %s15, 1
    %p76 = por %p74, %p75
    %p78 = scmp.ne.s32.totalorder %s61, %s77
    %p79 = scmp.eq.s32.totalorder %s15, 0
    %p80 = por %p78, %p79
    %s81 = ssub.s32 %s17, %s24
    %p82 = scmp.eq.s32.totalorder %s81, 0
    %s84 = sadd.s32 %s83, 1
    %s85 = scalar_select %p82, %s83, %s84
    %p88 = pneg %p82
    %p89 = scmp.eq.s32.totalorder %s9, 1
    %p90 = por %p88, %p89
    %p91 = scmp.ne.s32.totalorder %s83, %s86
    %p92 = scmp.eq.s32.totalorder %s9, 0
    %p93 = por %p91, %p92
    %p94 = scmp.ne.s32.totalorder %s83, %s86
    %p95 = scmp.eq.s32.totalorder %s14, 1
    %p96 = por %p94, %p95
    %p97 = scmp.ne.s32.totalorder %s86, %s87
    %p98 = scmp.eq.s32.totalorder %s14, 0
    %p99 = por %p97, %p98
    %p100 = scmp.ne.s32.totalorder %s86, %s87
    %p101 = scmp.eq.s32.totalorder %s15, 1
    %p102 = por %p100, %p101
    %p104 = scmp.ne.s32.totalorder %s87, %s103
    %p105 = scmp.eq.s32.totalorder %s15, 0
    %p106 = por %p104, %p105
    %s107 = ssub.s32 %s16, %s28
    %s108 = ssub.s32 %s17, %s24
    %s109 = sor.u32 %s107, %s108
    %p110 = scmp.eq.s32.totalorder %s109, 0
    %s112 = sadd.s32 %s111, 1
    %s113 = scalar_select %p110, %s111, %s112
    %p116 = pneg %p110
    %p117 = scmp.eq.s32.totalorder %s9, 1
    %p118 = por %p116, %p117
    %p119 = scmp.ne.s32.totalorder %s111, %s114
    %p120 = scmp.eq.s32.totalorder %s9, 0
    %p121 = por %p119, %p120
    %p122 = scmp.ne.s32.totalorder %s111, %s114
    %p123 = scmp.eq.s32.totalorder %s14, 1
    %p124 = por %p122, %p123
    %p125 = scmp.ne.s32.totalorder %s114, %s115
    %p126 = scmp.eq.s32.totalorder %s14, 0
    %p127 = por %p125, %p126
    %p128 = scmp.ne.s32.totalorder %s114, %s115
    %p129 = scmp.eq.s32.totalorder %s15, 1
    %p130 = por %p128, %p129
    %p132 = scmp.ne.s32.totalorder %s115, %s131
    %p133 = scmp.eq.s32.totalorder %s15, 0
    %p134 = por %p132, %p133
    %p135 = scmp.le.s32.totalorder 1, %s9
    %p136 = scmp.lt.s32.totalorder %s9, 3
    %p137 = pnand %p135, %p136
    %p138 = pneg %p137
    // Predicated region
    $region9: #{a_call__.12} parent=5 // pred_check
      _
    $region10: #{a_call__.12} parent=5 // pred_check_branch
      %140 = sbr.rel (%p137) target = $region12
    $region11: #{a_call__.12} parent=5 // pred_region
      %s141 = ssub.s32 %s9, 1
      // Predicated region
      $region13: #{a_call__.12} parent=11 // pred_check
        %p142 = pneg %p73
      $region14: #{a_call__.12} parent=11 // pred_check_branch
        %144 = sbr.rel (%p142) target = $region16
      $region15: #{a_call__.12} parent=11 // pred_region
        %p145 = scmp.lt.s32.totalorder %s19, 0
        %s146 = scalar_select %p145, %s19, 0
        %s147 = smul.addr %s146, 4
        %s148 = scalar_lea.vmem %s1, %s147
      $region16: #{a_call__.12} parent=11 // pred_fallthru
        _
      // Predicated region
      $region17: #{a_call__.12} parent=11 // pred_check
        %p149 = pneg %p99
      $region18: #{a_call__.12} parent=11 // pred_check_branch
        %151 = sbr.rel (%p149) target = $region20
      $region19: #{a_call__.12} parent=11 // pred_region
        %p152 = scmp.lt.s32.totalorder %s19, 0
        %s153 = scalar_select %p152, %s19, 0
        %s154 = smul.addr %s153, 2
        %s155 = scalar_lea.vmem %s2, %s154
      $region20: #{a_call__.12} parent=11 // pred_fallthru
        _
    $region12: #{a_call__.12} parent=5 // pred_fallthru
      _
    %p156 = scmp.lt.s32.totalorder %s9, 2
    // Predicated region
    $region21: #{a_call__.12} parent=5 // pred_check
      %p157 = pneg %p156
    $region22: #{a_call__.12} parent=5 // pred_check_branch
      %159 = sbr.rel (%p157) target = $region24
    $region23: #{a_call__.12} parent=5 // pred_region
      // Predicated region
      $region25: #{a_call__.12} parent=23 // pred_check
        %p160 = pneg %p41
      $region26: #{a_call__.12} parent=23 // pred_check_branch
        %162 = sbr.rel (%p160) target = $region28
      $region27: #{a_call__.12} parent=23 // pred_region
        %p163 = scmp.lt.s32.totalorder %s16, 1
        %s164 = scalar_select %p163, %s16, 1
        %s165 = smul.addr %s164, 14
        %s166 = smul.addr %s165, 4
        %s167 = scalar_lea.vmem %s0, %s166
      $region28: #{a_call__.12} parent=23 // pred_fallthru
        _
    $region24: #{a_call__.12} parent=5 // pred_fallthru
      _
    %p168 = scmp.le.s32.totalorder 1, %s9
    %p169 = scmp.lt.s32.totalorder %s9, 3
    %p170 = pnand %p168, %p169
    %p171 = pneg %p170
    // Predicated region
    $region29: #{a_call__.12} parent=5 // pred_check
      _
    $region30: #{a_call__.12} parent=5 // pred_check_branch
      %173 = sbr.rel (%p170) target = $region32
    $region31: #{a_call__.12} parent=5 // pred_region
      %s174 = ssub.s32 %s9, 1
      %p175 = scmp.lt.s32.totalorder %s18, 1
      %s176 = scalar_select %p175, %s18, 1
      %s177 = smul.addr %s176, 14
      %s178 = smul.addr %s177, 4
      %s179 = scalar_lea.vmem %s0, %s178
      %p180 = pneg %p47
      %p181 = pneg %p44
      %p182 = scmp.lt.s32.totalorder %s19, 0
      %s183 = scalar_select %p182, %s19, 0
      %s184 = smul.addr %s183, 4
      %s185 = scalar_lea.vmem %s1, %s184
      %p186 = pneg %p73
      %p187 = pneg %p70
      %p188 = scmp.lt.s32.totalorder %s19, 0
      %s189 = scalar_select %p188, %s19, 0
      %s190 = smul.addr %s189, 2
      %s191 = scalar_lea.vmem %s2, %s190
      %p192 = pneg %p99
      %p193 = pneg %p96
      %p194 = pneg %p127
      %p195 = pneg %p124
      %p196 = scmp.lt.s32.totalorder %s18, 1
      %s197 = scalar_select %p196, %s18, 1
      %p198 = scmp.lt.s32.totalorder %s19, 0
      %s199 = scalar_select %p198, %s19, 0
      %s200 = smul.addr %s197, 10
      %s201 = sadd.s32 %s199, %s200
      %s202 = smul.addr %s201, 4
      %s203 = scalar_lea.vmem %s3, %s202
      %p204 = scmp.lt.s32.totalorder %s18, 1
      %s205 = scalar_select %p204, %s18, 1
      %s206 = smul.addr %s205, 14
      %s207 = smul.addr %s206, 4
      %s208 = scalar_lea.vmem %s0, %s207
      %p209 = scmp.lt.s32.totalorder %s19, 0
      %s210 = scalar_select %p209, %s19, 0
      %s211 = smul.addr %s210, 4
      %s212 = scalar_lea.vmem %s1, %s211
      %p213 = scmp.lt.s32.totalorder %s19, 0
      %s214 = scalar_select %p213, %s19, 0
      %s215 = smul.addr %s214, 2
      %s216 = scalar_lea.vmem %s2, %s215
      %p217 = scmp.lt.s32.totalorder %s18, 1
      %s218 = scalar_select %p217, %s18, 1
      %p219 = scmp.lt.s32.totalorder %s19, 0
      %s220 = scalar_select %p219, %s19, 0
      %s221 = smul.addr %s218, 10
      %s222 = sadd.s32 %s220, %s221
      %s223 = smul.addr %s222, 4
      %s224 = scalar_lea.vmem %s3, %s223
      %225 = vst [vmem:[#allocation2] sm:$0xff] 0.0
      %226 = vst [vmem:[#allocation2 + $0x8] sm:$0xff] 0.0
      %227 = vst [vmem:[#allocation2 + $0x10] sm:$0xff] 0.0
      %228 = vst [vmem:[#allocation2 + $0x18] sm:$0xff] 0.0
      %229 = vst [vmem:[#allocation2 + $0x20] sm:$0xff] 0.0
      %230 = vst [vmem:[#allocation2 + $0x28] sm:$0xff] 0.0
      %231 = vst [vmem:[#allocation2 + $0x30] sm:$0xff] 0.0
      %232 = vst [vmem:[#allocation2 + $0x38] sm:$0xff] 0.0
      %233 = vst [vmem:[#allocation2 + $0x40] sm:$0xff] 0.0
      %234 = vst [vmem:[#allocation2 + $0x48] sm:$0xff] 0.0
      %v235 = vld [vmem:[%s208] sm:$0xf]
      %v236 = vld [vmem:[%s208 + $0x4] sm:$0xf]
      %v237 = vld [vmem:[%s208 + $0x8] sm:$0xf]
      %v238 = vld [vmem:[%s208 + $0xc] sm:$0xf]
      %v239 = vld [vmem:[%s208 + $0x10] sm:$0xf]
      %v240 = vld [vmem:[%s208 + $0x14] sm:$0xf]
      %v241 = vld [vmem:[%s208 + $0x18] sm:$0xf]
      %v242 = vld [vmem:[%s208 + $0x1c] sm:$0xf]
      %v243 = vld [vmem:[%s208 + $0x20] sm:$0xf]
      %v244 = vld [vmem:[%s208 + $0x24] sm:$0xf]
      %v245 = vld [vmem:[#allocation2] sm:$0xff]
      %v246 = vld [vmem:[#allocation2 + $0x8] sm:$0xff]
      %v247 = vld [vmem:[#allocation2 + $0x10] sm:$0xff]
      %v248 = vld [vmem:[#allocation2 + $0x18] sm:$0xff]
      %v249 = vld [vmem:[#allocation2 + $0x20] sm:$0xff]
      %v250 = vld [vmem:[#allocation2 + $0x28] sm:$0xff]
      %v251 = vld [vmem:[#allocation2 + $0x30] sm:$0xff]
      %v252 = vld [vmem:[#allocation2 + $0x38] sm:$0xff]
      %v253 = vld [vmem:[#allocation2 + $0x40] sm:$0xff]
      %v254 = vld [vmem:[#allocation2 + $0x48] sm:$0xff]
      %v255 = vld [vmem:[%s212] sm:$0xf]
      %v256 = vld [vmem:[%s212 + $0x4] sm:$0xf]
      %v257 = vld [vmem:[%s212 + $0x8] sm:$0xf]
      %v258 = vld [vmem:[%s212 + $0xc] sm:$0xf]
      %v259 = vld [vmem:[%s212 + $0x10] sm:$0xf]
      %v260 = vld [vmem:[%s212 + $0x14] sm:$0xf]
      %v261 = vld [vmem:[%s212 + $0x18] sm:$0xf]
      %v262 = vld [vmem:[%s212 + $0x1c] sm:$0xf]
      %v263 = vld [vmem:[%s212 + $0x20] sm:$0xf]
      %v264 = vld [vmem:[%s212 + $0x24] sm:$0xf]
      %v265 = vld [vmem:[%s212 + $0x28] sm:$0xf]
      %v266 = vld [vmem:[%s212 + $0x2c] sm:$0xf]
      %v267 = vld [vmem:[%s212 + $0x30] sm:$0xf]
      %v268 = vld [vmem:[%s212 + $0x34] sm:$0xf]
      %v269 = vld [vmem:[%s212 + $0x38] sm:$0xf]
      %v270 = vld [vmem:[%s212 + $0x3c] sm:$0xf]
      %v281 = vunpack.c.l.b16 %v235
      %v282 = vunpack.c.l.b16 %v236
      %v283 = vunpack.c.l.b16 %v237
      %v284 = vunpack.c.l.b16 %v238
      %v285 = vunpack.c.l.b16 %v239
      %v286 = vunpack.c.l.b16 %v240
      %v287 = vunpack.c.l.b16 %v241
      %v288 = vunpack.c.l.b16 %v242
      %v289 = vunpack.c.l.b16 %v243
      %v290 = vunpack.c.l.b16 %v244
      %v291 = vpack.c.b16 %v282, %v281
      %v292 = vpack.c.b16 %v284, %v283
      %v293 = vpack.c.b16 %v286, %v285
      %v294 = vpack.c.b16 %v288, %v287
      %v295 = vpack.c.b16 %v290, %v289
      %v317 = vunpack.c.l.b16 %v255
      %v318 = vunpack.c.l.b16 %v256
      %v319 = vunpack.c.l.b16 %v257
      %v320 = vunpack.c.l.b16 %v258
      %v321 = vunpack.c.l.b16 %v259
      %v322 = vunpack.c.l.b16 %v260
      %v323 = vunpack.c.l.b16 %v261
      %v324 = vunpack.c.l.b16 %v262
      %v325 = vunpack.c.l.b16 %v263
      %v326 = vunpack.c.l.b16 %v264
      %v327 = vunpack.c.l.b16 %v265
      %v328 = vunpack.c.l.b16 %v266
      %v329 = vunpack.c.l.b16 %v267
      %v330 = vunpack.c.l.b16 %v268
      %v331 = vunpack.c.l.b16 %v269
      %v332 = vunpack.c.l.b16 %v270
      %v333 = vpack.c.b16 %v318, %v317
      %v334 = vpack.c.b16 %v320, %v319
      %v335 = vpack.c.b16 %v322, %v321
      %v336 = vpack.c.b16 %v324, %v323
      %v337 = vpack.c.b16 %v326, %v325
      %v338 = vpack.c.b16 %v328, %v327
      %v339 = vpack.c.b16 %v330, %v329
      %v340 = vpack.c.b16 %v332, %v331
      %349 = vmatpush.bf16.msra.mxu0 %v340
      %350 = vmatpush.bf16.msra.mxu0 %v339
      %351 = vmatpush.bf16.msra.mxu0 %v338
      %352 = vmatpush.bf16.msra.mxu0 %v337
      %353 = vmatpush.bf16.msra.mxu0 %v336
      %354 = vmatpush.bf16.msra.mxu0 %v335
      %355 = vmatpush.bf16.msra.mxu0 %v334
      %356 = vmatpush.bf16.msra.mxu0 %v333
      %357 = vmatmul.bf16.gmra.mxu0 %v291
      %v358 = vpop.f32.mrf.mxu0
      %v359 = vadd.f32 0.0, %v358
      %v360 = vpop.f32.mrf.mxu0
      %v361 = vadd.f32 0.0, %v360
      %362 = vmatmul.bf16.gmra.mxu0 %v292
      %v363 = vpop.f32.mrf.mxu0
      %v364 = vadd.f32 0.0, %v363
      %v365 = vpop.f32.mrf.mxu0
      %v366 = vadd.f32 0.0, %v365
      %367 = vmatmul.bf16.gmra.mxu0 %v293
      %v368 = vpop.f32.mrf.mxu0
      %v369 = vadd.f32 0.0, %v368
      %v370 = vpop.f32.mrf.mxu0
      %v371 = vadd.f32 0.0, %v370
      %372 = vmatmul.bf16.gmra.mxu0 %v294
      %v373 = vpop.f32.mrf.mxu0
      %v374 = vadd.f32 0.0, %v373
      %v375 = vpop.f32.mrf.mxu0
      %v376 = vadd.f32 0.0, %v375
      %377 = vmatmul.bf16.gmra.mxu0 %v295
      %v378 = vpop.f32.mrf.mxu0
      %v379 = vadd.f32 0.0, %v378
      %v380 = vpop.f32.mrf.mxu0
      %v381 = vadd.f32 0.0, %v380
      %382 = vdwg.mxu0
      %v383 = vadd.f32 %v245, %v359
      %v384 = vadd.f32 %v246, %v361
      %v385 = vadd.f32 %v247, %v364
      %v386 = vadd.f32 %v248, %v366
      %v387 = vadd.f32 %v249, %v369
      %v388 = vadd.f32 %v250, %v371
      %v389 = vadd.f32 %v251, %v374
      %v390 = vadd.f32 %v252, %v376
      %v391 = vadd.f32 %v253, %v379
      %v392 = vadd.f32 %v254, %v381
      %393 = vst [vmem:[#allocation2] sm:$0xff] %v383
      %394 = vst [vmem:[#allocation2 + $0x8] sm:$0xff] %v384
      %395 = vst [vmem:[#allocation2 + $0x10] sm:$0xff] %v385
      %396 = vst [vmem:[#allocation2 + $0x18] sm:$0xff] %v386
      %397 = vst [vmem:[#allocation2 + $0x20] sm:$0xff] %v387
      %398 = vst [vmem:[#allocation2 + $0x28] sm:$0xff] %v388
      %399 = vst [vmem:[#allocation2 + $0x30] sm:$0xff] %v389
      %400 = vst [vmem:[#allocation2 + $0x38] sm:$0xff] %v390
      %401 = vst [vmem:[#allocation2 + $0x40] sm:$0xff] %v391
      %402 = vst [vmem:[#allocation2 + $0x48] sm:$0xff] %v392
      %v403 = vld [vmem:[%s208] sm:$0xf]
      %v404 = vld [vmem:[%s208 + $0x4] sm:$0xf]
      %v405 = vld [vmem:[%s208 + $0x8] sm:$0xf]
      %v406 = vld [vmem:[%s208 + $0xc] sm:$0xf]
      %v407 = vld [vmem:[%s208 + $0x10] sm:$0xf]
      %v408 = vld [vmem:[%s208 + $0x14] sm:$0xf]
      %v409 = vld [vmem:[%s208 + $0x18] sm:$0xf]
      %v410 = vld [vmem:[%s208 + $0x1c] sm:$0xf]
      %v411 = vld [vmem:[%s208 + $0x20] sm:$0xf]
      %v412 = vld [vmem:[%s208 + $0x24] sm:$0xf]
      %v413 = vld [vmem:[%s208 + $0x28] sm:$0x1]
      %v414 = vld [vmem:[#allocation2] sm:$0xff]
      %v415 = vld [vmem:[#allocation2 + $0x8] sm:$0xff]
      %v416 = vld [vmem:[#allocation2 + $0x10] sm:$0xff]
      %v417 = vld [vmem:[#allocation2 + $0x18] sm:$0xff]
      %v418 = vld [vmem:[#allocation2 + $0x20] sm:$0xff]
      %v419 = vld [vmem:[#allocation2 + $0x28] sm:$0xff]
      %v420 = vld [vmem:[#allocation2 + $0x30] sm:$0xff]
      %v421 = vld [vmem:[#allocation2 + $0x38] sm:$0xff]
      %v422 = vld [vmem:[#allocation2 + $0x40] sm:$0xff]
      %v423 = vld [vmem:[#allocation2 + $0x48] sm:$0xff]
      %s424 = scalar_lea.vmem %s212, 64
      %v425 = vld [vmem:[%s424] sm:$0xf]
      %v426 = vld [vmem:[%s424 + $0x4] sm:$0xf]
      %v427 = vld [vmem:[%s424 + $0x8] sm:$0xf]
      %v428 = vld [vmem:[%s424 + $0xc] sm:$0xf]
      %v429 = vld [vmem:[%s424 + $0x10] sm:$0xf]
      %v430 = vld [vmem:[%s424 + $0x14] sm:$0xf]
      %v431 = vld [vmem:[%s424 + $0x18] sm:$0xf]
      %v432 = vld [vmem:[%s424 + $0x1c] sm:$0xf]
      %v433 = vld [vmem:[%s424 + $0x20] sm:$0xf]
      %v434 = vld [vmem:[%s424 + $0x24] sm:$0xf]
      %v435 = vld [vmem:[%s424 + $0x28] sm:$0xf]
      %v436 = vld [vmem:[%s424 + $0x2c] sm:$0xf]
      %v437 = vld [vmem:[%s424 + $0x30] sm:$0xf]
      %v438 = vld [vmem:[%s424 + $0x34] sm:$0xf]
      %v439 = vld [vmem:[%s424 + $0x38] sm:$0xf]
      %v440 = vld [vmem:[%s424 + $0x3c] sm:$0xf]
      %v452 = vunpack.c.l.b16 %v403
      %v453 = vunpack.c.l.b16 %v404
      %v454 = vunpack.c.l.b16 %v405
      %v455 = vunpack.c.l.b16 %v406
      %v456 = vunpack.c.l.b16 %v407
      %v457 = vunpack.c.l.b16 %v408
      %v458 = vunpack.c.l.b16 %v409
      %v459 = vunpack.c.l.b16 %v410
      %v460 = vunpack.c.l.b16 %v411
      %v461 = vunpack.c.l.b16 %v412
      %v462 = vunpack.c.l.b16 %v413
      %v463 = vpack.c.b16 %v453, %v452
      %v464 = vpack.c.b16 %v455, %v454
      %v465 = vpack.c.b16 %v457, %v456
      %v466 = vpack.c.b16 %v459, %v458
      %v467 = vpack.c.b16 %v461, %v460
      %v468 = vpack.c.b16 %v462, %v462
      %vm469 = vsmask.f32 7424
      %v471 = vshrl.u32 %v463, 16
      %v473 = vshll.u32 %v463, 16
      %v475 = vrot.slane %v473, 1
      %v476 = vor.u32 %v471, %v475
      %v478 = vshll.u32 %v464, 16
      %v480 = vrot.slane %v478, 1
      %v481 = vsel %vm469, %v476, %v480
      %v482 = vshrl.u32 %v464, 16
      %v484 = vor.u32 %v482, %v480
      %v486 = vshll.u32 %v465, 16
      %v488 = vrot.slane %v486, 1
      %v489 = vsel %vm469, %v484, %v488
      %v490 = vshrl.u32 %v465, 16
      %v492 = vor.u32 %v490, %v488
      %v494 = vshll.u32 %v466, 16
      %v496 = vrot.slane %v494, 1
      %v497 = vsel %vm469, %v492, %v496
      %v498 = vshrl.u32 %v466, 16
      %v500 = vor.u32 %v498, %v496
      %v502 = vshll.u32 %v467, 16
      %v504 = vrot.slane %v502, 1
      %v505 = vsel %vm469, %v500, %v504
      %v506 = vshrl.u32 %v467, 16
      %v508 = vor.u32 %v506, %v504
      %v510 = vshll.u32 %v468, 16
      %v512 = vrot.slane %v510, 1
      %v513 = vsel %vm469, %v508, %v512
      %v535 = vunpack.c.l.b16 %v425
      %v536 = vunpack.c.l.b16 %v426
      %v537 = vunpack.c.l.b16 %v427
      %v538 = vunpack.c.l.b16 %v428
      %v539 = vunpack.c.l.b16 %v429
      %v540 = vunpack.c.l.b16 %v430
      %v541 = vunpack.c.l.b16 %v431
      %v542 = vunpack.c.l.b16 %v432
      %v543 = vunpack.c.l.b16 %v433
      %v544 = vunpack.c.l.b16 %v434
      %v545 = vunpack.c.l.b16 %v435
      %v546 = vunpack.c.l.b16 %v436
      %v547 = vunpack.c.l.b16 %v437
      %v548 = vunpack.c.l.b16 %v438
      %v549 = vunpack.c.l.b16 %v439
      %v550 = vunpack.c.l.b16 %v440
      %v551 = vpack.c.b16 %v536, %v535
      %v552 = vpack.c.b16 %v538, %v537
      %v553 = vpack.c.b16 %v540, %v539
      %v554 = vpack.c.b16 %v542, %v541
      %v555 = vpack.c.b16 %v544, %v543
      %v556 = vpack.c.b16 %v546, %v545
      %v557 = vpack.c.b16 %v548, %v547
      %v558 = vpack.c.b16 %v550, %v549
      %567 = vmatpush.bf16.msra.mxu0 %v558
      %568 = vmatpush.bf16.msra.mxu0 %v557
      %569 = vmatpush.bf16.msra.mxu0 %v556
      %570 = vmatpush.bf16.msra.mxu0 %v555
      %571 = vmatpush.bf16.msra.mxu0 %v554
      %572 = vmatpush.bf16.msra.mxu0 %v553
      %573 = vmatpush.bf16.msra.mxu0 %v552
      %574 = vmatpush.bf16.msra.mxu0 %v551
      %575 = vmatmul.bf16.gmra.mxu0 %v481
      %v576 = vpop.f32.mrf.mxu0
      %v577 = vadd.f32 0.0, %v576
      %v578 = vpop.f32.mrf.mxu0
      %v579 = vadd.f32 0.0, %v578
      %580 = vmatmul.bf16.gmra.mxu0 %v489
      %v581 = vpop.f32.mrf.mxu0
      %v582 = vadd.f32 0.0, %v581
      %v583 = vpop.f32.mrf.mxu0
      %v584 = vadd.f32 0.0, %v583
      %585 = vmatmul.bf16.gmra.mxu0 %v497
      %v586 = vpop.f32.mrf.mxu0
      %v587 = vadd.f32 0.0, %v586
      %v588 = vpop.f32.mrf.mxu0
      %v589 = vadd.f32 0.0, %v588
      %590 = vmatmul.bf16.gmra.mxu0 %v505
      %v591 = vpop.f32.mrf.mxu0
      %v592 = vadd.f32 0.0, %v591
      %v593 = vpop.f32.mrf.mxu0
      %v594 = vadd.f32 0.0, %v593
      %595 = vmatmul.bf16.gmra.mxu0 %v513
      %v596 = vpop.f32.mrf.mxu0
      %v597 = vadd.f32 0.0, %v596
      %v598 = vpop.f32.mrf.mxu0
      %v599 = vadd.f32 0.0, %v598
      %600 = vdwg.mxu0
      %v601 = vadd.f32 %v414, %v577
      %v602 = vadd.f32 %v415, %v579
      %v603 = vadd.f32 %v416, %v582
      %v604 = vadd.f32 %v417, %v584
      %v605 = vadd.f32 %v418, %v587
      %v606 = vadd.f32 %v419, %v589
      %v607 = vadd.f32 %v420, %v592
      %v608 = vadd.f32 %v421, %v594
      %v609 = vadd.f32 %v422, %v597
      %v610 = vadd.f32 %v423, %v599
      %611 = vst [vmem:[#allocation2] sm:$0xff] %v601
      %612 = vst [vmem:[#allocation2 + $0x8] sm:$0xff] %v602
      %613 = vst [vmem:[#allocation2 + $0x10] sm:$0xff] %v603
      %614 = vst [vmem:[#allocation2 + $0x18] sm:$0xff] %v604
      %615 = vst [vmem:[#allocation2 + $0x20] sm:$0xff] %v605
      %616 = vst [vmem:[#allocation2 + $0x28] sm:$0xff] %v606
      %617 = vst [vmem:[#allocation2 + $0x30] sm:$0xff] %v607
      %618 = vst [vmem:[#allocation2 + $0x38] sm:$0xff] %v608
      %619 = vst [vmem:[#allocation2 + $0x40] sm:$0xff] %v609
      %620 = vst [vmem:[#allocation2 + $0x48] sm:$0xff] %v610
      %v621 = vld [vmem:[%s208] sm:$0xe]
      %v622 = vld [vmem:[%s208 + $0x4] sm:$0xf]
      %v623 = vld [vmem:[%s208 + $0x8] sm:$0xf]
      %v624 = vld [vmem:[%s208 + $0xc] sm:$0xf]
      %v625 = vld [vmem:[%s208 + $0x10] sm:$0xf]
      %v626 = vld [vmem:[%s208 + $0x14] sm:$0xf]
      %v627 = vld [vmem:[%s208 + $0x18] sm:$0xf]
      %v628 = vld [vmem:[%s208 + $0x1c] sm:$0xf]
      %v629 = vld [vmem:[%s208 + $0x20] sm:$0xf]
      %v630 = vld [vmem:[%s208 + $0x24] sm:$0xf]
      %v631 = vld [vmem:[%s208 + $0x28] sm:$0x1]
      %v632 = vld [vmem:[#allocation2] sm:$0xff]
      %v633 = vld [vmem:[#allocation2 + $0x8] sm:$0xff]
      %v634 = vld [vmem:[#allocation2 + $0x10] sm:$0xff]
      %v635 = vld [vmem:[#allocation2 + $0x18] sm:$0xff]
      %v636 = vld [vmem:[#allocation2 + $0x20] sm:$0xff]
      %v637 = vld [vmem:[#allocation2 + $0x28] sm:$0xff]
      %v638 = vld [vmem:[#allocation2 + $0x30] sm:$0xff]
      %v639 = vld [vmem:[#allocation2 + $0x38] sm:$0xff]
      %v640 = vld [vmem:[#allocation2 + $0x40] sm:$0xff]
      %v641 = vld [vmem:[#allocation2 + $0x48] sm:$0xff]
      %s642 = scalar_lea.vmem %s212, 128
      %v643 = vld [vmem:[%s642] sm:$0xf]
      %v644 = vld [vmem:[%s642 + $0x4] sm:$0xf]
      %v645 = vld [vmem:[%s642 + $0x8] sm:$0xf]
      %v646 = vld [vmem:[%s642 + $0xc] sm:$0xf]
      %v647 = vld [vmem:[%s642 + $0x10] sm:$0xf]
      %v648 = vld [vmem:[%s642 + $0x14] sm:$0xf]
      %v649 = vld [vmem:[%s642 + $0x18] sm:$0xf]
      %v650 = vld [vmem:[%s642 + $0x1c] sm:$0xf]
      %v651 = vld [vmem:[%s642 + $0x20] sm:$0xf]
      %v652 = vld [vmem:[%s642 + $0x24] sm:$0xf]
      %v653 = vld [vmem:[%s642 + $0x28] sm:$0xf]
      %v654 = vld [vmem:[%s642 + $0x2c] sm:$0xf]
      %v655 = vld [vmem:[%s642 + $0x30] sm:$0xf]
      %v656 = vld [vmem:[%s642 + $0x34] sm:$0xf]
      %v657 = vld [vmem:[%s642 + $0x38] sm:$0xf]
      %v658 = vld [vmem:[%s642 + $0x3c] sm:$0xf]
      %v670 = vunpack.c.l.b16 %v621
      %v671 = vunpack.c.l.b16 %v622
      %v672 = vunpack.c.l.b16 %v623
      %v673 = vunpack.c.l.b16 %v624
      %v674 = vunpack.c.l.b16 %v625
      %v675 = vunpack.c.l.b16 %v626
      %v676 = vunpack.c.l.b16 %v627
      %v677 = vunpack.c.l.b16 %v628
      %v678 = vunpack.c.l.b16 %v629
      %v679 = vunpack.c.l.b16 %v630
      %v680 = vunpack.c.l.b16 %v631
      %v681 = vpack.c.b16 %v671, %v670
      %v682 = vpack.c.b16 %v673, %v672
      %v683 = vpack.c.b16 %v675, %v674
      %v684 = vpack.c.b16 %v677, %v676
      %v685 = vpack.c.b16 %v679, %v678
      %v686 = vpack.c.b16 %v680, %v680
      %vm687 = vcmask 1046528
      %v688 = vrot.slane %v681, 1
      %v689 = vrot.slane %v682, 1
      %v690 = vsel %vm687, %v688, %v689
      %v691 = vrot.slane %v683, 1
      %v692 = vsel %vm687, %v689, %v691
      %v693 = vrot.slane %v684, 1
      %v694 = vsel %vm687, %v691, %v693
      %v695 = vrot.slane %v685, 1
      %v696 = vsel %vm687, %v693, %v695
      %v697 = vrot.slane %v686, 1
      %v698 = vsel %vm687, %v695, %v697
      %v720 = vunpack.c.l.b16 %v643
      %v721 = vunpack.c.l.b16 %v644
      %v722 = vunpack.c.l.b16 %v645
      %v723 = vunpack.c.l.b16 %v646
      %v724 = vunpack.c.l.b16 %v647
      %v725 = vunpack.c.l.b16 %v648
      %v726 = vunpack.c.l.b16 %v649
      %v727 = vunpack.c.l.b16 %v650
      %v728 = vunpack.c.l.b16 %v651
      %v729 = vunpack.c.l.b16 %v652
      %v730 = vunpack.c.l.b16 %v653
      %v731 = vunpack.c.l.b16 %v654
      %v732 = vunpack.c.l.b16 %v655
      %v733 = vunpack.c.l.b16 %v656
      %v734 = vunpack.c.l.b16 %v657
      %v735 = vunpack.c.l.b16 %v658
      %v736 = vpack.c.b16 %v721, %v720
      %v737 = vpack.c.b16 %v723, %v722
      %v738 = vpack.c.b16 %v725, %v724
      %v739 = vpack.c.b16 %v727, %v726
      %v740 = vpack.c.b16 %v729, %v728
      %v741 = vpack.c.b16 %v731, %v730
      %v742 = vpack.c.b16 %v733, %v732
      %v743 = vpack.c.b16 %v735, %v734
      %752 = vmatpush.bf16.msra.mxu0 %v743
      %753 = vmatpush.bf16.msra.mxu0 %v742
      %754 = vmatpush.bf16.msra.mxu0 %v741
      %755 = vmatpush.bf16.msra.mxu0 %v740
      %756 = vmatpush.bf16.msra.mxu0 %v739
      %757 = vmatpush.bf16.msra.mxu0 %v738
      %758 = vmatpush.bf16.msra.mxu0 %v737
      %759 = vmatpush.bf16.msra.mxu0 %v736
      %760 = vmatmul.bf16.gmra.mxu0 %v690
      %v761 = vpop.f32.mrf.mxu0
      %v762 = vadd.f32 0.0, %v761
      %v763 = vpop.f32.mrf.mxu0
      %v764 = vadd.f32 0.0, %v763
      %765 = vmatmul.bf16.gmra.mxu0 %v692
      %v766 = vpop.f32.mrf.mxu0
      %v767 = vadd.f32 0.0, %v766
      %v768 = vpop.f32.mrf.mxu0
      %v769 = vadd.f32 0.0, %v768
      %770 = vmatmul.bf16.gmra.mxu0 %v694
      %v771 = vpop.f32.mrf.mxu0
      %v772 = vadd.f32 0.0, %v771
      %v773 = vpop.f32.mrf.mxu0
      %v774 = vadd.f32 0.0, %v773
      %775 = vmatmul.bf16.gmra.mxu0 %v696
      %v776 = vpop.f32.mrf.mxu0
      %v777 = vadd.f32 0.0, %v776
      %v778 = vpop.f32.mrf.mxu0
      %v779 = vadd.f32 0.0, %v778
      %780 = vmatmul.bf16.gmra.mxu0 %v698
      %v781 = vpop.f32.mrf.mxu0
      %v782 = vadd.f32 0.0, %v781
      %v783 = vpop.f32.mrf.mxu0
      %v784 = vadd.f32 0.0, %v783
      %785 = vdwg.mxu0
      %v786 = vadd.f32 %v632, %v762
      %v787 = vadd.f32 %v633, %v764
      %v788 = vadd.f32 %v634, %v767
      %v789 = vadd.f32 %v635, %v769
      %v790 = vadd.f32 %v636, %v772
      %v791 = vadd.f32 %v637, %v774
      %v792 = vadd.f32 %v638, %v777
      %v793 = vadd.f32 %v639, %v779
      %v794 = vadd.f32 %v640, %v782
      %v795 = vadd.f32 %v641, %v784
      %796 = vst [vmem:[#allocation2] sm:$0xff] %v786
      %797 = vst [vmem:[#allocation2 + $0x8] sm:$0xff] %v787
      %798 = vst [vmem:[#allocation2 + $0x10] sm:$0xff] %v788
      %799 = vst [vmem:[#allocation2 + $0x18] sm:$0xff] %v789
      %800 = vst [vmem:[#allocation2 + $0x20] sm:$0xff] %v790
      %801 = vst [vmem:[#allocation2 + $0x28] sm:$0xff] %v791
      %802 = vst [vmem:[#allocation2 + $0x30] sm:$0xff] %v792
      %803 = vst [vmem:[#allocation2 + $0x38] sm:$0xff] %v793
      %804 = vst [vmem:[#allocation2 + $0x40] sm:$0xff] %v794
      %805 = vst [vmem:[#allocation2 + $0x48] sm:$0xff] %v795
      %v806 = vld [vmem:[%s208 + $0x4] sm:$0xe]
      %v807 = vld [vmem:[%s208 + $0x8] sm:$0xf]
      %v808 = vld [vmem:[%s208 + $0xc] sm:$0xf]
      %v809 = vld [vmem:[%s208 + $0x10] sm:$0xf]
      %v810 = vld [vmem:[%s208 + $0x14] sm:$0xf]
      %v811 = vld [vmem:[%s208 + $0x18] sm:$0xf]
      %v812 = vld [vmem:[%s208 + $0x1c] sm:$0xf]
      %v813 = vld [vmem:[%s208 + $0x20] sm:$0xf]
      %v814 = vld [vmem:[%s208 + $0x24] sm:$0xf]
      %v815 = vld [vmem:[%s208 + $0x28] sm:$0xf]
      %v816 = vld [vmem:[%s208 + $0x2c] sm:$0x1]
      %v817 = vld [vmem:[#allocation2] sm:$0xff]
      %v818 = vld [vmem:[#allocation2 + $0x8] sm:$0xff]
      %v819 = vld [vmem:[#allocation2 + $0x10] sm:$0xff]
      %v820 = vld [vmem:[#allocation2 + $0x18] sm:$0xff]
      %v821 = vld [vmem:[#allocation2 + $0x20] sm:$0xff]
      %v822 = vld [vmem:[#allocation2 + $0x28] sm:$0xff]
      %v823 = vld [vmem:[#allocation2 + $0x30] sm:$0xff]
      %v824 = vld [vmem:[#allocation2 + $0x38] sm:$0xff]
      %v825 = vld [vmem:[#allocation2 + $0x40] sm:$0xff]
      %v826 = vld [vmem:[#allocation2 + $0x48] sm:$0xff]
      %s827 = scalar_lea.vmem %s212, 192
      %v828 = vld [vmem:[%s827] sm:$0xf]
      %v829 = vld [vmem:[%s827 + $0x4] sm:$0xf]
      %v830 = vld [vmem:[%s827 + $0x8] sm:$0xf]
      %v831 = vld [vmem:[%s827 + $0xc] sm:$0xf]
      %v832 = vld [vmem:[%s827 + $0x10] sm:$0xf]
      %v833 = vld [vmem:[%s827 + $0x14] sm:$0xf]
      %v834 = vld [vmem:[%s827 + $0x18] sm:$0xf]
      %v835 = vld [vmem:[%s827 + $0x1c] sm:$0xf]
      %v836 = vld [vmem:[%s827 + $0x20] sm:$0xf]
      %v837 = vld [vmem:[%s827 + $0x24] sm:$0xf]
      %v838 = vld [vmem:[%s827 + $0x28] sm:$0xf]
      %v839 = vld [vmem:[%s827 + $0x2c] sm:$0xf]
      %v840 = vld [vmem:[%s827 + $0x30] sm:$0xf]
      %v841 = vld [vmem:[%s827 + $0x34] sm:$0xf]
      %v842 = vld [vmem:[%s827 + $0x38] sm:$0xf]
      %v843 = vld [vmem:[%s827 + $0x3c] sm:$0xf]
      %v855 = vunpack.c.l.b16 %v806
      %v856 = vunpack.c.l.b16 %v807
      %v857 = vunpack.c.l.b16 %v808
      %v858 = vunpack.c.l.b16 %v809
      %v859 = vunpack.c.l.b16 %v810
      %v860 = vunpack.c.l.b16 %v811
      %v861 = vunpack.c.l.b16 %v812
      %v862 = vunpack.c.l.b16 %v813
      %v863 = vunpack.c.l.b16 %v814
      %v864 = vunpack.c.l.b16 %v815
      %v865 = vunpack.c.l.b16 %v816
      %v866 = vpack.c.b16 %v856, %v855
      %v867 = vpack.c.b16 %v858, %v857
      %v868 = vpack.c.b16 %v860, %v859
      %v869 = vpack.c.b16 %v862, %v861
      %v870 = vpack.c.b16 %v864, %v863
      %v871 = vpack.c.b16 %v865, %v865
      %v872 = vrot.slane %v866, 1
      %v873 = vrot.slane %v867, 1
      %v874 = vsel %vm687, %v872, %v873
      %v875 = vrot.slane %v868, 1
      %v876 = vsel %vm687, %v873, %v875
      %v877 = vrot.slane %v869, 1
      %v878 = vsel %vm687, %v875, %v877
      %v879 = vrot.slane %v870, 1
      %v880 = vsel %vm687, %v877, %v879
      %v881 = vrot.slane %v871, 1
      %v882 = vsel %vm687, %v879, %v881
      %v904 = vunpack.c.l.b16 %v828
      %v905 = vunpack.c.l.b16 %v829
      %v906 = vunpack.c.l.b16 %v830
      %v907 = vunpack.c.l.b16 %v831
      %v908 = vunpack.c.l.b16 %v832
      %v909 = vunpack.c.l.b16 %v833
      %v910 = vunpack.c.l.b16 %v834
      %v911 = vunpack.c.l.b16 %v835
      %v912 = vunpack.c.l.b16 %v836
      %v913 = vunpack.c.l.b16 %v837
      %v914 = vunpack.c.l.b16 %v838
      %v915 = vunpack.c.l.b16 %v839
      %v916 = vunpack.c.l.b16 %v840
      %v917 = vunpack.c.l.b16 %v841
      %v918 = vunpack.c.l.b16 %v842
      %v919 = vunpack.c.l.b16 %v843
      %v920 = vpack.c.b16 %v905, %v904
      %v921 = vpack.c.b16 %v907, %v906
      %v922 = vpack.c.b16 %v909, %v908
      %v923 = vpack.c.b16 %v911, %v910
      %v924 = vpack.c.b16 %v913, %v912
      %v925 = vpack.c.b16 %v915, %v914
      %v926 = vpack.c.b16 %v917, %v916
      %v927 = vpack.c.b16 %v919, %v918
      %936 = vmatpush.bf16.msra.mxu0 %v927
      %937 = vmatpush.bf16.msra.mxu0 %v926
      %938 = vmatpush.bf16.msra.mxu0 %v925
      %939 = vmatpush.bf16.msra.mxu0 %v924
      %940 = vmatpush.bf16.msra.mxu0 %v923
      %941 = vmatpush.bf16.msra.mxu0 %v922
      %942 = vmatpush.bf16.msra.mxu0 %v921
      %943 = vmatpush.bf16.msra.mxu0 %v920
      %944 = vmatmul.bf16.gmra.mxu0 %v874
      %v945 = vpop.f32.mrf.mxu0
      %v946 = vadd.f32 0.0, %v945
      %v947 = vpop.f32.mrf.mxu0
      %v948 = vadd.f32 0.0, %v947
      %949 = vmatmul.bf16.gmra.mxu0 %v876
      %v950 = vpop.f32.mrf.mxu0
      %v951 = vadd.f32 0.0, %v950
      %v952 = vpop.f32.mrf.mxu0
      %v953 = vadd.f32 0.0, %v952
      %954 = vmatmul.bf16.gmra.mxu0 %v878
      %v955 = vpop.f32.mrf.mxu0
      %v956 = vadd.f32 0.0, %v955
      %v957 = vpop.f32.mrf.mxu0
      %v958 = vadd.f32 0.0, %v957
      %959 = vmatmul.bf16.gmra.mxu0 %v880
      %v960 = vpop.f32.mrf.mxu0
      %v961 = vadd.f32 0.0, %v960
      %v962 = vpop.f32.mrf.mxu0
      %v963 = vadd.f32 0.0, %v962
      %964 = vmatmul.bf16.gmra.mxu0 %v882
      %v965 = vpop.f32.mrf.mxu0
      %v966 = vadd.f32 0.0, %v965
      %v967 = vpop.f32.mrf.mxu0
      %v968 = vadd.f32 0.0, %v967
      %969 = vdwg.mxu0
      %v970 = vadd.f32 %v817, %v946
      %v971 = vadd.f32 %v818, %v948
      %v972 = vadd.f32 %v819, %v951
      %v973 = vadd.f32 %v820, %v953
      %v974 = vadd.f32 %v821, %v956
      %v975 = vadd.f32 %v822, %v958
      %v976 = vadd.f32 %v823, %v961
      %v977 = vadd.f32 %v824, %v963
      %v978 = vadd.f32 %v825, %v966
      %v979 = vadd.f32 %v826, %v968
      %980 = vst [vmem:[#allocation2] sm:$0xff] %v970
      %981 = vst [vmem:[#allocation2 + $0x8] sm:$0xff] %v971
      %982 = vst [vmem:[#allocation2 + $0x10] sm:$0xff] %v972
      %983 = vst [vmem:[#allocation2 + $0x18] sm:$0xff] %v973
      %984 = vst [vmem:[#allocation2 + $0x20] sm:$0xff] %v974
      %985 = vst [vmem:[#allocation2 + $0x28] sm:$0xff] %v975
      %986 = vst [vmem:[#allocation2 + $0x30] sm:$0xff] %v976
      %987 = vst [vmem:[#allocation2 + $0x38] sm:$0xff] %v977
      %988 = vst [vmem:[#allocation2 + $0x40] sm:$0xff] %v978
      %989 = vst [vmem:[#allocation2 + $0x48] sm:$0xff] %v979
      %v990 = vld [vmem:[%s208 + $0x4] sm:$0xe]
      %v991 = vld [vmem:[%s208 + $0x8] sm:$0xf]
      %v992 = vld [vmem:[%s208 + $0xc] sm:$0xf]
      %v993 = vld [vmem:[%s208 + $0x10] sm:$0xf]
      %v994 = vld [vmem:[%s208 + $0x14] sm:$0xf]
      %v995 = vld [vmem:[%s208 + $0x18] sm:$0xf]
      %v996 = vld [vmem:[%s208 + $0x1c] sm:$0xf]
      %v997 = vld [vmem:[%s208 + $0x20] sm:$0xf]
      %v998 = vld [vmem:[%s208 + $0x24] sm:$0xf]
      %v999 = vld [vmem:[%s208 + $0x28] sm:$0xf]
      %v1000 = vld [vmem:[%s208 + $0x2c] sm:$0x3]
      %v1001 = vld [vmem:[#allocation2] sm:$0xff]
      %v1002 = vld [vmem:[#allocation2 + $0x8] sm:$0xff]
      %v1003 = vld [vmem:[#allocation2 + $0x10] sm:$0xff]
      %v1004 = vld [vmem:[#allocation2 + $0x18] sm:$0xff]
      %v1005 = vld [vmem:[#allocation2 + $0x20] sm:$0xff]
      %v1006 = vld [vmem:[#allocation2 + $0x28] sm:$0xff]
      %v1007 = vld [vmem:[#allocation2 + $0x30] sm:$0xff]
      %v1008 = vld [vmem:[#allocation2 + $0x38] sm:$0xff]
      %v1009 = vld [vmem:[#allocation2 + $0x40] sm:$0xff]
      %v1010 = vld [vmem:[#allocation2 + $0x48] sm:$0xff]
      %s1011 = scalar_lea.vmem %s212, 256
      %v1012 = vld [vmem:[%s1011] sm:$0xf]
      %v1013 = vld [vmem:[%s1011 + $0x4] sm:$0xf]
      %v1014 = vld [vmem:[%s1011 + $0x8] sm:$0xf]
      %v1015 = vld [vmem:[%s1011 + $0xc] sm:$0xf]
      %v1016 = vld [vmem:[%s1011 + $0x10] sm:$0xf]
      %v1017 = vld [vmem:[%s1011 + $0x14] sm:$0xf]
      %v1018 = vld [vmem:[%s1011 + $0x18] sm:$0xf]
      %v1019 = vld [vmem:[%s1011 + $0x1c] sm:$0xf]
      %v1020 = vld [vmem:[%s1011 + $0x20] sm:$0xf]
      %v1021 = vld [vmem:[%s1011 + $0x24] sm:$0xf]
      %v1022 = vld [vmem:[%s1011 + $0x28] sm:$0xf]
      %v1023 = vld [vmem:[%s1011 + $0x2c] sm:$0xf]
      %v1024 = vld [vmem:[%s1011 + $0x30] sm:$0xf]
      %v1025 = vld [vmem:[%s1011 + $0x34] sm:$0xf]
      %v1026 = vld [vmem:[%s1011 + $0x38] sm:$0xf]
      %v1027 = vld [vmem:[%s1011 + $0x3c] sm:$0xf]
      %v1039 = vunpack.c.l.b16 %v990
      %v1040 = vunpack.c.l.b16 %v991
      %v1041 = vunpack.c.l.b16 %v992
      %v1042 = vunpack.c.l.b16 %v993
      %v1043 = vunpack.c.l.b16 %v994
      %v1044 = vunpack.c.l.b16 %v995
      %v1045 = vunpack.c.l.b16 %v996
      %v1046 = vunpack.c.l.b16 %v997
      %v1047 = vunpack.c.l.b16 %v998
      %v1048 = vunpack.c.l.b16 %v999
      %v1049 = vunpack.c.l.b16 %v1000
      %v1050 = vpack.c.b16 %v1040, %v1039
      %v1051 = vpack.c.b16 %v1042, %v1041
      %v1052 = vpack.c.b16 %v1044, %v1043
      %v1053 = vpack.c.b16 %v1046, %v1045
      %v1054 = vpack.c.b16 %v1048, %v1047
      %v1055 = vpack.c.b16 %v1049, %v1049
      %vm1056 = vsmask.f32 6400
      %v1058 = vshrl.u32 %v1050, 16
      %v1060 = vrot.slane %v1058, 1
      %v1061 = vshll.u32 %v1050, 16
      %v1063 = vrot.slane %v1061, 2
      %v1064 = vor.u32 %v1060, %v1063
      %v1066 = vshrl.u32 %v1051, 16
      %v1068 = vrot.slane %v1066, 1
      %v1069 = vshll.u32 %v1051, 16
      %v1071 = vrot.slane %v1069, 2
      %v1072 = vor.u32 %v1068, %v1071
      %v1073 = vsel %vm1056, %v1064, %v1072
      %v1075 = vshrl.u32 %v1052, 16
      %v1077 = vrot.slane %v1075, 1
      %v1078 = vshll.u32 %v1052, 16
      %v1080 = vrot.slane %v1078, 2
      %v1081 = vor.u32 %v1077, %v1080
      %v1082 = vsel %vm1056, %v1072, %v1081
      %v1084 = vshrl.u32 %v1053, 16
      %v1086 = vrot.slane %v1084, 1
      %v1087 = vshll.u32 %v1053, 16
      %v1089 = vrot.slane %v1087, 2
      %v1090 = vor.u32 %v1086, %v1089
      %v1091 = vsel %vm1056, %v1081, %v1090
      %v1093 = vshrl.u32 %v1054, 16
      %v1095 = vrot.slane %v1093, 1
      %v1096 = vshll.u32 %v1054, 16
      %v1098 = vrot.slane %v1096, 2
      %v1099 = vor.u32 %v1095, %v1098
      %v1100 = vsel %vm1056, %v1090, %v1099
      %v1102 = vshrl.u32 %v1055, 16
      %v1104 = vrot.slane %v1102, 1
      %v1105 = vshll.u32 %v1055, 16
      %v1107 = vrot.slane %v1105, 2
      %v1108 = vor.u32 %v1104, %v1107
      %v1109 = vsel %vm1056, %v1099, %v1108
      %v1131 = vunpack.c.l.b16 %v1012
      %v1132 = vunpack.c.l.b16 %v1013
      %v1133 = vunpack.c.l.b16 %v1014
      %v1134 = vunpack.c.l.b16 %v1015
      %v1135 = vunpack.c.l.b16 %v1016
      %v1136 = vunpack.c.l.b16 %v1017
      %v1137 = vunpack.c.l.b16 %v1018
      %v1138 = vunpack.c.l.b16 %v1019
      %v1139 = vunpack.c.l.b16 %v1020
      %v1140 = vunpack.c.l.b16 %v1021
      %v1141 = vunpack.c.l.b16 %v1022
      %v1142 = vunpack.c.l.b16 %v1023
      %v1143 = vunpack.c.l.b16 %v1024
      %v1144 = vunpack.c.l.b16 %v1025
      %v1145 = vunpack.c.l.b16 %v1026
      %v1146 = vunpack.c.l.b16 %v1027
      %v1147 = vpack.c.b16 %v1132, %v1131
      %v1148 = vpack.c.b16 %v1134, %v1133
      %v1149 = vpack.c.b16 %v1136, %v1135
      %v1150 = vpack.c.b16 %v1138, %v1137
      %v1151 = vpack.c.b16 %v1140, %v1139
      %v1152 = vpack.c.b16 %v1142, %v1141
      %v1153 = vpack.c.b16 %v1144, %v1143
      %v1154 = vpack.c.b16 %v1146, %v1145
      %1163 = vmatpush.bf16.msra.mxu0 %v1154
      %1164 = vmatpush.bf16.msra.mxu0 %v1153
      %1165 = vmatpush.bf16.msra.mxu0 %v1152
      %1166 = vmatpush.bf16.msra.mxu0 %v1151
      %1167 = vmatpush.bf16.msra.mxu0 %v1150
      %1168 = vmatpush.bf16.msra.mxu0 %v1149
      %1169 = vmatpush.bf16.msra.mxu0 %v1148
      %1170 = vmatpush.bf16.msra.mxu0 %v1147
      %1171 = vmatmul.bf16.gmra.mxu0 %v1073
      %v1172 = vpop.f32.mrf.mxu0
      %v1173 = vadd.f32 0.0, %v1172
      %v1174 = vpop.f32.mrf.mxu0
      %v1175 = vadd.f32 0.0, %v1174
      %1176 = vmatmul.bf16.gmra.mxu0 %v1082
      %v1177 = vpop.f32.mrf.mxu0
      %v1178 = vadd.f32 0.0, %v1177
      %v1179 = vpop.f32.mrf.mxu0
      %v1180 = vadd.f32 0.0, %v1179
      %1181 = vmatmul.bf16.gmra.mxu0 %v1091
      %v1182 = vpop.f32.mrf.mxu0
      %v1183 = vadd.f32 0.0, %v1182
      %v1184 = vpop.f32.mrf.mxu0
      %v1185 = vadd.f32 0.0, %v1184
      %1186 = vmatmul.bf16.gmra.mxu0 %v1100
      %v1187 = vpop.f32.mrf.mxu0
      %v1188 = vadd.f32 0.0, %v1187
      %v1189 = vpop.f32.mrf.mxu0
      %v1190 = vadd.f32 0.0, %v1189
      %1191 = vmatmul.bf16.gmra.mxu0 %v1109
      %v1192 = vpop.f32.mrf.mxu0
      %v1193 = vadd.f32 0.0, %v1192
      %v1194 = vpop.f32.mrf.mxu0
      %v1195 = vadd.f32 0.0, %v1194
      %1196 = vdwg.mxu0
      %v1197 = vadd.f32 %v1001, %v1173
      %v1198 = vadd.f32 %v1002, %v1175
      %v1199 = vadd.f32 %v1003, %v1178
      %v1200 = vadd.f32 %v1004, %v1180
      %v1201 = vadd.f32 %v1005, %v1183
      %v1202 = vadd.f32 %v1006, %v1185
      %v1203 = vadd.f32 %v1007, %v1188
      %v1204 = vadd.f32 %v1008, %v1190
      %v1205 = vadd.f32 %v1009, %v1193
      %v1206 = vadd.f32 %v1010, %v1195
      %1207 = vst [vmem:[#allocation2] sm:$0xff] %v1197
      %1208 = vst [vmem:[#allocation2 + $0x8] sm:$0xff] %v1198
      %1209 = vst [vmem:[#allocation2 + $0x10] sm:$0xff] %v1199
      %1210 = vst [vmem:[#allocation2 + $0x18] sm:$0xff] %v1200
      %1211 = vst [vmem:[#allocation2 + $0x20] sm:$0xff] %v1201
      %1212 = vst [vmem:[#allocation2 + $0x28] sm:$0xff] %v1202
      %1213 = vst [vmem:[#allocation2 + $0x30] sm:$0xff] %v1203
      %1214 = vst [vmem:[#allocation2 + $0x38] sm:$0xff] %v1204
      %1215 = vst [vmem:[#allocation2 + $0x40] sm:$0xff] %v1205
      %1216 = vst [vmem:[#allocation2 + $0x48] sm:$0xff] %v1206
      %v1217 = vld [vmem:[%s208 + $0x4] sm:$0xc]
      %v1218 = vld [vmem:[%s208 + $0x8] sm:$0xf]
      %v1219 = vld [vmem:[%s208 + $0xc] sm:$0xf]
      %v1220 = vld [vmem:[%s208 + $0x10] sm:$0xf]
      %v1221 = vld [vmem:[%s208 + $0x14] sm:$0xf]
      %v1222 = vld [vmem:[%s208 + $0x18] sm:$0xf]
      %v1223 = vld [vmem:[%s208 + $0x1c] sm:$0xf]
      %v1224 = vld [vmem:[%s208 + $0x20] sm:$0xf]
      %v1225 = vld [vmem:[%s208 + $0x24] sm:$0xf]
      %v1226 = vld [vmem:[%s208 + $0x28] sm:$0xf]
      %v1227 = vld [vmem:[%s208 + $0x2c] sm:$0x3]
      %v1228 = vld [vmem:[#allocation2] sm:$0xff]
      %v1229 = vld [vmem:[#allocation2 + $0x8] sm:$0xff]
      %v1230 = vld [vmem:[#allocation2 + $0x10] sm:$0xff]
      %v1231 = vld [vmem:[#allocation2 + $0x18] sm:$0xff]
      %v1232 = vld [vmem:[#allocation2 + $0x20] sm:$0xff]
      %v1233 = vld [vmem:[#allocation2 + $0x28] sm:$0xff]
      %v1234 = vld [vmem:[#allocation2 + $0x30] sm:$0xff]
      %v1235 = vld [vmem:[#allocation2 + $0x38] sm:$0xff]
      %v1236 = vld [vmem:[#allocation2 + $0x40] sm:$0xff]
      %v1237 = vld [vmem:[#allocation2 + $0x48] sm:$0xff]
      %s1238 = scalar_lea.vmem %s212, 320
      %v1239 = vld [vmem:[%s1238] sm:$0xf]
      %v1240 = vld [vmem:[%s1238 + $0x4] sm:$0xf]
      %v1241 = vld [vmem:[%s1238 + $0x8] sm:$0xf]
      %v1242 = vld [vmem:[%s1238 + $0xc] sm:$0xf]
      %v1243 = vld [vmem:[%s1238 + $0x10] sm:$0xf]
      %v1244 = vld [vmem:[%s1238 + $0x14] sm:$0xf]
      %v1245 = vld [vmem:[%s1238 + $0x18] sm:$0xf]
      %v1246 = vld [vmem:[%s1238 + $0x1c] sm:$0xf]
      %v1247 = vld [vmem:[%s1238 + $0x20] sm:$0xf]
      %v1248 = vld [vmem:[%s1238 + $0x24] sm:$0xf]
      %v1249 = vld [vmem:[%s1238 + $0x28] sm:$0xf]
      %v1250 = vld [vmem:[%s1238 + $0x2c] sm:$0xf]
      %v1251 = vld [vmem:[%s1238 + $0x30] sm:$0xf]
      %v1252 = vld [vmem:[%s1238 + $0x34] sm:$0xf]
      %v1253 = vld [vmem:[%s1238 + $0x38] sm:$0xf]
      %v1254 = vld [vmem:[%s1238 + $0x3c] sm:$0xf]
      %v1266 = vunpack.c.l.b16 %v1217
      %v1267 = vunpack.c.l.b16 %v1218
      %v1268 = vunpack.c.l.b16 %v1219
      %v1269 = vunpack.c.l.b16 %v1220
      %v1270 = vunpack.c.l.b16 %v1221
      %v1271 = vunpack.c.l.b16 %v1222
      %v1272 = vunpack.c.l.b16 %v1223
      %v1273 = vunpack.c.l.b16 %v1224
      %v1274 = vunpack.c.l.b16 %v1225
      %v1275 = vunpack.c.l.b16 %v1226
      %v1276 = vunpack.c.l.b16 %v1227
      %v1277 = vpack.c.b16 %v1267, %v1266
      %v1278 = vpack.c.b16 %v1269, %v1268
      %v1279 = vpack.c.b16 %v1271, %v1270
      %v1280 = vpack.c.b16 %v1273, %v1272
      %v1281 = vpack.c.b16 %v1275, %v1274
      %v1282 = vpack.c.b16 %v1276, %v1276
      %vm1283 = vcmask 1045504
      %v1284 = vrot.slane %v1277, 2
      %v1285 = vrot.slane %v1278, 2
      %v1286 = vsel %vm1283, %v1284, %v1285
      %v1287 = vrot.slane %v1279, 2
      %v1288 = vsel %vm1283, %v1285, %v1287
      %v1289 = vrot.slane %v1280, 2
      %v1290 = vsel %vm1283, %v1287, %v1289
      %v1291 = vrot.slane %v1281, 2
      %v1292 = vsel %vm1283, %v1289, %v1291
      %v1293 = vrot.slane %v1282, 2
      %v1294 = vsel %vm1283, %v1291, %v1293
      %v1316 = vunpack.c.l.b16 %v1239
      %v1317 = vunpack.c.l.b16 %v1240
      %v1318 = vunpack.c.l.b16 %v1241
      %v1319 = vunpack.c.l.b16 %v1242
      %v1320 = vunpack.c.l.b16 %v1243
      %v1321 = vunpack.c.l.b16 %v1244
      %v1322 = vunpack.c.l.b16 %v1245
      %v1323 = vunpack.c.l.b16 %v1246
      %v1324 = vunpack.c.l.b16 %v1247
      %v1325 = vunpack.c.l.b16 %v1248
      %v1326 = vunpack.c.l.b16 %v1249
      %v1327 = vunpack.c.l.b16 %v1250
      %v1328 = vunpack.c.l.b16 %v1251
      %v1329 = vunpack.c.l.b16 %v1252
      %v1330 = vunpack.c.l.b16 %v1253
      %v1331 = vunpack.c.l.b16 %v1254
      %v1332 = vpack.c.b16 %v1317, %v1316
      %v1333 = vpack.c.b16 %v1319, %v1318
      %v1334 = vpack.c.b16 %v1321, %v1320
      %v1335 = vpack.c.b16 %v1323, %v1322
      %v1336 = vpack.c.b16 %v1325, %v1324
      %v1337 = vpack.c.b16 %v1327, %v1326
      %v1338 = vpack.c.b16 %v1329, %v1328
      %v1339 = vpack.c.b16 %v1331, %v1330
      %1348 = vmatpush.bf16.msra.mxu0 %v1339
      %1349 = vmatpush.bf16.msra.mxu0 %v1338
      %1350 = vmatpush.bf16.msra.mxu0 %v1337
      %1351 = vmatpush.bf16.msra.mxu0 %v1336
      %1352 = vmatpush.bf16.msra.mxu0 %v1335
      %1353 = vmatpush.bf16.msra.mxu0 %v1334
      %1354 = vmatpush.bf16.msra.mxu0 %v1333
      %1355 = vmatpush.bf16.msra.mxu0 %v1332
      %1356 = vmatmul.bf16.gmra.mxu0 %v1286
      %v1357 = vpop.f32.mrf.mxu0
      %v1358 = vadd.f32 0.0, %v1357
      %v1359 = vpop.f32.mrf.mxu0
      %v1360 = vadd.f32 0.0, %v1359
      %1361 = vmatmul.bf16.gmra.mxu0 %v1288
      %v1362 = vpop.f32.mrf.mxu0
      %v1363 = vadd.f32 0.0, %v1362
      %v1364 = vpop.f32.mrf.mxu0
      %v1365 = vadd.f32 0.0, %v1364
      %1366 = vmatmul.bf16.gmra.mxu0 %v1290
      %v1367 = vpop.f32.mrf.mxu0
      %v1368 = vadd.f32 0.0, %v1367
      %v1369 = vpop.f32.mrf.mxu0
      %v1370 = vadd.f32 0.0, %v1369
      %1371 = vmatmul.bf16.gmra.mxu0 %v1292
      %v1372 = vpop.f32.mrf.mxu0
      %v1373 = vadd.f32 0.0, %v1372
      %v1374 = vpop.f32.mrf.mxu0
      %v1375 = vadd.f32 0.0, %v1374
      %1376 = vmatmul.bf16.gmra.mxu0 %v1294
      %v1377 = vpop.f32.mrf.mxu0
      %v1378 = vadd.f32 0.0, %v1377
      %v1379 = vpop.f32.mrf.mxu0
      %v1380 = vadd.f32 0.0, %v1379
      %1381 = vdwg.mxu0
      %v1382 = vadd.f32 %v1228, %v1358
      %v1383 = vadd.f32 %v1229, %v1360
      %v1384 = vadd.f32 %v1230, %v1363
      %v1385 = vadd.f32 %v1231, %v1365
      %v1386 = vadd.f32 %v1232, %v1368
      %v1387 = vadd.f32 %v1233, %v1370
      %v1388 = vadd.f32 %v1234, %v1373
      %v1389 = vadd.f32 %v1235, %v1375
      %v1390 = vadd.f32 %v1236, %v1378
      %v1391 = vadd.f32 %v1237, %v1380
      %1392 = vst [vmem:[#allocation2] sm:$0xff] %v1382
      %1393 = vst [vmem:[#allocation2 + $0x8] sm:$0xff] %v1383
      %1394 = vst [vmem:[#allocation2 + $0x10] sm:$0xff] %v1384
      %1395 = vst [vmem:[#allocation2 + $0x18] sm:$0xff] %v1385
      %1396 = vst [vmem:[#allocation2 + $0x20] sm:$0xff] %v1386
      %1397 = vst [vmem:[#allocation2 + $0x28] sm:$0xff] %v1387
      %1398 = vst [vmem:[#allocation2 + $0x30] sm:$0xff] %v1388
      %1399 = vst [vmem:[#allocation2 + $0x38] sm:$0xff] %v1389
      %1400 = vst [vmem:[#allocation2 + $0x40] sm:$0xff] %v1390
      %1401 = vst [vmem:[#allocation2 + $0x48] sm:$0xff] %v1391
      %v1402 = vld [vmem:[%s208 + $0x8] sm:$0xc]
      %v1403 = vld [vmem:[%s208 + $0xc] sm:$0xf]
      %v1404 = vld [vmem:[%s208 + $0x10] sm:$0xf]
      %v1405 = vld [vmem:[%s208 + $0x14] sm:$0xf]
      %v1406 = vld [vmem:[%s208 + $0x18] sm:$0xf]
      %v1407 = vld [vmem:[%s208 + $0x1c] sm:$0xf]
      %v1408 = vld [vmem:[%s208 + $0x20] sm:$0xf]
      %v1409 = vld [vmem:[%s208 + $0x24] sm:$0xf]
      %v1410 = vld [vmem:[%s208 + $0x28] sm:$0xf]
      %v1411 = vld [vmem:[%s208 + $0x2c] sm:$0xf]
      %v1412 = vld [vmem:[%s208 + $0x30] sm:$0x3]
      %v1413 = vld [vmem:[#allocation2] sm:$0xff]
      %v1414 = vld [vmem:[#allocation2 + $0x8] sm:$0xff]
      %v1415 = vld [vmem:[#allocation2 + $0x10] sm:$0xff]
      %v1416 = vld [vmem:[#allocation2 + $0x18] sm:$0xff]
      %v1417 = vld [vmem:[#allocation2 + $0x20] sm:$0xff]
      %v1418 = vld [vmem:[#allocation2 + $0x28] sm:$0xff]
      %v1419 = vld [vmem:[#allocation2 + $0x30] sm:$0xff]
      %v1420 = vld [vmem:[#allocation2 + $0x38] sm:$0xff]
      %v1421 = vld [vmem:[#allocation2 + $0x40] sm:$0xff]
      %v1422 = vld [vmem:[#allocation2 + $0x48] sm:$0xff]
      %s1423 = scalar_lea.vmem %s212, 384
      %v1424 = vld [vmem:[%s1423] sm:$0xf]
      %v1425 = vld [vmem:[%s1423 + $0x4] sm:$0xf]
      %v1426 = vld [vmem:[%s1423 + $0x8] sm:$0xf]
      %v1427 = vld [vmem:[%s1423 + $0xc] sm:$0xf]
      %v1428 = vld [vmem:[%s1423 + $0x10] sm:$0xf]
      %v1429 = vld [vmem:[%s1423 + $0x14] sm:$0xf]
      %v1430 = vld [vmem:[%s1423 + $0x18] sm:$0xf]
      %v1431 = vld [vmem:[%s1423 + $0x1c] sm:$0xf]
      %v1432 = vld [vmem:[%s1423 + $0x20] sm:$0xf]
      %v1433 = vld [vmem:[%s1423 + $0x24] sm:$0xf]
      %v1434 = vld [vmem:[%s1423 + $0x28] sm:$0xf]
      %v1435 = vld [vmem:[%s1423 + $0x2c] sm:$0xf]
      %v1436 = vld [vmem:[%s1423 + $0x30] sm:$0xf]
      %v1437 = vld [vmem:[%s1423 + $0x34] sm:$0xf]
      %v1438 = vld [vmem:[%s1423 + $0x38] sm:$0xf]
      %v1439 = vld [vmem:[%s1423 + $0x3c] sm:$0xf]
      %v1451 = vunpack.c.l.b16 %v1402
      %v1452 = vunpack.c.l.b16 %v1403
      %v1453 = vunpack.c.l.b16 %v1404
      %v1454 = vunpack.c.l.b16 %v1405
      %v1455 = vunpack.c.l.b16 %v1406
      %v1456 = vunpack.c.l.b16 %v1407
      %v1457 = vunpack.c.l.b16 %v1408
      %v1458 = vunpack.c.l.b16 %v1409
      %v1459 = vunpack.c.l.b16 %v1410
      %v1460 = vunpack.c.l.b16 %v1411
      %v1461 = vunpack.c.l.b16 %v1412
      %v1462 = vpack.c.b16 %v1452, %v1451
      %v1463 = vpack.c.b16 %v1454, %v1453
      %v1464 = vpack.c.b16 %v1456, %v1455
      %v1465 = vpack.c.b16 %v1458, %v1457
      %v1466 = vpack.c.b16 %v1460, %v1459
      %v1467 = vpack.c.b16 %v1461, %v1461
      %v1468 = vrot.slane %v1462, 2
      %v1469 = vrot.slane %v1463, 2
      %v1470 = vsel %vm1283, %v1468, %v1469
      %v1471 = vrot.slane %v1464, 2
      %v1472 = vsel %vm1283, %v1469, %v1471
      %v1473 = vrot.slane %v1465, 2
      %v1474 = vsel %vm1283, %v1471, %v1473
      %v1475 = vrot.slane %v1466, 2
      %v1476 = vsel %vm1283, %v1473, %v1475
      %v1477 = vrot.slane %v1467, 2
      %v1478 = vsel %vm1283, %v1475, %v1477
      %v1500 = vunpack.c.l.b16 %v1424
      %v1501 = vunpack.c.l.b16 %v1425
      %v1502 = vunpack.c.l.b16 %v1426
      %v1503 = vunpack.c.l.b16 %v1427
      %v1504 = vunpack.c.l.b16 %v1428
      %v1505 = vunpack.c.l.b16 %v1429
      %v1506 = vunpack.c.l.b16 %v1430
      %v1507 = vunpack.c.l.b16 %v1431
      %v1508 = vunpack.c.l.b16 %v1432
      %v1509 = vunpack.c.l.b16 %v1433
      %v1510 = vunpack.c.l.b16 %v1434
      %v1511 = vunpack.c.l.b16 %v1435
      %v1512 = vunpack.c.l.b16 %v1436
      %v1513 = vunpack.c.l.b16 %v1437
      %v1514 = vunpack.c.l.b16 %v1438
      %v1515 = vunpack.c.l.b16 %v1439
      %v1516 = vpack.c.b16 %v1501, %v1500
      %v1517 = vpack.c.b16 %v1503, %v1502
      %v1518 = vpack.c.b16 %v1505, %v1504
      %v1519 = vpack.c.b16 %v1507, %v1506
      %v1520 = vpack.c.b16 %v1509, %v1508
      %v1521 = vpack.c.b16 %v1511, %v1510
      %v1522 = vpack.c.b16 %v1513, %v1512
      %v1523 = vpack.c.b16 %v1515, %v1514
      %1532 = vmatpush.bf16.msra.mxu0 %v1523
      %1533 = vmatpush.bf16.msra.mxu0 %v1522
      %1534 = vmatpush.bf16.msra.mxu0 %v1521
      %1535 = vmatpush.bf16.msra.mxu0 %v1520
      %1536 = vmatpush.bf16.msra.mxu0 %v1519
      %1537 = vmatpush.bf16.msra.mxu0 %v1518
      %1538 = vmatpush.bf16.msra.mxu0 %v1517
      %1539 = vmatpush.bf16.msra.mxu0 %v1516
      %1540 = vmatmul.bf16.gmra.mxu0 %v1470
      %v1541 = vpop.f32.mrf.mxu0
      %v1542 = vadd.f32 0.0, %v1541
      %v1543 = vpop.f32.mrf.mxu0
      %v1544 = vadd.f32 0.0, %v1543
      %1545 = vmatmul.bf16.gmra.mxu0 %v1472
      %v1546 = vpop.f32.mrf.mxu0
      %v1547 = vadd.f32 0.0, %v1546
      %v1548 = vpop.f32.mrf.mxu0
      %v1549 = vadd.f32 0.0, %v1548
      %1550 = vmatmul.bf16.gmra.mxu0 %v1474
      %v1551 = vpop.f32.mrf.mxu0
      %v1552 = vadd.f32 0.0, %v1551
      %v1553 = vpop.f32.mrf.mxu0
      %v1554 = vadd.f32 0.0, %v1553
      %1555 = vmatmul.bf16.gmra.mxu0 %v1476
      %v1556 = vpop.f32.mrf.mxu0
      %v1557 = vadd.f32 0.0, %v1556
      %v1558 = vpop.f32.mrf.mxu0
      %v1559 = vadd.f32 0.0, %v1558
      %1560 = vmatmul.bf16.gmra.mxu0 %v1478
      %v1561 = vpop.f32.mrf.mxu0
      %v1562 = vadd.f32 0.0, %v1561
      %v1563 = vpop.f32.mrf.mxu0
      %v1564 = vadd.f32 0.0, %v1563
      %1565 = vdwg.mxu0
      %v1566 = vadd.f32 %v1413, %v1542
      %v1567 = vadd.f32 %v1414, %v1544
      %v1568 = vadd.f32 %v1415, %v1547
      %v1569 = vadd.f32 %v1416, %v1549
      %v1570 = vadd.f32 %v1417, %v1552
      %v1571 = vadd.f32 %v1418, %v1554
      %v1572 = vadd.f32 %v1419, %v1557
      %v1573 = vadd.f32 %v1420, %v1559
      %v1574 = vadd.f32 %v1421, %v1562
      %v1575 = vadd.f32 %v1422, %v1564
      %1576 = vst [vmem:[#allocation2] sm:$0xff] %v1566
      %1577 = vst [vmem:[#allocation2 + $0x8] sm:$0xff] %v1567
      %1578 = vst [vmem:[#allocation2 + $0x10] sm:$0xff] %v1568
      %1579 = vst [vmem:[#allocation2 + $0x18] sm:$0xff] %v1569
      %1580 = vst [vmem:[#allocation2 + $0x20] sm:$0xff] %v1570
      %1581 = vst [vmem:[#allocation2 + $0x28] sm:$0xff] %v1571
      %1582 = vst [vmem:[#allocation2 + $0x30] sm:$0xff] %v1572
      %1583 = vst [vmem:[#allocation2 + $0x38] sm:$0xff] %v1573
      %1584 = vst [vmem:[#allocation2 + $0x40] sm:$0xff] %v1574
      %1585 = vst [vmem:[#allocation2 + $0x48] sm:$0xff] %v1575
      %v1586 = vld [vmem:[%s208 + $0x8] sm:$0xc]
      %v1587 = vld [vmem:[%s208 + $0xc] sm:$0xf]
      %v1588 = vld [vmem:[%s208 + $0x10] sm:$0xf]
      %v1589 = vld [vmem:[%s208 + $0x14] sm:$0xf]
      %v1590 = vld [vmem:[%s208 + $0x18] sm:$0xf]
      %v1591 = vld [vmem:[%s208 + $0x1c] sm:$0xf]
      %v1592 = vld [vmem:[%s208 + $0x20] sm:$0xf]
      %v1593 = vld [vmem:[%s208 + $0x24] sm:$0xf]
      %v1594 = vld [vmem:[%s208 + $0x28] sm:$0xf]
      %v1595 = vld [vmem:[%s208 + $0x2c] sm:$0xf]
      %v1596 = vld [vmem:[%s208 + $0x30] sm:$0x7]
      %v1597 = vld [vmem:[#allocation2] sm:$0xff]
      %v1598 = vld [vmem:[#allocation2 + $0x8] sm:$0xff]
      %v1599 = vld [vmem:[#allocation2 + $0x10] sm:$0xff]
      %v1600 = vld [vmem:[#allocation2 + $0x18] sm:$0xff]
      %v1601 = vld [vmem:[#allocation2 + $0x20] sm:$0xff]
      %v1602 = vld [vmem:[#allocation2 + $0x28] sm:$0xff]
      %v1603 = vld [vmem:[#allocation2 + $0x30] sm:$0xff]
      %v1604 = vld [vmem:[#allocation2 + $0x38] sm:$0xff]
      %v1605 = vld [vmem:[#allocation2 + $0x40] sm:$0xff]
      %v1606 = vld [vmem:[#allocation2 + $0x48] sm:$0xff]
      %s1607 = scalar_lea.vmem %s212, 448
      %v1608 = vld [vmem:[%s1607] sm:$0xf]
      %v1609 = vld [vmem:[%s1607 + $0x4] sm:$0xf]
      %v1610 = vld [vmem:[%s1607 + $0x8] sm:$0xf]
      %v1611 = vld [vmem:[%s1607 + $0xc] sm:$0xf]
      %v1612 = vld [vmem:[%s1607 + $0x10] sm:$0xf]
      %v1613 = vld [vmem:[%s1607 + $0x14] sm:$0xf]
      %v1614 = vld [vmem:[%s1607 + $0x18] sm:$0xf]
      %v1615 = vld [vmem:[%s1607 + $0x1c] sm:$0xf]
      %v1616 = vld [vmem:[%s1607 + $0x20] sm:$0xf]
      %v1617 = vld [vmem:[%s1607 + $0x24] sm:$0xf]
      %v1618 = vld [vmem:[%s1607 + $0x28] sm:$0xf]
      %v1619 = vld [vmem:[%s1607 + $0x2c] sm:$0xf]
      %v1620 = vld [vmem:[%s1607 + $0x30] sm:$0xf]
      %v1621 = vld [vmem:[%s1607 + $0x34] sm:$0xf]
      %v1622 = vld [vmem:[%s1607 + $0x38] sm:$0xf]
      %v1623 = vld [vmem:[%s1607 + $0x3c] sm:$0xf]
      %v1635 = vunpack.c.l.b16 %v1586
      %v1636 = vunpack.c.l.b16 %v1587
      %v1637 = vunpack.c.l.b16 %v1588
      %v1638 = vunpack.c.l.b16 %v1589
      %v1639 = vunpack.c.l.b16 %v1590
      %v1640 = vunpack.c.l.b16 %v1591
      %v1641 = vunpack.c.l.b16 %v1592
      %v1642 = vunpack.c.l.b16 %v1593
      %v1643 = vunpack.c.l.b16 %v1594
      %v1644 = vunpack.c.l.b16 %v1595
      %v1645 = vunpack.c.l.b16 %v1596
      %v1646 = vpack.c.b16 %v1636, %v1635
      %v1647 = vpack.c.b16 %v1638, %v1637
      %v1648 = vpack.c.b16 %v1640, %v1639
      %v1649 = vpack.c.b16 %v1642, %v1641
      %v1650 = vpack.c.b16 %v1644, %v1643
      %v1651 = vpack.c.b16 %v1645, %v1645
      %vm1652 = vsmask.f32 5376
      %v1654 = vshrl.u32 %v1646, 16
      %v1656 = vrot.slane %v1654, 2
      %v1657 = vshll.u32 %v1646, 16
      %v1659 = vrot.slane %v1657, 3
      %v1660 = vor.u32 %v1656, %v1659
      %v1662 = vshrl.u32 %v1647, 16
      %v1664 = vrot.slane %v1662, 2
      %v1665 = vshll.u32 %v1647, 16
      %v1667 = vrot.slane %v1665, 3
      %v1668 = vor.u32 %v1664, %v1667
      %v1669 = vsel %vm1652, %v1660, %v1668
      %v1671 = vshrl.u32 %v1648, 16
      %v1673 = vrot.slane %v1671, 2
      %v1674 = vshll.u32 %v1648, 16
      %v1676 = vrot.slane %v1674, 3
      %v1677 = vor.u32 %v1673, %v1676
      %v1678 = vsel %vm1652, %v1668, %v1677
      %v1680 = vshrl.u32 %v1649, 16
      %v1682 = vrot.slane %v1680, 2
      %v1683 = vshll.u32 %v1649, 16
      %v1685 = vrot.slane %v1683, 3
      %v1686 = vor.u32 %v1682, %v1685
      %v1687 = vsel %vm1652, %v1677, %v1686
      %v1689 = vshrl.u32 %v1650, 16
      %v1691 = vrot.slane %v1689, 2
      %v1692 = vshll.u32 %v1650, 16
      %v1694 = vrot.slane %v1692, 3
      %v1695 = vor.u32 %v1691, %v1694
      %v1696 = vsel %vm1652, %v1686, %v1695
      %v1698 = vshrl.u32 %v1651, 16
      %v1700 = vrot.slane %v1698, 2
      %v1701 = vshll.u32 %v1651, 16
      %v1703 = vrot.slane %v1701, 3
      %v1704 = vor.u32 %v1700, %v1703
      %v1705 = vsel %vm1652, %v1695, %v1704
      %v1727 = vunpack.c.l.b16 %v1608
      %v1728 = vunpack.c.l.b16 %v1609
      %v1729 = vunpack.c.l.b16 %v1610
      %v1730 = vunpack.c.l.b16 %v1611
      %v1731 = vunpack.c.l.b16 %v1612
      %v1732 = vunpack.c.l.b16 %v1613
      %v1733 = vunpack.c.l.b16 %v1614
      %v1734 = vunpack.c.l.b16 %v1615
      %v1735 = vunpack.c.l.b16 %v1616
      %v1736 = vunpack.c.l.b16 %v1617
      %v1737 = vunpack.c.l.b16 %v1618
      %v1738 = vunpack.c.l.b16 %v1619
      %v1739 = vunpack.c.l.b16 %v1620
      %v1740 = vunpack.c.l.b16 %v1621
      %v1741 = vunpack.c.l.b16 %v1622
      %v1742 = vunpack.c.l.b16 %v1623
      %v1743 = vpack.c.b16 %v1728, %v1727
      %v1744 = vpack.c.b16 %v1730, %v1729
      %v1745 = vpack.c.b16 %v1732, %v1731
      %v1746 = vpack.c.b16 %v1734, %v1733
      %v1747 = vpack.c.b16 %v1736, %v1735
      %v1748 = vpack.c.b16 %v1738, %v1737
      %v1749 = vpack.c.b16 %v1740, %v1739
      %v1750 = vpack.c.b16 %v1742, %v1741
      %1759 = vmatpush.bf16.msra.mxu0 %v1750
      %1760 = vmatpush.bf16.msra.mxu0 %v1749
      %1761 = vmatpush.bf16.msra.mxu0 %v1748
      %1762 = vmatpush.bf16.msra.mxu0 %v1747
      %1763 = vmatpush.bf16.msra.mxu0 %v1746
      %1764 = vmatpush.bf16.msra.mxu0 %v1745
      %1765 = vmatpush.bf16.msra.mxu0 %v1744
      %1766 = vmatpush.bf16.msra.mxu0 %v1743
      %1767 = vmatmul.bf16.gmra.mxu0 %v1669
      %v1768 = vpop.f32.mrf.mxu0
      %v1769 = vadd.f32 0.0, %v1768
      %v1770 = vpop.f32.mrf.mxu0
      %v1771 = vadd.f32 0.0, %v1770
      %1772 = vmatmul.bf16.gmra.mxu0 %v1678
      %v1773 = vpop.f32.mrf.mxu0
      %v1774 = vadd.f32 0.0, %v1773
      %v1775 = vpop.f32.mrf.mxu0
      %v1776 = vadd.f32 0.0, %v1775
      %1777 = vmatmul.bf16.gmra.mxu0 %v1687
      %v1778 = vpop.f32.mrf.mxu0
      %v1779 = vadd.f32 0.0, %v1778
      %v1780 = vpop.f32.mrf.mxu0
      %v1781 = vadd.f32 0.0, %v1780
      %1782 = vmatmul.bf16.gmra.mxu0 %v1696
      %v1783 = vpop.f32.mrf.mxu0
      %v1784 = vadd.f32 0.0, %v1783
      %v1785 = vpop.f32.mrf.mxu0
      %v1786 = vadd.f32 0.0, %v1785
      %1787 = vmatmul.bf16.gmra.mxu0 %v1705
      %v1788 = vpop.f32.mrf.mxu0
      %v1789 = vadd.f32 0.0, %v1788
      %v1790 = vpop.f32.mrf.mxu0
      %v1791 = vadd.f32 0.0, %v1790
      %1792 = vdwg.mxu0
      %v1793 = vadd.f32 %v1597, %v1769
      %v1794 = vadd.f32 %v1598, %v1771
      %v1795 = vadd.f32 %v1599, %v1774
      %v1796 = vadd.f32 %v1600, %v1776
      %v1797 = vadd.f32 %v1601, %v1779
      %v1798 = vadd.f32 %v1602, %v1781
      %v1799 = vadd.f32 %v1603, %v1784
      %v1800 = vadd.f32 %v1604, %v1786
      %v1801 = vadd.f32 %v1605, %v1789
      %v1802 = vadd.f32 %v1606, %v1791
      %1803 = vst [vmem:[#allocation2] sm:$0xff] %v1793
      %1804 = vst [vmem:[#allocation2 + $0x8] sm:$0xff] %v1794
      %1805 = vst [vmem:[#allocation2 + $0x10] sm:$0xff] %v1795
      %1806 = vst [vmem:[#allocation2 + $0x18] sm:$0xff] %v1796
      %1807 = vst [vmem:[#allocation2 + $0x20] sm:$0xff] %v1797
      %1808 = vst [vmem:[#allocation2 + $0x28] sm:$0xff] %v1798
      %1809 = vst [vmem:[#allocation2 + $0x30] sm:$0xff] %v1799
      %1810 = vst [vmem:[#allocation2 + $0x38] sm:$0xff] %v1800
      %1811 = vst [vmem:[#allocation2 + $0x40] sm:$0xff] %v1801
      %1812 = vst [vmem:[#allocation2 + $0x48] sm:$0xff] %v1802
      %v1813 = vld [vmem:[%s208 + $0x8] sm:$0x8]
      %v1814 = vld [vmem:[%s208 + $0xc] sm:$0xf]
      %v1815 = vld [vmem:[%s208 + $0x10] sm:$0xf]
      %v1816 = vld [vmem:[%s208 + $0x14] sm:$0xf]
      %v1817 = vld [vmem:[%s208 + $0x18] sm:$0xf]
      %v1818 = vld [vmem:[%s208 + $0x1c] sm:$0xf]
      %v1819 = vld [vmem:[%s208 + $0x20] sm:$0xf]
      %v1820 = vld [vmem:[%s208 + $0x24] sm:$0xf]
      %v1821 = vld [vmem:[%s208 + $0x28] sm:$0xf]
      %v1822 = vld [vmem:[%s208 + $0x2c] sm:$0xf]
      %v1823 = vld [vmem:[%s208 + $0x30] sm:$0x7]
      %v1824 = vld [vmem:[#allocation2] sm:$0xff]
      %v1825 = vld [vmem:[#allocation2 + $0x8] sm:$0xff]
      %v1826 = vld [vmem:[#allocation2 + $0x10] sm:$0xff]
      %v1827 = vld [vmem:[#allocation2 + $0x18] sm:$0xff]
      %v1828 = vld [vmem:[#allocation2 + $0x20] sm:$0xff]
      %v1829 = vld [vmem:[#allocation2 + $0x28] sm:$0xff]
      %v1830 = vld [vmem:[#allocation2 + $0x30] sm:$0xff]
      %v1831 = vld [vmem:[#allocation2 + $0x38] sm:$0xff]
      %v1832 = vld [vmem:[#allocation2 + $0x40] sm:$0xff]
      %v1833 = vld [vmem:[#allocation2 + $0x48] sm:$0xff]
      %s1834 = scalar_lea.vmem %s212, 512
      %v1835 = vld [vmem:[%s1834] sm:$0xf]
      %v1836 = vld [vmem:[%s1834 + $0x4] sm:$0xf]
      %v1837 = vld [vmem:[%s1834 + $0x8] sm:$0xf]
      %v1838 = vld [vmem:[%s1834 + $0xc] sm:$0xf]
      %v1839 = vld [vmem:[%s1834 + $0x10] sm:$0xf]
      %v1840 = vld [vmem:[%s1834 + $0x14] sm:$0xf]
      %v1841 = vld [vmem:[%s1834 + $0x18] sm:$0xf]
      %v1842 = vld [vmem:[%s1834 + $0x1c] sm:$0xf]
      %v1843 = vld [vmem:[%s1834 + $0x20] sm:$0xf]
      %v1844 = vld [vmem:[%s1834 + $0x24] sm:$0xf]
      %v1845 = vld [vmem:[%s1834 + $0x28] sm:$0xf]
      %v1846 = vld [vmem:[%s1834 + $0x2c] sm:$0xf]
      %v1847 = vld [vmem:[%s1834 + $0x30] sm:$0xf]
      %v1848 = vld [vmem:[%s1834 + $0x34] sm:$0xf]
      %v1849 = vld [vmem:[%s1834 + $0x38] sm:$0xf]
      %v1850 = vld [vmem:[%s1834 + $0x3c] sm:$0xf]
      %v1862 = vunpack.c.l.b16 %v1813
      %v1863 = vunpack.c.l.b16 %v1814
      %v1864 = vunpack.c.l.b16 %v1815
      %v1865 = vunpack.c.l.b16 %v1816
      %v1866 = vunpack.c.l.b16 %v1817
      %v1867 = vunpack.c.l.b16 %v1818
      %v1868 = vunpack.c.l.b16 %v1819
      %v1869 = vunpack.c.l.b16 %v1820
      %v1870 = vunpack.c.l.b16 %v1821
      %v1871 = vunpack.c.l.b16 %v1822
      %v1872 = vunpack.c.l.b16 %v1823
      %v1873 = vpack.c.b16 %v1863, %v1862
      %v1874 = vpack.c.b16 %v1865, %v1864
      %v1875 = vpack.c.b16 %v1867, %v1866
      %v1876 = vpack.c.b16 %v1869, %v1868
      %v1877 = vpack.c.b16 %v1871, %v1870
      %v1878 = vpack.c.b16 %v1872, %v1872
      %vm1879 = vcmask 1044480
      %v1880 = vrot.slane %v1873, 3
      %v1881 = vrot.slane %v1874, 3
      %v1882 = vsel %vm1879, %v1880, %v1881
      %v1883 = vrot.slane %v1875, 3
      %v1884 = vsel %vm1879, %v1881, %v1883
      %v1885 = vrot.slane %v1876, 3
      %v1886 = vsel %vm1879, %v1883, %v1885
      %v1887 = vrot.slane %v1877, 3
      %v1888 = vsel %vm1879, %v1885, %v1887
      %v1889 = vrot.slane %v1878, 3
      %v1890 = vsel %vm1879, %v1887, %v1889
      %v1912 = vunpack.c.l.b16 %v1835
      %v1913 = vunpack.c.l.b16 %v1836
      %v1914 = vunpack.c.l.b16 %v1837
      %v1915 = vunpack.c.l.b16 %v1838
      %v1916 = vunpack.c.l.b16 %v1839
      %v1917 = vunpack.c.l.b16 %v1840
      %v1918 = vunpack.c.l.b16 %v1841
      %v1919 = vunpack.c.l.b16 %v1842
      %v1920 = vunpack.c.l.b16 %v1843
      %v1921 = vunpack.c.l.b16 %v1844
      %v1922 = vunpack.c.l.b16 %v1845
      %v1923 = vunpack.c.l.b16 %v1846
      %v1924 = vunpack.c.l.b16 %v1847
      %v1925 = vunpack.c.l.b16 %v1848
      %v1926 = vunpack.c.l.b16 %v1849
      %v1927 = vunpack.c.l.b16 %v1850
      %v1928 = vpack.c.b16 %v1913, %v1912
      %v1929 = vpack.c.b16 %v1915, %v1914
      %v1930 = vpack.c.b16 %v1917, %v1916
      %v1931 = vpack.c.b16 %v1919, %v1918
      %v1932 = vpack.c.b16 %v1921, %v1920
      %v1933 = vpack.c.b16 %v1923, %v1922
      %v1934 = vpack.c.b16 %v1925, %v1924
      %v1935 = vpack.c.b16 %v1927, %v1926
      %1944 = vmatpush.bf16.msra.mxu0 %v1935
      %1945 = vmatpush.bf16.msra.mxu0 %v1934
      %1946 = vmatpush.bf16.msra.mxu0 %v1933
      %1947 = vmatpush.bf16.msra.mxu0 %v1932
      %1948 = vmatpush.bf16.msra.mxu0 %v1931
      %1949 = vmatpush.bf16.msra.mxu0 %v1930
      %1950 = vmatpush.bf16.msra.mxu0 %v1929
      %1951 = vmatpush.bf16.msra.mxu0 %v1928
      %1952 = vmatmul.bf16.gmra.mxu0 %v1882
      %v1953 = vpop.f32.mrf.mxu0
      %v1954 = vadd.f32 0.0, %v1953
      %v1955 = vpop.f32.mrf.mxu0
      %v1956 = vadd.f32 0.0, %v1955
      %1957 = vmatmul.bf16.gmra.mxu0 %v1884
      %v1958 = vpop.f32.mrf.mxu0
      %v1959 = vadd.f32 0.0, %v1958
      %v1960 = vpop.f32.mrf.mxu0
      %v1961 = vadd.f32 0.0, %v1960
      %1962 = vmatmul.bf16.gmra.mxu0 %v1886
      %v1963 = vpop.f32.mrf.mxu0
      %v1964 = vadd.f32 0.0, %v1963
      %v1965 = vpop.f32.mrf.mxu0
      %v1966 = vadd.f32 0.0, %v1965
      %1967 = vmatmul.bf16.gmra.mxu0 %v1888
      %v1968 = vpop.f32.mrf.mxu0
      %v1969 = vadd.f32 0.0, %v1968
      %v1970 = vpop.f32.mrf.mxu0
      %v1971 = vadd.f32 0.0, %v1970
      %1972 = vmatmul.bf16.gmra.mxu0 %v1890
      %v1973 = vpop.f32.mrf.mxu0
      %v1974 = vadd.f32 0.0, %v1973
      %v1975 = vpop.f32.mrf.mxu0
      %v1976 = vadd.f32 0.0, %v1975
      %1977 = vdwg.mxu0
      %v1978 = vadd.f32 %v1824, %v1954
      %v1979 = vadd.f32 %v1825, %v1956
      %v1980 = vadd.f32 %v1826, %v1959
      %v1981 = vadd.f32 %v1827, %v1961
      %v1982 = vadd.f32 %v1828, %v1964
      %v1983 = vadd.f32 %v1829, %v1966
      %v1984 = vadd.f32 %v1830, %v1969
      %v1985 = vadd.f32 %v1831, %v1971
      %v1986 = vadd.f32 %v1832, %v1974
      %v1987 = vadd.f32 %v1833, %v1976
      %1988 = vst [vmem:[#allocation2] sm:$0xff] %v1978
      %1989 = vst [vmem:[#allocation2 + $0x8] sm:$0xff] %v1979
      %1990 = vst [vmem:[#allocation2 + $0x10] sm:$0xff] %v1980
      %1991 = vst [vmem:[#allocation2 + $0x18] sm:$0xff] %v1981
      %1992 = vst [vmem:[#allocation2 + $0x20] sm:$0xff] %v1982
      %1993 = vst [vmem:[#allocation2 + $0x28] sm:$0xff] %v1983
      %1994 = vst [vmem:[#allocation2 + $0x30] sm:$0xff] %v1984
      %1995 = vst [vmem:[#allocation2 + $0x38] sm:$0xff] %v1985
      %1996 = vst [vmem:[#allocation2 + $0x40] sm:$0xff] %v1986
      %1997 = vst [vmem:[#allocation2 + $0x48] sm:$0xff] %v1987
      %v1998 = vld [vmem:[#allocation2] sm:$0xff]
      %v1999 = vld [vmem:[#allocation2 + $0x8] sm:$0xff]
      %v2000 = vld [vmem:[#allocation2 + $0x10] sm:$0xff]
      %v2001 = vld [vmem:[#allocation2 + $0x18] sm:$0xff]
      %v2002 = vld [vmem:[#allocation2 + $0x20] sm:$0xff]
      %v2003 = vld [vmem:[#allocation2 + $0x28] sm:$0xff]
      %v2004 = vld [vmem:[#allocation2 + $0x30] sm:$0xff]
      %v2005 = vld [vmem:[#allocation2 + $0x38] sm:$0xff]
      %v2006 = vld [vmem:[#allocation2 + $0x40] sm:$0xff]
      %v2007 = vld [vmem:[#allocation2 + $0x48] sm:$0xff]
      %v2008 = vld [vmem:[%s216] sm:$0x1]
      %v2009 = vperm.slane %v2008, 0
      %v2010 = vmul.f32 %v1998, %v2009
      %v2011 = vmul.f32 %v1999, %v2009
      %v2012 = vmul.f32 %v2000, %v2009
      %v2013 = vmul.f32 %v2001, %v2009
      %v2014 = vmul.f32 %v2002, %v2009
      %v2015 = vmul.f32 %v2003, %v2009
      %v2016 = vmul.f32 %v2004, %v2009
      %v2017 = vmul.f32 %v2005, %v2009
      %v2018 = vmul.f32 %v2006, %v2009
      %v2019 = vmul.f32 %v2007, %v2009
      %v2020 = vld [vmem:[%s216 + $0x1] sm:$0x1]
      %v2021 = vperm.slane %v2020, 0
      %v2022 = vadd.f32 %v2010, %v2021
      %v2023 = vadd.f32 %v2011, %v2021
      %v2024 = vadd.f32 %v2012, %v2021
      %v2025 = vadd.f32 %v2013, %v2021
      %v2026 = vadd.f32 %v2014, %v2021
      %v2027 = vadd.f32 %v2015, %v2021
      %v2028 = vadd.f32 %v2016, %v2021
      %v2029 = vadd.f32 %v2017, %v2021
      %v2030 = vadd.f32 %v2018, %v2021
      %v2031 = vadd.f32 %v2019, %v2021
      %vm2032 = vcmp.ge.f32.partialorder %v2022, 0.0
      %vm2033 = vcmp.ge.f32.partialorder %v2023, 0.0
      %vm2034 = vcmp.ge.f32.partialorder %v2024, 0.0
      %vm2035 = vcmp.ge.f32.partialorder %v2025, 0.0
      %vm2036 = vcmp.ge.f32.partialorder %v2026, 0.0
      %vm2037 = vcmp.ge.f32.partialorder %v2027, 0.0
      %vm2038 = vcmp.ge.f32.partialorder %v2028, 0.0
      %vm2039 = vcmp.ge.f32.partialorder %v2029, 0.0
      %vm2040 = vcmp.ge.f32.partialorder %v2030, 0.0
      %vm2041 = vcmp.ge.f32.partialorder %v2031, 0.0
      %v2042 = vmul.f32 %v2022, 0.1
      %v2043 = vmul.f32 %v2023, 0.1
      %v2044 = vmul.f32 %v2024, 0.1
      %v2045 = vmul.f32 %v2025, 0.1
      %v2046 = vmul.f32 %v2026, 0.1
      %v2047 = vmul.f32 %v2027, 0.1
      %v2048 = vmul.f32 %v2028, 0.1
      %v2049 = vmul.f32 %v2029, 0.1
      %v2050 = vmul.f32 %v2030, 0.1
      %v2051 = vmul.f32 %v2031, 0.1
      %v2052 = vsel %vm2032, %v2022, %v2042
      %v2053 = vsel %vm2033, %v2023, %v2043
      %v2054 = vsel %vm2034, %v2024, %v2044
      %v2055 = vsel %vm2035, %v2025, %v2045
      %v2056 = vsel %vm2036, %v2026, %v2046
      %v2057 = vsel %vm2037, %v2027, %v2047
      %v2058 = vsel %vm2038, %v2028, %v2048
      %v2059 = vsel %vm2039, %v2029, %v2049
      %v2060 = vsel %vm2040, %v2030, %v2050
      %v2061 = vsel %vm2041, %v2031, %v2051
      %v2062 = vpack.c.bf16 %v2052, %v2052
      %v2063 = vpack.c.bf16 %v2053, %v2053
      %v2064 = vpack.c.bf16 %v2054, %v2054
      %v2065 = vpack.c.bf16 %v2055, %v2055
      %v2066 = vpack.c.bf16 %v2056, %v2056
      %v2067 = vpack.c.bf16 %v2057, %v2057
      %v2068 = vpack.c.bf16 %v2058, %v2058
      %v2069 = vpack.c.bf16 %v2059, %v2059
      %v2070 = vpack.c.bf16 %v2060, %v2060
      %v2071 = vpack.c.bf16 %v2061, %v2061
      %2072 = vst [vmem:[%s224] sm:$0xf] %v2062
      %2073 = vst [vmem:[%s224 + $0x4] sm:$0xf] %v2063
      %2074 = vst [vmem:[%s224 + $0x8] sm:$0xf] %v2064
      %2075 = vst [vmem:[%s224 + $0xc] sm:$0xf] %v2065
      %2076 = vst [vmem:[%s224 + $0x10] sm:$0xf] %v2066
      %2077 = vst [vmem:[%s224 + $0x14] sm:$0xf] %v2067
      %2078 = vst [vmem:[%s224 + $0x18] sm:$0xf] %v2068
      %2079 = vst [vmem:[%s224 + $0x1c] sm:$0xf] %v2069
      %2080 = vst [vmem:[%s224 + $0x20] sm:$0xf] %v2070
      %2081 = vst [vmem:[%s224 + $0x24] sm:$0xf] %v2071
      %p2082 = scmp.lt.s32.totalorder %s18, 1
      %s2083 = scalar_select %p2082, %s18, 1
      %p2084 = scmp.lt.s32.totalorder %s19, 0
      %s2085 = scalar_select %p2084, %s19, 0
      %s2086 = smul.addr %s2083, 10
      %s2087 = sadd.s32 %s2085, %s2086
      %s2088 = smul.addr %s2087, 4
      %s2089 = scalar_lea.vmem %s3, %s2088
      // Predicated region
      $region33: #{a_call__.12} parent=31 // pred_check
        %p2090 = pneg %p124
      $region34: #{a_call__.12} parent=31 // pred_check_branch
        %2092 = sbr.rel (%p2090) target = $region36
      $region35: #{a_call__.12} parent=31 // pred_region
        _
      $region36: #{a_call__.12} parent=31 // pred_fallthru
        _
    $region32: #{a_call__.12} parent=5 // pred_fallthru
      _
    %p2093 = scmp.le.s32.totalorder 2, %s9
    // Predicated region
    $region37: #{a_call__.12} parent=5 // pred_check
      %p2094 = pneg %p2093
    $region38: #{a_call__.12} parent=5 // pred_check_branch
      %2096 = sbr.rel (%p2094) target = $region40
    $region39: #{a_call__.12} parent=5 // pred_region
      %s2097 = ssub.s32 %s9, 2
      // Predicated region
      $region41: #{a_call__.12} parent=39 // pred_check
        %p2098 = pneg %p130
      $region42: #{a_call__.12} parent=39 // pred_check_branch
        %2100 = sbr.rel (%p2098) target = $region44
      $region43: #{a_call__.12} parent=39 // pred_region
        %p2101 = scmp.lt.s32.totalorder %s20, 1
        %s2102 = scalar_select %p2101, %s20, 1
        %p2103 = scmp.lt.s32.totalorder %s21, 0
        %s2104 = scalar_select %p2103, %s21, 0
        %s2105 = smul.addr %s2102, 10
        %s2106 = sadd.s32 %s2104, %s2105
        %s2107 = smul.addr %s2106, 4
        %s2108 = scalar_lea.vmem %s3, %s2107
      $region44: #{a_call__.12} parent=39 // pred_fallthru
        _
    $region40: #{a_call__.12} parent=5 // pred_fallthru
      _
  $region6: #{a_call__.12} parent=0 // loop_footer
    %s13 = sadd.s32 1, %s9
  $region7: #{a_call__.12} parent=0 // loop_footer_branch
    %8 = sbr.rel target = $region3
  $region8: #{a_call__.12} parent=0 // loop_exit
    _

</llo_original>
